<compile_context>
chip_gen: v6e
topology: v6e:2x2x1
jax: 0.10.0
libtpu: 0.0.40
codegen_flags: <defaults>
</compile_context>

<pallas_src>
import jax
import jax.numpy as jnp
from jax.experimental import pallas as pl
from jax.experimental.pallas import tpu as pltpu


# ---------------------------------------------------------------------------
# Fused kernel:
#   AdaptiveConcatPool2d((1,1)) + Flatten
#   -> [BN1 folded] Linear(4096,512) + ReLU
#   -> [BN2 folded] Linear(512,classes) + LogSoftmax(dim=1)
#
#   x_ref   : (tn, H*W, C)   f32  (channels lane-dense)
#   w1a_ref : (C, hidden)    bf16 (rows of folded w1 hit by the avg-pool half)
#   w1b_ref : (C, hidden)    bf16 (rows of folded w1 hit by the max-pool half)
#   b1_ref  : (1, hidden)    f32  (folded bias)
#   w2_ref  : (hidden, cls)  f32  (folded)
#   b2_ref  : (1, cls)       f32  (folded)
#   o_ref   : (tn, cls)      f32  log-probabilities
# ---------------------------------------------------------------------------
def fused_kernel(x_ref, w1a_ref, w1b_ref, b1_ref, w2_ref, b2_ref, o_ref):
    x = x_ref[...]                                   # (tn, HW, C) f32
    inv_hw = 1.0 / x.shape[1]
    avg = jnp.sum(x, axis=1) * inv_hw                # (tn, C)  sublane reduce
    mx = jnp.max(x, axis=1)                          # (tn, C)

    # torch.cat((avg, max), dim=1) @ w1'  ==  avg @ w1a' + mx @ w1b'
    # BN1 is folded into w1'/b1'; Dropout is eval-mode identity.
    h = (jnp.dot(avg.astype(jnp.bfloat16), w1a_ref[...],
                 preferred_element_type=jnp.float32)
         + jnp.dot(mx.astype(jnp.bfloat16), w1b_ref[...],
                   preferred_element_type=jnp.float32)
         + b1_ref[...])
    h = jnp.maximum(h, 0.0)                          # ReLU

    # BN2 folded into w2'/b2'; Dropout identity.
    logits = jnp.dot(h, w2_ref[...],
                     preferred_element_type=jnp.float32) + b2_ref[...]

    # LogSoftmax(dim=1), numerically stable.
    m = jnp.max(logits, axis=1, keepdims=True)
    z = logits - m
    lse = jnp.log(jnp.sum(jnp.exp(z), axis=1, keepdims=True))
    o_ref[...] = z - lse


# ---------------------------------------------------------------------------
# Offline parameter folding (eval-mode BN -> adjacent Linear)
# ---------------------------------------------------------------------------
def fold_params(p, eps=1e-5):
    s1 = p["g1"] * jax.lax.rsqrt(p["v1"] + eps)          # (1, 4096)
    t1 = p["be1"] - p["m1"] * s1                         # (1, 4096)
    w1 = p["w1"] * s1.reshape(-1, 1)                     # (4096, 512)
    b1 = p["b1"] + t1 @ p["w1"]                          # (1, 512)

    s2 = p["g2"] * jax.lax.rsqrt(p["v2"] + eps)          # (1, 512)
    t2 = p["be2"] - p["m2"] * s2                         # (1, 512)
    w2 = p["w2"] * s2.reshape(-1, 1)                     # (512, classes)
    b2 = p["b2"] + t2 @ p["w2"]                          # (1, classes)

    c = w1.shape[0] // 2
    return {
        "w1a": w1[:c].astype(jnp.bfloat16),              # avg-pool half
        "w1b": w1[c:].astype(jnp.bfloat16),              # max-pool half
        "b1":  b1.astype(jnp.float32),
        "w2":  w2.astype(jnp.float32),
        "b2":  b2.astype(jnp.float32),
    }


def _pick_tile_n(n):
    """Largest batch tile <=128 that divides n and is a multiple of 8."""
    if n <= 8:
        return n
    for t in (128, 64, 32, 16, 8):
        if n % t == 0:
            return t
    return n


# ---------------------------------------------------------------------------
# Wrapper
# ---------------------------------------------------------------------------
def resnet_finetuned_forward(x_nchw, folded):
    N, C, H, W = x_nchw.shape
    HW = H * W
    # Lane-dense layout: channels (2048) on the last (lane) dim.
    # TODO(synk): ideally the external backbone would emit NHWC so this
    # transpose pass disappears entirely.
    x = jnp.transpose(x_nchw.reshape(N, C, HW), (0, 2, 1)).astype(jnp.float32)

    hidden = folded["w1a"].shape[1]
    classes = folded["w2"].shape[1]
    tn = _pick_tile_n(N)
    grid = (N // tn,)
    const = lambda i: (0, 0)

    return pl.pallas_call(
        fused_kernel,
        out_shape=jax.ShapeDtypeStruct((N, classes), jnp.float32),
        grid=grid,
        in_specs=[
            pl.BlockSpec((tn, HW, C), lambda i: (i, 0, 0)),
            pl.BlockSpec((C, hidden), const),
            pl.BlockSpec((C, hidden), const),
            pl.BlockSpec((1, hidden), const),
            pl.BlockSpec((hidden, classes), const),
            pl.BlockSpec((1, classes), const),
        ],
        out_specs=pl.BlockSpec((tn, classes), lambda i: (i, 0)),
        compiler_params=pltpu.CompilerParams(
            dimension_semantics=("parallel",),
            vmem_limit_bytes=32 << 20,
        ),
    )(x, folded["w1a"], folded["w1b"], folded["b1"], folded["w2"], folded["b2"])


# ---------------------------------------------------------------------------
# Pure-JAX f32 reference (original un-folded semantics) for sanity check
# ---------------------------------------------------------------------------
def reference_forward(x_nchw, p):
    N, C, H, W = x_nchw.shape
    xf = x_nchw.reshape(N, C, H * W)
    feat = jnp.concatenate([xf.mean(-1), xf.max(-1)], axis=1)
    eps = 1e-5
    h = (feat - p["m1"]) / jnp.sqrt(p["v1"] + eps) * p["g1"] + p["be1"]
    h = jnp.maximum(h @ p["w1"] + p["b1"], 0.0)
    h = (h - p["m2"]) / jnp.sqrt(p["v2"] + eps) * p["g2"] + p["be2"]
    logits = h @ p["w2"] + p["b2"]
    return jax.nn.log_softmax(logits, axis=1)


# ---------------------------------------------------------------------------
# Deterministic parameter init (shapes from create_classifier: 4096->512->2)
# ---------------------------------------------------------------------------
def init_params(key, in_dim=4096, hidden=512, classes=2):
    ks = jax.random.split(key, 8)
    return {
        # BatchNorm1d(4096): weight, bias, running_mean, running_var
        "g1":  1.0 + 0.1 * jax.random.normal(ks[0], (1, in_dim), jnp.float32),
        "be1": 0.1 * jax.random.normal(ks[1], (1, in_dim), jnp.float32),
        "m1":  0.1 * jax.random.normal(ks[2], (1, in_dim), jnp.float32),
        "v1":  jax.random.uniform(ks[3], (1, in_dim), jnp.float32, 0.5, 1.5),
        # Linear(4096, 512)
        "w1":  (jax.random.normal(ks[4], (in_dim, hidden), jnp.float32)
                / jnp.sqrt(in_dim)),
        "b1":  jnp.zeros((1, hidden), jnp.float32),
        # BatchNorm1d(512)
        "g2":  jnp.ones((1, hidden), jnp.float32),
        "be2": jnp.zeros((1, hidden), jnp.float32),
        "m2":  0.1 * jax.random.normal(ks[5], (1, hidden), jnp.float32),
        "v2":  jax.random.uniform(ks[6], (1, hidden), jnp.float32, 0.5, 1.5),
        # Linear(512, classes)
        "w2":  (jax.random.normal(ks[7], (hidden, classes), jnp.float32)
                / jnp.sqrt(hidden)),
        "b2":  jnp.zeros((1, classes), jnp.float32),
    }


if __name__ == "__main__":
    key = jax.random.PRNGKey(0)
    kx, kp = jax.random.split(key)

    # Backbone feature map: (N, 2048, 4, 4) -> concat-pool gives 4096 features,
    # matching the hard-coded classifier in_dim.
    N, C, H, W = 2, 2048, 4, 4
    x = jax.random.normal(kx, (N, C, H, W), jnp.float32)
    params = init_params(kp)
    folded = fold_params(params)

    out = resnet_finetuned_forward(x, folded)
    out = jax.block_until_ready(out)

    ref = reference_forward(x, params)
    assert out.shape == (N, 2), out.shape
    # Loose tolerance: kernel uses bf16 storage for the 4096x512 weight.
    assert jnp.allclose(out, ref, atol=5e-2, rtol=5e-2), (out, ref)

    print("KERNEL_OK")
</pallas_src>

<mosaic_0001>
module attributes {stable_mosaic.version = 11 : i64} {
  func.func @fused_kernel(%arg0: i32, %arg1: memref<2x16x2048xf32, #tpu.memory_space<vmem>>, %arg2: memref<2048x512xbf16, #tpu.memory_space<vmem>>, %arg3: memref<2048x512xbf16, #tpu.memory_space<vmem>>, %arg4: memref<1x512xf32, #tpu.memory_space<vmem>>, %arg5: memref<512x2xf32, #tpu.memory_space<vmem>>, %arg6: memref<1x2xf32, #tpu.memory_space<vmem>>, %arg7: memref<2x2xf32, #tpu.memory_space<vmem>>) attributes {dimension_semantics = [#tpu.dimension_semantics<parallel>], iteration_bounds = array<i64: 1>, scalar_prefetch = 0 : i64, scratch_operands = 0 : i64, tpu.core_type = #tpu.core_type<tc>, window_params = [{transform_indices = @transform_0, window_bounds = array<i64: 2, 16, 2048>}, {pipeline_mode = #tpu.pipeline_mode<synchronous>, transform_indices = @transform_1, window_bounds = array<i64: 2048, 512>}, {pipeline_mode = #tpu.pipeline_mode<synchronous>, transform_indices = @transform_2, window_bounds = array<i64: 2048, 512>}, {pipeline_mode = #tpu.pipeline_mode<synchronous>, transform_indices = @transform_3, window_bounds = array<i64: 1, 512>}, {pipeline_mode = #tpu.pipeline_mode<synchronous>, transform_indices = @transform_4, window_bounds = array<i64: 512, 2>}, {pipeline_mode = #tpu.pipeline_mode<synchronous>, transform_indices = @transform_5, window_bounds = array<i64: 1, 2>}, {transform_indices = @transform_6, window_bounds = array<i64: 2, 2>}]} {
    %c0 = arith.constant 0 : index
    %c0_0 = arith.constant 0 : index
    %c0_1 = arith.constant 0 : index
    %0 = vector.load %arg1[%c0, %c0_0, %c0_1] : memref<2x16x2048xf32, #tpu.memory_space<vmem>>, vector<2x16x2048xf32>
    %cst = arith.constant dense<0.000000e+00> : vector<2x2048xf32>
    %1 = vector.multi_reduction <add>, %0, %cst [1] : vector<2x16x2048xf32> to vector<2x2048xf32>
    %cst_2 = arith.constant 6.250000e-02 : f32
    %2 = vector.broadcast %cst_2 : f32 to vector<2x2048xf32>
    %3 = arith.mulf %1, %2 : vector<2x2048xf32>
    %cst_3 = arith.constant dense<0xFF800000> : vector<2x2048xf32>
    %4 = vector.multi_reduction <maximumf>, %0, %cst_3 [1] : vector<2x16x2048xf32> to vector<2x2048xf32>
    %5 = arith.truncf %3 : vector<2x2048xf32> to vector<2x2048xbf16>
    %c0_4 = arith.constant 0 : index
    %c0_5 = arith.constant 0 : index
    %6 = vector.load %arg2[%c0_4, %c0_5] : memref<2048x512xbf16, #tpu.memory_space<vmem>>, vector<2048x512xbf16>
    %cst_6 = arith.constant dense<0.000000e+00> : vector<2x512xf32>
    %7 = tpu.matmul %5, %6, %cst_6 {dimension_numbers = #tpu.dot_dimension_numbers<[1], [0], [0], [1], [0, 0, 1, 1], [], []>} : vector<2x2048xbf16>, vector<2048x512xbf16>, vector<2x512xf32> -> vector<2x512xf32>
    %8 = arith.truncf %4 : vector<2x2048xf32> to vector<2x2048xbf16>
    %c0_7 = arith.constant 0 : index
    %c0_8 = arith.constant 0 : index
    %9 = vector.load %arg3[%c0_7, %c0_8] : memref<2048x512xbf16, #tpu.memory_space<vmem>>, vector<2048x512xbf16>
    %cst_9 = arith.constant dense<0.000000e+00> : vector<2x512xf32>
    %10 = tpu.matmul %8, %9, %cst_9 {dimension_numbers = #tpu.dot_dimension_numbers<[1], [0], [0], [1], [0, 0, 1, 1], [], []>} : vector<2x2048xbf16>, vector<2048x512xbf16>, vector<2x512xf32> -> vector<2x512xf32>
    %11 = arith.addf %7, %10 : vector<2x512xf32>
    %c0_10 = arith.constant 0 : index
    %c0_11 = arith.constant 0 : index
    %12 = vector.load %arg4[%c0_10, %c0_11] : memref<1x512xf32, #tpu.memory_space<vmem>>, vector<1x512xf32>
    %13 = vector.broadcast %12 : vector<1x512xf32> to vector<2x512xf32>
    %14 = arith.addf %11, %13 : vector<2x512xf32>
    %cst_12 = arith.constant 0.000000e+00 : f32
    %15 = vector.broadcast %cst_12 : f32 to vector<2x512xf32>
    %16 = arith.maximumf %14, %15 : vector<2x512xf32>
    %c0_13 = arith.constant 0 : index
    %c0_14 = arith.constant 0 : index
    %17 = vector.load %arg5[%c0_13, %c0_14] : memref<512x2xf32, #tpu.memory_space<vmem>>, vector<512x2xf32>
    %cst_15 = arith.constant dense<0.000000e+00> : vector<2x2xf32>
    %18 = tpu.matmul %16, %17, %cst_15 {dimension_numbers = #tpu.dot_dimension_numbers<[1], [0], [0], [1], [0, 0, 1, 1], [], []>} : vector<2x512xf32>, vector<512x2xf32>, vector<2x2xf32> -> vector<2x2xf32>
    %c0_16 = arith.constant 0 : index
    %c0_17 = arith.constant 0 : index
    %19 = vector.load %arg6[%c0_16, %c0_17] : memref<1x2xf32, #tpu.memory_space<vmem>>, vector<1x2xf32>
    %20 = vector.broadcast %19 : vector<1x2xf32> to vector<2x2xf32>
    %21 = arith.addf %18, %20 : vector<2x2xf32>
    %cst_18 = arith.constant dense<0xFF800000> : vector<2xf32>
    %22 = vector.multi_reduction <maximumf>, %21, %cst_18 [1] : vector<2x2xf32> to vector<2xf32>
    %23 = vector.shape_cast %22 : vector<2xf32> to vector<2x1xf32>
    %24 = vector.broadcast %23 : vector<2x1xf32> to vector<2x2xf32>
    %25 = arith.subf %21, %24 : vector<2x2xf32>
    %26 = math.exp %25 : vector<2x2xf32>
    %cst_19 = arith.constant dense<0.000000e+00> : vector<2xf32>
    %27 = vector.multi_reduction <add>, %26, %cst_19 [1] : vector<2x2xf32> to vector<2xf32>
    %28 = vector.shape_cast %27 : vector<2xf32> to vector<2x1xf32>
    %29 = math.log %28 : vector<2x1xf32>
    %30 = vector.broadcast %29 : vector<2x1xf32> to vector<2x2xf32>
    %31 = arith.subf %25, %30 : vector<2x2xf32>
    %c0_20 = arith.constant 0 : index
    %c0_21 = arith.constant 0 : index
    %32 = vector.load %arg7[%c0_20, %c0_21] : memref<2x2xf32, #tpu.memory_space<vmem>>, vector<2x2xf32>
    tpu.vector_store %arg7[%c0_20, %c0_21], %31 {strides = array<i32>} : memref<2x2xf32, #tpu.memory_space<vmem>>, vector<2x2xf32>,
    return
  }
  func.func @transform_0(%arg0: i32) -> (i32, i32, i32) {
    %c0_i32 = arith.constant 0 : i32
    %c0_i32_0 = arith.constant 0 : i32
    %c0_i32_1 = arith.constant 0 : i32
    return %arg0, %c0_i32, %c0_i32_0 : i32, i32, i32
  }
  func.func @transform_1(%arg0: i32) -> (i32, i32) {
    %c0_i32 = arith.constant 0 : i32
    %c0_i32_0 = arith.constant 0 : i32
    %c0_i32_1 = arith.constant 0 : i32
    return %c0_i32, %c0_i32_0 : i32, i32
  }
  func.func @transform_2(%arg0: i32) -> (i32, i32) {
    %c0_i32 = arith.constant 0 : i32
    %c0_i32_0 = arith.constant 0 : i32
    %c0_i32_1 = arith.constant 0 : i32
    return %c0_i32, %c0_i32_0 : i32, i32
  }
  func.func @transform_3(%arg0: i32) -> (i32, i32) {
    %c0_i32 = arith.constant 0 : i32
    %c0_i32_0 = arith.constant 0 : i32
    %c0_i32_1 = arith.constant 0 : i32
    return %c0_i32, %c0_i32_0 : i32, i32
  }
  func.func @transform_4(%arg0: i32) -> (i32, i32) {
    %c0_i32 = arith.constant 0 : i32
    %c0_i32_0 = arith.constant 0 : i32
    %c0_i32_1 = arith.constant 0 : i32
    return %c0_i32, %c0_i32_0 : i32, i32
  }
  func.func @transform_5(%arg0: i32) -> (i32, i32) {
    %c0_i32 = arith.constant 0 : i32
    %c0_i32_0 = arith.constant 0 : i32
    %c0_i32_1 = arith.constant 0 : i32
    return %c0_i32, %c0_i32_0 : i32, i32
  }
  func.func @transform_6(%arg0: i32) -> (i32, i32) {
    %c0_i32 = arith.constant 0 : i32
    %c0_i32_0 = arith.constant 0 : i32
    return %arg0, %c0_i32 : i32, i32
  }
}

</mosaic_0001>

<llo_original>
// kernel: tpu_custom_call.1
$region0: #{tpu_custom_call.1}
  #allocation0 [shape = 'u32[]', space=smem, size = 0x4, offset = 0x4, fixed_abs, tag = 'smem constant byte address 0x4 - core index']
  #allocation1 [shape = 'u32[144,128]{1,0:T(1,128)}', space=vmem, size = 0x12000, scoped, tag = 'internal scratch']
  %s0 = inlined_call_operand.hbm [shape: f32[2,16,2048], index: 0, kind: input, shape index: {}]
  %s1 = inlined_call_operand.hbm [shape: bf16[2048,512], index: 1, kind: input, shape index: {}]
  %s2 = inlined_call_operand.hbm [shape: bf16[2048,512], index: 2, kind: input, shape index: {}]
  %s3 = inlined_call_operand.hbm [shape: f32[1,512], index: 3, kind: input, shape index: {}]
  %s4 = inlined_call_operand.vmem [shape: f32[512,2], index: 4, kind: input, shape index: {}]
  %s5 = inlined_call_operand.hbm [shape: f32[1,2], index: 5, kind: input, shape index: {}]
  %s6 = inlined_call_operand.hbm [shape: f32[2,2], index: 6, kind: output, shape index: {}]
  %s7 = sld [smem:[#allocation0]]
  $region54: #{tpu_custom_call.1} parent=0
    _
  %s9 = ssub.s32 1, %s7
  %s10 = scalar_select 0, %s9, %s7
  $region1: #{tpu_custom_call.1} parent=0
    #allocation2 [shape = 'u8[262144]{0}', space=vmem, size = 0x40000, scoped, tag = 'input window, operand 0, single buffered']
    #allocation3 [shape = 's32[1]{0}', space=sflag, size = 0x4, scoped, tag = 'scoped memory for tpu_custom_call.1']
    #allocation4 [shape = 's32[1]{0}', space=sflag, size = 0x4, scoped, tag = 'scoped memory for tpu_custom_call.1']
    #allocation5 [shape = 'u8[2097152]{0}', space=vmem, size = 0x200000, scoped, tag = 'input window, operand 1, single buffered']
    #allocation6 [shape = 's32[1]{0}', space=sflag, size = 0x4, scoped, tag = 'scoped memory for tpu_custom_call.1']
    #allocation7 [shape = 'u8[2097152]{0}', space=vmem, size = 0x200000, scoped, tag = 'input window, operand 2, single buffered']
    #allocation8 [shape = 'u8[2048]{0}', space=vmem, size = 0x800, scoped, tag = 'input window, operand 3, single buffered']
    #allocation9 [shape = 's32[1]{0}', space=sflag, size = 0x4, scoped, tag = 'scoped memory for tpu_custom_call.1']
    #allocation10 [shape = 'u8[512]{0}', space=vmem, size = 0x400, scoped, tag = 'input window, operand 5, single buffered']
    #allocation11 [shape = 'u8[1024]{0}', space=vmem, size = 0x400, scoped, tag = 'output window, operand 0, single buffered']
    %11 = vsyncpa [#allocation3], 0
    %12 = vsyncpa [#allocation6], 0
    %13 = vsyncpa [#allocation9], 0
    %14 = vsyncpa [#allocation4], 0
    // Predicated region
    $region2: #{tpu_custom_call.1} parent=1 // pred_check
      _
    $region3: #{tpu_custom_call.1} parent=1 // pred_check_branch
      %16 = sbr.rel (0) target = $region5
    $region4: #{tpu_custom_call.1} parent=1 // pred_region
      %s18 = ssub.s32 8192, 8192
      %19 = vsyncadd [#allocation3], %s18
      %s20 = sshll.u32 [#allocation2], 4
      %s21 = int_to_ptr.vmem [resolvable:$true] %s20
      %26 = dma.hbm_to_vmem [thread:$0]  %s0, 8192, %s21, [#allocation3], 2048, 2048, 128
    $region5: #{tpu_custom_call.1} parent=1 // pred_fallthru
      _
    // Predicated region
    $region6: #{tpu_custom_call.1} parent=1 // pred_check
      _
    $region7: #{tpu_custom_call.1} parent=1 // pred_check_branch
      %28 = sbr.rel (0) target = $region9
    $region8: #{tpu_custom_call.1} parent=1 // pred_region
      %s30 = ssub.s32 65536, 65536
      %31 = vsyncadd [#allocation6], %s30
      %s32 = sshll.u32 [#allocation5], 4
      %s33 = int_to_ptr.vmem [resolvable:$true] %s32
      %38 = dma.hbm_to_vmem [thread:$0]  %s1, 65536, %s33, [#allocation6], 256, 256, 16
    $region9: #{tpu_custom_call.1} parent=1 // pred_fallthru
      _
    // Predicated region
    $region10: #{tpu_custom_call.1} parent=1 // pred_check
      _
    $region11: #{tpu_custom_call.1} parent=1 // pred_check_branch
      %40 = sbr.rel (0) target = $region13
    $region12: #{tpu_custom_call.1} parent=1 // pred_region
      %s42 = ssub.s32 65536, 65536
      %43 = vsyncadd [#allocation6], %s42
      %s44 = sshll.u32 [#allocation7], 4
      %s45 = int_to_ptr.vmem [resolvable:$true] %s44
      %50 = dma.hbm_to_vmem [thread:$0]  %s2, 65536, %s45, [#allocation6], 256, 256, 16
    $region13: #{tpu_custom_call.1} parent=1 // pred_fallthru
      _
    // Predicated region
    $region14: #{tpu_custom_call.1} parent=1 // pred_check
      _
    $region15: #{tpu_custom_call.1} parent=1 // pred_check_branch
      %52 = sbr.rel (0) target = $region17
    $region16: #{tpu_custom_call.1} parent=1 // pred_region
      %s54 = ssub.s32 64, 64
      %55 = vsyncadd [#allocation9], %s54
      %s57 = sshll.u32 [#allocation8], 4
      %s58 = int_to_ptr.vmem [resolvable:$true] %s57
      %60 = dma.hbm_to_vmem [thread:$0]  %s3, 64, %s58, [#allocation9]
    $region17: #{tpu_custom_call.1} parent=1 // pred_fallthru
      _
    // Predicated region
    $region18: #{tpu_custom_call.1} parent=1 // pred_check
      _
    $region19: #{tpu_custom_call.1} parent=1 // pred_check_branch
      %62 = sbr.rel (0) target = $region21
    $region20: #{tpu_custom_call.1} parent=1 // pred_region
      _
    $region21: #{tpu_custom_call.1} parent=1 // pred_fallthru
      _
    // Predicated region
    $region22: #{tpu_custom_call.1} parent=1 // pred_check
      _
    $region23: #{tpu_custom_call.1} parent=1 // pred_check_branch
      %64 = sbr.rel (0) target = $region25
    $region24: #{tpu_custom_call.1} parent=1 // pred_region
      %s66 = ssub.s32 16, 16
      %67 = vsyncadd [#allocation9], %s66
      %s69 = sshll.u32 [#allocation10], 4
      %s70 = int_to_ptr.vmem [resolvable:$true] %s69
      %72 = dma.hbm_to_vmem [thread:$0]  %s5, 16, %s70, [#allocation9]
    $region25: #{tpu_custom_call.1} parent=1 // pred_fallthru
      _
    // Predicated region
    $region26: #{tpu_custom_call.1} parent=1 // pred_check
      _
    $region27: #{tpu_custom_call.1} parent=1 // pred_check_branch
      %74 = sbr.rel (0) target = $region29
    $region28: #{tpu_custom_call.1} parent=1 // pred_region
      %75 = dma.done [#allocation3], 8192
    $region29: #{tpu_custom_call.1} parent=1 // pred_fallthru
      _
    // Predicated region
    $region30: #{tpu_custom_call.1} parent=1 // pred_check
      _
    $region31: #{tpu_custom_call.1} parent=1 // pred_check_branch
      %77 = sbr.rel (0) target = $region33
    $region32: #{tpu_custom_call.1} parent=1 // pred_region
      %78 = dma.done [#allocation6], 65536
    $region33: #{tpu_custom_call.1} parent=1 // pred_fallthru
      _
    // Predicated region
    $region34: #{tpu_custom_call.1} parent=1 // pred_check
      _
    $region35: #{tpu_custom_call.1} parent=1 // pred_check_branch
      %80 = sbr.rel (0) target = $region37
    $region36: #{tpu_custom_call.1} parent=1 // pred_region
      %81 = dma.done [#allocation6], 65536
    $region37: #{tpu_custom_call.1} parent=1 // pred_fallthru
      _
    // Predicated region
    $region38: #{tpu_custom_call.1} parent=1 // pred_check
      _
    $region39: #{tpu_custom_call.1} parent=1 // pred_check_branch
      %83 = sbr.rel (0) target = $region41
    $region40: #{tpu_custom_call.1} parent=1 // pred_region
      %84 = dma.done [#allocation9], 64
    $region41: #{tpu_custom_call.1} parent=1 // pred_fallthru
      _
    // Predicated region
    $region42: #{tpu_custom_call.1} parent=1 // pred_check
      _
    $region43: #{tpu_custom_call.1} parent=1 // pred_check_branch
      %86 = sbr.rel (0) target = $region45
    $region44: #{tpu_custom_call.1} parent=1 // pred_region
      %87 = dma.done [#allocation9], 16
    $region45: #{tpu_custom_call.1} parent=1 // pred_fallthru
      _
    %v88 = vld [vmem:[#allocation2] sm:$0xff]
    %v89 = vld [vmem:[#allocation2 + $0x8] sm:$0xff]
    %v90 = vld [vmem:[#allocation2 + $0x10] sm:$0xff]
    %v91 = vld [vmem:[#allocation2 + $0x18] sm:$0xff]
    %v92 = vld [vmem:[#allocation2 + $0x20] sm:$0xff]
    %v93 = vld [vmem:[#allocation2 + $0x28] sm:$0xff]
    %v94 = vld [vmem:[#allocation2 + $0x30] sm:$0xff]
    %v95 = vld [vmem:[#allocation2 + $0x38] sm:$0xff]
    %v96 = vld [vmem:[#allocation2 + $0x40] sm:$0xff]
    %v97 = vld [vmem:[#allocation2 + $0x48] sm:$0xff]
    %v98 = vld [vmem:[#allocation2 + $0x50] sm:$0xff]
    %v99 = vld [vmem:[#allocation2 + $0x58] sm:$0xff]
    %v100 = vld [vmem:[#allocation2 + $0x60] sm:$0xff]
    %v101 = vld [vmem:[#allocation2 + $0x68] sm:$0xff]
    %v102 = vld [vmem:[#allocation2 + $0x70] sm:$0xff]
    %v103 = vld [vmem:[#allocation2 + $0x78] sm:$0xff]
    %v104 = vld [vmem:[#allocation2 + $0x80] sm:$0xff]
    %v105 = vld [vmem:[#allocation2 + $0x88] sm:$0xff]
    %v106 = vld [vmem:[#allocation2 + $0x90] sm:$0xff]
    %v107 = vld [vmem:[#allocation2 + $0x98] sm:$0xff]
    %v108 = vld [vmem:[#allocation2 + $0xa0] sm:$0xff]
    %v109 = vld [vmem:[#allocation2 + $0xa8] sm:$0xff]
    %v110 = vld [vmem:[#allocation2 + $0xb0] sm:$0xff]
    %v111 = vld [vmem:[#allocation2 + $0xb8] sm:$0xff]
    %v112 = vld [vmem:[#allocation2 + $0xc0] sm:$0xff]
    %v113 = vld [vmem:[#allocation2 + $0xc8] sm:$0xff]
    %v114 = vld [vmem:[#allocation2 + $0xd0] sm:$0xff]
    %v115 = vld [vmem:[#allocation2 + $0xd8] sm:$0xff]
    %v116 = vld [vmem:[#allocation2 + $0xe0] sm:$0xff]
    %v117 = vld [vmem:[#allocation2 + $0xe8] sm:$0xff]
    %v118 = vld [vmem:[#allocation2 + $0xf0] sm:$0xff]
    %v119 = vld [vmem:[#allocation2 + $0xf8] sm:$0xff]
    %v120 = vld [vmem:[#allocation2 + $0x100] sm:$0xff]
    %v121 = vld [vmem:[#allocation2 + $0x108] sm:$0xff]
    %v122 = vld [vmem:[#allocation2 + $0x110] sm:$0xff]
    %v123 = vld [vmem:[#allocation2 + $0x118] sm:$0xff]
    %v124 = vld [vmem:[#allocation2 + $0x120] sm:$0xff]
    %v125 = vld [vmem:[#allocation2 + $0x128] sm:$0xff]
    %v126 = vld [vmem:[#allocation2 + $0x130] sm:$0xff]
    %v127 = vld [vmem:[#allocation2 + $0x138] sm:$0xff]
    %v128 = vld [vmem:[#allocation2 + $0x140] sm:$0xff]
    %v129 = vld [vmem:[#allocation2 + $0x148] sm:$0xff]
    %v130 = vld [vmem:[#allocation2 + $0x150] sm:$0xff]
    %v131 = vld [vmem:[#allocation2 + $0x158] sm:$0xff]
    %v132 = vld [vmem:[#allocation2 + $0x160] sm:$0xff]
    %v133 = vld [vmem:[#allocation2 + $0x168] sm:$0xff]
    %v134 = vld [vmem:[#allocation2 + $0x170] sm:$0xff]
    %v135 = vld [vmem:[#allocation2 + $0x178] sm:$0xff]
    %v136 = vld [vmem:[#allocation2 + $0x180] sm:$0xff]
    %v137 = vld [vmem:[#allocation2 + $0x188] sm:$0xff]
    %v138 = vld [vmem:[#allocation2 + $0x190] sm:$0xff]
    %v139 = vld [vmem:[#allocation2 + $0x198] sm:$0xff]
    %v140 = vld [vmem:[#allocation2 + $0x1a0] sm:$0xff]
    %v141 = vld [vmem:[#allocation2 + $0x1a8] sm:$0xff]
    %v142 = vld [vmem:[#allocation2 + $0x1b0] sm:$0xff]
    %v143 = vld [vmem:[#allocation2 + $0x1b8] sm:$0xff]
    %v144 = vld [vmem:[#allocation2 + $0x1c0] sm:$0xff]
    %v145 = vld [vmem:[#allocation2 + $0x1c8] sm:$0xff]
    %v146 = vld [vmem:[#allocation2 + $0x1d0] sm:$0xff]
    %v147 = vld [vmem:[#allocation2 + $0x1d8] sm:$0xff]
    %v148 = vld [vmem:[#allocation2 + $0x1e0] sm:$0xff]
    %v149 = vld [vmem:[#allocation2 + $0x1e8] sm:$0xff]
    %v150 = vld [vmem:[#allocation2 + $0x1f0] sm:$0xff]
    %v151 = vld [vmem:[#allocation2 + $0x1f8] sm:$0xff]
    %v152 = vadd.f32 %v88, %v104
    %v153 = vrot.slane %v152, 4
    %v154 = vadd.f32 %v152, %v153
    %v155 = vrot.slane %v154, 2
    %v156 = vadd.f32 %v154, %v155
    %v157 = vrot.slane %v156, 1
    %v158 = vadd.f32 %v156, %v157
    %v159 = vadd.f32 %v89, %v105
    %v160 = vrot.slane %v159, 4
    %v161 = vadd.f32 %v159, %v160
    %v162 = vrot.slane %v161, 2
    %v163 = vadd.f32 %v161, %v162
    %v164 = vrot.slane %v163, 1
    %v165 = vadd.f32 %v163, %v164
    %v166 = vadd.f32 %v90, %v106
    %v167 = vrot.slane %v166, 4
    %v168 = vadd.f32 %v166, %v167
    %v169 = vrot.slane %v168, 2
    %v170 = vadd.f32 %v168, %v169
    %v171 = vrot.slane %v170, 1
    %v172 = vadd.f32 %v170, %v171
    %v173 = vadd.f32 %v91, %v107
    %v174 = vrot.slane %v173, 4
    %v175 = vadd.f32 %v173, %v174
    %v176 = vrot.slane %v175, 2
    %v177 = vadd.f32 %v175, %v176
    %v178 = vrot.slane %v177, 1
    %v179 = vadd.f32 %v177, %v178
    %v180 = vadd.f32 %v92, %v108
    %v181 = vrot.slane %v180, 4
    %v182 = vadd.f32 %v180, %v181
    %v183 = vrot.slane %v182, 2
    %v184 = vadd.f32 %v182, %v183
    %v185 = vrot.slane %v184, 1
    %v186 = vadd.f32 %v184, %v185
    %v187 = vadd.f32 %v93, %v109
    %v188 = vrot.slane %v187, 4
    %v189 = vadd.f32 %v187, %v188
    %v190 = vrot.slane %v189, 2
    %v191 = vadd.f32 %v189, %v190
    %v192 = vrot.slane %v191, 1
    %v193 = vadd.f32 %v191, %v192
    %v194 = vadd.f32 %v94, %v110
    %v195 = vrot.slane %v194, 4
    %v196 = vadd.f32 %v194, %v195
    %v197 = vrot.slane %v196, 2
    %v198 = vadd.f32 %v196, %v197
    %v199 = vrot.slane %v198, 1
    %v200 = vadd.f32 %v198, %v199
    %v201 = vadd.f32 %v95, %v111
    %v202 = vrot.slane %v201, 4
    %v203 = vadd.f32 %v201, %v202
    %v204 = vrot.slane %v203, 2
    %v205 = vadd.f32 %v203, %v204
    %v206 = vrot.slane %v205, 1
    %v207 = vadd.f32 %v205, %v206
    %v208 = vadd.f32 %v96, %v112
    %v209 = vrot.slane %v208, 4
    %v210 = vadd.f32 %v208, %v209
    %v211 = vrot.slane %v210, 2
    %v212 = vadd.f32 %v210, %v211
    %v213 = vrot.slane %v212, 1
    %v214 = vadd.f32 %v212, %v213
    %v215 = vadd.f32 %v97, %v113
    %v216 = vrot.slane %v215, 4
    %v217 = vadd.f32 %v215, %v216
    %v218 = vrot.slane %v217, 2
    %v219 = vadd.f32 %v217, %v218
    %v220 = vrot.slane %v219, 1
    %v221 = vadd.f32 %v219, %v220
    %v222 = vadd.f32 %v98, %v114
    %v223 = vrot.slane %v222, 4
    %v224 = vadd.f32 %v222, %v223
    %v225 = vrot.slane %v224, 2
    %v226 = vadd.f32 %v224, %v225
    %v227 = vrot.slane %v226, 1
    %v228 = vadd.f32 %v226, %v227
    %v229 = vadd.f32 %v99, %v115
    %v230 = vrot.slane %v229, 4
    %v231 = vadd.f32 %v229, %v230
    %v232 = vrot.slane %v231, 2
    %v233 = vadd.f32 %v231, %v232
    %v234 = vrot.slane %v233, 1
    %v235 = vadd.f32 %v233, %v234
    %v236 = vadd.f32 %v100, %v116
    %v237 = vrot.slane %v236, 4
    %v238 = vadd.f32 %v236, %v237
    %v239 = vrot.slane %v238, 2
    %v240 = vadd.f32 %v238, %v239
    %v241 = vrot.slane %v240, 1
    %v242 = vadd.f32 %v240, %v241
    %v243 = vadd.f32 %v101, %v117
    %v244 = vrot.slane %v243, 4
    %v245 = vadd.f32 %v243, %v244
    %v246 = vrot.slane %v245, 2
    %v247 = vadd.f32 %v245, %v246
    %v248 = vrot.slane %v247, 1
    %v249 = vadd.f32 %v247, %v248
    %v250 = vadd.f32 %v102, %v118
    %v251 = vrot.slane %v250, 4
    %v252 = vadd.f32 %v250, %v251
    %v253 = vrot.slane %v252, 2
    %v254 = vadd.f32 %v252, %v253
    %v255 = vrot.slane %v254, 1
    %v256 = vadd.f32 %v254, %v255
    %v257 = vadd.f32 %v103, %v119
    %v258 = vrot.slane %v257, 4
    %v259 = vadd.f32 %v257, %v258
    %v260 = vrot.slane %v259, 2
    %v261 = vadd.f32 %v259, %v260
    %v262 = vrot.slane %v261, 1
    %v263 = vadd.f32 %v261, %v262
    %v264 = vadd.f32 %v120, %v136
    %v265 = vrot.slane %v264, 4
    %v266 = vadd.f32 %v264, %v265
    %v267 = vrot.slane %v266, 2
    %v268 = vadd.f32 %v266, %v267
    %v269 = vrot.slane %v268, 1
    %v270 = vadd.f32 %v268, %v269
    %v271 = vadd.f32 %v121, %v137
    %v272 = vrot.slane %v271, 4
    %v273 = vadd.f32 %v271, %v272
    %v274 = vrot.slane %v273, 2
    %v275 = vadd.f32 %v273, %v274
    %v276 = vrot.slane %v275, 1
    %v277 = vadd.f32 %v275, %v276
    %v278 = vadd.f32 %v122, %v138
    %v279 = vrot.slane %v278, 4
    %v280 = vadd.f32 %v278, %v279
    %v281 = vrot.slane %v280, 2
    %v282 = vadd.f32 %v280, %v281
    %v283 = vrot.slane %v282, 1
    %v284 = vadd.f32 %v282, %v283
    %v285 = vadd.f32 %v123, %v139
    %v286 = vrot.slane %v285, 4
    %v287 = vadd.f32 %v285, %v286
    %v288 = vrot.slane %v287, 2
    %v289 = vadd.f32 %v287, %v288
    %v290 = vrot.slane %v289, 1
    %v291 = vadd.f32 %v289, %v290
    %v292 = vadd.f32 %v124, %v140
    %v293 = vrot.slane %v292, 4
    %v294 = vadd.f32 %v292, %v293
    %v295 = vrot.slane %v294, 2
    %v296 = vadd.f32 %v294, %v295
    %v297 = vrot.slane %v296, 1
    %v298 = vadd.f32 %v296, %v297
    %v299 = vadd.f32 %v125, %v141
    %v300 = vrot.slane %v299, 4
    %v301 = vadd.f32 %v299, %v300
    %v302 = vrot.slane %v301, 2
    %v303 = vadd.f32 %v301, %v302
    %v304 = vrot.slane %v303, 1
    %v305 = vadd.f32 %v303, %v304
    %v306 = vadd.f32 %v126, %v142
    %v307 = vrot.slane %v306, 4
    %v308 = vadd.f32 %v306, %v307
    %v309 = vrot.slane %v308, 2
    %v310 = vadd.f32 %v308, %v309
    %v311 = vrot.slane %v310, 1
    %v312 = vadd.f32 %v310, %v311
    %v313 = vadd.f32 %v127, %v143
    %v314 = vrot.slane %v313, 4
    %v315 = vadd.f32 %v313, %v314
    %v316 = vrot.slane %v315, 2
    %v317 = vadd.f32 %v315, %v316
    %v318 = vrot.slane %v317, 1
    %v319 = vadd.f32 %v317, %v318
    %v320 = vadd.f32 %v128, %v144
    %v321 = vrot.slane %v320, 4
    %v322 = vadd.f32 %v320, %v321
    %v323 = vrot.slane %v322, 2
    %v324 = vadd.f32 %v322, %v323
    %v325 = vrot.slane %v324, 1
    %v326 = vadd.f32 %v324, %v325
    %v327 = vadd.f32 %v129, %v145
    %v328 = vrot.slane %v327, 4
    %v329 = vadd.f32 %v327, %v328
    %v330 = vrot.slane %v329, 2
    %v331 = vadd.f32 %v329, %v330
    %v332 = vrot.slane %v331, 1
    %v333 = vadd.f32 %v331, %v332
    %v334 = vadd.f32 %v130, %v146
    %v335 = vrot.slane %v334, 4
    %v336 = vadd.f32 %v334, %v335
    %v337 = vrot.slane %v336, 2
    %v338 = vadd.f32 %v336, %v337
    %v339 = vrot.slane %v338, 1
    %v340 = vadd.f32 %v338, %v339
    %v341 = vadd.f32 %v131, %v147
    %v342 = vrot.slane %v341, 4
    %v343 = vadd.f32 %v341, %v342
    %v344 = vrot.slane %v343, 2
    %v345 = vadd.f32 %v343, %v344
    %v346 = vrot.slane %v345, 1
    %v347 = vadd.f32 %v345, %v346
    %v348 = vadd.f32 %v132, %v148
    %v349 = vrot.slane %v348, 4
    %v350 = vadd.f32 %v348, %v349
    %v351 = vrot.slane %v350, 2
    %v352 = vadd.f32 %v350, %v351
    %v353 = vrot.slane %v352, 1
    %v354 = vadd.f32 %v352, %v353
    %v355 = vadd.f32 %v133, %v149
    %v356 = vrot.slane %v355, 4
    %v357 = vadd.f32 %v355, %v356
    %v358 = vrot.slane %v357, 2
    %v359 = vadd.f32 %v357, %v358
    %v360 = vrot.slane %v359, 1
    %v361 = vadd.f32 %v359, %v360
    %v362 = vadd.f32 %v134, %v150
    %v363 = vrot.slane %v362, 4
    %v364 = vadd.f32 %v362, %v363
    %v365 = vrot.slane %v364, 2
    %v366 = vadd.f32 %v364, %v365
    %v367 = vrot.slane %v366, 1
    %v368 = vadd.f32 %v366, %v367
    %v369 = vadd.f32 %v135, %v151
    %v370 = vrot.slane %v369, 4
    %v371 = vadd.f32 %v369, %v370
    %v372 = vrot.slane %v371, 2
    %v373 = vadd.f32 %v371, %v372
    %v374 = vrot.slane %v373, 1
    %v375 = vadd.f32 %v373, %v374
    %v376 = vmul.f32 %v158, 0.0625
    %v377 = vmul.f32 %v165, 0.0625
    %v378 = vmul.f32 %v172, 0.0625
    %v379 = vmul.f32 %v179, 0.0625
    %v380 = vmul.f32 %v186, 0.0625
    %v381 = vmul.f32 %v193, 0.0625
    %v382 = vmul.f32 %v200, 0.0625
    %v383 = vmul.f32 %v207, 0.0625
    %v384 = vmul.f32 %v214, 0.0625
    %v385 = vmul.f32 %v221, 0.0625
    %v386 = vmul.f32 %v228, 0.0625
    %v387 = vmul.f32 %v235, 0.0625
    %v388 = vmul.f32 %v242, 0.0625
    %v389 = vmul.f32 %v249, 0.0625
    %v390 = vmul.f32 %v256, 0.0625
    %v391 = vmul.f32 %v263, 0.0625
    %v392 = vmul.f32 %v270, 0.0625
    %v393 = vmul.f32 %v277, 0.0625
    %v394 = vmul.f32 %v284, 0.0625
    %v395 = vmul.f32 %v291, 0.0625
    %v396 = vmul.f32 %v298, 0.0625
    %v397 = vmul.f32 %v305, 0.0625
    %v398 = vmul.f32 %v312, 0.0625
    %v399 = vmul.f32 %v319, 0.0625
    %v400 = vmul.f32 %v326, 0.0625
    %v401 = vmul.f32 %v333, 0.0625
    %v402 = vmul.f32 %v340, 0.0625
    %v403 = vmul.f32 %v347, 0.0625
    %v404 = vmul.f32 %v354, 0.0625
    %v405 = vmul.f32 %v361, 0.0625
    %v406 = vmul.f32 %v368, 0.0625
    %v407 = vmul.f32 %v375, 0.0625
    %v408 = vmax.f32 %v88, %v104
    %v409 = vrot.slane %v408, 4
    %v410 = vmax.f32 %v408, %v409
    %v411 = vrot.slane %v410, 2
    %v412 = vmax.f32 %v410, %v411
    %v413 = vrot.slane %v412, 1
    %v414 = vmax.f32 %v412, %v413
    %v415 = vmax.f32 %v89, %v105
    %v416 = vrot.slane %v415, 4
    %v417 = vmax.f32 %v415, %v416
    %v418 = vrot.slane %v417, 2
    %v419 = vmax.f32 %v417, %v418
    %v420 = vrot.slane %v419, 1
    %v421 = vmax.f32 %v419, %v420
    %v422 = vmax.f32 %v90, %v106
    %v423 = vrot.slane %v422, 4
    %v424 = vmax.f32 %v422, %v423
    %v425 = vrot.slane %v424, 2
    %v426 = vmax.f32 %v424, %v425
    %v427 = vrot.slane %v426, 1
    %v428 = vmax.f32 %v426, %v427
    %v429 = vmax.f32 %v91, %v107
    %v430 = vrot.slane %v429, 4
    %v431 = vmax.f32 %v429, %v430
    %v432 = vrot.slane %v431, 2
    %v433 = vmax.f32 %v431, %v432
    %v434 = vrot.slane %v433, 1
    %v435 = vmax.f32 %v433, %v434
    %v436 = vmax.f32 %v92, %v108
    %v437 = vrot.slane %v436, 4
    %v438 = vmax.f32 %v436, %v437
    %v439 = vrot.slane %v438, 2
    %v440 = vmax.f32 %v438, %v439
    %v441 = vrot.slane %v440, 1
    %v442 = vmax.f32 %v440, %v441
    %v443 = vmax.f32 %v93, %v109
    %v444 = vrot.slane %v443, 4
    %v445 = vmax.f32 %v443, %v444
    %v446 = vrot.slane %v445, 2
    %v447 = vmax.f32 %v445, %v446
    %v448 = vrot.slane %v447, 1
    %v449 = vmax.f32 %v447, %v448
    %v450 = vmax.f32 %v94, %v110
    %v451 = vrot.slane %v450, 4
    %v452 = vmax.f32 %v450, %v451
    %v453 = vrot.slane %v452, 2
    %v454 = vmax.f32 %v452, %v453
    %v455 = vrot.slane %v454, 1
    %v456 = vmax.f32 %v454, %v455
    %v457 = vmax.f32 %v95, %v111
    %v458 = vrot.slane %v457, 4
    %v459 = vmax.f32 %v457, %v458
    %v460 = vrot.slane %v459, 2
    %v461 = vmax.f32 %v459, %v460
    %v462 = vrot.slane %v461, 1
    %v463 = vmax.f32 %v461, %v462
    %v464 = vmax.f32 %v96, %v112
    %v465 = vrot.slane %v464, 4
    %v466 = vmax.f32 %v464, %v465
    %v467 = vrot.slane %v466, 2
    %v468 = vmax.f32 %v466, %v467
    %v469 = vrot.slane %v468, 1
    %v470 = vmax.f32 %v468, %v469
    %v471 = vmax.f32 %v97, %v113
    %v472 = vrot.slane %v471, 4
    %v473 = vmax.f32 %v471, %v472
    %v474 = vrot.slane %v473, 2
    %v475 = vmax.f32 %v473, %v474
    %v476 = vrot.slane %v475, 1
    %v477 = vmax.f32 %v475, %v476
    %v478 = vmax.f32 %v98, %v114
    %v479 = vrot.slane %v478, 4
    %v480 = vmax.f32 %v478, %v479
    %v481 = vrot.slane %v480, 2
    %v482 = vmax.f32 %v480, %v481
    %v483 = vrot.slane %v482, 1
    %v484 = vmax.f32 %v482, %v483
    %v485 = vmax.f32 %v99, %v115
    %v486 = vrot.slane %v485, 4
    %v487 = vmax.f32 %v485, %v486
    %v488 = vrot.slane %v487, 2
    %v489 = vmax.f32 %v487, %v488
    %v490 = vrot.slane %v489, 1
    %v491 = vmax.f32 %v489, %v490
    %v492 = vmax.f32 %v100, %v116
    %v493 = vrot.slane %v492, 4
    %v494 = vmax.f32 %v492, %v493
    %v495 = vrot.slane %v494, 2
    %v496 = vmax.f32 %v494, %v495
    %v497 = vrot.slane %v496, 1
    %v498 = vmax.f32 %v496, %v497
    %v499 = vmax.f32 %v101, %v117
    %v500 = vrot.slane %v499, 4
    %v501 = vmax.f32 %v499, %v500
    %v502 = vrot.slane %v501, 2
    %v503 = vmax.f32 %v501, %v502
    %v504 = vrot.slane %v503, 1
    %v505 = vmax.f32 %v503, %v504
    %v506 = vmax.f32 %v102, %v118
    %v507 = vrot.slane %v506, 4
    %v508 = vmax.f32 %v506, %v507
    %v509 = vrot.slane %v508, 2
    %v510 = vmax.f32 %v508, %v509
    %v511 = vrot.slane %v510, 1
    %v512 = vmax.f32 %v510, %v511
    %v513 = vmax.f32 %v103, %v119
    %v514 = vrot.slane %v513, 4
    %v515 = vmax.f32 %v513, %v514
    %v516 = vrot.slane %v515, 2
    %v517 = vmax.f32 %v515, %v516
    %v518 = vrot.slane %v517, 1
    %v519 = vmax.f32 %v517, %v518
    %v520 = vmax.f32 %v120, %v136
    %v521 = vrot.slane %v520, 4
    %v522 = vmax.f32 %v520, %v521
    %v523 = vrot.slane %v522, 2
    %v524 = vmax.f32 %v522, %v523
    %v525 = vrot.slane %v524, 1
    %v526 = vmax.f32 %v524, %v525
    %v527 = vmax.f32 %v121, %v137
    %v528 = vrot.slane %v527, 4
    %v529 = vmax.f32 %v527, %v528
    %v530 = vrot.slane %v529, 2
    %v531 = vmax.f32 %v529, %v530
    %v532 = vrot.slane %v531, 1
    %v533 = vmax.f32 %v531, %v532
    %v534 = vmax.f32 %v122, %v138
    %v535 = vrot.slane %v534, 4
    %v536 = vmax.f32 %v534, %v535
    %v537 = vrot.slane %v536, 2
    %v538 = vmax.f32 %v536, %v537
    %v539 = vrot.slane %v538, 1
    %v540 = vmax.f32 %v538, %v539
    %v541 = vmax.f32 %v123, %v139
    %v542 = vrot.slane %v541, 4
    %v543 = vmax.f32 %v541, %v542
    %v544 = vrot.slane %v543, 2
    %v545 = vmax.f32 %v543, %v544
    %v546 = vrot.slane %v545, 1
    %v547 = vmax.f32 %v545, %v546
    %v548 = vmax.f32 %v124, %v140
    %v549 = vrot.slane %v548, 4
    %v550 = vmax.f32 %v548, %v549
    %v551 = vrot.slane %v550, 2
    %v552 = vmax.f32 %v550, %v551
    %v553 = vrot.slane %v552, 1
    %v554 = vmax.f32 %v552, %v553
    %v555 = vmax.f32 %v125, %v141
    %v556 = vrot.slane %v555, 4
    %v557 = vmax.f32 %v555, %v556
    %v558 = vrot.slane %v557, 2
    %v559 = vmax.f32 %v557, %v558
    %v560 = vrot.slane %v559, 1
    %v561 = vmax.f32 %v559, %v560
    %v562 = vmax.f32 %v126, %v142
    %v563 = vrot.slane %v562, 4
    %v564 = vmax.f32 %v562, %v563
    %v565 = vrot.slane %v564, 2
    %v566 = vmax.f32 %v564, %v565
    %v567 = vrot.slane %v566, 1
    %v568 = vmax.f32 %v566, %v567
    %v569 = vmax.f32 %v127, %v143
    %v570 = vrot.slane %v569, 4
    %v571 = vmax.f32 %v569, %v570
    %v572 = vrot.slane %v571, 2
    %v573 = vmax.f32 %v571, %v572
    %v574 = vrot.slane %v573, 1
    %v575 = vmax.f32 %v573, %v574
    %v576 = vmax.f32 %v128, %v144
    %v577 = vrot.slane %v576, 4
    %v578 = vmax.f32 %v576, %v577
    %v579 = vrot.slane %v578, 2
    %v580 = vmax.f32 %v578, %v579
    %v581 = vrot.slane %v580, 1
    %v582 = vmax.f32 %v580, %v581
    %v583 = vmax.f32 %v129, %v145
    %v584 = vrot.slane %v583, 4
    %v585 = vmax.f32 %v583, %v584
    %v586 = vrot.slane %v585, 2
    %v587 = vmax.f32 %v585, %v586
    %v588 = vrot.slane %v587, 1
    %v589 = vmax.f32 %v587, %v588
    %v590 = vmax.f32 %v130, %v146
    %v591 = vrot.slane %v590, 4
    %v592 = vmax.f32 %v590, %v591
    %v593 = vrot.slane %v592, 2
    %v594 = vmax.f32 %v592, %v593
    %v595 = vrot.slane %v594, 1
    %v596 = vmax.f32 %v594, %v595
    %v597 = vmax.f32 %v131, %v147
    %v598 = vrot.slane %v597, 4
    %v599 = vmax.f32 %v597, %v598
    %v600 = vrot.slane %v599, 2
    %v601 = vmax.f32 %v599, %v600
    %v602 = vrot.slane %v601, 1
    %v603 = vmax.f32 %v601, %v602
    %v604 = vmax.f32 %v132, %v148
    %v605 = vrot.slane %v604, 4
    %v606 = vmax.f32 %v604, %v605
    %v607 = vrot.slane %v606, 2
    %v608 = vmax.f32 %v606, %v607
    %v609 = vrot.slane %v608, 1
    %v610 = vmax.f32 %v608, %v609
    %v611 = vmax.f32 %v133, %v149
    %v612 = vrot.slane %v611, 4
    %v613 = vmax.f32 %v611, %v612
    %v614 = vrot.slane %v613, 2
    %v615 = vmax.f32 %v613, %v614
    %v616 = vrot.slane %v615, 1
    %v617 = vmax.f32 %v615, %v616
    %v618 = vmax.f32 %v134, %v150
    %v619 = vrot.slane %v618, 4
    %v620 = vmax.f32 %v618, %v619
    %v621 = vrot.slane %v620, 2
    %v622 = vmax.f32 %v620, %v621
    %v623 = vrot.slane %v622, 1
    %v624 = vmax.f32 %v622, %v623
    %v625 = vmax.f32 %v135, %v151
    %v626 = vrot.slane %v625, 4
    %v627 = vmax.f32 %v625, %v626
    %v628 = vrot.slane %v627, 2
    %v629 = vmax.f32 %v627, %v628
    %v630 = vrot.slane %v629, 1
    %v631 = vmax.f32 %v629, %v630
    %v632 = vpack.c.bf16 %v376, %v376
    %v633 = vpack.c.bf16 %v377, %v377
    %v634 = vpack.c.bf16 %v378, %v378
    %v635 = vpack.c.bf16 %v379, %v379
    %v636 = vpack.c.bf16 %v380, %v380
    %v637 = vpack.c.bf16 %v381, %v381
    %v638 = vpack.c.bf16 %v382, %v382
    %v639 = vpack.c.bf16 %v383, %v383
    %v640 = vpack.c.bf16 %v384, %v384
    %v641 = vpack.c.bf16 %v385, %v385
    %v642 = vpack.c.bf16 %v386, %v386
    %v643 = vpack.c.bf16 %v387, %v387
    %v644 = vpack.c.bf16 %v388, %v388
    %v645 = vpack.c.bf16 %v389, %v389
    %v646 = vpack.c.bf16 %v390, %v390
    %v647 = vpack.c.bf16 %v391, %v391
    %v648 = vpack.c.bf16 %v392, %v392
    %v649 = vpack.c.bf16 %v393, %v393
    %v650 = vpack.c.bf16 %v394, %v394
    %v651 = vpack.c.bf16 %v395, %v395
    %v652 = vpack.c.bf16 %v396, %v396
    %v653 = vpack.c.bf16 %v397, %v397
    %v654 = vpack.c.bf16 %v398, %v398
    %v655 = vpack.c.bf16 %v399, %v399
    %v656 = vpack.c.bf16 %v400, %v400
    %v657 = vpack.c.bf16 %v401, %v401
    %v658 = vpack.c.bf16 %v402, %v402
    %v659 = vpack.c.bf16 %v403, %v403
    %v660 = vpack.c.bf16 %v404, %v404
    %v661 = vpack.c.bf16 %v405, %v405
    %v662 = vpack.c.bf16 %v406, %v406
    %v663 = vpack.c.bf16 %v407, %v407
    %v664 = vld [vmem:[#allocation5] sm:$0xff]
    %v665 = vld [vmem:[#allocation5 + $0x8] sm:$0xff]
    %v666 = vld [vmem:[#allocation5 + $0x10] sm:$0xff]
    %v667 = vld [vmem:[#allocation5 + $0x18] sm:$0xff]
    %v668 = vld [vmem:[#allocation5 + $0x20] sm:$0xff]
    %v669 = vld [vmem:[#allocation5 + $0x28] sm:$0xff]
    %v670 = vld [vmem:[#allocation5 + $0x30] sm:$0xff]
    %v671 = vld [vmem:[#allocation5 + $0x38] sm:$0xff]
    %v672 = vld [vmem:[#allocation5 + $0x40] sm:$0xff]
    %v673 = vld [vmem:[#allocation5 + $0x48] sm:$0xff]
    %v674 = vld [vmem:[#allocation5 + $0x50] sm:$0xff]
    %v675 = vld [vmem:[#allocation5 + $0x58] sm:$0xff]
    %v676 = vld [vmem:[#allocation5 + $0x60] sm:$0xff]
    %v677 = vld [vmem:[#allocation5 + $0x68] sm:$0xff]
    %v678 = vld [vmem:[#allocation5 + $0x70] sm:$0xff]
    %v679 = vld [vmem:[#allocation5 + $0x78] sm:$0xff]
    %v680 = vld [vmem:[#allocation5 + $0x80] sm:$0xff]
    %v681 = vld [vmem:[#allocation5 + $0x88] sm:$0xff]
    %v682 = vld [vmem:[#allocation5 + $0x90] sm:$0xff]
    %v683 = vld [vmem:[#allocation5 + $0x98] sm:$0xff]
    %v684 = vld [vmem:[#allocation5 + $0xa0] sm:$0xff]
    %v685 = vld [vmem:[#allocation5 + $0xa8] sm:$0xff]
    %v686 = vld [vmem:[#allocation5 + $0xb0] sm:$0xff]
    %v687 = vld [vmem:[#allocation5 + $0xb8] sm:$0xff]
    %v688 = vld [vmem:[#allocation5 + $0xc0] sm:$0xff]
    %v689 = vld [vmem:[#allocation5 + $0xc8] sm:$0xff]
    %v690 = vld [vmem:[#allocation5 + $0xd0] sm:$0xff]
    %v691 = vld [vmem:[#allocation5 + $0xd8] sm:$0xff]
    %v692 = vld [vmem:[#allocation5 + $0xe0] sm:$0xff]
    %v693 = vld [vmem:[#allocation5 + $0xe8] sm:$0xff]
    %v694 = vld [vmem:[#allocation5 + $0xf0] sm:$0xff]
    %v695 = vld [vmem:[#allocation5 + $0xf8] sm:$0xff]
    %v696 = vld [vmem:[#allocation5 + $0x100] sm:$0xff]
    %v697 = vld [vmem:[#allocation5 + $0x108] sm:$0xff]
    %v698 = vld [vmem:[#allocation5 + $0x110] sm:$0xff]
    %v699 = vld [vmem:[#allocation5 + $0x118] sm:$0xff]
    %v700 = vld [vmem:[#allocation5 + $0x120] sm:$0xff]
    %v701 = vld [vmem:[#allocation5 + $0x128] sm:$0xff]
    %v702 = vld [vmem:[#allocation5 + $0x130] sm:$0xff]
    %v703 = vld [vmem:[#allocation5 + $0x138] sm:$0xff]
    %v704 = vld [vmem:[#allocation5 + $0x140] sm:$0xff]
    %v705 = vld [vmem:[#allocation5 + $0x148] sm:$0xff]
    %v706 = vld [vmem:[#allocation5 + $0x150] sm:$0xff]
    %v707 = vld [vmem:[#allocation5 + $0x158] sm:$0xff]
    %v708 = vld [vmem:[#allocation5 + $0x160] sm:$0xff]
    %v709 = vld [vmem:[#allocation5 + $0x168] sm:$0xff]
    %v710 = vld [vmem:[#allocation5 + $0x170] sm:$0xff]
    %v711 = vld [vmem:[#allocation5 + $0x178] sm:$0xff]
    %v712 = vld [vmem:[#allocation5 + $0x180] sm:$0xff]
    %v713 = vld [vmem:[#allocation5 + $0x188] sm:$0xff]
    %v714 = vld [vmem:[#allocation5 + $0x190] sm:$0xff]
    %v715 = vld [vmem:[#allocation5 + $0x198] sm:$0xff]
    %v716 = vld [vmem:[#allocation5 + $0x1a0] sm:$0xff]
    %v717 = vld [vmem:[#allocation5 + $0x1a8] sm:$0xff]
    %v718 = vld [vmem:[#allocation5 + $0x1b0] sm:$0xff]
    %v719 = vld [vmem:[#allocation5 + $0x1b8] sm:$0xff]
    %v720 = vld [vmem:[#allocation5 + $0x1c0] sm:$0xff]
    %v721 = vld [vmem:[#allocation5 + $0x1c8] sm:$0xff]
    %v722 = vld [vmem:[#allocation5 + $0x1d0] sm:$0xff]
    %v723 = vld [vmem:[#allocation5 + $0x1d8] sm:$0xff]
    %v724 = vld [vmem:[#allocation5 + $0x1e0] sm:$0xff]
    %v725 = vld [vmem:[#allocation5 + $0x1e8] sm:$0xff]
    %v726 = vld [vmem:[#allocation5 + $0x1f0] sm:$0xff]
    %v727 = vld [vmem:[#allocation5 + $0x1f8] sm:$0xff]
    %v728 = vld [vmem:[#allocation5 + $0x200] sm:$0xff]
    %v729 = vld [vmem:[#allocation5 + $0x208] sm:$0xff]
    %v730 = vld [vmem:[#allocation5 + $0x210] sm:$0xff]
    %v731 = vld [vmem:[#allocation5 + $0x218] sm:$0xff]
    %v732 = vld [vmem:[#allocation5 + $0x220] sm:$0xff]
    %v733 = vld [vmem:[#allocation5 + $0x228] sm:$0xff]
    %v734 = vld [vmem:[#allocation5 + $0x230] sm:$0xff]
    %v735 = vld [vmem:[#allocation5 + $0x238] sm:$0xff]
    %v736 = vld [vmem:[#allocation5 + $0x240] sm:$0xff]
    %v737 = vld [vmem:[#allocation5 + $0x248] sm:$0xff]
    %v738 = vld [vmem:[#allocation5 + $0x250] sm:$0xff]
    %v739 = vld [vmem:[#allocation5 + $0x258] sm:$0xff]
    %v740 = vld [vmem:[#allocation5 + $0x260] sm:$0xff]
    %v741 = vld [vmem:[#allocation5 + $0x268] sm:$0xff]
    %v742 = vld [vmem:[#allocation5 + $0x270] sm:$0xff]
    %v743 = vld [vmem:[#allocation5 + $0x278] sm:$0xff]
    %v744 = vld [vmem:[#allocation5 + $0x280] sm:$0xff]
    %v745 = vld [vmem:[#allocation5 + $0x288] sm:$0xff]
    %v746 = vld [vmem:[#allocation5 + $0x290] sm:$0xff]
    %v747 = vld [vmem:[#allocation5 + $0x298] sm:$0xff]
    %v748 = vld [vmem:[#allocation5 + $0x2a0] sm:$0xff]
    %v749 = vld [vmem:[#allocation5 + $0x2a8] sm:$0xff]
    %v750 = vld [vmem:[#allocation5 + $0x2b0] sm:$0xff]
    %v751 = vld [vmem:[#allocation5 + $0x2b8] sm:$0xff]
    %v752 = vld [vmem:[#allocation5 + $0x2c0] sm:$0xff]
    %v753 = vld [vmem:[#allocation5 + $0x2c8] sm:$0xff]
    %v754 = vld [vmem:[#allocation5 + $0x2d0] sm:$0xff]
    %v755 = vld [vmem:[#allocation5 + $0x2d8] sm:$0xff]
    %v756 = vld [vmem:[#allocation5 + $0x2e0] sm:$0xff]
    %v757 = vld [vmem:[#allocation5 + $0x2e8] sm:$0xff]
    %v758 = vld [vmem:[#allocation5 + $0x2f0] sm:$0xff]
    %v759 = vld [vmem:[#allocation5 + $0x2f8] sm:$0xff]
    %v760 = vld [vmem:[#allocation5 + $0x300] sm:$0xff]
    %v761 = vld [vmem:[#allocation5 + $0x308] sm:$0xff]
    %v762 = vld [vmem:[#allocation5 + $0x310] sm:$0xff]
    %v763 = vld [vmem:[#allocation5 + $0x318] sm:$0xff]
    %v764 = vld [vmem:[#allocation5 + $0x320] sm:$0xff]
    %v765 = vld [vmem:[#allocation5 + $0x328] sm:$0xff]
    %v766 = vld [vmem:[#allocation5 + $0x330] sm:$0xff]
    %v767 = vld [vmem:[#allocation5 + $0x338] sm:$0xff]
    %v768 = vld [vmem:[#allocation5 + $0x340] sm:$0xff]
    %v769 = vld [vmem:[#allocation5 + $0x348] sm:$0xff]
    %v770 = vld [vmem:[#allocation5 + $0x350] sm:$0xff]
    %v771 = vld [vmem:[#allocation5 + $0x358] sm:$0xff]
    %v772 = vld [vmem:[#allocation5 + $0x360] sm:$0xff]
    %v773 = vld [vmem:[#allocation5 + $0x368] sm:$0xff]
    %v774 = vld [vmem:[#allocation5 + $0x370] sm:$0xff]
    %v775 = vld [vmem:[#allocation5 + $0x378] sm:$0xff]
    %v776 = vld [vmem:[#allocation5 + $0x380] sm:$0xff]
    %v777 = vld [vmem:[#allocation5 + $0x388] sm:$0xff]
    %v778 = vld [vmem:[#allocation5 + $0x390] sm:$0xff]
    %v779 = vld [vmem:[#allocation5 + $0x398] sm:$0xff]
    %v780 = vld [vmem:[#allocation5 + $0x3a0] sm:$0xff]
    %v781 = vld [vmem:[#allocation5 + $0x3a8] sm:$0xff]
    %v782 = vld [vmem:[#allocation5 + $0x3b0] sm:$0xff]
    %v783 = vld [vmem:[#allocation5 + $0x3b8] sm:$0xff]
    %v784 = vld [vmem:[#allocation5 + $0x3c0] sm:$0xff]
    %v785 = vld [vmem:[#allocation5 + $0x3c8] sm:$0xff]
    %v786 = vld [vmem:[#allocation5 + $0x3d0] sm:$0xff]
    %v787 = vld [vmem:[#allocation5 + $0x3d8] sm:$0xff]
    %v788 = vld [vmem:[#allocation5 + $0x3e0] sm:$0xff]
    %v789 = vld [vmem:[#allocation5 + $0x3e8] sm:$0xff]
    %v790 = vld [vmem:[#allocation5 + $0x3f0] sm:$0xff]
    %v791 = vld [vmem:[#allocation5 + $0x3f8] sm:$0xff]
    %v792 = vld [vmem:[#allocation5 + $0x400] sm:$0xff]
    %v793 = vld [vmem:[#allocation5 + $0x408] sm:$0xff]
    %v794 = vld [vmem:[#allocation5 + $0x410] sm:$0xff]
    %v795 = vld [vmem:[#allocation5 + $0x418] sm:$0xff]
    %v796 = vld [vmem:[#allocation5 + $0x420] sm:$0xff]
    %v797 = vld [vmem:[#allocation5 + $0x428] sm:$0xff]
    %v798 = vld [vmem:[#allocation5 + $0x430] sm:$0xff]
    %v799 = vld [vmem:[#allocation5 + $0x438] sm:$0xff]
    %v800 = vld [vmem:[#allocation5 + $0x440] sm:$0xff]
    %v801 = vld [vmem:[#allocation5 + $0x448] sm:$0xff]
    %v802 = vld [vmem:[#allocation5 + $0x450] sm:$0xff]
    %v803 = vld [vmem:[#allocation5 + $0x458] sm:$0xff]
    %v804 = vld [vmem:[#allocation5 + $0x460] sm:$0xff]
    %v805 = vld [vmem:[#allocation5 + $0x468] sm:$0xff]
    %v806 = vld [vmem:[#allocation5 + $0x470] sm:$0xff]
    %v807 = vld [vmem:[#allocation5 + $0x478] sm:$0xff]
    %v808 = vld [vmem:[#allocation5 + $0x480] sm:$0xff]
    %v809 = vld [vmem:[#allocation5 + $0x488] sm:$0xff]
    %v810 = vld [vmem:[#allocation5 + $0x490] sm:$0xff]
    %v811 = vld [vmem:[#allocation5 + $0x498] sm:$0xff]
    %v812 = vld [vmem:[#allocation5 + $0x4a0] sm:$0xff]
    %v813 = vld [vmem:[#allocation5 + $0x4a8] sm:$0xff]
    %v814 = vld [vmem:[#allocation5 + $0x4b0] sm:$0xff]
    %v815 = vld [vmem:[#allocation5 + $0x4b8] sm:$0xff]
    %v816 = vld [vmem:[#allocation5 + $0x4c0] sm:$0xff]
    %v817 = vld [vmem:[#allocation5 + $0x4c8] sm:$0xff]
    %v818 = vld [vmem:[#allocation5 + $0x4d0] sm:$0xff]
    %v819 = vld [vmem:[#allocation5 + $0x4d8] sm:$0xff]
    %v820 = vld [vmem:[#allocation5 + $0x4e0] sm:$0xff]
    %v821 = vld [vmem:[#allocation5 + $0x4e8] sm:$0xff]
    %v822 = vld [vmem:[#allocation5 + $0x4f0] sm:$0xff]
    %v823 = vld [vmem:[#allocation5 + $0x4f8] sm:$0xff]
    %v824 = vld [vmem:[#allocation5 + $0x500] sm:$0xff]
    %v825 = vld [vmem:[#allocation5 + $0x508] sm:$0xff]
    %v826 = vld [vmem:[#allocation5 + $0x510] sm:$0xff]
    %v827 = vld [vmem:[#allocation5 + $0x518] sm:$0xff]
    %v828 = vld [vmem:[#allocation5 + $0x520] sm:$0xff]
    %v829 = vld [vmem:[#allocation5 + $0x528] sm:$0xff]
    %v830 = vld [vmem:[#allocation5 + $0x530] sm:$0xff]
    %v831 = vld [vmem:[#allocation5 + $0x538] sm:$0xff]
    %v832 = vld [vmem:[#allocation5 + $0x540] sm:$0xff]
    %v833 = vld [vmem:[#allocation5 + $0x548] sm:$0xff]
    %v834 = vld [vmem:[#allocation5 + $0x550] sm:$0xff]
    %v835 = vld [vmem:[#allocation5 + $0x558] sm:$0xff]
    %v836 = vld [vmem:[#allocation5 + $0x560] sm:$0xff]
    %v837 = vld [vmem:[#allocation5 + $0x568] sm:$0xff]
    %v838 = vld [vmem:[#allocation5 + $0x570] sm:$0xff]
    %v839 = vld [vmem:[#allocation5 + $0x578] sm:$0xff]
    %v840 = vld [vmem:[#allocation5 + $0x580] sm:$0xff]
    %v841 = vld [vmem:[#allocation5 + $0x588] sm:$0xff]
    %v842 = vld [vmem:[#allocation5 + $0x590] sm:$0xff]
    %v843 = vld [vmem:[#allocation5 + $0x598] sm:$0xff]
    %v844 = vld [vmem:[#allocation5 + $0x5a0] sm:$0xff]
    %v845 = vld [vmem:[#allocation5 + $0x5a8] sm:$0xff]
    %v846 = vld [vmem:[#allocation5 + $0x5b0] sm:$0xff]
    %v847 = vld [vmem:[#allocation5 + $0x5b8] sm:$0xff]
    %v848 = vld [vmem:[#allocation5 + $0x5c0] sm:$0xff]
    %v849 = vld [vmem:[#allocation5 + $0x5c8] sm:$0xff]
    %v850 = vld [vmem:[#allocation5 + $0x5d0] sm:$0xff]
    %v851 = vld [vmem:[#allocation5 + $0x5d8] sm:$0xff]
    %v852 = vld [vmem:[#allocation5 + $0x5e0] sm:$0xff]
    %v853 = vld [vmem:[#allocation5 + $0x5e8] sm:$0xff]
    %v854 = vld [vmem:[#allocation5 + $0x5f0] sm:$0xff]
    %v855 = vld [vmem:[#allocation5 + $0x5f8] sm:$0xff]
    %v856 = vld [vmem:[#allocation5 + $0x600] sm:$0xff]
    %v857 = vld [vmem:[#allocation5 + $0x608] sm:$0xff]
    %v858 = vld [vmem:[#allocation5 + $0x610] sm:$0xff]
    %v859 = vld [vmem:[#allocation5 + $0x618] sm:$0xff]
    %v860 = vld [vmem:[#allocation5 + $0x620] sm:$0xff]
    %v861 = vld [vmem:[#allocation5 + $0x628] sm:$0xff]
    %v862 = vld [vmem:[#allocation5 + $0x630] sm:$0xff]
    %v863 = vld [vmem:[#allocation5 + $0x638] sm:$0xff]
    %v864 = vld [vmem:[#allocation5 + $0x640] sm:$0xff]
    %v865 = vld [vmem:[#allocation5 + $0x648] sm:$0xff]
    %v866 = vld [vmem:[#allocation5 + $0x650] sm:$0xff]
    %v867 = vld [vmem:[#allocation5 + $0x658] sm:$0xff]
    %v868 = vld [vmem:[#allocation5 + $0x660] sm:$0xff]
    %v869 = vld [vmem:[#allocation5 + $0x668] sm:$0xff]
    %v870 = vld [vmem:[#allocation5 + $0x670] sm:$0xff]
    %v871 = vld [vmem:[#allocation5 + $0x678] sm:$0xff]
    %v872 = vld [vmem:[#allocation5 + $0x680] sm:$0xff]
    %v873 = vld [vmem:[#allocation5 + $0x688] sm:$0xff]
    %v874 = vld [vmem:[#allocation5 + $0x690] sm:$0xff]
    %v875 = vld [vmem:[#allocation5 + $0x698] sm:$0xff]
    %v876 = vld [vmem:[#allocation5 + $0x6a0] sm:$0xff]
    %v877 = vld [vmem:[#allocation5 + $0x6a8] sm:$0xff]
    %v878 = vld [vmem:[#allocation5 + $0x6b0] sm:$0xff]
    %v879 = vld [vmem:[#allocation5 + $0x6b8] sm:$0xff]
    %v880 = vld [vmem:[#allocation5 + $0x6c0] sm:$0xff]
    %v881 = vld [vmem:[#allocation5 + $0x6c8] sm:$0xff]
    %v882 = vld [vmem:[#allocation5 + $0x6d0] sm:$0xff]
    %v883 = vld [vmem:[#allocation5 + $0x6d8] sm:$0xff]
    %v884 = vld [vmem:[#allocation5 + $0x6e0] sm:$0xff]
    %v885 = vld [vmem:[#allocation5 + $0x6e8] sm:$0xff]
    %v886 = vld [vmem:[#allocation5 + $0x6f0] sm:$0xff]
    %v887 = vld [vmem:[#allocation5 + $0x6f8] sm:$0xff]
    %v888 = vld [vmem:[#allocation5 + $0x700] sm:$0xff]
    %v889 = vld [vmem:[#allocation5 + $0x708] sm:$0xff]
    %v890 = vld [vmem:[#allocation5 + $0x710] sm:$0xff]
    %v891 = vld [vmem:[#allocation5 + $0x718] sm:$0xff]
    %v892 = vld [vmem:[#allocation5 + $0x720] sm:$0xff]
    %v893 = vld [vmem:[#allocation5 + $0x728] sm:$0xff]
    %v894 = vld [vmem:[#allocation5 + $0x730] sm:$0xff]
    %v895 = vld [vmem:[#allocation5 + $0x738] sm:$0xff]
    %v896 = vld [vmem:[#allocation5 + $0x740] sm:$0xff]
    %v897 = vld [vmem:[#allocation5 + $0x748] sm:$0xff]
    %v898 = vld [vmem:[#allocation5 + $0x750] sm:$0xff]
    %v899 = vld [vmem:[#allocation5 + $0x758] sm:$0xff]
    %v900 = vld [vmem:[#allocation5 + $0x760] sm:$0xff]
    %v901 = vld [vmem:[#allocation5 + $0x768] sm:$0xff]
    %v902 = vld [vmem:[#allocation5 + $0x770] sm:$0xff]
    %v903 = vld [vmem:[#allocation5 + $0x778] sm:$0xff]
    %v904 = vld [vmem:[#allocation5 + $0x780] sm:$0xff]
    %v905 = vld [vmem:[#allocation5 + $0x788] sm:$0xff]
    %v906 = vld [vmem:[#allocation5 + $0x790] sm:$0xff]
    %v907 = vld [vmem:[#allocation5 + $0x798] sm:$0xff]
    %v908 = vld [vmem:[#allocation5 + $0x7a0] sm:$0xff]
    %v909 = vld [vmem:[#allocation5 + $0x7a8] sm:$0xff]
    %v910 = vld [vmem:[#allocation5 + $0x7b0] sm:$0xff]
    %v911 = vld [vmem:[#allocation5 + $0x7b8] sm:$0xff]
    %v912 = vld [vmem:[#allocation5 + $0x7c0] sm:$0xff]
    %v913 = vld [vmem:[#allocation5 + $0x7c8] sm:$0xff]
    %v914 = vld [vmem:[#allocation5 + $0x7d0] sm:$0xff]
    %v915 = vld [vmem:[#allocation5 + $0x7d8] sm:$0xff]
    %v916 = vld [vmem:[#allocation5 + $0x7e0] sm:$0xff]
    %v917 = vld [vmem:[#allocation5 + $0x7e8] sm:$0xff]
    %v918 = vld [vmem:[#allocation5 + $0x7f0] sm:$0xff]
    %v919 = vld [vmem:[#allocation5 + $0x7f8] sm:$0xff]
    %v920 = vld [vmem:[#allocation5 + $0x800] sm:$0xff]
    %v921 = vld [vmem:[#allocation5 + $0x808] sm:$0xff]
    %v922 = vld [vmem:[#allocation5 + $0x810] sm:$0xff]
    %v923 = vld [vmem:[#allocation5 + $0x818] sm:$0xff]
    %v924 = vld [vmem:[#allocation5 + $0x820] sm:$0xff]
    %v925 = vld [vmem:[#allocation5 + $0x828] sm:$0xff]
    %v926 = vld [vmem:[#allocation5 + $0x830] sm:$0xff]
    %v927 = vld [vmem:[#allocation5 + $0x838] sm:$0xff]
    %v928 = vld [vmem:[#allocation5 + $0x840] sm:$0xff]
    %v929 = vld [vmem:[#allocation5 + $0x848] sm:$0xff]
    %v930 = vld [vmem:[#allocation5 + $0x850] sm:$0xff]
    %v931 = vld [vmem:[#allocation5 + $0x858] sm:$0xff]
    %v932 = vld [vmem:[#allocation5 + $0x860] sm:$0xff]
    %v933 = vld [vmem:[#allocation5 + $0x868] sm:$0xff]
    %v934 = vld [vmem:[#allocation5 + $0x870] sm:$0xff]
    %v935 = vld [vmem:[#allocation5 + $0x878] sm:$0xff]
    %v936 = vld [vmem:[#allocation5 + $0x880] sm:$0xff]
    %v937 = vld [vmem:[#allocation5 + $0x888] sm:$0xff]
    %v938 = vld [vmem:[#allocation5 + $0x890] sm:$0xff]
    %v939 = vld [vmem:[#allocation5 + $0x898] sm:$0xff]
    %v940 = vld [vmem:[#allocation5 + $0x8a0] sm:$0xff]
    %v941 = vld [vmem:[#allocation5 + $0x8a8] sm:$0xff]
    %v942 = vld [vmem:[#allocation5 + $0x8b0] sm:$0xff]
    %v943 = vld [vmem:[#allocation5 + $0x8b8] sm:$0xff]
    %v944 = vld [vmem:[#allocation5 + $0x8c0] sm:$0xff]
    %v945 = vld [vmem:[#allocation5 + $0x8c8] sm:$0xff]
    %v946 = vld [vmem:[#allocation5 + $0x8d0] sm:$0xff]
    %v947 = vld [vmem:[#allocation5 + $0x8d8] sm:$0xff]
    %v948 = vld [vmem:[#allocation5 + $0x8e0] sm:$0xff]
    %v949 = vld [vmem:[#allocation5 + $0x8e8] sm:$0xff]
    %v950 = vld [vmem:[#allocation5 + $0x8f0] sm:$0xff]
    %v951 = vld [vmem:[#allocation5 + $0x8f8] sm:$0xff]
    %v952 = vld [vmem:[#allocation5 + $0x900] sm:$0xff]
    %v953 = vld [vmem:[#allocation5 + $0x908] sm:$0xff]
    %v954 = vld [vmem:[#allocation5 + $0x910] sm:$0xff]
    %v955 = vld [vmem:[#allocation5 + $0x918] sm:$0xff]
    %v956 = vld [vmem:[#allocation5 + $0x920] sm:$0xff]
    %v957 = vld [vmem:[#allocation5 + $0x928] sm:$0xff]
    %v958 = vld [vmem:[#allocation5 + $0x930] sm:$0xff]
    %v959 = vld [vmem:[#allocation5 + $0x938] sm:$0xff]
    %v960 = vld [vmem:[#allocation5 + $0x940] sm:$0xff]
    %v961 = vld [vmem:[#allocation5 + $0x948] sm:$0xff]
    %v962 = vld [vmem:[#allocation5 + $0x950] sm:$0xff]
    %v963 = vld [vmem:[#allocation5 + $0x958] sm:$0xff]
    %v964 = vld [vmem:[#allocation5 + $0x960] sm:$0xff]
    %v965 = vld [vmem:[#allocation5 + $0x968] sm:$0xff]
    %v966 = vld [vmem:[#allocation5 + $0x970] sm:$0xff]
    %v967 = vld [vmem:[#allocation5 + $0x978] sm:$0xff]
    %v968 = vld [vmem:[#allocation5 + $0x980] sm:$0xff]
    %v969 = vld [vmem:[#allocation5 + $0x988] sm:$0xff]
    %v970 = vld [vmem:[#allocation5 + $0x990] sm:$0xff]
    %v971 = vld [vmem:[#allocation5 + $0x998] sm:$0xff]
    %v972 = vld [vmem:[#allocation5 + $0x9a0] sm:$0xff]
    %v973 = vld [vmem:[#allocation5 + $0x9a8] sm:$0xff]
    %v974 = vld [vmem:[#allocation5 + $0x9b0] sm:$0xff]
    %v975 = vld [vmem:[#allocation5 + $0x9b8] sm:$0xff]
    %v976 = vld [vmem:[#allocation5 + $0x9c0] sm:$0xff]
    %v977 = vld [vmem:[#allocation5 + $0x9c8] sm:$0xff]
    %v978 = vld [vmem:[#allocation5 + $0x9d0] sm:$0xff]
    %v979 = vld [vmem:[#allocation5 + $0x9d8] sm:$0xff]
    %v980 = vld [vmem:[#allocation5 + $0x9e0] sm:$0xff]
    %v981 = vld [vmem:[#allocation5 + $0x9e8] sm:$0xff]
    %v982 = vld [vmem:[#allocation5 + $0x9f0] sm:$0xff]
    %v983 = vld [vmem:[#allocation5 + $0x9f8] sm:$0xff]
    %v984 = vld [vmem:[#allocation5 + $0xa00] sm:$0xff]
    %v985 = vld [vmem:[#allocation5 + $0xa08] sm:$0xff]
    %v986 = vld [vmem:[#allocation5 + $0xa10] sm:$0xff]
    %v987 = vld [vmem:[#allocation5 + $0xa18] sm:$0xff]
    %v988 = vld [vmem:[#allocation5 + $0xa20] sm:$0xff]
    %v989 = vld [vmem:[#allocation5 + $0xa28] sm:$0xff]
    %v990 = vld [vmem:[#allocation5 + $0xa30] sm:$0xff]
    %v991 = vld [vmem:[#allocation5 + $0xa38] sm:$0xff]
    %v992 = vld [vmem:[#allocation5 + $0xa40] sm:$0xff]
    %v993 = vld [vmem:[#allocation5 + $0xa48] sm:$0xff]
    %v994 = vld [vmem:[#allocation5 + $0xa50] sm:$0xff]
    %v995 = vld [vmem:[#allocation5 + $0xa58] sm:$0xff]
    %v996 = vld [vmem:[#allocation5 + $0xa60] sm:$0xff]
    %v997 = vld [vmem:[#allocation5 + $0xa68] sm:$0xff]
    %v998 = vld [vmem:[#allocation5 + $0xa70] sm:$0xff]
    %v999 = vld [vmem:[#allocation5 + $0xa78] sm:$0xff]
    %v1000 = vld [vmem:[#allocation5 + $0xa80] sm:$0xff]
    %v1001 = vld [vmem:[#allocation5 + $0xa88] sm:$0xff]
    %v1002 = vld [vmem:[#allocation5 + $0xa90] sm:$0xff]
    %v1003 = vld [vmem:[#allocation5 + $0xa98] sm:$0xff]
    %v1004 = vld [vmem:[#allocation5 + $0xaa0] sm:$0xff]
    %v1005 = vld [vmem:[#allocation5 + $0xaa8] sm:$0xff]
    %v1006 = vld [vmem:[#allocation5 + $0xab0] sm:$0xff]
    %v1007 = vld [vmem:[#allocation5 + $0xab8] sm:$0xff]
    %v1008 = vld [vmem:[#allocation5 + $0xac0] sm:$0xff]
    %v1009 = vld [vmem:[#allocation5 + $0xac8] sm:$0xff]
    %v1010 = vld [vmem:[#allocation5 + $0xad0] sm:$0xff]
    %v1011 = vld [vmem:[#allocation5 + $0xad8] sm:$0xff]
    %v1012 = vld [vmem:[#allocation5 + $0xae0] sm:$0xff]
    %v1013 = vld [vmem:[#allocation5 + $0xae8] sm:$0xff]
    %v1014 = vld [vmem:[#allocation5 + $0xaf0] sm:$0xff]
    %v1015 = vld [vmem:[#allocation5 + $0xaf8] sm:$0xff]
    %v1016 = vld [vmem:[#allocation5 + $0xb00] sm:$0xff]
    %v1017 = vld [vmem:[#allocation5 + $0xb08] sm:$0xff]
    %v1018 = vld [vmem:[#allocation5 + $0xb10] sm:$0xff]
    %v1019 = vld [vmem:[#allocation5 + $0xb18] sm:$0xff]
    %v1020 = vld [vmem:[#allocation5 + $0xb20] sm:$0xff]
    %v1021 = vld [vmem:[#allocation5 + $0xb28] sm:$0xff]
    %v1022 = vld [vmem:[#allocation5 + $0xb30] sm:$0xff]
    %v1023 = vld [vmem:[#allocation5 + $0xb38] sm:$0xff]
    %v1024 = vld [vmem:[#allocation5 + $0xb40] sm:$0xff]
    %v1025 = vld [vmem:[#allocation5 + $0xb48] sm:$0xff]
    %v1026 = vld [vmem:[#allocation5 + $0xb50] sm:$0xff]
    %v1027 = vld [vmem:[#allocation5 + $0xb58] sm:$0xff]
    %v1028 = vld [vmem:[#allocation5 + $0xb60] sm:$0xff]
    %v1029 = vld [vmem:[#allocation5 + $0xb68] sm:$0xff]
    %v1030 = vld [vmem:[#allocation5 + $0xb70] sm:$0xff]
    %v1031 = vld [vmem:[#allocation5 + $0xb78] sm:$0xff]
    %v1032 = vld [vmem:[#allocation5 + $0xb80] sm:$0xff]
    %v1033 = vld [vmem:[#allocation5 + $0xb88] sm:$0xff]
    %v1034 = vld [vmem:[#allocation5 + $0xb90] sm:$0xff]
    %v1035 = vld [vmem:[#allocation5 + $0xb98] sm:$0xff]
    %v1036 = vld [vmem:[#allocation5 + $0xba0] sm:$0xff]
    %v1037 = vld [vmem:[#allocation5 + $0xba8] sm:$0xff]
    %v1038 = vld [vmem:[#allocation5 + $0xbb0] sm:$0xff]
    %v1039 = vld [vmem:[#allocation5 + $0xbb8] sm:$0xff]
    %v1040 = vld [vmem:[#allocation5 + $0xbc0] sm:$0xff]
    %v1041 = vld [vmem:[#allocation5 + $0xbc8] sm:$0xff]
    %v1042 = vld [vmem:[#allocation5 + $0xbd0] sm:$0xff]
    %v1043 = vld [vmem:[#allocation5 + $0xbd8] sm:$0xff]
    %v1044 = vld [vmem:[#allocation5 + $0xbe0] sm:$0xff]
    %v1045 = vld [vmem:[#allocation5 + $0xbe8] sm:$0xff]
    %v1046 = vld [vmem:[#allocation5 + $0xbf0] sm:$0xff]
    %v1047 = vld [vmem:[#allocation5 + $0xbf8] sm:$0xff]
    %v1048 = vld [vmem:[#allocation5 + $0xc00] sm:$0xff]
    %v1049 = vld [vmem:[#allocation5 + $0xc08] sm:$0xff]
    %v1050 = vld [vmem:[#allocation5 + $0xc10] sm:$0xff]
    %v1051 = vld [vmem:[#allocation5 + $0xc18] sm:$0xff]
    %v1052 = vld [vmem:[#allocation5 + $0xc20] sm:$0xff]
    %v1053 = vld [vmem:[#allocation5 + $0xc28] sm:$0xff]
    %v1054 = vld [vmem:[#allocation5 + $0xc30] sm:$0xff]
    %v1055 = vld [vmem:[#allocation5 + $0xc38] sm:$0xff]
    %v1056 = vld [vmem:[#allocation5 + $0xc40] sm:$0xff]
    %v1057 = vld [vmem:[#allocation5 + $0xc48] sm:$0xff]
    %v1058 = vld [vmem:[#allocation5 + $0xc50] sm:$0xff]
    %v1059 = vld [vmem:[#allocation5 + $0xc58] sm:$0xff]
    %v1060 = vld [vmem:[#allocation5 + $0xc60] sm:$0xff]
    %v1061 = vld [vmem:[#allocation5 + $0xc68] sm:$0xff]
    %v1062 = vld [vmem:[#allocation5 + $0xc70] sm:$0xff]
    %v1063 = vld [vmem:[#allocation5 + $0xc78] sm:$0xff]
    %v1064 = vld [vmem:[#allocation5 + $0xc80] sm:$0xff]
    %v1065 = vld [vmem:[#allocation5 + $0xc88] sm:$0xff]
    %v1066 = vld [vmem:[#allocation5 + $0xc90] sm:$0xff]
    %v1067 = vld [vmem:[#allocation5 + $0xc98] sm:$0xff]
    %v1068 = vld [vmem:[#allocation5 + $0xca0] sm:$0xff]
    %v1069 = vld [vmem:[#allocation5 + $0xca8] sm:$0xff]
    %v1070 = vld [vmem:[#allocation5 + $0xcb0] sm:$0xff]
    %v1071 = vld [vmem:[#allocation5 + $0xcb8] sm:$0xff]
    %v1072 = vld [vmem:[#allocation5 + $0xcc0] sm:$0xff]
    %v1073 = vld [vmem:[#allocation5 + $0xcc8] sm:$0xff]
    %v1074 = vld [vmem:[#allocation5 + $0xcd0] sm:$0xff]
    %v1075 = vld [vmem:[#allocation5 + $0xcd8] sm:$0xff]
    %v1076 = vld [vmem:[#allocation5 + $0xce0] sm:$0xff]
    %v1077 = vld [vmem:[#allocation5 + $0xce8] sm:$0xff]
    %v1078 = vld [vmem:[#allocation5 + $0xcf0] sm:$0xff]
    %v1079 = vld [vmem:[#allocation5 + $0xcf8] sm:$0xff]
    %v1080 = vld [vmem:[#allocation5 + $0xd00] sm:$0xff]
    %v1081 = vld [vmem:[#allocation5 + $0xd08] sm:$0xff]
    %v1082 = vld [vmem:[#allocation5 + $0xd10] sm:$0xff]
    %v1083 = vld [vmem:[#allocation5 + $0xd18] sm:$0xff]
    %v1084 = vld [vmem:[#allocation5 + $0xd20] sm:$0xff]
    %v1085 = vld [vmem:[#allocation5 + $0xd28] sm:$0xff]
    %v1086 = vld [vmem:[#allocation5 + $0xd30] sm:$0xff]
    %v1087 = vld [vmem:[#allocation5 + $0xd38] sm:$0xff]
    %v1088 = vld [vmem:[#allocation5 + $0xd40] sm:$0xff]
    %v1089 = vld [vmem:[#allocation5 + $0xd48] sm:$0xff]
    %v1090 = vld [vmem:[#allocation5 + $0xd50] sm:$0xff]
    %v1091 = vld [vmem:[#allocation5 + $0xd58] sm:$0xff]
    %v1092 = vld [vmem:[#allocation5 + $0xd60] sm:$0xff]
    %v1093 = vld [vmem:[#allocation5 + $0xd68] sm:$0xff]
    %v1094 = vld [vmem:[#allocation5 + $0xd70] sm:$0xff]
    %v1095 = vld [vmem:[#allocation5 + $0xd78] sm:$0xff]
    %v1096 = vld [vmem:[#allocation5 + $0xd80] sm:$0xff]
    %v1097 = vld [vmem:[#allocation5 + $0xd88] sm:$0xff]
    %v1098 = vld [vmem:[#allocation5 + $0xd90] sm:$0xff]
    %v1099 = vld [vmem:[#allocation5 + $0xd98] sm:$0xff]
    %v1100 = vld [vmem:[#allocation5 + $0xda0] sm:$0xff]
    %v1101 = vld [vmem:[#allocation5 + $0xda8] sm:$0xff]
    %v1102 = vld [vmem:[#allocation5 + $0xdb0] sm:$0xff]
    %v1103 = vld [vmem:[#allocation5 + $0xdb8] sm:$0xff]
    %v1104 = vld [vmem:[#allocation5 + $0xdc0] sm:$0xff]
    %v1105 = vld [vmem:[#allocation5 + $0xdc8] sm:$0xff]
    %v1106 = vld [vmem:[#allocation5 + $0xdd0] sm:$0xff]
    %v1107 = vld [vmem:[#allocation5 + $0xdd8] sm:$0xff]
    %v1108 = vld [vmem:[#allocation5 + $0xde0] sm:$0xff]
    %v1109 = vld [vmem:[#allocation5 + $0xde8] sm:$0xff]
    %v1110 = vld [vmem:[#allocation5 + $0xdf0] sm:$0xff]
    %v1111 = vld [vmem:[#allocation5 + $0xdf8] sm:$0xff]
    %v1112 = vld [vmem:[#allocation5 + $0xe00] sm:$0xff]
    %v1113 = vld [vmem:[#allocation5 + $0xe08] sm:$0xff]
    %v1114 = vld [vmem:[#allocation5 + $0xe10] sm:$0xff]
    %v1115 = vld [vmem:[#allocation5 + $0xe18] sm:$0xff]
    %v1116 = vld [vmem:[#allocation5 + $0xe20] sm:$0xff]
    %v1117 = vld [vmem:[#allocation5 + $0xe28] sm:$0xff]
    %v1118 = vld [vmem:[#allocation5 + $0xe30] sm:$0xff]
    %v1119 = vld [vmem:[#allocation5 + $0xe38] sm:$0xff]
    %v1120 = vld [vmem:[#allocation5 + $0xe40] sm:$0xff]
    %v1121 = vld [vmem:[#allocation5 + $0xe48] sm:$0xff]
    %v1122 = vld [vmem:[#allocation5 + $0xe50] sm:$0xff]
    %v1123 = vld [vmem:[#allocation5 + $0xe58] sm:$0xff]
    %v1124 = vld [vmem:[#allocation5 + $0xe60] sm:$0xff]
    %v1125 = vld [vmem:[#allocation5 + $0xe68] sm:$0xff]
    %v1126 = vld [vmem:[#allocation5 + $0xe70] sm:$0xff]
    %v1127 = vld [vmem:[#allocation5 + $0xe78] sm:$0xff]
    %v1128 = vld [vmem:[#allocation5 + $0xe80] sm:$0xff]
    %v1129 = vld [vmem:[#allocation5 + $0xe88] sm:$0xff]
    %v1130 = vld [vmem:[#allocation5 + $0xe90] sm:$0xff]
    %v1131 = vld [vmem:[#allocation5 + $0xe98] sm:$0xff]
    %v1132 = vld [vmem:[#allocation5 + $0xea0] sm:$0xff]
    %v1133 = vld [vmem:[#allocation5 + $0xea8] sm:$0xff]
    %v1134 = vld [vmem:[#allocation5 + $0xeb0] sm:$0xff]
    %v1135 = vld [vmem:[#allocation5 + $0xeb8] sm:$0xff]
    %v1136 = vld [vmem:[#allocation5 + $0xec0] sm:$0xff]
    %v1137 = vld [vmem:[#allocation5 + $0xec8] sm:$0xff]
    %v1138 = vld [vmem:[#allocation5 + $0xed0] sm:$0xff]
    %v1139 = vld [vmem:[#allocation5 + $0xed8] sm:$0xff]
    %v1140 = vld [vmem:[#allocation5 + $0xee0] sm:$0xff]
    %v1141 = vld [vmem:[#allocation5 + $0xee8] sm:$0xff]
    %v1142 = vld [vmem:[#allocation5 + $0xef0] sm:$0xff]
    %v1143 = vld [vmem:[#allocation5 + $0xef8] sm:$0xff]
    %v1144 = vld [vmem:[#allocation5 + $0xf00] sm:$0xff]
    %v1145 = vld [vmem:[#allocation5 + $0xf08] sm:$0xff]
    %v1146 = vld [vmem:[#allocation5 + $0xf10] sm:$0xff]
    %v1147 = vld [vmem:[#allocation5 + $0xf18] sm:$0xff]
    %v1148 = vld [vmem:[#allocation5 + $0xf20] sm:$0xff]
    %v1149 = vld [vmem:[#allocation5 + $0xf28] sm:$0xff]
    %v1150 = vld [vmem:[#allocation5 + $0xf30] sm:$0xff]
    %v1151 = vld [vmem:[#allocation5 + $0xf38] sm:$0xff]
    %v1152 = vld [vmem:[#allocation5 + $0xf40] sm:$0xff]
    %v1153 = vld [vmem:[#allocation5 + $0xf48] sm:$0xff]
    %v1154 = vld [vmem:[#allocation5 + $0xf50] sm:$0xff]
    %v1155 = vld [vmem:[#allocation5 + $0xf58] sm:$0xff]
    %v1156 = vld [vmem:[#allocation5 + $0xf60] sm:$0xff]
    %v1157 = vld [vmem:[#allocation5 + $0xf68] sm:$0xff]
    %v1158 = vld [vmem:[#allocation5 + $0xf70] sm:$0xff]
    %v1159 = vld [vmem:[#allocation5 + $0xf78] sm:$0xff]
    %v1160 = vld [vmem:[#allocation5 + $0xf80] sm:$0xff]
    %v1161 = vld [vmem:[#allocation5 + $0xf88] sm:$0xff]
    %v1162 = vld [vmem:[#allocation5 + $0xf90] sm:$0xff]
    %v1163 = vld [vmem:[#allocation5 + $0xf98] sm:$0xff]
    %v1164 = vld [vmem:[#allocation5 + $0xfa0] sm:$0xff]
    %v1165 = vld [vmem:[#allocation5 + $0xfa8] sm:$0xff]
    %v1166 = vld [vmem:[#allocation5 + $0xfb0] sm:$0xff]
    %v1167 = vld [vmem:[#allocation5 + $0xfb8] sm:$0xff]
    %v1168 = vld [vmem:[#allocation5 + $0xfc0] sm:$0xff]
    %v1169 = vld [vmem:[#allocation5 + $0xfc8] sm:$0xff]
    %v1170 = vld [vmem:[#allocation5 + $0xfd0] sm:$0xff]
    %v1171 = vld [vmem:[#allocation5 + $0xfd8] sm:$0xff]
    %v1172 = vld [vmem:[#allocation5 + $0xfe0] sm:$0xff]
    %v1173 = vld [vmem:[#allocation5 + $0xfe8] sm:$0xff]
    %v1174 = vld [vmem:[#allocation5 + $0xff0] sm:$0xff]
    %v1175 = vld [vmem:[#allocation5 + $0xff8] sm:$0xff]
    %v1176 = vpack.c.bf16 %v414, %v414
    %v1177 = vpack.c.bf16 %v421, %v421
    %v1178 = vpack.c.bf16 %v428, %v428
    %v1179 = vpack.c.bf16 %v435, %v435
    %v1180 = vpack.c.bf16 %v442, %v442
    %v1181 = vpack.c.bf16 %v449, %v449
    %v1182 = vpack.c.bf16 %v456, %v456
    %v1183 = vpack.c.bf16 %v463, %v463
    %v1184 = vpack.c.bf16 %v470, %v470
    %v1185 = vpack.c.bf16 %v477, %v477
    %v1186 = vpack.c.bf16 %v484, %v484
    %v1187 = vpack.c.bf16 %v491, %v491
    %v1188 = vpack.c.bf16 %v498, %v498
    %v1189 = vpack.c.bf16 %v505, %v505
    %v1190 = vpack.c.bf16 %v512, %v512
    %v1191 = vpack.c.bf16 %v519, %v519
    %v1192 = vpack.c.bf16 %v526, %v526
    %v1193 = vpack.c.bf16 %v533, %v533
    %v1194 = vpack.c.bf16 %v540, %v540
    %v1195 = vpack.c.bf16 %v547, %v547
    %v1196 = vpack.c.bf16 %v554, %v554
    %v1197 = vpack.c.bf16 %v561, %v561
    %v1198 = vpack.c.bf16 %v568, %v568
    %v1199 = vpack.c.bf16 %v575, %v575
    %v1200 = vpack.c.bf16 %v582, %v582
    %v1201 = vpack.c.bf16 %v589, %v589
    %v1202 = vpack.c.bf16 %v596, %v596
    %v1203 = vpack.c.bf16 %v603, %v603
    %v1204 = vpack.c.bf16 %v610, %v610
    %v1205 = vpack.c.bf16 %v617, %v617
    %v1206 = vpack.c.bf16 %v624, %v624
    %v1207 = vpack.c.bf16 %v631, %v631
    %v1208 = vld [vmem:[#allocation7] sm:$0xff]
    %v1209 = vld [vmem:[#allocation7 + $0x8] sm:$0xff]
    %v1210 = vld [vmem:[#allocation7 + $0x10] sm:$0xff]
    %v1211 = vld [vmem:[#allocation7 + $0x18] sm:$0xff]
    %v1212 = vld [vmem:[#allocation7 + $0x20] sm:$0xff]
    %v1213 = vld [vmem:[#allocation7 + $0x28] sm:$0xff]
    %v1214 = vld [vmem:[#allocation7 + $0x30] sm:$0xff]
    %v1215 = vld [vmem:[#allocation7 + $0x38] sm:$0xff]
    %v1216 = vld [vmem:[#allocation7 + $0x40] sm:$0xff]
    %v1217 = vld [vmem:[#allocation7 + $0x48] sm:$0xff]
    %v1218 = vld [vmem:[#allocation7 + $0x50] sm:$0xff]
    %v1219 = vld [vmem:[#allocation7 + $0x58] sm:$0xff]
    %v1220 = vld [vmem:[#allocation7 + $0x60] sm:$0xff]
    %v1221 = vld [vmem:[#allocation7 + $0x68] sm:$0xff]
    %v1222 = vld [vmem:[#allocation7 + $0x70] sm:$0xff]
    %v1223 = vld [vmem:[#allocation7 + $0x78] sm:$0xff]
    %v1224 = vld [vmem:[#allocation7 + $0x80] sm:$0xff]
    %v1225 = vld [vmem:[#allocation7 + $0x88] sm:$0xff]
    %v1226 = vld [vmem:[#allocation7 + $0x90] sm:$0xff]
    %v1227 = vld [vmem:[#allocation7 + $0x98] sm:$0xff]
    %v1228 = vld [vmem:[#allocation7 + $0xa0] sm:$0xff]
    %v1229 = vld [vmem:[#allocation7 + $0xa8] sm:$0xff]
    %v1230 = vld [vmem:[#allocation7 + $0xb0] sm:$0xff]
    %v1231 = vld [vmem:[#allocation7 + $0xb8] sm:$0xff]
    %v1232 = vld [vmem:[#allocation7 + $0xc0] sm:$0xff]
    %v1233 = vld [vmem:[#allocation7 + $0xc8] sm:$0xff]
    %v1234 = vld [vmem:[#allocation7 + $0xd0] sm:$0xff]
    %v1235 = vld [vmem:[#allocation7 + $0xd8] sm:$0xff]
    %v1236 = vld [vmem:[#allocation7 + $0xe0] sm:$0xff]
    %v1237 = vld [vmem:[#allocation7 + $0xe8] sm:$0xff]
    %v1238 = vld [vmem:[#allocation7 + $0xf0] sm:$0xff]
    %v1239 = vld [vmem:[#allocation7 + $0xf8] sm:$0xff]
    %v1240 = vld [vmem:[#allocation7 + $0x100] sm:$0xff]
    %v1241 = vld [vmem:[#allocation7 + $0x108] sm:$0xff]
    %v1242 = vld [vmem:[#allocation7 + $0x110] sm:$0xff]
    %v1243 = vld [vmem:[#allocation7 + $0x118] sm:$0xff]
    %v1244 = vld [vmem:[#allocation7 + $0x120] sm:$0xff]
    %v1245 = vld [vmem:[#allocation7 + $0x128] sm:$0xff]
    %v1246 = vld [vmem:[#allocation7 + $0x130] sm:$0xff]
    %v1247 = vld [vmem:[#allocation7 + $0x138] sm:$0xff]
    %v1248 = vld [vmem:[#allocation7 + $0x140] sm:$0xff]
    %v1249 = vld [vmem:[#allocation7 + $0x148] sm:$0xff]
    %v1250 = vld [vmem:[#allocation7 + $0x150] sm:$0xff]
    %v1251 = vld [vmem:[#allocation7 + $0x158] sm:$0xff]
    %v1252 = vld [vmem:[#allocation7 + $0x160] sm:$0xff]
    %v1253 = vld [vmem:[#allocation7 + $0x168] sm:$0xff]
    %v1254 = vld [vmem:[#allocation7 + $0x170] sm:$0xff]
    %v1255 = vld [vmem:[#allocation7 + $0x178] sm:$0xff]
    %v1256 = vld [vmem:[#allocation7 + $0x180] sm:$0xff]
    %v1257 = vld [vmem:[#allocation7 + $0x188] sm:$0xff]
    %v1258 = vld [vmem:[#allocation7 + $0x190] sm:$0xff]
    %v1259 = vld [vmem:[#allocation7 + $0x198] sm:$0xff]
    %v1260 = vld [vmem:[#allocation7 + $0x1a0] sm:$0xff]
    %v1261 = vld [vmem:[#allocation7 + $0x1a8] sm:$0xff]
    %v1262 = vld [vmem:[#allocation7 + $0x1b0] sm:$0xff]
    %v1263 = vld [vmem:[#allocation7 + $0x1b8] sm:$0xff]
    %v1264 = vld [vmem:[#allocation7 + $0x1c0] sm:$0xff]
    %v1265 = vld [vmem:[#allocation7 + $0x1c8] sm:$0xff]
    %v1266 = vld [vmem:[#allocation7 + $0x1d0] sm:$0xff]
    %v1267 = vld [vmem:[#allocation7 + $0x1d8] sm:$0xff]
    %v1268 = vld [vmem:[#allocation7 + $0x1e0] sm:$0xff]
    %v1269 = vld [vmem:[#allocation7 + $0x1e8] sm:$0xff]
    %v1270 = vld [vmem:[#allocation7 + $0x1f0] sm:$0xff]
    %v1271 = vld [vmem:[#allocation7 + $0x1f8] sm:$0xff]
    %v1272 = vld [vmem:[#allocation7 + $0x200] sm:$0xff]
    %v1273 = vld [vmem:[#allocation7 + $0x208] sm:$0xff]
    %v1274 = vld [vmem:[#allocation7 + $0x210] sm:$0xff]
    %v1275 = vld [vmem:[#allocation7 + $0x218] sm:$0xff]
    %v1276 = vld [vmem:[#allocation7 + $0x220] sm:$0xff]
    %v1277 = vld [vmem:[#allocation7 + $0x228] sm:$0xff]
    %v1278 = vld [vmem:[#allocation7 + $0x230] sm:$0xff]
    %v1279 = vld [vmem:[#allocation7 + $0x238] sm:$0xff]
    %v1280 = vld [vmem:[#allocation7 + $0x240] sm:$0xff]
    %v1281 = vld [vmem:[#allocation7 + $0x248] sm:$0xff]
    %v1282 = vld [vmem:[#allocation7 + $0x250] sm:$0xff]
    %v1283 = vld [vmem:[#allocation7 + $0x258] sm:$0xff]
    %v1284 = vld [vmem:[#allocation7 + $0x260] sm:$0xff]
    %v1285 = vld [vmem:[#allocation7 + $0x268] sm:$0xff]
    %v1286 = vld [vmem:[#allocation7 + $0x270] sm:$0xff]
    %v1287 = vld [vmem:[#allocation7 + $0x278] sm:$0xff]
    %v1288 = vld [vmem:[#allocation7 + $0x280] sm:$0xff]
    %v1289 = vld [vmem:[#allocation7 + $0x288] sm:$0xff]
    %v1290 = vld [vmem:[#allocation7 + $0x290] sm:$0xff]
    %v1291 = vld [vmem:[#allocation7 + $0x298] sm:$0xff]
    %v1292 = vld [vmem:[#allocation7 + $0x2a0] sm:$0xff]
    %v1293 = vld [vmem:[#allocation7 + $0x2a8] sm:$0xff]
    %v1294 = vld [vmem:[#allocation7 + $0x2b0] sm:$0xff]
    %v1295 = vld [vmem:[#allocation7 + $0x2b8] sm:$0xff]
    %v1296 = vld [vmem:[#allocation7 + $0x2c0] sm:$0xff]
    %v1297 = vld [vmem:[#allocation7 + $0x2c8] sm:$0xff]
    %v1298 = vld [vmem:[#allocation7 + $0x2d0] sm:$0xff]
    %v1299 = vld [vmem:[#allocation7 + $0x2d8] sm:$0xff]
    %v1300 = vld [vmem:[#allocation7 + $0x2e0] sm:$0xff]
    %v1301 = vld [vmem:[#allocation7 + $0x2e8] sm:$0xff]
    %v1302 = vld [vmem:[#allocation7 + $0x2f0] sm:$0xff]
    %v1303 = vld [vmem:[#allocation7 + $0x2f8] sm:$0xff]
    %v1304 = vld [vmem:[#allocation7 + $0x300] sm:$0xff]
    %v1305 = vld [vmem:[#allocation7 + $0x308] sm:$0xff]
    %v1306 = vld [vmem:[#allocation7 + $0x310] sm:$0xff]
    %v1307 = vld [vmem:[#allocation7 + $0x318] sm:$0xff]
    %v1308 = vld [vmem:[#allocation7 + $0x320] sm:$0xff]
    %v1309 = vld [vmem:[#allocation7 + $0x328] sm:$0xff]
    %v1310 = vld [vmem:[#allocation7 + $0x330] sm:$0xff]
    %v1311 = vld [vmem:[#allocation7 + $0x338] sm:$0xff]
    %v1312 = vld [vmem:[#allocation7 + $0x340] sm:$0xff]
    %v1313 = vld [vmem:[#allocation7 + $0x348] sm:$0xff]
    %v1314 = vld [vmem:[#allocation7 + $0x350] sm:$0xff]
    %v1315 = vld [vmem:[#allocation7 + $0x358] sm:$0xff]
    %v1316 = vld [vmem:[#allocation7 + $0x360] sm:$0xff]
    %v1317 = vld [vmem:[#allocation7 + $0x368] sm:$0xff]
    %v1318 = vld [vmem:[#allocation7 + $0x370] sm:$0xff]
    %v1319 = vld [vmem:[#allocation7 + $0x378] sm:$0xff]
    %v1320 = vld [vmem:[#allocation7 + $0x380] sm:$0xff]
    %v1321 = vld [vmem:[#allocation7 + $0x388] sm:$0xff]
    %v1322 = vld [vmem:[#allocation7 + $0x390] sm:$0xff]
    %v1323 = vld [vmem:[#allocation7 + $0x398] sm:$0xff]
    %v1324 = vld [vmem:[#allocation7 + $0x3a0] sm:$0xff]
    %v1325 = vld [vmem:[#allocation7 + $0x3a8] sm:$0xff]
    %v1326 = vld [vmem:[#allocation7 + $0x3b0] sm:$0xff]
    %v1327 = vld [vmem:[#allocation7 + $0x3b8] sm:$0xff]
    %v1328 = vld [vmem:[#allocation7 + $0x3c0] sm:$0xff]
    %v1329 = vld [vmem:[#allocation7 + $0x3c8] sm:$0xff]
    %v1330 = vld [vmem:[#allocation7 + $0x3d0] sm:$0xff]
    %v1331 = vld [vmem:[#allocation7 + $0x3d8] sm:$0xff]
    %v1332 = vld [vmem:[#allocation7 + $0x3e0] sm:$0xff]
    %v1333 = vld [vmem:[#allocation7 + $0x3e8] sm:$0xff]
    %v1334 = vld [vmem:[#allocation7 + $0x3f0] sm:$0xff]
    %v1335 = vld [vmem:[#allocation7 + $0x3f8] sm:$0xff]
    %v1336 = vld [vmem:[#allocation7 + $0x400] sm:$0xff]
    %v1337 = vld [vmem:[#allocation7 + $0x408] sm:$0xff]
    %v1338 = vld [vmem:[#allocation7 + $0x410] sm:$0xff]
    %v1339 = vld [vmem:[#allocation7 + $0x418] sm:$0xff]
    %v1340 = vld [vmem:[#allocation7 + $0x420] sm:$0xff]
    %v1341 = vld [vmem:[#allocation7 + $0x428] sm:$0xff]
    %v1342 = vld [vmem:[#allocation7 + $0x430] sm:$0xff]
    %v1343 = vld [vmem:[#allocation7 + $0x438] sm:$0xff]
    %v1344 = vld [vmem:[#allocation7 + $0x440] sm:$0xff]
    %v1345 = vld [vmem:[#allocation7 + $0x448] sm:$0xff]
    %v1346 = vld [vmem:[#allocation7 + $0x450] sm:$0xff]
    %v1347 = vld [vmem:[#allocation7 + $0x458] sm:$0xff]
    %v1348 = vld [vmem:[#allocation7 + $0x460] sm:$0xff]
    %v1349 = vld [vmem:[#allocation7 + $0x468] sm:$0xff]
    %v1350 = vld [vmem:[#allocation7 + $0x470] sm:$0xff]
    %v1351 = vld [vmem:[#allocation7 + $0x478] sm:$0xff]
    %v1352 = vld [vmem:[#allocation7 + $0x480] sm:$0xff]
    %v1353 = vld [vmem:[#allocation7 + $0x488] sm:$0xff]
    %v1354 = vld [vmem:[#allocation7 + $0x490] sm:$0xff]
    %v1355 = vld [vmem:[#allocation7 + $0x498] sm:$0xff]
    %v1356 = vld [vmem:[#allocation7 + $0x4a0] sm:$0xff]
    %v1357 = vld [vmem:[#allocation7 + $0x4a8] sm:$0xff]
    %v1358 = vld [vmem:[#allocation7 + $0x4b0] sm:$0xff]
    %v1359 = vld [vmem:[#allocation7 + $0x4b8] sm:$0xff]
    %v1360 = vld [vmem:[#allocation7 + $0x4c0] sm:$0xff]
    %v1361 = vld [vmem:[#allocation7 + $0x4c8] sm:$0xff]
    %v1362 = vld [vmem:[#allocation7 + $0x4d0] sm:$0xff]
    %v1363 = vld [vmem:[#allocation7 + $0x4d8] sm:$0xff]
    %v1364 = vld [vmem:[#allocation7 + $0x4e0] sm:$0xff]
    %v1365 = vld [vmem:[#allocation7 + $0x4e8] sm:$0xff]
    %v1366 = vld [vmem:[#allocation7 + $0x4f0] sm:$0xff]
    %v1367 = vld [vmem:[#allocation7 + $0x4f8] sm:$0xff]
    %v1368 = vld [vmem:[#allocation7 + $0x500] sm:$0xff]
    %v1369 = vld [vmem:[#allocation7 + $0x508] sm:$0xff]
    %v1370 = vld [vmem:[#allocation7 + $0x510] sm:$0xff]
    %v1371 = vld [vmem:[#allocation7 + $0x518] sm:$0xff]
    %v1372 = vld [vmem:[#allocation7 + $0x520] sm:$0xff]
    %v1373 = vld [vmem:[#allocation7 + $0x528] sm:$0xff]
    %v1374 = vld [vmem:[#allocation7 + $0x530] sm:$0xff]
    %v1375 = vld [vmem:[#allocation7 + $0x538] sm:$0xff]
    %v1376 = vld [vmem:[#allocation7 + $0x540] sm:$0xff]
    %v1377 = vld [vmem:[#allocation7 + $0x548] sm:$0xff]
    %v1378 = vld [vmem:[#allocation7 + $0x550] sm:$0xff]
    %v1379 = vld [vmem:[#allocation7 + $0x558] sm:$0xff]
    %v1380 = vld [vmem:[#allocation7 + $0x560] sm:$0xff]
    %v1381 = vld [vmem:[#allocation7 + $0x568] sm:$0xff]
    %v1382 = vld [vmem:[#allocation7 + $0x570] sm:$0xff]
    %v1383 = vld [vmem:[#allocation7 + $0x578] sm:$0xff]
    %v1384 = vld [vmem:[#allocation7 + $0x580] sm:$0xff]
    %v1385 = vld [vmem:[#allocation7 + $0x588] sm:$0xff]
    %v1386 = vld [vmem:[#allocation7 + $0x590] sm:$0xff]
    %v1387 = vld [vmem:[#allocation7 + $0x598] sm:$0xff]
    %v1388 = vld [vmem:[#allocation7 + $0x5a0] sm:$0xff]
    %v1389 = vld [vmem:[#allocation7 + $0x5a8] sm:$0xff]
    %v1390 = vld [vmem:[#allocation7 + $0x5b0] sm:$0xff]
    %v1391 = vld [vmem:[#allocation7 + $0x5b8] sm:$0xff]
    %v1392 = vld [vmem:[#allocation7 + $0x5c0] sm:$0xff]
    %v1393 = vld [vmem:[#allocation7 + $0x5c8] sm:$0xff]
    %v1394 = vld [vmem:[#allocation7 + $0x5d0] sm:$0xff]
    %v1395 = vld [vmem:[#allocation7 + $0x5d8] sm:$0xff]
    %v1396 = vld [vmem:[#allocation7 + $0x5e0] sm:$0xff]
    %v1397 = vld [vmem:[#allocation7 + $0x5e8] sm:$0xff]
    %v1398 = vld [vmem:[#allocation7 + $0x5f0] sm:$0xff]
    %v1399 = vld [vmem:[#allocation7 + $0x5f8] sm:$0xff]
    %v1400 = vld [vmem:[#allocation7 + $0x600] sm:$0xff]
    %v1401 = vld [vmem:[#allocation7 + $0x608] sm:$0xff]
    %v1402 = vld [vmem:[#allocation7 + $0x610] sm:$0xff]
    %v1403 = vld [vmem:[#allocation7 + $0x618] sm:$0xff]
    %v1404 = vld [vmem:[#allocation7 + $0x620] sm:$0xff]
    %v1405 = vld [vmem:[#allocation7 + $0x628] sm:$0xff]
    %v1406 = vld [vmem:[#allocation7 + $0x630] sm:$0xff]
    %v1407 = vld [vmem:[#allocation7 + $0x638] sm:$0xff]
    %v1408 = vld [vmem:[#allocation7 + $0x640] sm:$0xff]
    %v1409 = vld [vmem:[#allocation7 + $0x648] sm:$0xff]
    %v1410 = vld [vmem:[#allocation7 + $0x650] sm:$0xff]
    %v1411 = vld [vmem:[#allocation7 + $0x658] sm:$0xff]
    %v1412 = vld [vmem:[#allocation7 + $0x660] sm:$0xff]
    %v1413 = vld [vmem:[#allocation7 + $0x668] sm:$0xff]
    %v1414 = vld [vmem:[#allocation7 + $0x670] sm:$0xff]
    %v1415 = vld [vmem:[#allocation7 + $0x678] sm:$0xff]
    %v1416 = vld [vmem:[#allocation7 + $0x680] sm:$0xff]
    %v1417 = vld [vmem:[#allocation7 + $0x688] sm:$0xff]
    %v1418 = vld [vmem:[#allocation7 + $0x690] sm:$0xff]
    %v1419 = vld [vmem:[#allocation7 + $0x698] sm:$0xff]
    %v1420 = vld [vmem:[#allocation7 + $0x6a0] sm:$0xff]
    %v1421 = vld [vmem:[#allocation7 + $0x6a8] sm:$0xff]
    %v1422 = vld [vmem:[#allocation7 + $0x6b0] sm:$0xff]
    %v1423 = vld [vmem:[#allocation7 + $0x6b8] sm:$0xff]
    %v1424 = vld [vmem:[#allocation7 + $0x6c0] sm:$0xff]
    %v1425 = vld [vmem:[#allocation7 + $0x6c8] sm:$0xff]
    %v1426 = vld [vmem:[#allocation7 + $0x6d0] sm:$0xff]
    %v1427 = vld [vmem:[#allocation7 + $0x6d8] sm:$0xff]
    %v1428 = vld [vmem:[#allocation7 + $0x6e0] sm:$0xff]
    %v1429 = vld [vmem:[#allocation7 + $0x6e8] sm:$0xff]
    %v1430 = vld [vmem:[#allocation7 + $0x6f0] sm:$0xff]
    %v1431 = vld [vmem:[#allocation7 + $0x6f8] sm:$0xff]
    %v1432 = vld [vmem:[#allocation7 + $0x700] sm:$0xff]
    %v1433 = vld [vmem:[#allocation7 + $0x708] sm:$0xff]
    %v1434 = vld [vmem:[#allocation7 + $0x710] sm:$0xff]
    %v1435 = vld [vmem:[#allocation7 + $0x718] sm:$0xff]
    %v1436 = vld [vmem:[#allocation7 + $0x720] sm:$0xff]
    %v1437 = vld [vmem:[#allocation7 + $0x728] sm:$0xff]
    %v1438 = vld [vmem:[#allocation7 + $0x730] sm:$0xff]
    %v1439 = vld [vmem:[#allocation7 + $0x738] sm:$0xff]
    %v1440 = vld [vmem:[#allocation7 + $0x740] sm:$0xff]
    %v1441 = vld [vmem:[#allocation7 + $0x748] sm:$0xff]
    %v1442 = vld [vmem:[#allocation7 + $0x750] sm:$0xff]
    %v1443 = vld [vmem:[#allocation7 + $0x758] sm:$0xff]
    %v1444 = vld [vmem:[#allocation7 + $0x760] sm:$0xff]
    %v1445 = vld [vmem:[#allocation7 + $0x768] sm:$0xff]
    %v1446 = vld [vmem:[#allocation7 + $0x770] sm:$0xff]
    %v1447 = vld [vmem:[#allocation7 + $0x778] sm:$0xff]
    %v1448 = vld [vmem:[#allocation7 + $0x780] sm:$0xff]
    %v1449 = vld [vmem:[#allocation7 + $0x788] sm:$0xff]
    %v1450 = vld [vmem:[#allocation7 + $0x790] sm:$0xff]
    %v1451 = vld [vmem:[#allocation7 + $0x798] sm:$0xff]
    %v1452 = vld [vmem:[#allocation7 + $0x7a0] sm:$0xff]
    %v1453 = vld [vmem:[#allocation7 + $0x7a8] sm:$0xff]
    %v1454 = vld [vmem:[#allocation7 + $0x7b0] sm:$0xff]
    %v1455 = vld [vmem:[#allocation7 + $0x7b8] sm:$0xff]
    %v1456 = vld [vmem:[#allocation7 + $0x7c0] sm:$0xff]
    %v1457 = vld [vmem:[#allocation7 + $0x7c8] sm:$0xff]
    %v1458 = vld [vmem:[#allocation7 + $0x7d0] sm:$0xff]
    %v1459 = vld [vmem:[#allocation7 + $0x7d8] sm:$0xff]
    %v1460 = vld [vmem:[#allocation7 + $0x7e0] sm:$0xff]
    %v1461 = vld [vmem:[#allocation7 + $0x7e8] sm:$0xff]
    %v1462 = vld [vmem:[#allocation7 + $0x7f0] sm:$0xff]
    %v1463 = vld [vmem:[#allocation7 + $0x7f8] sm:$0xff]
    %v1464 = vld [vmem:[#allocation7 + $0x800] sm:$0xff]
    %v1465 = vld [vmem:[#allocation7 + $0x808] sm:$0xff]
    %v1466 = vld [vmem:[#allocation7 + $0x810] sm:$0xff]
    %v1467 = vld [vmem:[#allocation7 + $0x818] sm:$0xff]
    %v1468 = vld [vmem:[#allocation7 + $0x820] sm:$0xff]
    %v1469 = vld [vmem:[#allocation7 + $0x828] sm:$0xff]
    %v1470 = vld [vmem:[#allocation7 + $0x830] sm:$0xff]
    %v1471 = vld [vmem:[#allocation7 + $0x838] sm:$0xff]
    %v1472 = vld [vmem:[#allocation7 + $0x840] sm:$0xff]
    %v1473 = vld [vmem:[#allocation7 + $0x848] sm:$0xff]
    %v1474 = vld [vmem:[#allocation7 + $0x850] sm:$0xff]
    %v1475 = vld [vmem:[#allocation7 + $0x858] sm:$0xff]
    %v1476 = vld [vmem:[#allocation7 + $0x860] sm:$0xff]
    %v1477 = vld [vmem:[#allocation7 + $0x868] sm:$0xff]
    %v1478 = vld [vmem:[#allocation7 + $0x870] sm:$0xff]
    %v1479 = vld [vmem:[#allocation7 + $0x878] sm:$0xff]
    %v1480 = vld [vmem:[#allocation7 + $0x880] sm:$0xff]
    %v1481 = vld [vmem:[#allocation7 + $0x888] sm:$0xff]
    %v1482 = vld [vmem:[#allocation7 + $0x890] sm:$0xff]
    %v1483 = vld [vmem:[#allocation7 + $0x898] sm:$0xff]
    %v1484 = vld [vmem:[#allocation7 + $0x8a0] sm:$0xff]
    %v1485 = vld [vmem:[#allocation7 + $0x8a8] sm:$0xff]
    %v1486 = vld [vmem:[#allocation7 + $0x8b0] sm:$0xff]
    %v1487 = vld [vmem:[#allocation7 + $0x8b8] sm:$0xff]
    %v1488 = vld [vmem:[#allocation7 + $0x8c0] sm:$0xff]
    %v1489 = vld [vmem:[#allocation7 + $0x8c8] sm:$0xff]
    %v1490 = vld [vmem:[#allocation7 + $0x8d0] sm:$0xff]
    %v1491 = vld [vmem:[#allocation7 + $0x8d8] sm:$0xff]
    %v1492 = vld [vmem:[#allocation7 + $0x8e0] sm:$0xff]
    %v1493 = vld [vmem:[#allocation7 + $0x8e8] sm:$0xff]
    %v1494 = vld [vmem:[#allocation7 + $0x8f0] sm:$0xff]
    %v1495 = vld [vmem:[#allocation7 + $0x8f8] sm:$0xff]
    %v1496 = vld [vmem:[#allocation7 + $0x900] sm:$0xff]
    %v1497 = vld [vmem:[#allocation7 + $0x908] sm:$0xff]
    %v1498 = vld [vmem:[#allocation7 + $0x910] sm:$0xff]
    %v1499 = vld [vmem:[#allocation7 + $0x918] sm:$0xff]
    %v1500 = vld [vmem:[#allocation7 + $0x920] sm:$0xff]
    %v1501 = vld [vmem:[#allocation7 + $0x928] sm:$0xff]
    %v1502 = vld [vmem:[#allocation7 + $0x930] sm:$0xff]
    %v1503 = vld [vmem:[#allocation7 + $0x938] sm:$0xff]
    %v1504 = vld [vmem:[#allocation7 + $0x940] sm:$0xff]
    %v1505 = vld [vmem:[#allocation7 + $0x948] sm:$0xff]
    %v1506 = vld [vmem:[#allocation7 + $0x950] sm:$0xff]
    %v1507 = vld [vmem:[#allocation7 + $0x958] sm:$0xff]
    %v1508 = vld [vmem:[#allocation7 + $0x960] sm:$0xff]
    %v1509 = vld [vmem:[#allocation7 + $0x968] sm:$0xff]
    %v1510 = vld [vmem:[#allocation7 + $0x970] sm:$0xff]
    %v1511 = vld [vmem:[#allocation7 + $0x978] sm:$0xff]
    %v1512 = vld [vmem:[#allocation7 + $0x980] sm:$0xff]
    %v1513 = vld [vmem:[#allocation7 + $0x988] sm:$0xff]
    %v1514 = vld [vmem:[#allocation7 + $0x990] sm:$0xff]
    %v1515 = vld [vmem:[#allocation7 + $0x998] sm:$0xff]
    %v1516 = vld [vmem:[#allocation7 + $0x9a0] sm:$0xff]
    %v1517 = vld [vmem:[#allocation7 + $0x9a8] sm:$0xff]
    %v1518 = vld [vmem:[#allocation7 + $0x9b0] sm:$0xff]
    %v1519 = vld [vmem:[#allocation7 + $0x9b8] sm:$0xff]
    %v1520 = vld [vmem:[#allocation7 + $0x9c0] sm:$0xff]
    %v1521 = vld [vmem:[#allocation7 + $0x9c8] sm:$0xff]
    %v1522 = vld [vmem:[#allocation7 + $0x9d0] sm:$0xff]
    %v1523 = vld [vmem:[#allocation7 + $0x9d8] sm:$0xff]
    %v1524 = vld [vmem:[#allocation7 + $0x9e0] sm:$0xff]
    %v1525 = vld [vmem:[#allocation7 + $0x9e8] sm:$0xff]
    %v1526 = vld [vmem:[#allocation7 + $0x9f0] sm:$0xff]
    %v1527 = vld [vmem:[#allocation7 + $0x9f8] sm:$0xff]
    %v1528 = vld [vmem:[#allocation7 + $0xa00] sm:$0xff]
    %v1529 = vld [vmem:[#allocation7 + $0xa08] sm:$0xff]
    %v1530 = vld [vmem:[#allocation7 + $0xa10] sm:$0xff]
    %v1531 = vld [vmem:[#allocation7 + $0xa18] sm:$0xff]
    %v1532 = vld [vmem:[#allocation7 + $0xa20] sm:$0xff]
    %v1533 = vld [vmem:[#allocation7 + $0xa28] sm:$0xff]
    %v1534 = vld [vmem:[#allocation7 + $0xa30] sm:$0xff]
    %v1535 = vld [vmem:[#allocation7 + $0xa38] sm:$0xff]
    %v1536 = vld [vmem:[#allocation7 + $0xa40] sm:$0xff]
    %v1537 = vld [vmem:[#allocation7 + $0xa48] sm:$0xff]
    %v1538 = vld [vmem:[#allocation7 + $0xa50] sm:$0xff]
    %v1539 = vld [vmem:[#allocation7 + $0xa58] sm:$0xff]
    %v1540 = vld [vmem:[#allocation7 + $0xa60] sm:$0xff]
    %v1541 = vld [vmem:[#allocation7 + $0xa68] sm:$0xff]
    %v1542 = vld [vmem:[#allocation7 + $0xa70] sm:$0xff]
    %v1543 = vld [vmem:[#allocation7 + $0xa78] sm:$0xff]
    %v1544 = vld [vmem:[#allocation7 + $0xa80] sm:$0xff]
    %v1545 = vld [vmem:[#allocation7 + $0xa88] sm:$0xff]
    %v1546 = vld [vmem:[#allocation7 + $0xa90] sm:$0xff]
    %v1547 = vld [vmem:[#allocation7 + $0xa98] sm:$0xff]
    %v1548 = vld [vmem:[#allocation7 + $0xaa0] sm:$0xff]
    %v1549 = vld [vmem:[#allocation7 + $0xaa8] sm:$0xff]
    %v1550 = vld [vmem:[#allocation7 + $0xab0] sm:$0xff]
    %v1551 = vld [vmem:[#allocation7 + $0xab8] sm:$0xff]
    %v1552 = vld [vmem:[#allocation7 + $0xac0] sm:$0xff]
    %v1553 = vld [vmem:[#allocation7 + $0xac8] sm:$0xff]
    %v1554 = vld [vmem:[#allocation7 + $0xad0] sm:$0xff]
    %v1555 = vld [vmem:[#allocation7 + $0xad8] sm:$0xff]
    %v1556 = vld [vmem:[#allocation7 + $0xae0] sm:$0xff]
    %v1557 = vld [vmem:[#allocation7 + $0xae8] sm:$0xff]
    %v1558 = vld [vmem:[#allocation7 + $0xaf0] sm:$0xff]
    %v1559 = vld [vmem:[#allocation7 + $0xaf8] sm:$0xff]
    %v1560 = vld [vmem:[#allocation7 + $0xb00] sm:$0xff]
    %v1561 = vld [vmem:[#allocation7 + $0xb08] sm:$0xff]
    %v1562 = vld [vmem:[#allocation7 + $0xb10] sm:$0xff]
    %v1563 = vld [vmem:[#allocation7 + $0xb18] sm:$0xff]
    %v1564 = vld [vmem:[#allocation7 + $0xb20] sm:$0xff]
    %v1565 = vld [vmem:[#allocation7 + $0xb28] sm:$0xff]
    %v1566 = vld [vmem:[#allocation7 + $0xb30] sm:$0xff]
    %v1567 = vld [vmem:[#allocation7 + $0xb38] sm:$0xff]
    %v1568 = vld [vmem:[#allocation7 + $0xb40] sm:$0xff]
    %v1569 = vld [vmem:[#allocation7 + $0xb48] sm:$0xff]
    %v1570 = vld [vmem:[#allocation7 + $0xb50] sm:$0xff]
    %v1571 = vld [vmem:[#allocation7 + $0xb58] sm:$0xff]
    %v1572 = vld [vmem:[#allocation7 + $0xb60] sm:$0xff]
    %v1573 = vld [vmem:[#allocation7 + $0xb68] sm:$0xff]
    %v1574 = vld [vmem:[#allocation7 + $0xb70] sm:$0xff]
    %v1575 = vld [vmem:[#allocation7 + $0xb78] sm:$0xff]
    %v1576 = vld [vmem:[#allocation7 + $0xb80] sm:$0xff]
    %v1577 = vld [vmem:[#allocation7 + $0xb88] sm:$0xff]
    %v1578 = vld [vmem:[#allocation7 + $0xb90] sm:$0xff]
    %v1579 = vld [vmem:[#allocation7 + $0xb98] sm:$0xff]
    %v1580 = vld [vmem:[#allocation7 + $0xba0] sm:$0xff]
    %v1581 = vld [vmem:[#allocation7 + $0xba8] sm:$0xff]
    %v1582 = vld [vmem:[#allocation7 + $0xbb0] sm:$0xff]
    %v1583 = vld [vmem:[#allocation7 + $0xbb8] sm:$0xff]
    %v1584 = vld [vmem:[#allocation7 + $0xbc0] sm:$0xff]
    %v1585 = vld [vmem:[#allocation7 + $0xbc8] sm:$0xff]
    %v1586 = vld [vmem:[#allocation7 + $0xbd0] sm:$0xff]
    %v1587 = vld [vmem:[#allocation7 + $0xbd8] sm:$0xff]
    %v1588 = vld [vmem:[#allocation7 + $0xbe0] sm:$0xff]
    %v1589 = vld [vmem:[#allocation7 + $0xbe8] sm:$0xff]
    %v1590 = vld [vmem:[#allocation7 + $0xbf0] sm:$0xff]
    %v1591 = vld [vmem:[#allocation7 + $0xbf8] sm:$0xff]
    %v1592 = vld [vmem:[#allocation7 + $0xc00] sm:$0xff]
    %v1593 = vld [vmem:[#allocation7 + $0xc08] sm:$0xff]
    %v1594 = vld [vmem:[#allocation7 + $0xc10] sm:$0xff]
    %v1595 = vld [vmem:[#allocation7 + $0xc18] sm:$0xff]
    %v1596 = vld [vmem:[#allocation7 + $0xc20] sm:$0xff]
    %v1597 = vld [vmem:[#allocation7 + $0xc28] sm:$0xff]
    %v1598 = vld [vmem:[#allocation7 + $0xc30] sm:$0xff]
    %v1599 = vld [vmem:[#allocation7 + $0xc38] sm:$0xff]
    %v1600 = vld [vmem:[#allocation7 + $0xc40] sm:$0xff]
    %v1601 = vld [vmem:[#allocation7 + $0xc48] sm:$0xff]
    %v1602 = vld [vmem:[#allocation7 + $0xc50] sm:$0xff]
    %v1603 = vld [vmem:[#allocation7 + $0xc58] sm:$0xff]
    %v1604 = vld [vmem:[#allocation7 + $0xc60] sm:$0xff]
    %v1605 = vld [vmem:[#allocation7 + $0xc68] sm:$0xff]
    %v1606 = vld [vmem:[#allocation7 + $0xc70] sm:$0xff]
    %v1607 = vld [vmem:[#allocation7 + $0xc78] sm:$0xff]
    %v1608 = vld [vmem:[#allocation7 + $0xc80] sm:$0xff]
    %v1609 = vld [vmem:[#allocation7 + $0xc88] sm:$0xff]
    %v1610 = vld [vmem:[#allocation7 + $0xc90] sm:$0xff]
    %v1611 = vld [vmem:[#allocation7 + $0xc98] sm:$0xff]
    %v1612 = vld [vmem:[#allocation7 + $0xca0] sm:$0xff]
    %v1613 = vld [vmem:[#allocation7 + $0xca8] sm:$0xff]
    %v1614 = vld [vmem:[#allocation7 + $0xcb0] sm:$0xff]
    %v1615 = vld [vmem:[#allocation7 + $0xcb8] sm:$0xff]
    %v1616 = vld [vmem:[#allocation7 + $0xcc0] sm:$0xff]
    %v1617 = vld [vmem:[#allocation7 + $0xcc8] sm:$0xff]
    %v1618 = vld [vmem:[#allocation7 + $0xcd0] sm:$0xff]
    %v1619 = vld [vmem:[#allocation7 + $0xcd8] sm:$0xff]
    %v1620 = vld [vmem:[#allocation7 + $0xce0] sm:$0xff]
    %v1621 = vld [vmem:[#allocation7 + $0xce8] sm:$0xff]
    %v1622 = vld [vmem:[#allocation7 + $0xcf0] sm:$0xff]
    %v1623 = vld [vmem:[#allocation7 + $0xcf8] sm:$0xff]
    %v1624 = vld [vmem:[#allocation7 + $0xd00] sm:$0xff]
    %v1625 = vld [vmem:[#allocation7 + $0xd08] sm:$0xff]
    %v1626 = vld [vmem:[#allocation7 + $0xd10] sm:$0xff]
    %v1627 = vld [vmem:[#allocation7 + $0xd18] sm:$0xff]
    %v1628 = vld [vmem:[#allocation7 + $0xd20] sm:$0xff]
    %v1629 = vld [vmem:[#allocation7 + $0xd28] sm:$0xff]
    %v1630 = vld [vmem:[#allocation7 + $0xd30] sm:$0xff]
    %v1631 = vld [vmem:[#allocation7 + $0xd38] sm:$0xff]
    %v1632 = vld [vmem:[#allocation7 + $0xd40] sm:$0xff]
    %v1633 = vld [vmem:[#allocation7 + $0xd48] sm:$0xff]
    %v1634 = vld [vmem:[#allocation7 + $0xd50] sm:$0xff]
    %v1635 = vld [vmem:[#allocation7 + $0xd58] sm:$0xff]
    %v1636 = vld [vmem:[#allocation7 + $0xd60] sm:$0xff]
    %v1637 = vld [vmem:[#allocation7 + $0xd68] sm:$0xff]
    %v1638 = vld [vmem:[#allocation7 + $0xd70] sm:$0xff]
    %v1639 = vld [vmem:[#allocation7 + $0xd78] sm:$0xff]
    %v1640 = vld [vmem:[#allocation7 + $0xd80] sm:$0xff]
    %v1641 = vld [vmem:[#allocation7 + $0xd88] sm:$0xff]
    %v1642 = vld [vmem:[#allocation7 + $0xd90] sm:$0xff]
    %v1643 = vld [vmem:[#allocation7 + $0xd98] sm:$0xff]
    %v1644 = vld [vmem:[#allocation7 + $0xda0] sm:$0xff]
    %v1645 = vld [vmem:[#allocation7 + $0xda8] sm:$0xff]
    %v1646 = vld [vmem:[#allocation7 + $0xdb0] sm:$0xff]
    %v1647 = vld [vmem:[#allocation7 + $0xdb8] sm:$0xff]
    %v1648 = vld [vmem:[#allocation7 + $0xdc0] sm:$0xff]
    %v1649 = vld [vmem:[#allocation7 + $0xdc8] sm:$0xff]
    %v1650 = vld [vmem:[#allocation7 + $0xdd0] sm:$0xff]
    %v1651 = vld [vmem:[#allocation7 + $0xdd8] sm:$0xff]
    %v1652 = vld [vmem:[#allocation7 + $0xde0] sm:$0xff]
    %v1653 = vld [vmem:[#allocation7 + $0xde8] sm:$0xff]
    %v1654 = vld [vmem:[#allocation7 + $0xdf0] sm:$0xff]
    %v1655 = vld [vmem:[#allocation7 + $0xdf8] sm:$0xff]
    %v1656 = vld [vmem:[#allocation7 + $0xe00] sm:$0xff]
    %v1657 = vld [vmem:[#allocation7 + $0xe08] sm:$0xff]
    %v1658 = vld [vmem:[#allocation7 + $0xe10] sm:$0xff]
    %v1659 = vld [vmem:[#allocation7 + $0xe18] sm:$0xff]
    %v1660 = vld [vmem:[#allocation7 + $0xe20] sm:$0xff]
    %v1661 = vld [vmem:[#allocation7 + $0xe28] sm:$0xff]
    %v1662 = vld [vmem:[#allocation7 + $0xe30] sm:$0xff]
    %v1663 = vld [vmem:[#allocation7 + $0xe38] sm:$0xff]
    %v1664 = vld [vmem:[#allocation7 + $0xe40] sm:$0xff]
    %v1665 = vld [vmem:[#allocation7 + $0xe48] sm:$0xff]
    %v1666 = vld [vmem:[#allocation7 + $0xe50] sm:$0xff]
    %v1667 = vld [vmem:[#allocation7 + $0xe58] sm:$0xff]
    %v1668 = vld [vmem:[#allocation7 + $0xe60] sm:$0xff]
    %v1669 = vld [vmem:[#allocation7 + $0xe68] sm:$0xff]
    %v1670 = vld [vmem:[#allocation7 + $0xe70] sm:$0xff]
    %v1671 = vld [vmem:[#allocation7 + $0xe78] sm:$0xff]
    %v1672 = vld [vmem:[#allocation7 + $0xe80] sm:$0xff]
    %v1673 = vld [vmem:[#allocation7 + $0xe88] sm:$0xff]
    %v1674 = vld [vmem:[#allocation7 + $0xe90] sm:$0xff]
    %v1675 = vld [vmem:[#allocation7 + $0xe98] sm:$0xff]
    %v1676 = vld [vmem:[#allocation7 + $0xea0] sm:$0xff]
    %v1677 = vld [vmem:[#allocation7 + $0xea8] sm:$0xff]
    %v1678 = vld [vmem:[#allocation7 + $0xeb0] sm:$0xff]
    %v1679 = vld [vmem:[#allocation7 + $0xeb8] sm:$0xff]
    %v1680 = vld [vmem:[#allocation7 + $0xec0] sm:$0xff]
    %v1681 = vld [vmem:[#allocation7 + $0xec8] sm:$0xff]
    %v1682 = vld [vmem:[#allocation7 + $0xed0] sm:$0xff]
    %v1683 = vld [vmem:[#allocation7 + $0xed8] sm:$0xff]
    %v1684 = vld [vmem:[#allocation7 + $0xee0] sm:$0xff]
    %v1685 = vld [vmem:[#allocation7 + $0xee8] sm:$0xff]
    %v1686 = vld [vmem:[#allocation7 + $0xef0] sm:$0xff]
    %v1687 = vld [vmem:[#allocation7 + $0xef8] sm:$0xff]
    %v1688 = vld [vmem:[#allocation7 + $0xf00] sm:$0xff]
    %v1689 = vld [vmem:[#allocation7 + $0xf08] sm:$0xff]
    %v1690 = vld [vmem:[#allocation7 + $0xf10] sm:$0xff]
    %v1691 = vld [vmem:[#allocation7 + $0xf18] sm:$0xff]
    %v1692 = vld [vmem:[#allocation7 + $0xf20] sm:$0xff]
    %v1693 = vld [vmem:[#allocation7 + $0xf28] sm:$0xff]
    %v1694 = vld [vmem:[#allocation7 + $0xf30] sm:$0xff]
    %v1695 = vld [vmem:[#allocation7 + $0xf38] sm:$0xff]
    %v1696 = vld [vmem:[#allocation7 + $0xf40] sm:$0xff]
    %v1697 = vld [vmem:[#allocation7 + $0xf48] sm:$0xff]
    %v1698 = vld [vmem:[#allocation7 + $0xf50] sm:$0xff]
    %v1699 = vld [vmem:[#allocation7 + $0xf58] sm:$0xff]
    %v1700 = vld [vmem:[#allocation7 + $0xf60] sm:$0xff]
    %v1701 = vld [vmem:[#allocation7 + $0xf68] sm:$0xff]
    %v1702 = vld [vmem:[#allocation7 + $0xf70] sm:$0xff]
    %v1703 = vld [vmem:[#allocation7 + $0xf78] sm:$0xff]
    %v1704 = vld [vmem:[#allocation7 + $0xf80] sm:$0xff]
    %v1705 = vld [vmem:[#allocation7 + $0xf88] sm:$0xff]
    %v1706 = vld [vmem:[#allocation7 + $0xf90] sm:$0xff]
    %v1707 = vld [vmem:[#allocation7 + $0xf98] sm:$0xff]
    %v1708 = vld [vmem:[#allocation7 + $0xfa0] sm:$0xff]
    %v1709 = vld [vmem:[#allocation7 + $0xfa8] sm:$0xff]
    %v1710 = vld [vmem:[#allocation7 + $0xfb0] sm:$0xff]
    %v1711 = vld [vmem:[#allocation7 + $0xfb8] sm:$0xff]
    %v1712 = vld [vmem:[#allocation7 + $0xfc0] sm:$0xff]
    %v1713 = vld [vmem:[#allocation7 + $0xfc8] sm:$0xff]
    %v1714 = vld [vmem:[#allocation7 + $0xfd0] sm:$0xff]
    %v1715 = vld [vmem:[#allocation7 + $0xfd8] sm:$0xff]
    %v1716 = vld [vmem:[#allocation7 + $0xfe0] sm:$0xff]
    %v1717 = vld [vmem:[#allocation7 + $0xfe8] sm:$0xff]
    %v1718 = vld [vmem:[#allocation7 + $0xff0] sm:$0xff]
    %v1719 = vld [vmem:[#allocation7 + $0xff8] sm:$0xff]
    %v1752 = vunpack.c.l.b16 %v1176
    %v1753 = vunpack.c.l.b16 %v1177
    %v1754 = vunpack.c.l.b16 %v1178
    %v1755 = vunpack.c.l.b16 %v1179
    %v1756 = vunpack.c.l.b16 %v1180
    %v1757 = vunpack.c.l.b16 %v1181
    %v1758 = vunpack.c.l.b16 %v1182
    %v1759 = vunpack.c.l.b16 %v1183
    %v1760 = vunpack.c.l.b16 %v1184
    %v1761 = vunpack.c.l.b16 %v1185
    %v1762 = vunpack.c.l.b16 %v1186
    %v1763 = vunpack.c.l.b16 %v1187
    %v1764 = vunpack.c.l.b16 %v1188
    %v1765 = vunpack.c.l.b16 %v1189
    %v1766 = vunpack.c.l.b16 %v1190
    %v1767 = vunpack.c.l.b16 %v1191
    %v1768 = vunpack.c.l.b16 %v1192
    %v1769 = vunpack.c.l.b16 %v1193
    %v1770 = vunpack.c.l.b16 %v1194
    %v1771 = vunpack.c.l.b16 %v1195
    %v1772 = vunpack.c.l.b16 %v1196
    %v1773 = vunpack.c.l.b16 %v1197
    %v1774 = vunpack.c.l.b16 %v1198
    %v1775 = vunpack.c.l.b16 %v1199
    %v1776 = vunpack.c.l.b16 %v1200
    %v1777 = vunpack.c.l.b16 %v1201
    %v1778 = vunpack.c.l.b16 %v1202
    %v1779 = vunpack.c.l.b16 %v1203
    %v1780 = vunpack.c.l.b16 %v1204
    %v1781 = vunpack.c.l.b16 %v1205
    %v1782 = vunpack.c.l.b16 %v1206
    %v1783 = vunpack.c.l.b16 %v1207
    %vm1784 = vcmask 1041409
    %v1785 = vsel %vm1784, %v1768, %v1752
    %v1786 = vsel %vm1784, %v1769, %v1753
    %v1787 = vsel %vm1784, %v1770, %v1754
    %v1788 = vsel %vm1784, %v1771, %v1755
    %v1789 = vsel %vm1784, %v1772, %v1756
    %v1790 = vsel %vm1784, %v1773, %v1757
    %v1791 = vsel %vm1784, %v1774, %v1758
    %v1792 = vsel %vm1784, %v1775, %v1759
    %v1793 = vsel %vm1784, %v1776, %v1760
    %v1794 = vsel %vm1784, %v1777, %v1761
    %v1795 = vsel %vm1784, %v1778, %v1762
    %v1796 = vsel %vm1784, %v1779, %v1763
    %v1797 = vsel %vm1784, %v1780, %v1764
    %v1798 = vsel %vm1784, %v1781, %v1765
    %v1799 = vsel %vm1784, %v1782, %v1766
    %v1800 = vsel %vm1784, %v1783, %v1767
    %v1801 = vpack.c.b16 %v1785, %v1785
    %v1802 = vpack.c.b16 %v1786, %v1786
    %v1803 = vpack.c.b16 %v1787, %v1787
    %v1804 = vpack.c.b16 %v1788, %v1788
    %v1805 = vpack.c.b16 %v1789, %v1789
    %v1806 = vpack.c.b16 %v1790, %v1790
    %v1807 = vpack.c.b16 %v1791, %v1791
    %v1808 = vpack.c.b16 %v1792, %v1792
    %v1809 = vpack.c.b16 %v1793, %v1793
    %v1810 = vpack.c.b16 %v1794, %v1794
    %v1811 = vpack.c.b16 %v1795, %v1795
    %v1812 = vpack.c.b16 %v1796, %v1796
    %v1813 = vpack.c.b16 %v1797, %v1797
    %v1814 = vpack.c.b16 %v1798, %v1798
    %v1815 = vpack.c.b16 %v1799, %v1799
    %v1816 = vpack.c.b16 %v1800, %v1800
    %v2345 = vunpack.c.l.b16 %v1208
    %v2346 = vunpack.c.h.b16 %v1208
    %v2347 = vunpack.c.l.b16 %v1209
    %v2348 = vunpack.c.h.b16 %v1209
    %v2349 = vunpack.c.l.b16 %v1210
    %v2350 = vunpack.c.h.b16 %v1210
    %v2351 = vunpack.c.l.b16 %v1211
    %v2352 = vunpack.c.h.b16 %v1211
    %v2353 = vunpack.c.l.b16 %v1212
    %v2354 = vunpack.c.h.b16 %v1212
    %v2355 = vunpack.c.l.b16 %v1213
    %v2356 = vunpack.c.h.b16 %v1213
    %v2357 = vunpack.c.l.b16 %v1214
    %v2358 = vunpack.c.h.b16 %v1214
    %v2359 = vunpack.c.l.b16 %v1215
    %v2360 = vunpack.c.h.b16 %v1215
    %v2361 = vunpack.c.l.b16 %v1216
    %v2362 = vunpack.c.h.b16 %v1216
    %v2363 = vunpack.c.l.b16 %v1217
    %v2364 = vunpack.c.h.b16 %v1217
    %v2365 = vunpack.c.l.b16 %v1218
    %v2366 = vunpack.c.h.b16 %v1218
    %v2367 = vunpack.c.l.b16 %v1219
    %v2368 = vunpack.c.h.b16 %v1219
    %v2369 = vunpack.c.l.b16 %v1220
    %v2370 = vunpack.c.h.b16 %v1220
    %v2371 = vunpack.c.l.b16 %v1221
    %v2372 = vunpack.c.h.b16 %v1221
    %v2373 = vunpack.c.l.b16 %v1222
    %v2374 = vunpack.c.h.b16 %v1222
    %v2375 = vunpack.c.l.b16 %v1223
    %v2376 = vunpack.c.h.b16 %v1223
    %v2377 = vunpack.c.l.b16 %v1224
    %v2378 = vunpack.c.h.b16 %v1224
    %v2379 = vunpack.c.l.b16 %v1225
    %v2380 = vunpack.c.h.b16 %v1225
    %v2381 = vunpack.c.l.b16 %v1226
    %v2382 = vunpack.c.h.b16 %v1226
    %v2383 = vunpack.c.l.b16 %v1227
    %v2384 = vunpack.c.h.b16 %v1227
    %v2385 = vunpack.c.l.b16 %v1228
    %v2386 = vunpack.c.h.b16 %v1228
    %v2387 = vunpack.c.l.b16 %v1229
    %v2388 = vunpack.c.h.b16 %v1229
    %v2389 = vunpack.c.l.b16 %v1230
    %v2390 = vunpack.c.h.b16 %v1230
    %v2391 = vunpack.c.l.b16 %v1231
    %v2392 = vunpack.c.h.b16 %v1231
    %v2393 = vunpack.c.l.b16 %v1232
    %v2394 = vunpack.c.h.b16 %v1232
    %v2395 = vunpack.c.l.b16 %v1233
    %v2396 = vunpack.c.h.b16 %v1233
    %v2397 = vunpack.c.l.b16 %v1234
    %v2398 = vunpack.c.h.b16 %v1234
    %v2399 = vunpack.c.l.b16 %v1235
    %v2400 = vunpack.c.h.b16 %v1235
    %v2401 = vunpack.c.l.b16 %v1236
    %v2402 = vunpack.c.h.b16 %v1236
    %v2403 = vunpack.c.l.b16 %v1237
    %v2404 = vunpack.c.h.b16 %v1237
    %v2405 = vunpack.c.l.b16 %v1238
    %v2406 = vunpack.c.h.b16 %v1238
    %v2407 = vunpack.c.l.b16 %v1239
    %v2408 = vunpack.c.h.b16 %v1239
    %v2409 = vunpack.c.l.b16 %v1240
    %v2410 = vunpack.c.h.b16 %v1240
    %v2411 = vunpack.c.l.b16 %v1241
    %v2412 = vunpack.c.h.b16 %v1241
    %v2413 = vunpack.c.l.b16 %v1242
    %v2414 = vunpack.c.h.b16 %v1242
    %v2415 = vunpack.c.l.b16 %v1243
    %v2416 = vunpack.c.h.b16 %v1243
    %v2417 = vunpack.c.l.b16 %v1244
    %v2418 = vunpack.c.h.b16 %v1244
    %v2419 = vunpack.c.l.b16 %v1245
    %v2420 = vunpack.c.h.b16 %v1245
    %v2421 = vunpack.c.l.b16 %v1246
    %v2422 = vunpack.c.h.b16 %v1246
    %v2423 = vunpack.c.l.b16 %v1247
    %v2424 = vunpack.c.h.b16 %v1247
    %v2425 = vunpack.c.l.b16 %v1248
    %v2426 = vunpack.c.h.b16 %v1248
    %v2427 = vunpack.c.l.b16 %v1249
    %v2428 = vunpack.c.h.b16 %v1249
    %v2429 = vunpack.c.l.b16 %v1250
    %v2430 = vunpack.c.h.b16 %v1250
    %v2431 = vunpack.c.l.b16 %v1251
    %v2432 = vunpack.c.h.b16 %v1251
    %v2433 = vunpack.c.l.b16 %v1252
    %v2434 = vunpack.c.h.b16 %v1252
    %v2435 = vunpack.c.l.b16 %v1253
    %v2436 = vunpack.c.h.b16 %v1253
    %v2437 = vunpack.c.l.b16 %v1254
    %v2438 = vunpack.c.h.b16 %v1254
    %v2439 = vunpack.c.l.b16 %v1255
    %v2440 = vunpack.c.h.b16 %v1255
    %v2441 = vunpack.c.l.b16 %v1256
    %v2442 = vunpack.c.h.b16 %v1256
    %v2443 = vunpack.c.l.b16 %v1257
    %v2444 = vunpack.c.h.b16 %v1257
    %v2445 = vunpack.c.l.b16 %v1258
    %v2446 = vunpack.c.h.b16 %v1258
    %v2447 = vunpack.c.l.b16 %v1259
    %v2448 = vunpack.c.h.b16 %v1259
    %v2449 = vunpack.c.l.b16 %v1260
    %v2450 = vunpack.c.h.b16 %v1260
    %v2451 = vunpack.c.l.b16 %v1261
    %v2452 = vunpack.c.h.b16 %v1261
    %v2453 = vunpack.c.l.b16 %v1262
    %v2454 = vunpack.c.h.b16 %v1262
    %v2455 = vunpack.c.l.b16 %v1263
    %v2456 = vunpack.c.h.b16 %v1263
    %v2457 = vunpack.c.l.b16 %v1264
    %v2458 = vunpack.c.h.b16 %v1264
    %v2459 = vunpack.c.l.b16 %v1265
    %v2460 = vunpack.c.h.b16 %v1265
    %v2461 = vunpack.c.l.b16 %v1266
    %v2462 = vunpack.c.h.b16 %v1266
    %v2463 = vunpack.c.l.b16 %v1267
    %v2464 = vunpack.c.h.b16 %v1267
    %v2465 = vunpack.c.l.b16 %v1268
    %v2466 = vunpack.c.h.b16 %v1268
    %v2467 = vunpack.c.l.b16 %v1269
    %v2468 = vunpack.c.h.b16 %v1269
    %v2469 = vunpack.c.l.b16 %v1270
    %v2470 = vunpack.c.h.b16 %v1270
    %v2471 = vunpack.c.l.b16 %v1271
    %v2472 = vunpack.c.h.b16 %v1271
    %v2473 = vunpack.c.l.b16 %v1272
    %v2474 = vunpack.c.h.b16 %v1272
    %v2475 = vunpack.c.l.b16 %v1273
    %v2476 = vunpack.c.h.b16 %v1273
    %v2477 = vunpack.c.l.b16 %v1274
    %v2478 = vunpack.c.h.b16 %v1274
    %v2479 = vunpack.c.l.b16 %v1275
    %v2480 = vunpack.c.h.b16 %v1275
    %v2481 = vunpack.c.l.b16 %v1276
    %v2482 = vunpack.c.h.b16 %v1276
    %v2483 = vunpack.c.l.b16 %v1277
    %v2484 = vunpack.c.h.b16 %v1277
    %v2485 = vunpack.c.l.b16 %v1278
    %v2486 = vunpack.c.h.b16 %v1278
    %v2487 = vunpack.c.l.b16 %v1279
    %v2488 = vunpack.c.h.b16 %v1279
    %v2489 = vunpack.c.l.b16 %v1280
    %v2490 = vunpack.c.h.b16 %v1280
    %v2491 = vunpack.c.l.b16 %v1281
    %v2492 = vunpack.c.h.b16 %v1281
    %v2493 = vunpack.c.l.b16 %v1282
    %v2494 = vunpack.c.h.b16 %v1282
    %v2495 = vunpack.c.l.b16 %v1283
    %v2496 = vunpack.c.h.b16 %v1283
    %v2497 = vunpack.c.l.b16 %v1284
    %v2498 = vunpack.c.h.b16 %v1284
    %v2499 = vunpack.c.l.b16 %v1285
    %v2500 = vunpack.c.h.b16 %v1285
    %v2501 = vunpack.c.l.b16 %v1286
    %v2502 = vunpack.c.h.b16 %v1286
    %v2503 = vunpack.c.l.b16 %v1287
    %v2504 = vunpack.c.h.b16 %v1287
    %v2505 = vunpack.c.l.b16 %v1288
    %v2506 = vunpack.c.h.b16 %v1288
    %v2507 = vunpack.c.l.b16 %v1289
    %v2508 = vunpack.c.h.b16 %v1289
    %v2509 = vunpack.c.l.b16 %v1290
    %v2510 = vunpack.c.h.b16 %v1290
    %v2511 = vunpack.c.l.b16 %v1291
    %v2512 = vunpack.c.h.b16 %v1291
    %v2513 = vunpack.c.l.b16 %v1292
    %v2514 = vunpack.c.h.b16 %v1292
    %v2515 = vunpack.c.l.b16 %v1293
    %v2516 = vunpack.c.h.b16 %v1293
    %v2517 = vunpack.c.l.b16 %v1294
    %v2518 = vunpack.c.h.b16 %v1294
    %v2519 = vunpack.c.l.b16 %v1295
    %v2520 = vunpack.c.h.b16 %v1295
    %v2521 = vunpack.c.l.b16 %v1296
    %v2522 = vunpack.c.h.b16 %v1296
    %v2523 = vunpack.c.l.b16 %v1297
    %v2524 = vunpack.c.h.b16 %v1297
    %v2525 = vunpack.c.l.b16 %v1298
    %v2526 = vunpack.c.h.b16 %v1298
    %v2527 = vunpack.c.l.b16 %v1299
    %v2528 = vunpack.c.h.b16 %v1299
    %v2529 = vunpack.c.l.b16 %v1300
    %v2530 = vunpack.c.h.b16 %v1300
    %v2531 = vunpack.c.l.b16 %v1301
    %v2532 = vunpack.c.h.b16 %v1301
    %v2533 = vunpack.c.l.b16 %v1302
    %v2534 = vunpack.c.h.b16 %v1302
    %v2535 = vunpack.c.l.b16 %v1303
    %v2536 = vunpack.c.h.b16 %v1303
    %v2537 = vunpack.c.l.b16 %v1304
    %v2538 = vunpack.c.h.b16 %v1304
    %v2539 = vunpack.c.l.b16 %v1305
    %v2540 = vunpack.c.h.b16 %v1305
    %v2541 = vunpack.c.l.b16 %v1306
    %v2542 = vunpack.c.h.b16 %v1306
    %v2543 = vunpack.c.l.b16 %v1307
    %v2544 = vunpack.c.h.b16 %v1307
    %v2545 = vunpack.c.l.b16 %v1308
    %v2546 = vunpack.c.h.b16 %v1308
    %v2547 = vunpack.c.l.b16 %v1309
    %v2548 = vunpack.c.h.b16 %v1309
    %v2549 = vunpack.c.l.b16 %v1310
    %v2550 = vunpack.c.h.b16 %v1310
    %v2551 = vunpack.c.l.b16 %v1311
    %v2552 = vunpack.c.h.b16 %v1311
    %v2553 = vunpack.c.l.b16 %v1312
    %v2554 = vunpack.c.h.b16 %v1312
    %v2555 = vunpack.c.l.b16 %v1313
    %v2556 = vunpack.c.h.b16 %v1313
    %v2557 = vunpack.c.l.b16 %v1314
    %v2558 = vunpack.c.h.b16 %v1314
    %v2559 = vunpack.c.l.b16 %v1315
    %v2560 = vunpack.c.h.b16 %v1315
    %v2561 = vunpack.c.l.b16 %v1316
    %v2562 = vunpack.c.h.b16 %v1316
    %v2563 = vunpack.c.l.b16 %v1317
    %v2564 = vunpack.c.h.b16 %v1317
    %v2565 = vunpack.c.l.b16 %v1318
    %v2566 = vunpack.c.h.b16 %v1318
    %v2567 = vunpack.c.l.b16 %v1319
    %v2568 = vunpack.c.h.b16 %v1319
    %v2569 = vunpack.c.l.b16 %v1320
    %v2570 = vunpack.c.h.b16 %v1320
    %v2571 = vunpack.c.l.b16 %v1321
    %v2572 = vunpack.c.h.b16 %v1321
    %v2573 = vunpack.c.l.b16 %v1322
    %v2574 = vunpack.c.h.b16 %v1322
    %v2575 = vunpack.c.l.b16 %v1323
    %v2576 = vunpack.c.h.b16 %v1323
    %v2577 = vunpack.c.l.b16 %v1324
    %v2578 = vunpack.c.h.b16 %v1324
    %v2579 = vunpack.c.l.b16 %v1325
    %v2580 = vunpack.c.h.b16 %v1325
    %v2581 = vunpack.c.l.b16 %v1326
    %v2582 = vunpack.c.h.b16 %v1326
    %v2583 = vunpack.c.l.b16 %v1327
    %v2584 = vunpack.c.h.b16 %v1327
    %v2585 = vunpack.c.l.b16 %v1328
    %v2586 = vunpack.c.h.b16 %v1328
    %v2587 = vunpack.c.l.b16 %v1329
    %v2588 = vunpack.c.h.b16 %v1329
    %v2589 = vunpack.c.l.b16 %v1330
    %v2590 = vunpack.c.h.b16 %v1330
    %v2591 = vunpack.c.l.b16 %v1331
    %v2592 = vunpack.c.h.b16 %v1331
    %v2593 = vunpack.c.l.b16 %v1332
    %v2594 = vunpack.c.h.b16 %v1332
    %v2595 = vunpack.c.l.b16 %v1333
    %v2596 = vunpack.c.h.b16 %v1333
    %v2597 = vunpack.c.l.b16 %v1334
    %v2598 = vunpack.c.h.b16 %v1334
    %v2599 = vunpack.c.l.b16 %v1335
    %v2600 = vunpack.c.h.b16 %v1335
    %v2601 = vunpack.c.l.b16 %v1336
    %v2602 = vunpack.c.h.b16 %v1336
    %v2603 = vunpack.c.l.b16 %v1337
    %v2604 = vunpack.c.h.b16 %v1337
    %v2605 = vunpack.c.l.b16 %v1338
    %v2606 = vunpack.c.h.b16 %v1338
    %v2607 = vunpack.c.l.b16 %v1339
    %v2608 = vunpack.c.h.b16 %v1339
    %v2609 = vunpack.c.l.b16 %v1340
    %v2610 = vunpack.c.h.b16 %v1340
    %v2611 = vunpack.c.l.b16 %v1341
    %v2612 = vunpack.c.h.b16 %v1341
    %v2613 = vunpack.c.l.b16 %v1342
    %v2614 = vunpack.c.h.b16 %v1342
    %v2615 = vunpack.c.l.b16 %v1343
    %v2616 = vunpack.c.h.b16 %v1343
    %v2617 = vunpack.c.l.b16 %v1344
    %v2618 = vunpack.c.h.b16 %v1344
    %v2619 = vunpack.c.l.b16 %v1345
    %v2620 = vunpack.c.h.b16 %v1345
    %v2621 = vunpack.c.l.b16 %v1346
    %v2622 = vunpack.c.h.b16 %v1346
    %v2623 = vunpack.c.l.b16 %v1347
    %v2624 = vunpack.c.h.b16 %v1347
    %v2625 = vunpack.c.l.b16 %v1348
    %v2626 = vunpack.c.h.b16 %v1348
    %v2627 = vunpack.c.l.b16 %v1349
    %v2628 = vunpack.c.h.b16 %v1349
    %v2629 = vunpack.c.l.b16 %v1350
    %v2630 = vunpack.c.h.b16 %v1350
    %v2631 = vunpack.c.l.b16 %v1351
    %v2632 = vunpack.c.h.b16 %v1351
    %v2633 = vunpack.c.l.b16 %v1352
    %v2634 = vunpack.c.h.b16 %v1352
    %v2635 = vunpack.c.l.b16 %v1353
    %v2636 = vunpack.c.h.b16 %v1353
    %v2637 = vunpack.c.l.b16 %v1354
    %v2638 = vunpack.c.h.b16 %v1354
    %v2639 = vunpack.c.l.b16 %v1355
    %v2640 = vunpack.c.h.b16 %v1355
    %v2641 = vunpack.c.l.b16 %v1356
    %v2642 = vunpack.c.h.b16 %v1356
    %v2643 = vunpack.c.l.b16 %v1357
    %v2644 = vunpack.c.h.b16 %v1357
    %v2645 = vunpack.c.l.b16 %v1358
    %v2646 = vunpack.c.h.b16 %v1358
    %v2647 = vunpack.c.l.b16 %v1359
    %v2648 = vunpack.c.h.b16 %v1359
    %v2649 = vunpack.c.l.b16 %v1360
    %v2650 = vunpack.c.h.b16 %v1360
    %v2651 = vunpack.c.l.b16 %v1361
    %v2652 = vunpack.c.h.b16 %v1361
    %v2653 = vunpack.c.l.b16 %v1362
    %v2654 = vunpack.c.h.b16 %v1362
    %v2655 = vunpack.c.l.b16 %v1363
    %v2656 = vunpack.c.h.b16 %v1363
    %v2657 = vunpack.c.l.b16 %v1364
    %v2658 = vunpack.c.h.b16 %v1364
    %v2659 = vunpack.c.l.b16 %v1365
    %v2660 = vunpack.c.h.b16 %v1365
    %v2661 = vunpack.c.l.b16 %v1366
    %v2662 = vunpack.c.h.b16 %v1366
    %v2663 = vunpack.c.l.b16 %v1367
    %v2664 = vunpack.c.h.b16 %v1367
    %v2665 = vunpack.c.l.b16 %v1368
    %v2666 = vunpack.c.h.b16 %v1368
    %v2667 = vunpack.c.l.b16 %v1369
    %v2668 = vunpack.c.h.b16 %v1369
    %v2669 = vunpack.c.l.b16 %v1370
    %v2670 = vunpack.c.h.b16 %v1370
    %v2671 = vunpack.c.l.b16 %v1371
    %v2672 = vunpack.c.h.b16 %v1371
    %v2673 = vunpack.c.l.b16 %v1372
    %v2674 = vunpack.c.h.b16 %v1372
    %v2675 = vunpack.c.l.b16 %v1373
    %v2676 = vunpack.c.h.b16 %v1373
    %v2677 = vunpack.c.l.b16 %v1374
    %v2678 = vunpack.c.h.b16 %v1374
    %v2679 = vunpack.c.l.b16 %v1375
    %v2680 = vunpack.c.h.b16 %v1375
    %v2681 = vunpack.c.l.b16 %v1376
    %v2682 = vunpack.c.h.b16 %v1376
    %v2683 = vunpack.c.l.b16 %v1377
    %v2684 = vunpack.c.h.b16 %v1377
    %v2685 = vunpack.c.l.b16 %v1378
    %v2686 = vunpack.c.h.b16 %v1378
    %v2687 = vunpack.c.l.b16 %v1379
    %v2688 = vunpack.c.h.b16 %v1379
    %v2689 = vunpack.c.l.b16 %v1380
    %v2690 = vunpack.c.h.b16 %v1380
    %v2691 = vunpack.c.l.b16 %v1381
    %v2692 = vunpack.c.h.b16 %v1381
    %v2693 = vunpack.c.l.b16 %v1382
    %v2694 = vunpack.c.h.b16 %v1382
    %v2695 = vunpack.c.l.b16 %v1383
    %v2696 = vunpack.c.h.b16 %v1383
    %v2697 = vunpack.c.l.b16 %v1384
    %v2698 = vunpack.c.h.b16 %v1384
    %v2699 = vunpack.c.l.b16 %v1385
    %v2700 = vunpack.c.h.b16 %v1385
    %v2701 = vunpack.c.l.b16 %v1386
    %v2702 = vunpack.c.h.b16 %v1386
    %v2703 = vunpack.c.l.b16 %v1387
    %v2704 = vunpack.c.h.b16 %v1387
    %v2705 = vunpack.c.l.b16 %v1388
    %v2706 = vunpack.c.h.b16 %v1388
    %v2707 = vunpack.c.l.b16 %v1389
    %v2708 = vunpack.c.h.b16 %v1389
    %v2709 = vunpack.c.l.b16 %v1390
    %v2710 = vunpack.c.h.b16 %v1390
    %v2711 = vunpack.c.l.b16 %v1391
    %v2712 = vunpack.c.h.b16 %v1391
    %v2713 = vunpack.c.l.b16 %v1392
    %v2714 = vunpack.c.h.b16 %v1392
    %v2715 = vunpack.c.l.b16 %v1393
    %v2716 = vunpack.c.h.b16 %v1393
    %v2717 = vunpack.c.l.b16 %v1394
    %v2718 = vunpack.c.h.b16 %v1394
    %v2719 = vunpack.c.l.b16 %v1395
    %v2720 = vunpack.c.h.b16 %v1395
    %v2721 = vunpack.c.l.b16 %v1396
    %v2722 = vunpack.c.h.b16 %v1396
    %v2723 = vunpack.c.l.b16 %v1397
    %v2724 = vunpack.c.h.b16 %v1397
    %v2725 = vunpack.c.l.b16 %v1398
    %v2726 = vunpack.c.h.b16 %v1398
    %v2727 = vunpack.c.l.b16 %v1399
    %v2728 = vunpack.c.h.b16 %v1399
    %v2729 = vunpack.c.l.b16 %v1400
    %v2730 = vunpack.c.h.b16 %v1400
    %v2731 = vunpack.c.l.b16 %v1401
    %v2732 = vunpack.c.h.b16 %v1401
    %v2733 = vunpack.c.l.b16 %v1402
    %v2734 = vunpack.c.h.b16 %v1402
    %v2735 = vunpack.c.l.b16 %v1403
    %v2736 = vunpack.c.h.b16 %v1403
    %v2737 = vunpack.c.l.b16 %v1404
    %v2738 = vunpack.c.h.b16 %v1404
    %v2739 = vunpack.c.l.b16 %v1405
    %v2740 = vunpack.c.h.b16 %v1405
    %v2741 = vunpack.c.l.b16 %v1406
    %v2742 = vunpack.c.h.b16 %v1406
    %v2743 = vunpack.c.l.b16 %v1407
    %v2744 = vunpack.c.h.b16 %v1407
    %v2745 = vunpack.c.l.b16 %v1408
    %v2746 = vunpack.c.h.b16 %v1408
    %v2747 = vunpack.c.l.b16 %v1409
    %v2748 = vunpack.c.h.b16 %v1409
    %v2749 = vunpack.c.l.b16 %v1410
    %v2750 = vunpack.c.h.b16 %v1410
    %v2751 = vunpack.c.l.b16 %v1411
    %v2752 = vunpack.c.h.b16 %v1411
    %v2753 = vunpack.c.l.b16 %v1412
    %v2754 = vunpack.c.h.b16 %v1412
    %v2755 = vunpack.c.l.b16 %v1413
    %v2756 = vunpack.c.h.b16 %v1413
    %v2757 = vunpack.c.l.b16 %v1414
    %v2758 = vunpack.c.h.b16 %v1414
    %v2759 = vunpack.c.l.b16 %v1415
    %v2760 = vunpack.c.h.b16 %v1415
    %v2761 = vunpack.c.l.b16 %v1416
    %v2762 = vunpack.c.h.b16 %v1416
    %v2763 = vunpack.c.l.b16 %v1417
    %v2764 = vunpack.c.h.b16 %v1417
    %v2765 = vunpack.c.l.b16 %v1418
    %v2766 = vunpack.c.h.b16 %v1418
    %v2767 = vunpack.c.l.b16 %v1419
    %v2768 = vunpack.c.h.b16 %v1419
    %v2769 = vunpack.c.l.b16 %v1420
    %v2770 = vunpack.c.h.b16 %v1420
    %v2771 = vunpack.c.l.b16 %v1421
    %v2772 = vunpack.c.h.b16 %v1421
    %v2773 = vunpack.c.l.b16 %v1422
    %v2774 = vunpack.c.h.b16 %v1422
    %v2775 = vunpack.c.l.b16 %v1423
    %v2776 = vunpack.c.h.b16 %v1423
    %v2777 = vunpack.c.l.b16 %v1424
    %v2778 = vunpack.c.h.b16 %v1424
    %v2779 = vunpack.c.l.b16 %v1425
    %v2780 = vunpack.c.h.b16 %v1425
    %v2781 = vunpack.c.l.b16 %v1426
    %v2782 = vunpack.c.h.b16 %v1426
    %v2783 = vunpack.c.l.b16 %v1427
    %v2784 = vunpack.c.h.b16 %v1427
    %v2785 = vunpack.c.l.b16 %v1428
    %v2786 = vunpack.c.h.b16 %v1428
    %v2787 = vunpack.c.l.b16 %v1429
    %v2788 = vunpack.c.h.b16 %v1429
    %v2789 = vunpack.c.l.b16 %v1430
    %v2790 = vunpack.c.h.b16 %v1430
    %v2791 = vunpack.c.l.b16 %v1431
    %v2792 = vunpack.c.h.b16 %v1431
    %v2793 = vunpack.c.l.b16 %v1432
    %v2794 = vunpack.c.h.b16 %v1432
    %v2795 = vunpack.c.l.b16 %v1433
    %v2796 = vunpack.c.h.b16 %v1433
    %v2797 = vunpack.c.l.b16 %v1434
    %v2798 = vunpack.c.h.b16 %v1434
    %v2799 = vunpack.c.l.b16 %v1435
    %v2800 = vunpack.c.h.b16 %v1435
    %v2801 = vunpack.c.l.b16 %v1436
    %v2802 = vunpack.c.h.b16 %v1436
    %v2803 = vunpack.c.l.b16 %v1437
    %v2804 = vunpack.c.h.b16 %v1437
    %v2805 = vunpack.c.l.b16 %v1438
    %v2806 = vunpack.c.h.b16 %v1438
    %v2807 = vunpack.c.l.b16 %v1439
    %v2808 = vunpack.c.h.b16 %v1439
    %v2809 = vunpack.c.l.b16 %v1440
    %v2810 = vunpack.c.h.b16 %v1440
    %v2811 = vunpack.c.l.b16 %v1441
    %v2812 = vunpack.c.h.b16 %v1441
    %v2813 = vunpack.c.l.b16 %v1442
    %v2814 = vunpack.c.h.b16 %v1442
    %v2815 = vunpack.c.l.b16 %v1443
    %v2816 = vunpack.c.h.b16 %v1443
    %v2817 = vunpack.c.l.b16 %v1444
    %v2818 = vunpack.c.h.b16 %v1444
    %v2819 = vunpack.c.l.b16 %v1445
    %v2820 = vunpack.c.h.b16 %v1445
    %v2821 = vunpack.c.l.b16 %v1446
    %v2822 = vunpack.c.h.b16 %v1446
    %v2823 = vunpack.c.l.b16 %v1447
    %v2824 = vunpack.c.h.b16 %v1447
    %v2825 = vunpack.c.l.b16 %v1448
    %v2826 = vunpack.c.h.b16 %v1448
    %v2827 = vunpack.c.l.b16 %v1449
    %v2828 = vunpack.c.h.b16 %v1449
    %v2829 = vunpack.c.l.b16 %v1450
    %v2830 = vunpack.c.h.b16 %v1450
    %v2831 = vunpack.c.l.b16 %v1451
    %v2832 = vunpack.c.h.b16 %v1451
    %v2833 = vunpack.c.l.b16 %v1452
    %v2834 = vunpack.c.h.b16 %v1452
    %v2835 = vunpack.c.l.b16 %v1453
    %v2836 = vunpack.c.h.b16 %v1453
    %v2837 = vunpack.c.l.b16 %v1454
    %v2838 = vunpack.c.h.b16 %v1454
    %v2839 = vunpack.c.l.b16 %v1455
    %v2840 = vunpack.c.h.b16 %v1455
    %v2841 = vunpack.c.l.b16 %v1456
    %v2842 = vunpack.c.h.b16 %v1456
    %v2843 = vunpack.c.l.b16 %v1457
    %v2844 = vunpack.c.h.b16 %v1457
    %v2845 = vunpack.c.l.b16 %v1458
    %v2846 = vunpack.c.h.b16 %v1458
    %v2847 = vunpack.c.l.b16 %v1459
    %v2848 = vunpack.c.h.b16 %v1459
    %v2849 = vunpack.c.l.b16 %v1460
    %v2850 = vunpack.c.h.b16 %v1460
    %v2851 = vunpack.c.l.b16 %v1461
    %v2852 = vunpack.c.h.b16 %v1461
    %v2853 = vunpack.c.l.b16 %v1462
    %v2854 = vunpack.c.h.b16 %v1462
    %v2855 = vunpack.c.l.b16 %v1463
    %v2856 = vunpack.c.h.b16 %v1463
    %v2857 = vunpack.c.l.b16 %v1464
    %v2858 = vunpack.c.h.b16 %v1464
    %v2859 = vunpack.c.l.b16 %v1465
    %v2860 = vunpack.c.h.b16 %v1465
    %v2861 = vunpack.c.l.b16 %v1466
    %v2862 = vunpack.c.h.b16 %v1466
    %v2863 = vunpack.c.l.b16 %v1467
    %v2864 = vunpack.c.h.b16 %v1467
    %v2865 = vunpack.c.l.b16 %v1468
    %v2866 = vunpack.c.h.b16 %v1468
    %v2867 = vunpack.c.l.b16 %v1469
    %v2868 = vunpack.c.h.b16 %v1469
    %v2869 = vunpack.c.l.b16 %v1470
    %v2870 = vunpack.c.h.b16 %v1470
    %v2871 = vunpack.c.l.b16 %v1471
    %v2872 = vunpack.c.h.b16 %v1471
    %v2873 = vunpack.c.l.b16 %v1472
    %v2874 = vunpack.c.h.b16 %v1472
    %v2875 = vunpack.c.l.b16 %v1473
    %v2876 = vunpack.c.h.b16 %v1473
    %v2877 = vunpack.c.l.b16 %v1474
    %v2878 = vunpack.c.h.b16 %v1474
    %v2879 = vunpack.c.l.b16 %v1475
    %v2880 = vunpack.c.h.b16 %v1475
    %v2881 = vunpack.c.l.b16 %v1476
    %v2882 = vunpack.c.h.b16 %v1476
    %v2883 = vunpack.c.l.b16 %v1477
    %v2884 = vunpack.c.h.b16 %v1477
    %v2885 = vunpack.c.l.b16 %v1478
    %v2886 = vunpack.c.h.b16 %v1478
    %v2887 = vunpack.c.l.b16 %v1479
    %v2888 = vunpack.c.h.b16 %v1479
    %v2889 = vunpack.c.l.b16 %v1480
    %v2890 = vunpack.c.h.b16 %v1480
    %v2891 = vunpack.c.l.b16 %v1481
    %v2892 = vunpack.c.h.b16 %v1481
    %v2893 = vunpack.c.l.b16 %v1482
    %v2894 = vunpack.c.h.b16 %v1482
    %v2895 = vunpack.c.l.b16 %v1483
    %v2896 = vunpack.c.h.b16 %v1483
    %v2897 = vunpack.c.l.b16 %v1484
    %v2898 = vunpack.c.h.b16 %v1484
    %v2899 = vunpack.c.l.b16 %v1485
    %v2900 = vunpack.c.h.b16 %v1485
    %v2901 = vunpack.c.l.b16 %v1486
    %v2902 = vunpack.c.h.b16 %v1486
    %v2903 = vunpack.c.l.b16 %v1487
    %v2904 = vunpack.c.h.b16 %v1487
    %v2905 = vunpack.c.l.b16 %v1488
    %v2906 = vunpack.c.h.b16 %v1488
    %v2907 = vunpack.c.l.b16 %v1489
    %v2908 = vunpack.c.h.b16 %v1489
    %v2909 = vunpack.c.l.b16 %v1490
    %v2910 = vunpack.c.h.b16 %v1490
    %v2911 = vunpack.c.l.b16 %v1491
    %v2912 = vunpack.c.h.b16 %v1491
    %v2913 = vunpack.c.l.b16 %v1492
    %v2914 = vunpack.c.h.b16 %v1492
    %v2915 = vunpack.c.l.b16 %v1493
    %v2916 = vunpack.c.h.b16 %v1493
    %v2917 = vunpack.c.l.b16 %v1494
    %v2918 = vunpack.c.h.b16 %v1494
    %v2919 = vunpack.c.l.b16 %v1495
    %v2920 = vunpack.c.h.b16 %v1495
    %v2921 = vunpack.c.l.b16 %v1496
    %v2922 = vunpack.c.h.b16 %v1496
    %v2923 = vunpack.c.l.b16 %v1497
    %v2924 = vunpack.c.h.b16 %v1497
    %v2925 = vunpack.c.l.b16 %v1498
    %v2926 = vunpack.c.h.b16 %v1498
    %v2927 = vunpack.c.l.b16 %v1499
    %v2928 = vunpack.c.h.b16 %v1499
    %v2929 = vunpack.c.l.b16 %v1500
    %v2930 = vunpack.c.h.b16 %v1500
    %v2931 = vunpack.c.l.b16 %v1501
    %v2932 = vunpack.c.h.b16 %v1501
    %v2933 = vunpack.c.l.b16 %v1502
    %v2934 = vunpack.c.h.b16 %v1502
    %v2935 = vunpack.c.l.b16 %v1503
    %v2936 = vunpack.c.h.b16 %v1503
    %v2937 = vunpack.c.l.b16 %v1504
    %v2938 = vunpack.c.h.b16 %v1504
    %v2939 = vunpack.c.l.b16 %v1505
    %v2940 = vunpack.c.h.b16 %v1505
    %v2941 = vunpack.c.l.b16 %v1506
    %v2942 = vunpack.c.h.b16 %v1506
    %v2943 = vunpack.c.l.b16 %v1507
    %v2944 = vunpack.c.h.b16 %v1507
    %v2945 = vunpack.c.l.b16 %v1508
    %v2946 = vunpack.c.h.b16 %v1508
    %v2947 = vunpack.c.l.b16 %v1509
    %v2948 = vunpack.c.h.b16 %v1509
    %v2949 = vunpack.c.l.b16 %v1510
    %v2950 = vunpack.c.h.b16 %v1510
    %v2951 = vunpack.c.l.b16 %v1511
    %v2952 = vunpack.c.h.b16 %v1511
    %v2953 = vunpack.c.l.b16 %v1512
    %v2954 = vunpack.c.h.b16 %v1512
    %v2955 = vunpack.c.l.b16 %v1513
    %v2956 = vunpack.c.h.b16 %v1513
    %v2957 = vunpack.c.l.b16 %v1514
    %v2958 = vunpack.c.h.b16 %v1514
    %v2959 = vunpack.c.l.b16 %v1515
    %v2960 = vunpack.c.h.b16 %v1515
    %v2961 = vunpack.c.l.b16 %v1516
    %v2962 = vunpack.c.h.b16 %v1516
    %v2963 = vunpack.c.l.b16 %v1517
    %v2964 = vunpack.c.h.b16 %v1517
    %v2965 = vunpack.c.l.b16 %v1518
    %v2966 = vunpack.c.h.b16 %v1518
    %v2967 = vunpack.c.l.b16 %v1519
    %v2968 = vunpack.c.h.b16 %v1519
    %v2969 = vunpack.c.l.b16 %v1520
    %v2970 = vunpack.c.h.b16 %v1520
    %v2971 = vunpack.c.l.b16 %v1521
    %v2972 = vunpack.c.h.b16 %v1521
    %v2973 = vunpack.c.l.b16 %v1522
    %v2974 = vunpack.c.h.b16 %v1522
    %v2975 = vunpack.c.l.b16 %v1523
    %v2976 = vunpack.c.h.b16 %v1523
    %v2977 = vunpack.c.l.b16 %v1524
    %v2978 = vunpack.c.h.b16 %v1524
    %v2979 = vunpack.c.l.b16 %v1525
    %v2980 = vunpack.c.h.b16 %v1525
    %v2981 = vunpack.c.l.b16 %v1526
    %v2982 = vunpack.c.h.b16 %v1526
    %v2983 = vunpack.c.l.b16 %v1527
    %v2984 = vunpack.c.h.b16 %v1527
    %v2985 = vunpack.c.l.b16 %v1528
    %v2986 = vunpack.c.h.b16 %v1528
    %v2987 = vunpack.c.l.b16 %v1529
    %v2988 = vunpack.c.h.b16 %v1529
    %v2989 = vunpack.c.l.b16 %v1530
    %v2990 = vunpack.c.h.b16 %v1530
    %v2991 = vunpack.c.l.b16 %v1531
    %v2992 = vunpack.c.h.b16 %v1531
    %v2993 = vunpack.c.l.b16 %v1532
    %v2994 = vunpack.c.h.b16 %v1532
    %v2995 = vunpack.c.l.b16 %v1533
    %v2996 = vunpack.c.h.b16 %v1533
    %v2997 = vunpack.c.l.b16 %v1534
    %v2998 = vunpack.c.h.b16 %v1534
    %v2999 = vunpack.c.l.b16 %v1535
    %v3000 = vunpack.c.h.b16 %v1535
    %v3001 = vunpack.c.l.b16 %v1536
    %v3002 = vunpack.c.h.b16 %v1536
    %v3003 = vunpack.c.l.b16 %v1537
    %v3004 = vunpack.c.h.b16 %v1537
    %v3005 = vunpack.c.l.b16 %v1538
    %v3006 = vunpack.c.h.b16 %v1538
    %v3007 = vunpack.c.l.b16 %v1539
    %v3008 = vunpack.c.h.b16 %v1539
    %v3009 = vunpack.c.l.b16 %v1540
    %v3010 = vunpack.c.h.b16 %v1540
    %v3011 = vunpack.c.l.b16 %v1541
    %v3012 = vunpack.c.h.b16 %v1541
    %v3013 = vunpack.c.l.b16 %v1542
    %v3014 = vunpack.c.h.b16 %v1542
    %v3015 = vunpack.c.l.b16 %v1543
    %v3016 = vunpack.c.h.b16 %v1543
    %v3017 = vunpack.c.l.b16 %v1544
    %v3018 = vunpack.c.h.b16 %v1544
    %v3019 = vunpack.c.l.b16 %v1545
    %v3020 = vunpack.c.h.b16 %v1545
    %v3021 = vunpack.c.l.b16 %v1546
    %v3022 = vunpack.c.h.b16 %v1546
    %v3023 = vunpack.c.l.b16 %v1547
    %v3024 = vunpack.c.h.b16 %v1547
    %v3025 = vunpack.c.l.b16 %v1548
    %v3026 = vunpack.c.h.b16 %v1548
    %v3027 = vunpack.c.l.b16 %v1549
    %v3028 = vunpack.c.h.b16 %v1549
    %v3029 = vunpack.c.l.b16 %v1550
    %v3030 = vunpack.c.h.b16 %v1550
    %v3031 = vunpack.c.l.b16 %v1551
    %v3032 = vunpack.c.h.b16 %v1551
    %v3033 = vunpack.c.l.b16 %v1552
    %v3034 = vunpack.c.h.b16 %v1552
    %v3035 = vunpack.c.l.b16 %v1553
    %v3036 = vunpack.c.h.b16 %v1553
    %v3037 = vunpack.c.l.b16 %v1554
    %v3038 = vunpack.c.h.b16 %v1554
    %v3039 = vunpack.c.l.b16 %v1555
    %v3040 = vunpack.c.h.b16 %v1555
    %v3041 = vunpack.c.l.b16 %v1556
    %v3042 = vunpack.c.h.b16 %v1556
    %v3043 = vunpack.c.l.b16 %v1557
    %v3044 = vunpack.c.h.b16 %v1557
    %v3045 = vunpack.c.l.b16 %v1558
    %v3046 = vunpack.c.h.b16 %v1558
    %v3047 = vunpack.c.l.b16 %v1559
    %v3048 = vunpack.c.h.b16 %v1559
    %v3049 = vunpack.c.l.b16 %v1560
    %v3050 = vunpack.c.h.b16 %v1560
    %v3051 = vunpack.c.l.b16 %v1561
    %v3052 = vunpack.c.h.b16 %v1561
    %v3053 = vunpack.c.l.b16 %v1562
    %v3054 = vunpack.c.h.b16 %v1562
    %v3055 = vunpack.c.l.b16 %v1563
    %v3056 = vunpack.c.h.b16 %v1563
    %v3057 = vunpack.c.l.b16 %v1564
    %v3058 = vunpack.c.h.b16 %v1564
    %v3059 = vunpack.c.l.b16 %v1565
    %v3060 = vunpack.c.h.b16 %v1565
    %v3061 = vunpack.c.l.b16 %v1566
    %v3062 = vunpack.c.h.b16 %v1566
    %v3063 = vunpack.c.l.b16 %v1567
    %v3064 = vunpack.c.h.b16 %v1567
    %v3065 = vunpack.c.l.b16 %v1568
    %v3066 = vunpack.c.h.b16 %v1568
    %v3067 = vunpack.c.l.b16 %v1569
    %v3068 = vunpack.c.h.b16 %v1569
    %v3069 = vunpack.c.l.b16 %v1570
    %v3070 = vunpack.c.h.b16 %v1570
    %v3071 = vunpack.c.l.b16 %v1571
    %v3072 = vunpack.c.h.b16 %v1571
    %v3073 = vunpack.c.l.b16 %v1572
    %v3074 = vunpack.c.h.b16 %v1572
    %v3075 = vunpack.c.l.b16 %v1573
    %v3076 = vunpack.c.h.b16 %v1573
    %v3077 = vunpack.c.l.b16 %v1574
    %v3078 = vunpack.c.h.b16 %v1574
    %v3079 = vunpack.c.l.b16 %v1575
    %v3080 = vunpack.c.h.b16 %v1575
    %v3081 = vunpack.c.l.b16 %v1576
    %v3082 = vunpack.c.h.b16 %v1576
    %v3083 = vunpack.c.l.b16 %v1577
    %v3084 = vunpack.c.h.b16 %v1577
    %v3085 = vunpack.c.l.b16 %v1578
    %v3086 = vunpack.c.h.b16 %v1578
    %v3087 = vunpack.c.l.b16 %v1579
    %v3088 = vunpack.c.h.b16 %v1579
    %v3089 = vunpack.c.l.b16 %v1580
    %v3090 = vunpack.c.h.b16 %v1580
    %v3091 = vunpack.c.l.b16 %v1581
    %v3092 = vunpack.c.h.b16 %v1581
    %v3093 = vunpack.c.l.b16 %v1582
    %v3094 = vunpack.c.h.b16 %v1582
    %v3095 = vunpack.c.l.b16 %v1583
    %v3096 = vunpack.c.h.b16 %v1583
    %v3097 = vunpack.c.l.b16 %v1584
    %v3098 = vunpack.c.h.b16 %v1584
    %v3099 = vunpack.c.l.b16 %v1585
    %v3100 = vunpack.c.h.b16 %v1585
    %v3101 = vunpack.c.l.b16 %v1586
    %v3102 = vunpack.c.h.b16 %v1586
    %v3103 = vunpack.c.l.b16 %v1587
    %v3104 = vunpack.c.h.b16 %v1587
    %v3105 = vunpack.c.l.b16 %v1588
    %v3106 = vunpack.c.h.b16 %v1588
    %v3107 = vunpack.c.l.b16 %v1589
    %v3108 = vunpack.c.h.b16 %v1589
    %v3109 = vunpack.c.l.b16 %v1590
    %v3110 = vunpack.c.h.b16 %v1590
    %v3111 = vunpack.c.l.b16 %v1591
    %v3112 = vunpack.c.h.b16 %v1591
    %v3113 = vunpack.c.l.b16 %v1592
    %v3114 = vunpack.c.h.b16 %v1592
    %v3115 = vunpack.c.l.b16 %v1593
    %v3116 = vunpack.c.h.b16 %v1593
    %v3117 = vunpack.c.l.b16 %v1594
    %v3118 = vunpack.c.h.b16 %v1594
    %v3119 = vunpack.c.l.b16 %v1595
    %v3120 = vunpack.c.h.b16 %v1595
    %v3121 = vunpack.c.l.b16 %v1596
    %v3122 = vunpack.c.h.b16 %v1596
    %v3123 = vunpack.c.l.b16 %v1597
    %v3124 = vunpack.c.h.b16 %v1597
    %v3125 = vunpack.c.l.b16 %v1598
    %v3126 = vunpack.c.h.b16 %v1598
    %v3127 = vunpack.c.l.b16 %v1599
    %v3128 = vunpack.c.h.b16 %v1599
    %v3129 = vunpack.c.l.b16 %v1600
    %v3130 = vunpack.c.h.b16 %v1600
    %v3131 = vunpack.c.l.b16 %v1601
    %v3132 = vunpack.c.h.b16 %v1601
    %v3133 = vunpack.c.l.b16 %v1602
    %v3134 = vunpack.c.h.b16 %v1602
    %v3135 = vunpack.c.l.b16 %v1603
    %v3136 = vunpack.c.h.b16 %v1603
    %v3137 = vunpack.c.l.b16 %v1604
    %v3138 = vunpack.c.h.b16 %v1604
    %v3139 = vunpack.c.l.b16 %v1605
    %v3140 = vunpack.c.h.b16 %v1605
    %v3141 = vunpack.c.l.b16 %v1606
    %v3142 = vunpack.c.h.b16 %v1606
    %v3143 = vunpack.c.l.b16 %v1607
    %v3144 = vunpack.c.h.b16 %v1607
    %v3145 = vunpack.c.l.b16 %v1608
    %v3146 = vunpack.c.h.b16 %v1608
    %v3147 = vunpack.c.l.b16 %v1609
    %v3148 = vunpack.c.h.b16 %v1609
    %v3149 = vunpack.c.l.b16 %v1610
    %v3150 = vunpack.c.h.b16 %v1610
    %v3151 = vunpack.c.l.b16 %v1611
    %v3152 = vunpack.c.h.b16 %v1611
    %v3153 = vunpack.c.l.b16 %v1612
    %v3154 = vunpack.c.h.b16 %v1612
    %v3155 = vunpack.c.l.b16 %v1613
    %v3156 = vunpack.c.h.b16 %v1613
    %v3157 = vunpack.c.l.b16 %v1614
    %v3158 = vunpack.c.h.b16 %v1614
    %v3159 = vunpack.c.l.b16 %v1615
    %v3160 = vunpack.c.h.b16 %v1615
    %v3161 = vunpack.c.l.b16 %v1616
    %v3162 = vunpack.c.h.b16 %v1616
    %v3163 = vunpack.c.l.b16 %v1617
    %v3164 = vunpack.c.h.b16 %v1617
    %v3165 = vunpack.c.l.b16 %v1618
    %v3166 = vunpack.c.h.b16 %v1618
    %v3167 = vunpack.c.l.b16 %v1619
    %v3168 = vunpack.c.h.b16 %v1619
    %v3169 = vunpack.c.l.b16 %v1620
    %v3170 = vunpack.c.h.b16 %v1620
    %v3171 = vunpack.c.l.b16 %v1621
    %v3172 = vunpack.c.h.b16 %v1621
    %v3173 = vunpack.c.l.b16 %v1622
    %v3174 = vunpack.c.h.b16 %v1622
    %v3175 = vunpack.c.l.b16 %v1623
    %v3176 = vunpack.c.h.b16 %v1623
    %v3177 = vunpack.c.l.b16 %v1624
    %v3178 = vunpack.c.h.b16 %v1624
    %v3179 = vunpack.c.l.b16 %v1625
    %v3180 = vunpack.c.h.b16 %v1625
    %v3181 = vunpack.c.l.b16 %v1626
    %v3182 = vunpack.c.h.b16 %v1626
    %v3183 = vunpack.c.l.b16 %v1627
    %v3184 = vunpack.c.h.b16 %v1627
    %v3185 = vunpack.c.l.b16 %v1628
    %v3186 = vunpack.c.h.b16 %v1628
    %v3187 = vunpack.c.l.b16 %v1629
    %v3188 = vunpack.c.h.b16 %v1629
    %v3189 = vunpack.c.l.b16 %v1630
    %v3190 = vunpack.c.h.b16 %v1630
    %v3191 = vunpack.c.l.b16 %v1631
    %v3192 = vunpack.c.h.b16 %v1631
    %v3193 = vunpack.c.l.b16 %v1632
    %v3194 = vunpack.c.h.b16 %v1632
    %v3195 = vunpack.c.l.b16 %v1633
    %v3196 = vunpack.c.h.b16 %v1633
    %v3197 = vunpack.c.l.b16 %v1634
    %v3198 = vunpack.c.h.b16 %v1634
    %v3199 = vunpack.c.l.b16 %v1635
    %v3200 = vunpack.c.h.b16 %v1635
    %v3201 = vunpack.c.l.b16 %v1636
    %v3202 = vunpack.c.h.b16 %v1636
    %v3203 = vunpack.c.l.b16 %v1637
    %v3204 = vunpack.c.h.b16 %v1637
    %v3205 = vunpack.c.l.b16 %v1638
    %v3206 = vunpack.c.h.b16 %v1638
    %v3207 = vunpack.c.l.b16 %v1639
    %v3208 = vunpack.c.h.b16 %v1639
    %v3209 = vunpack.c.l.b16 %v1640
    %v3210 = vunpack.c.h.b16 %v1640
    %v3211 = vunpack.c.l.b16 %v1641
    %v3212 = vunpack.c.h.b16 %v1641
    %v3213 = vunpack.c.l.b16 %v1642
    %v3214 = vunpack.c.h.b16 %v1642
    %v3215 = vunpack.c.l.b16 %v1643
    %v3216 = vunpack.c.h.b16 %v1643
    %v3217 = vunpack.c.l.b16 %v1644
    %v3218 = vunpack.c.h.b16 %v1644
    %v3219 = vunpack.c.l.b16 %v1645
    %v3220 = vunpack.c.h.b16 %v1645
    %v3221 = vunpack.c.l.b16 %v1646
    %v3222 = vunpack.c.h.b16 %v1646
    %v3223 = vunpack.c.l.b16 %v1647
    %v3224 = vunpack.c.h.b16 %v1647
    %v3225 = vunpack.c.l.b16 %v1648
    %v3226 = vunpack.c.h.b16 %v1648
    %v3227 = vunpack.c.l.b16 %v1649
    %v3228 = vunpack.c.h.b16 %v1649
    %v3229 = vunpack.c.l.b16 %v1650
    %v3230 = vunpack.c.h.b16 %v1650
    %v3231 = vunpack.c.l.b16 %v1651
    %v3232 = vunpack.c.h.b16 %v1651
    %v3233 = vunpack.c.l.b16 %v1652
    %v3234 = vunpack.c.h.b16 %v1652
    %v3235 = vunpack.c.l.b16 %v1653
    %v3236 = vunpack.c.h.b16 %v1653
    %v3237 = vunpack.c.l.b16 %v1654
    %v3238 = vunpack.c.h.b16 %v1654
    %v3239 = vunpack.c.l.b16 %v1655
    %v3240 = vunpack.c.h.b16 %v1655
    %v3241 = vunpack.c.l.b16 %v1656
    %v3242 = vunpack.c.h.b16 %v1656
    %v3243 = vunpack.c.l.b16 %v1657
    %v3244 = vunpack.c.h.b16 %v1657
    %v3245 = vunpack.c.l.b16 %v1658
    %v3246 = vunpack.c.h.b16 %v1658
    %v3247 = vunpack.c.l.b16 %v1659
    %v3248 = vunpack.c.h.b16 %v1659
    %v3249 = vunpack.c.l.b16 %v1660
    %v3250 = vunpack.c.h.b16 %v1660
    %v3251 = vunpack.c.l.b16 %v1661
    %v3252 = vunpack.c.h.b16 %v1661
    %v3253 = vunpack.c.l.b16 %v1662
    %v3254 = vunpack.c.h.b16 %v1662
    %v3255 = vunpack.c.l.b16 %v1663
    %v3256 = vunpack.c.h.b16 %v1663
    %v3257 = vunpack.c.l.b16 %v1664
    %v3258 = vunpack.c.h.b16 %v1664
    %v3259 = vunpack.c.l.b16 %v1665
    %v3260 = vunpack.c.h.b16 %v1665
    %v3261 = vunpack.c.l.b16 %v1666
    %v3262 = vunpack.c.h.b16 %v1666
    %v3263 = vunpack.c.l.b16 %v1667
    %v3264 = vunpack.c.h.b16 %v1667
    %v3265 = vunpack.c.l.b16 %v1668
    %v3266 = vunpack.c.h.b16 %v1668
    %v3267 = vunpack.c.l.b16 %v1669
    %v3268 = vunpack.c.h.b16 %v1669
    %v3269 = vunpack.c.l.b16 %v1670
    %v3270 = vunpack.c.h.b16 %v1670
    %v3271 = vunpack.c.l.b16 %v1671
    %v3272 = vunpack.c.h.b16 %v1671
    %v3273 = vunpack.c.l.b16 %v1672
    %v3274 = vunpack.c.h.b16 %v1672
    %v3275 = vunpack.c.l.b16 %v1673
    %v3276 = vunpack.c.h.b16 %v1673
    %v3277 = vunpack.c.l.b16 %v1674
    %v3278 = vunpack.c.h.b16 %v1674
    %v3279 = vunpack.c.l.b16 %v1675
    %v3280 = vunpack.c.h.b16 %v1675
    %v3281 = vunpack.c.l.b16 %v1676
    %v3282 = vunpack.c.h.b16 %v1676
    %v3283 = vunpack.c.l.b16 %v1677
    %v3284 = vunpack.c.h.b16 %v1677
    %v3285 = vunpack.c.l.b16 %v1678
    %v3286 = vunpack.c.h.b16 %v1678
    %v3287 = vunpack.c.l.b16 %v1679
    %v3288 = vunpack.c.h.b16 %v1679
    %v3289 = vunpack.c.l.b16 %v1680
    %v3290 = vunpack.c.h.b16 %v1680
    %v3291 = vunpack.c.l.b16 %v1681
    %v3292 = vunpack.c.h.b16 %v1681
    %v3293 = vunpack.c.l.b16 %v1682
    %v3294 = vunpack.c.h.b16 %v1682
    %v3295 = vunpack.c.l.b16 %v1683
    %v3296 = vunpack.c.h.b16 %v1683
    %v3297 = vunpack.c.l.b16 %v1684
    %v3298 = vunpack.c.h.b16 %v1684
    %v3299 = vunpack.c.l.b16 %v1685
    %v3300 = vunpack.c.h.b16 %v1685
    %v3301 = vunpack.c.l.b16 %v1686
    %v3302 = vunpack.c.h.b16 %v1686
    %v3303 = vunpack.c.l.b16 %v1687
    %v3304 = vunpack.c.h.b16 %v1687
    %v3305 = vunpack.c.l.b16 %v1688
    %v3306 = vunpack.c.h.b16 %v1688
    %v3307 = vunpack.c.l.b16 %v1689
    %v3308 = vunpack.c.h.b16 %v1689
    %v3309 = vunpack.c.l.b16 %v1690
    %v3310 = vunpack.c.h.b16 %v1690
    %v3311 = vunpack.c.l.b16 %v1691
    %v3312 = vunpack.c.h.b16 %v1691
    %v3313 = vunpack.c.l.b16 %v1692
    %v3314 = vunpack.c.h.b16 %v1692
    %v3315 = vunpack.c.l.b16 %v1693
    %v3316 = vunpack.c.h.b16 %v1693
    %v3317 = vunpack.c.l.b16 %v1694
    %v3318 = vunpack.c.h.b16 %v1694
    %v3319 = vunpack.c.l.b16 %v1695
    %v3320 = vunpack.c.h.b16 %v1695
    %v3321 = vunpack.c.l.b16 %v1696
    %v3322 = vunpack.c.h.b16 %v1696
    %v3323 = vunpack.c.l.b16 %v1697
    %v3324 = vunpack.c.h.b16 %v1697
    %v3325 = vunpack.c.l.b16 %v1698
    %v3326 = vunpack.c.h.b16 %v1698
    %v3327 = vunpack.c.l.b16 %v1699
    %v3328 = vunpack.c.h.b16 %v1699
    %v3329 = vunpack.c.l.b16 %v1700
    %v3330 = vunpack.c.h.b16 %v1700
    %v3331 = vunpack.c.l.b16 %v1701
    %v3332 = vunpack.c.h.b16 %v1701
    %v3333 = vunpack.c.l.b16 %v1702
    %v3334 = vunpack.c.h.b16 %v1702
    %v3335 = vunpack.c.l.b16 %v1703
    %v3336 = vunpack.c.h.b16 %v1703
    %v3337 = vunpack.c.l.b16 %v1704
    %v3338 = vunpack.c.h.b16 %v1704
    %v3339 = vunpack.c.l.b16 %v1705
    %v3340 = vunpack.c.h.b16 %v1705
    %v3341 = vunpack.c.l.b16 %v1706
    %v3342 = vunpack.c.h.b16 %v1706
    %v3343 = vunpack.c.l.b16 %v1707
    %v3344 = vunpack.c.h.b16 %v1707
    %v3345 = vunpack.c.l.b16 %v1708
    %v3346 = vunpack.c.h.b16 %v1708
    %v3347 = vunpack.c.l.b16 %v1709
    %v3348 = vunpack.c.h.b16 %v1709
    %v3349 = vunpack.c.l.b16 %v1710
    %v3350 = vunpack.c.h.b16 %v1710
    %v3351 = vunpack.c.l.b16 %v1711
    %v3352 = vunpack.c.h.b16 %v1711
    %v3353 = vunpack.c.l.b16 %v1712
    %v3354 = vunpack.c.h.b16 %v1712
    %v3355 = vunpack.c.l.b16 %v1713
    %v3356 = vunpack.c.h.b16 %v1713
    %v3357 = vunpack.c.l.b16 %v1714
    %v3358 = vunpack.c.h.b16 %v1714
    %v3359 = vunpack.c.l.b16 %v1715
    %v3360 = vunpack.c.h.b16 %v1715
    %v3361 = vunpack.c.l.b16 %v1716
    %v3362 = vunpack.c.h.b16 %v1716
    %v3363 = vunpack.c.l.b16 %v1717
    %v3364 = vunpack.c.h.b16 %v1717
    %v3365 = vunpack.c.l.b16 %v1718
    %v3366 = vunpack.c.h.b16 %v1718
    %v3367 = vunpack.c.l.b16 %v1719
    %v3368 = vunpack.c.h.b16 %v1719
    %v3369 = vpack.c.b16 %v2349, %v2345
    %v3370 = vpack.c.b16 %v2350, %v2346
    %v3371 = vpack.c.b16 %v2351, %v2347
    %v3372 = vpack.c.b16 %v2352, %v2348
    %v3373 = vpack.c.b16 %v2357, %v2353
    %v3374 = vpack.c.b16 %v2358, %v2354
    %v3375 = vpack.c.b16 %v2359, %v2355
    %v3376 = vpack.c.b16 %v2360, %v2356
    %v3377 = vpack.c.b16 %v2365, %v2361
    %v3378 = vpack.c.b16 %v2366, %v2362
    %v3379 = vpack.c.b16 %v2367, %v2363
    %v3380 = vpack.c.b16 %v2368, %v2364
    %v3381 = vpack.c.b16 %v2373, %v2369
    %v3382 = vpack.c.b16 %v2374, %v2370
    %v3383 = vpack.c.b16 %v2375, %v2371
    %v3384 = vpack.c.b16 %v2376, %v2372
    %v3385 = vpack.c.b16 %v2381, %v2377
    %v3386 = vpack.c.b16 %v2382, %v2378
    %v3387 = vpack.c.b16 %v2383, %v2379
    %v3388 = vpack.c.b16 %v2384, %v2380
    %v3389 = vpack.c.b16 %v2389, %v2385
    %v3390 = vpack.c.b16 %v2390, %v2386
    %v3391 = vpack.c.b16 %v2391, %v2387
    %v3392 = vpack.c.b16 %v2392, %v2388
    %v3393 = vpack.c.b16 %v2397, %v2393
    %v3394 = vpack.c.b16 %v2398, %v2394
    %v3395 = vpack.c.b16 %v2399, %v2395
    %v3396 = vpack.c.b16 %v2400, %v2396
    %v3397 = vpack.c.b16 %v2405, %v2401
    %v3398 = vpack.c.b16 %v2406, %v2402
    %v3399 = vpack.c.b16 %v2407, %v2403
    %v3400 = vpack.c.b16 %v2408, %v2404
    %v3401 = vpack.c.b16 %v2413, %v2409
    %v3402 = vpack.c.b16 %v2414, %v2410
    %v3403 = vpack.c.b16 %v2415, %v2411
    %v3404 = vpack.c.b16 %v2416, %v2412
    %v3405 = vpack.c.b16 %v2421, %v2417
    %v3406 = vpack.c.b16 %v2422, %v2418
    %v3407 = vpack.c.b16 %v2423, %v2419
    %v3408 = vpack.c.b16 %v2424, %v2420
    %v3409 = vpack.c.b16 %v2429, %v2425
    %v3410 = vpack.c.b16 %v2430, %v2426
    %v3411 = vpack.c.b16 %v2431, %v2427
    %v3412 = vpack.c.b16 %v2432, %v2428
    %v3413 = vpack.c.b16 %v2437, %v2433
    %v3414 = vpack.c.b16 %v2438, %v2434
    %v3415 = vpack.c.b16 %v2439, %v2435
    %v3416 = vpack.c.b16 %v2440, %v2436
    %v3417 = vpack.c.b16 %v2445, %v2441
    %v3418 = vpack.c.b16 %v2446, %v2442
    %v3419 = vpack.c.b16 %v2447, %v2443
    %v3420 = vpack.c.b16 %v2448, %v2444
    %v3421 = vpack.c.b16 %v2453, %v2449
    %v3422 = vpack.c.b16 %v2454, %v2450
    %v3423 = vpack.c.b16 %v2455, %v2451
    %v3424 = vpack.c.b16 %v2456, %v2452
    %v3425 = vpack.c.b16 %v2461, %v2457
    %v3426 = vpack.c.b16 %v2462, %v2458
    %v3427 = vpack.c.b16 %v2463, %v2459
    %v3428 = vpack.c.b16 %v2464, %v2460
    %v3429 = vpack.c.b16 %v2469, %v2465
    %v3430 = vpack.c.b16 %v2470, %v2466
    %v3431 = vpack.c.b16 %v2471, %v2467
    %v3432 = vpack.c.b16 %v2472, %v2468
    %v3433 = vpack.c.b16 %v2477, %v2473
    %v3434 = vpack.c.b16 %v2478, %v2474
    %v3435 = vpack.c.b16 %v2479, %v2475
    %v3436 = vpack.c.b16 %v2480, %v2476
    %v3437 = vpack.c.b16 %v2485, %v2481
    %v3438 = vpack.c.b16 %v2486, %v2482
    %v3439 = vpack.c.b16 %v2487, %v2483
    %v3440 = vpack.c.b16 %v2488, %v2484
    %v3441 = vpack.c.b16 %v2493, %v2489
    %v3442 = vpack.c.b16 %v2494, %v2490
    %v3443 = vpack.c.b16 %v2495, %v2491
    %v3444 = vpack.c.b16 %v2496, %v2492
    %v3445 = vpack.c.b16 %v2501, %v2497
    %v3446 = vpack.c.b16 %v2502, %v2498
    %v3447 = vpack.c.b16 %v2503, %v2499
    %v3448 = vpack.c.b16 %v2504, %v2500
    %v3449 = vpack.c.b16 %v2509, %v2505
    %v3450 = vpack.c.b16 %v2510, %v2506
    %v3451 = vpack.c.b16 %v2511, %v2507
    %v3452 = vpack.c.b16 %v2512, %v2508
    %v3453 = vpack.c.b16 %v2517, %v2513
    %v3454 = vpack.c.b16 %v2518, %v2514
    %v3455 = vpack.c.b16 %v2519, %v2515
    %v3456 = vpack.c.b16 %v2520, %v2516
    %v3457 = vpack.c.b16 %v2525, %v2521
    %v3458 = vpack.c.b16 %v2526, %v2522
    %v3459 = vpack.c.b16 %v2527, %v2523
    %v3460 = vpack.c.b16 %v2528, %v2524
    %v3461 = vpack.c.b16 %v2533, %v2529
    %v3462 = vpack.c.b16 %v2534, %v2530
    %v3463 = vpack.c.b16 %v2535, %v2531
    %v3464 = vpack.c.b16 %v2536, %v2532
    %v3465 = vpack.c.b16 %v2541, %v2537
    %v3466 = vpack.c.b16 %v2542, %v2538
    %v3467 = vpack.c.b16 %v2543, %v2539
    %v3468 = vpack.c.b16 %v2544, %v2540
    %v3469 = vpack.c.b16 %v2549, %v2545
    %v3470 = vpack.c.b16 %v2550, %v2546
    %v3471 = vpack.c.b16 %v2551, %v2547
    %v3472 = vpack.c.b16 %v2552, %v2548
    %v3473 = vpack.c.b16 %v2557, %v2553
    %v3474 = vpack.c.b16 %v2558, %v2554
    %v3475 = vpack.c.b16 %v2559, %v2555
    %v3476 = vpack.c.b16 %v2560, %v2556
    %v3477 = vpack.c.b16 %v2565, %v2561
    %v3478 = vpack.c.b16 %v2566, %v2562
    %v3479 = vpack.c.b16 %v2567, %v2563
    %v3480 = vpack.c.b16 %v2568, %v2564
    %v3481 = vpack.c.b16 %v2573, %v2569
    %v3482 = vpack.c.b16 %v2574, %v2570
    %v3483 = vpack.c.b16 %v2575, %v2571
    %v3484 = vpack.c.b16 %v2576, %v2572
    %v3485 = vpack.c.b16 %v2581, %v2577
    %v3486 = vpack.c.b16 %v2582, %v2578
    %v3487 = vpack.c.b16 %v2583, %v2579
    %v3488 = vpack.c.b16 %v2584, %v2580
    %v3489 = vpack.c.b16 %v2589, %v2585
    %v3490 = vpack.c.b16 %v2590, %v2586
    %v3491 = vpack.c.b16 %v2591, %v2587
    %v3492 = vpack.c.b16 %v2592, %v2588
    %v3493 = vpack.c.b16 %v2597, %v2593
    %v3494 = vpack.c.b16 %v2598, %v2594
    %v3495 = vpack.c.b16 %v2599, %v2595
    %v3496 = vpack.c.b16 %v2600, %v2596
    %v3497 = vpack.c.b16 %v2605, %v2601
    %v3498 = vpack.c.b16 %v2606, %v2602
    %v3499 = vpack.c.b16 %v2607, %v2603
    %v3500 = vpack.c.b16 %v2608, %v2604
    %v3501 = vpack.c.b16 %v2613, %v2609
    %v3502 = vpack.c.b16 %v2614, %v2610
    %v3503 = vpack.c.b16 %v2615, %v2611
    %v3504 = vpack.c.b16 %v2616, %v2612
    %v3505 = vpack.c.b16 %v2621, %v2617
    %v3506 = vpack.c.b16 %v2622, %v2618
    %v3507 = vpack.c.b16 %v2623, %v2619
    %v3508 = vpack.c.b16 %v2624, %v2620
    %v3509 = vpack.c.b16 %v2629, %v2625
    %v3510 = vpack.c.b16 %v2630, %v2626
    %v3511 = vpack.c.b16 %v2631, %v2627
    %v3512 = vpack.c.b16 %v2632, %v2628
    %v3513 = vpack.c.b16 %v2637, %v2633
    %v3514 = vpack.c.b16 %v2638, %v2634
    %v3515 = vpack.c.b16 %v2639, %v2635
    %v3516 = vpack.c.b16 %v2640, %v2636
    %v3517 = vpack.c.b16 %v2645, %v2641
    %v3518 = vpack.c.b16 %v2646, %v2642
    %v3519 = vpack.c.b16 %v2647, %v2643
    %v3520 = vpack.c.b16 %v2648, %v2644
    %v3521 = vpack.c.b16 %v2653, %v2649
    %v3522 = vpack.c.b16 %v2654, %v2650
    %v3523 = vpack.c.b16 %v2655, %v2651
    %v3524 = vpack.c.b16 %v2656, %v2652
    %v3525 = vpack.c.b16 %v2661, %v2657
    %v3526 = vpack.c.b16 %v2662, %v2658
    %v3527 = vpack.c.b16 %v2663, %v2659
    %v3528 = vpack.c.b16 %v2664, %v2660
    %v3529 = vpack.c.b16 %v2669, %v2665
    %v3530 = vpack.c.b16 %v2670, %v2666
    %v3531 = vpack.c.b16 %v2671, %v2667
    %v3532 = vpack.c.b16 %v2672, %v2668
    %v3533 = vpack.c.b16 %v2677, %v2673
    %v3534 = vpack.c.b16 %v2678, %v2674
    %v3535 = vpack.c.b16 %v2679, %v2675
    %v3536 = vpack.c.b16 %v2680, %v2676
    %v3537 = vpack.c.b16 %v2685, %v2681
    %v3538 = vpack.c.b16 %v2686, %v2682
    %v3539 = vpack.c.b16 %v2687, %v2683
    %v3540 = vpack.c.b16 %v2688, %v2684
    %v3541 = vpack.c.b16 %v2693, %v2689
    %v3542 = vpack.c.b16 %v2694, %v2690
    %v3543 = vpack.c.b16 %v2695, %v2691
    %v3544 = vpack.c.b16 %v2696, %v2692
    %v3545 = vpack.c.b16 %v2701, %v2697
    %v3546 = vpack.c.b16 %v2702, %v2698
    %v3547 = vpack.c.b16 %v2703, %v2699
    %v3548 = vpack.c.b16 %v2704, %v2700
    %v3549 = vpack.c.b16 %v2709, %v2705
    %v3550 = vpack.c.b16 %v2710, %v2706
    %v3551 = vpack.c.b16 %v2711, %v2707
    %v3552 = vpack.c.b16 %v2712, %v2708
    %v3553 = vpack.c.b16 %v2717, %v2713
    %v3554 = vpack.c.b16 %v2718, %v2714
    %v3555 = vpack.c.b16 %v2719, %v2715
    %v3556 = vpack.c.b16 %v2720, %v2716
    %v3557 = vpack.c.b16 %v2725, %v2721
    %v3558 = vpack.c.b16 %v2726, %v2722
    %v3559 = vpack.c.b16 %v2727, %v2723
    %v3560 = vpack.c.b16 %v2728, %v2724
    %v3561 = vpack.c.b16 %v2733, %v2729
    %v3562 = vpack.c.b16 %v2734, %v2730
    %v3563 = vpack.c.b16 %v2735, %v2731
    %v3564 = vpack.c.b16 %v2736, %v2732
    %v3565 = vpack.c.b16 %v2741, %v2737
    %v3566 = vpack.c.b16 %v2742, %v2738
    %v3567 = vpack.c.b16 %v2743, %v2739
    %v3568 = vpack.c.b16 %v2744, %v2740
    %v3569 = vpack.c.b16 %v2749, %v2745
    %v3570 = vpack.c.b16 %v2750, %v2746
    %v3571 = vpack.c.b16 %v2751, %v2747
    %v3572 = vpack.c.b16 %v2752, %v2748
    %v3573 = vpack.c.b16 %v2757, %v2753
    %v3574 = vpack.c.b16 %v2758, %v2754
    %v3575 = vpack.c.b16 %v2759, %v2755
    %v3576 = vpack.c.b16 %v2760, %v2756
    %v3577 = vpack.c.b16 %v2765, %v2761
    %v3578 = vpack.c.b16 %v2766, %v2762
    %v3579 = vpack.c.b16 %v2767, %v2763
    %v3580 = vpack.c.b16 %v2768, %v2764
    %v3581 = vpack.c.b16 %v2773, %v2769
    %v3582 = vpack.c.b16 %v2774, %v2770
    %v3583 = vpack.c.b16 %v2775, %v2771
    %v3584 = vpack.c.b16 %v2776, %v2772
    %v3585 = vpack.c.b16 %v2781, %v2777
    %v3586 = vpack.c.b16 %v2782, %v2778
    %v3587 = vpack.c.b16 %v2783, %v2779
    %v3588 = vpack.c.b16 %v2784, %v2780
    %v3589 = vpack.c.b16 %v2789, %v2785
    %v3590 = vpack.c.b16 %v2790, %v2786
    %v3591 = vpack.c.b16 %v2791, %v2787
    %v3592 = vpack.c.b16 %v2792, %v2788
    %v3593 = vpack.c.b16 %v2797, %v2793
    %v3594 = vpack.c.b16 %v2798, %v2794
    %v3595 = vpack.c.b16 %v2799, %v2795
    %v3596 = vpack.c.b16 %v2800, %v2796
    %v3597 = vpack.c.b16 %v2805, %v2801
    %v3598 = vpack.c.b16 %v2806, %v2802
    %v3599 = vpack.c.b16 %v2807, %v2803
    %v3600 = vpack.c.b16 %v2808, %v2804
    %v3601 = vpack.c.b16 %v2813, %v2809
    %v3602 = vpack.c.b16 %v2814, %v2810
    %v3603 = vpack.c.b16 %v2815, %v2811
    %v3604 = vpack.c.b16 %v2816, %v2812
    %v3605 = vpack.c.b16 %v2821, %v2817
    %v3606 = vpack.c.b16 %v2822, %v2818
    %v3607 = vpack.c.b16 %v2823, %v2819
    %v3608 = vpack.c.b16 %v2824, %v2820
    %v3609 = vpack.c.b16 %v2829, %v2825
    %v3610 = vpack.c.b16 %v2830, %v2826
    %v3611 = vpack.c.b16 %v2831, %v2827
    %v3612 = vpack.c.b16 %v2832, %v2828
    %v3613 = vpack.c.b16 %v2837, %v2833
    %v3614 = vpack.c.b16 %v2838, %v2834
    %v3615 = vpack.c.b16 %v2839, %v2835
    %v3616 = vpack.c.b16 %v2840, %v2836
    %v3617 = vpack.c.b16 %v2845, %v2841
    %v3618 = vpack.c.b16 %v2846, %v2842
    %v3619 = vpack.c.b16 %v2847, %v2843
    %v3620 = vpack.c.b16 %v2848, %v2844
    %v3621 = vpack.c.b16 %v2853, %v2849
    %v3622 = vpack.c.b16 %v2854, %v2850
    %v3623 = vpack.c.b16 %v2855, %v2851
    %v3624 = vpack.c.b16 %v2856, %v2852
    %v3625 = vpack.c.b16 %v2861, %v2857
    %v3626 = vpack.c.b16 %v2862, %v2858
    %v3627 = vpack.c.b16 %v2863, %v2859
    %v3628 = vpack.c.b16 %v2864, %v2860
    %v3629 = vpack.c.b16 %v2869, %v2865
    %v3630 = vpack.c.b16 %v2870, %v2866
    %v3631 = vpack.c.b16 %v2871, %v2867
    %v3632 = vpack.c.b16 %v2872, %v2868
    %v3633 = vpack.c.b16 %v2877, %v2873
    %v3634 = vpack.c.b16 %v2878, %v2874
    %v3635 = vpack.c.b16 %v2879, %v2875
    %v3636 = vpack.c.b16 %v2880, %v2876
    %v3637 = vpack.c.b16 %v2885, %v2881
    %v3638 = vpack.c.b16 %v2886, %v2882
    %v3639 = vpack.c.b16 %v2887, %v2883
    %v3640 = vpack.c.b16 %v2888, %v2884
    %v3641 = vpack.c.b16 %v2893, %v2889
    %v3642 = vpack.c.b16 %v2894, %v2890
    %v3643 = vpack.c.b16 %v2895, %v2891
    %v3644 = vpack.c.b16 %v2896, %v2892
    %v3645 = vpack.c.b16 %v2901, %v2897
    %v3646 = vpack.c.b16 %v2902, %v2898
    %v3647 = vpack.c.b16 %v2903, %v2899
    %v3648 = vpack.c.b16 %v2904, %v2900
    %v3649 = vpack.c.b16 %v2909, %v2905
    %v3650 = vpack.c.b16 %v2910, %v2906
    %v3651 = vpack.c.b16 %v2911, %v2907
    %v3652 = vpack.c.b16 %v2912, %v2908
    %v3653 = vpack.c.b16 %v2917, %v2913
    %v3654 = vpack.c.b16 %v2918, %v2914
    %v3655 = vpack.c.b16 %v2919, %v2915
    %v3656 = vpack.c.b16 %v2920, %v2916
    %v3657 = vpack.c.b16 %v2925, %v2921
    %v3658 = vpack.c.b16 %v2926, %v2922
    %v3659 = vpack.c.b16 %v2927, %v2923
    %v3660 = vpack.c.b16 %v2928, %v2924
    %v3661 = vpack.c.b16 %v2933, %v2929
    %v3662 = vpack.c.b16 %v2934, %v2930
    %v3663 = vpack.c.b16 %v2935, %v2931
    %v3664 = vpack.c.b16 %v2936, %v2932
    %v3665 = vpack.c.b16 %v2941, %v2937
    %v3666 = vpack.c.b16 %v2942, %v2938
    %v3667 = vpack.c.b16 %v2943, %v2939
    %v3668 = vpack.c.b16 %v2944, %v2940
    %v3669 = vpack.c.b16 %v2949, %v2945
    %v3670 = vpack.c.b16 %v2950, %v2946
    %v3671 = vpack.c.b16 %v2951, %v2947
    %v3672 = vpack.c.b16 %v2952, %v2948
    %v3673 = vpack.c.b16 %v2957, %v2953
    %v3674 = vpack.c.b16 %v2958, %v2954
    %v3675 = vpack.c.b16 %v2959, %v2955
    %v3676 = vpack.c.b16 %v2960, %v2956
    %v3677 = vpack.c.b16 %v2965, %v2961
    %v3678 = vpack.c.b16 %v2966, %v2962
    %v3679 = vpack.c.b16 %v2967, %v2963
    %v3680 = vpack.c.b16 %v2968, %v2964
    %v3681 = vpack.c.b16 %v2973, %v2969
    %v3682 = vpack.c.b16 %v2974, %v2970
    %v3683 = vpack.c.b16 %v2975, %v2971
    %v3684 = vpack.c.b16 %v2976, %v2972
    %v3685 = vpack.c.b16 %v2981, %v2977
    %v3686 = vpack.c.b16 %v2982, %v2978
    %v3687 = vpack.c.b16 %v2983, %v2979
    %v3688 = vpack.c.b16 %v2984, %v2980
    %v3689 = vpack.c.b16 %v2989, %v2985
    %v3690 = vpack.c.b16 %v2990, %v2986
    %v3691 = vpack.c.b16 %v2991, %v2987
    %v3692 = vpack.c.b16 %v2992, %v2988
    %v3693 = vpack.c.b16 %v2997, %v2993
    %v3694 = vpack.c.b16 %v2998, %v2994
    %v3695 = vpack.c.b16 %v2999, %v2995
    %v3696 = vpack.c.b16 %v3000, %v2996
    %v3697 = vpack.c.b16 %v3005, %v3001
    %v3698 = vpack.c.b16 %v3006, %v3002
    %v3699 = vpack.c.b16 %v3007, %v3003
    %v3700 = vpack.c.b16 %v3008, %v3004
    %v3701 = vpack.c.b16 %v3013, %v3009
    %v3702 = vpack.c.b16 %v3014, %v3010
    %v3703 = vpack.c.b16 %v3015, %v3011
    %v3704 = vpack.c.b16 %v3016, %v3012
    %v3705 = vpack.c.b16 %v3021, %v3017
    %v3706 = vpack.c.b16 %v3022, %v3018
    %v3707 = vpack.c.b16 %v3023, %v3019
    %v3708 = vpack.c.b16 %v3024, %v3020
    %v3709 = vpack.c.b16 %v3029, %v3025
    %v3710 = vpack.c.b16 %v3030, %v3026
    %v3711 = vpack.c.b16 %v3031, %v3027
    %v3712 = vpack.c.b16 %v3032, %v3028
    %v3713 = vpack.c.b16 %v3037, %v3033
    %v3714 = vpack.c.b16 %v3038, %v3034
    %v3715 = vpack.c.b16 %v3039, %v3035
    %v3716 = vpack.c.b16 %v3040, %v3036
    %v3717 = vpack.c.b16 %v3045, %v3041
    %v3718 = vpack.c.b16 %v3046, %v3042
    %v3719 = vpack.c.b16 %v3047, %v3043
    %v3720 = vpack.c.b16 %v3048, %v3044
    %v3721 = vpack.c.b16 %v3053, %v3049
    %v3722 = vpack.c.b16 %v3054, %v3050
    %v3723 = vpack.c.b16 %v3055, %v3051
    %v3724 = vpack.c.b16 %v3056, %v3052
    %v3725 = vpack.c.b16 %v3061, %v3057
    %v3726 = vpack.c.b16 %v3062, %v3058
    %v3727 = vpack.c.b16 %v3063, %v3059
    %v3728 = vpack.c.b16 %v3064, %v3060
    %v3729 = vpack.c.b16 %v3069, %v3065
    %v3730 = vpack.c.b16 %v3070, %v3066
    %v3731 = vpack.c.b16 %v3071, %v3067
    %v3732 = vpack.c.b16 %v3072, %v3068
    %v3733 = vpack.c.b16 %v3077, %v3073
    %v3734 = vpack.c.b16 %v3078, %v3074
    %v3735 = vpack.c.b16 %v3079, %v3075
    %v3736 = vpack.c.b16 %v3080, %v3076
    %v3737 = vpack.c.b16 %v3085, %v3081
    %v3738 = vpack.c.b16 %v3086, %v3082
    %v3739 = vpack.c.b16 %v3087, %v3083
    %v3740 = vpack.c.b16 %v3088, %v3084
    %v3741 = vpack.c.b16 %v3093, %v3089
    %v3742 = vpack.c.b16 %v3094, %v3090
    %v3743 = vpack.c.b16 %v3095, %v3091
    %v3744 = vpack.c.b16 %v3096, %v3092
    %v3745 = vpack.c.b16 %v3101, %v3097
    %v3746 = vpack.c.b16 %v3102, %v3098
    %v3747 = vpack.c.b16 %v3103, %v3099
    %v3748 = vpack.c.b16 %v3104, %v3100
    %v3749 = vpack.c.b16 %v3109, %v3105
    %v3750 = vpack.c.b16 %v3110, %v3106
    %v3751 = vpack.c.b16 %v3111, %v3107
    %v3752 = vpack.c.b16 %v3112, %v3108
    %v3753 = vpack.c.b16 %v3117, %v3113
    %v3754 = vpack.c.b16 %v3118, %v3114
    %v3755 = vpack.c.b16 %v3119, %v3115
    %v3756 = vpack.c.b16 %v3120, %v3116
    %v3757 = vpack.c.b16 %v3125, %v3121
    %v3758 = vpack.c.b16 %v3126, %v3122
    %v3759 = vpack.c.b16 %v3127, %v3123
    %v3760 = vpack.c.b16 %v3128, %v3124
    %v3761 = vpack.c.b16 %v3133, %v3129
    %v3762 = vpack.c.b16 %v3134, %v3130
    %v3763 = vpack.c.b16 %v3135, %v3131
    %v3764 = vpack.c.b16 %v3136, %v3132
    %v3765 = vpack.c.b16 %v3141, %v3137
    %v3766 = vpack.c.b16 %v3142, %v3138
    %v3767 = vpack.c.b16 %v3143, %v3139
    %v3768 = vpack.c.b16 %v3144, %v3140
    %v3769 = vpack.c.b16 %v3149, %v3145
    %v3770 = vpack.c.b16 %v3150, %v3146
    %v3771 = vpack.c.b16 %v3151, %v3147
    %v3772 = vpack.c.b16 %v3152, %v3148
    %v3773 = vpack.c.b16 %v3157, %v3153
    %v3774 = vpack.c.b16 %v3158, %v3154
    %v3775 = vpack.c.b16 %v3159, %v3155
    %v3776 = vpack.c.b16 %v3160, %v3156
    %v3777 = vpack.c.b16 %v3165, %v3161
    %v3778 = vpack.c.b16 %v3166, %v3162
    %v3779 = vpack.c.b16 %v3167, %v3163
    %v3780 = vpack.c.b16 %v3168, %v3164
    %v3781 = vpack.c.b16 %v3173, %v3169
    %v3782 = vpack.c.b16 %v3174, %v3170
    %v3783 = vpack.c.b16 %v3175, %v3171
    %v3784 = vpack.c.b16 %v3176, %v3172
    %v3785 = vpack.c.b16 %v3181, %v3177
    %v3786 = vpack.c.b16 %v3182, %v3178
    %v3787 = vpack.c.b16 %v3183, %v3179
    %v3788 = vpack.c.b16 %v3184, %v3180
    %v3789 = vpack.c.b16 %v3189, %v3185
    %v3790 = vpack.c.b16 %v3190, %v3186
    %v3791 = vpack.c.b16 %v3191, %v3187
    %v3792 = vpack.c.b16 %v3192, %v3188
    %v3793 = vpack.c.b16 %v3197, %v3193
    %v3794 = vpack.c.b16 %v3198, %v3194
    %v3795 = vpack.c.b16 %v3199, %v3195
    %v3796 = vpack.c.b16 %v3200, %v3196
    %v3797 = vpack.c.b16 %v3205, %v3201
    %v3798 = vpack.c.b16 %v3206, %v3202
    %v3799 = vpack.c.b16 %v3207, %v3203
    %v3800 = vpack.c.b16 %v3208, %v3204
    %v3801 = vpack.c.b16 %v3213, %v3209
    %v3802 = vpack.c.b16 %v3214, %v3210
    %v3803 = vpack.c.b16 %v3215, %v3211
    %v3804 = vpack.c.b16 %v3216, %v3212
    %v3805 = vpack.c.b16 %v3221, %v3217
    %v3806 = vpack.c.b16 %v3222, %v3218
    %v3807 = vpack.c.b16 %v3223, %v3219
    %v3808 = vpack.c.b16 %v3224, %v3220
    %v3809 = vpack.c.b16 %v3229, %v3225
    %v3810 = vpack.c.b16 %v3230, %v3226
    %v3811 = vpack.c.b16 %v3231, %v3227
    %v3812 = vpack.c.b16 %v3232, %v3228
    %v3813 = vpack.c.b16 %v3237, %v3233
    %v3814 = vpack.c.b16 %v3238, %v3234
    %v3815 = vpack.c.b16 %v3239, %v3235
    %v3816 = vpack.c.b16 %v3240, %v3236
    %v3817 = vpack.c.b16 %v3245, %v3241
    %v3818 = vpack.c.b16 %v3246, %v3242
    %v3819 = vpack.c.b16 %v3247, %v3243
    %v3820 = vpack.c.b16 %v3248, %v3244
    %v3821 = vpack.c.b16 %v3253, %v3249
    %v3822 = vpack.c.b16 %v3254, %v3250
    %v3823 = vpack.c.b16 %v3255, %v3251
    %v3824 = vpack.c.b16 %v3256, %v3252
    %v3825 = vpack.c.b16 %v3261, %v3257
    %v3826 = vpack.c.b16 %v3262, %v3258
    %v3827 = vpack.c.b16 %v3263, %v3259
    %v3828 = vpack.c.b16 %v3264, %v3260
    %v3829 = vpack.c.b16 %v3269, %v3265
    %v3830 = vpack.c.b16 %v3270, %v3266
    %v3831 = vpack.c.b16 %v3271, %v3267
    %v3832 = vpack.c.b16 %v3272, %v3268
    %v3833 = vpack.c.b16 %v3277, %v3273
    %v3834 = vpack.c.b16 %v3278, %v3274
    %v3835 = vpack.c.b16 %v3279, %v3275
    %v3836 = vpack.c.b16 %v3280, %v3276
    %v3837 = vpack.c.b16 %v3285, %v3281
    %v3838 = vpack.c.b16 %v3286, %v3282
    %v3839 = vpack.c.b16 %v3287, %v3283
    %v3840 = vpack.c.b16 %v3288, %v3284
    %v3841 = vpack.c.b16 %v3293, %v3289
    %v3842 = vpack.c.b16 %v3294, %v3290
    %v3843 = vpack.c.b16 %v3295, %v3291
    %v3844 = vpack.c.b16 %v3296, %v3292
    %v3845 = vpack.c.b16 %v3301, %v3297
    %v3846 = vpack.c.b16 %v3302, %v3298
    %v3847 = vpack.c.b16 %v3303, %v3299
    %v3848 = vpack.c.b16 %v3304, %v3300
    %v3849 = vpack.c.b16 %v3309, %v3305
    %v3850 = vpack.c.b16 %v3310, %v3306
    %v3851 = vpack.c.b16 %v3311, %v3307
    %v3852 = vpack.c.b16 %v3312, %v3308
    %v3853 = vpack.c.b16 %v3317, %v3313
    %v3854 = vpack.c.b16 %v3318, %v3314
    %v3855 = vpack.c.b16 %v3319, %v3315
    %v3856 = vpack.c.b16 %v3320, %v3316
    %v3857 = vpack.c.b16 %v3325, %v3321
    %v3858 = vpack.c.b16 %v3326, %v3322
    %v3859 = vpack.c.b16 %v3327, %v3323
    %v3860 = vpack.c.b16 %v3328, %v3324
    %v3861 = vpack.c.b16 %v3333, %v3329
    %v3862 = vpack.c.b16 %v3334, %v3330
    %v3863 = vpack.c.b16 %v3335, %v3331
    %v3864 = vpack.c.b16 %v3336, %v3332
    %v3865 = vpack.c.b16 %v3341, %v3337
    %v3866 = vpack.c.b16 %v3342, %v3338
    %v3867 = vpack.c.b16 %v3343, %v3339
    %v3868 = vpack.c.b16 %v3344, %v3340
    %v3869 = vpack.c.b16 %v3349, %v3345
    %v3870 = vpack.c.b16 %v3350, %v3346
    %v3871 = vpack.c.b16 %v3351, %v3347
    %v3872 = vpack.c.b16 %v3352, %v3348
    %v3873 = vpack.c.b16 %v3357, %v3353
    %v3874 = vpack.c.b16 %v3358, %v3354
    %v3875 = vpack.c.b16 %v3359, %v3355
    %v3876 = vpack.c.b16 %v3360, %v3356
    %v3877 = vpack.c.b16 %v3365, %v3361
    %v3878 = vpack.c.b16 %v3366, %v3362
    %v3879 = vpack.c.b16 %v3367, %v3363
    %v3880 = vpack.c.b16 %v3368, %v3364
    %4393 = vmatprep.subr.bf16.mxu0 %v3398
    %4394 = vmatpush1.bf16.msra.mxu0 %v3397
    %4395 = vmatprep.subr.bf16.mxu0 %v3394
    %4396 = vmatpush1.bf16.msra.mxu0 %v3393
    %4397 = vmatprep.subr.bf16.mxu0 %v3390
    %4398 = vmatpush1.bf16.msra.mxu0 %v3389
    %4399 = vmatprep.subr.bf16.mxu0 %v3386
    %4400 = vmatpush1.bf16.msra.mxu0 %v3385
    %4401 = vmatprep.subr.bf16.mxu0 %v3382
    %4402 = vmatpush1.bf16.msra.mxu0 %v3381
    %4403 = vmatprep.subr.bf16.mxu0 %v3378
    %4404 = vmatpush1.bf16.msra.mxu0 %v3377
    %4405 = vmatprep.subr.bf16.mxu0 %v3374
    %4406 = vmatpush1.bf16.msra.mxu0 %v3373
    %4407 = vmatprep.subr.bf16.mxu0 %v3370
    %4408 = vmatpush1.bf16.msra.mxu0 %v3369
    %4409 = vmatprep.subr.bf16.mxu0 %v3430
    %4410 = vmatpush2.bf16.msra.mxu0 %v3429
    %4411 = vmatprep.subr.bf16.mxu0 %v3426
    %4412 = vmatpush2.bf16.msra.mxu0 %v3425
    %4413 = vmatprep.subr.bf16.mxu0 %v3422
    %4414 = vmatpush2.bf16.msra.mxu0 %v3421
    %4415 = vmatprep.subr.bf16.mxu0 %v3418
    %4416 = vmatpush2.bf16.msra.mxu0 %v3417
    %4417 = vmatprep.subr.bf16.mxu0 %v3414
    %4418 = vmatpush2.bf16.msra.mxu0 %v3413
    %4419 = vmatprep.subr.bf16.mxu0 %v3410
    %4420 = vmatpush2.bf16.msra.mxu0 %v3409
    %4421 = vmatprep.subr.bf16.mxu0 %v3406
    %4422 = vmatpush2.bf16.msra.mxu0 %v3405
    %4423 = vmatprep.subr.bf16.mxu0 %v3402
    %4424 = vmatpush2.bf16.msra.mxu0 %v3401
    %4425 = vmatprep.mubr.bf16.mxu0 %v1802
    %4426 = vmatmul.mubr.bf16.gmra.mxu0 %v1801
    %v4427 = vpop.f32.mrf.mxu0
    %v4428 = vadd.f32 0.0, %v4427
    %v4429 = vpop.f32.mrf.mxu0
    %v4430 = vadd.f32 0.0, %v4429
    %v4431 = vpop.f32.mrf.mxu0
    %v4432 = vpop.f32.mrf.mxu0
    %4433 = vdwg.mxu0
    %4434 = vmatprep.subr.bf16.mxu0 %v3462
    %4435 = vmatpush1.bf16.msra.mxu0 %v3461
    %4436 = vmatprep.subr.bf16.mxu0 %v3458
    %4437 = vmatpush1.bf16.msra.mxu0 %v3457
    %4438 = vmatprep.subr.bf16.mxu0 %v3454
    %4439 = vmatpush1.bf16.msra.mxu0 %v3453
    %4440 = vmatprep.subr.bf16.mxu0 %v3450
    %4441 = vmatpush1.bf16.msra.mxu0 %v3449
    %4442 = vmatprep.subr.bf16.mxu0 %v3446
    %4443 = vmatpush1.bf16.msra.mxu0 %v3445
    %4444 = vmatprep.subr.bf16.mxu0 %v3442
    %4445 = vmatpush1.bf16.msra.mxu0 %v3441
    %4446 = vmatprep.subr.bf16.mxu0 %v3438
    %4447 = vmatpush1.bf16.msra.mxu0 %v3437
    %4448 = vmatprep.subr.bf16.mxu0 %v3434
    %4449 = vmatpush1.bf16.msra.mxu0 %v3433
    %4450 = vmatprep.subr.bf16.mxu0 %v3494
    %4451 = vmatpush2.bf16.msra.mxu0 %v3493
    %4452 = vmatprep.subr.bf16.mxu0 %v3490
    %4453 = vmatpush2.bf16.msra.mxu0 %v3489
    %4454 = vmatprep.subr.bf16.mxu0 %v3486
    %4455 = vmatpush2.bf16.msra.mxu0 %v3485
    %4456 = vmatprep.subr.bf16.mxu0 %v3482
    %4457 = vmatpush2.bf16.msra.mxu0 %v3481
    %4458 = vmatprep.subr.bf16.mxu0 %v3478
    %4459 = vmatpush2.bf16.msra.mxu0 %v3477
    %4460 = vmatprep.subr.bf16.mxu0 %v3474
    %4461 = vmatpush2.bf16.msra.mxu0 %v3473
    %4462 = vmatprep.subr.bf16.mxu0 %v3470
    %4463 = vmatpush2.bf16.msra.mxu0 %v3469
    %4464 = vmatprep.subr.bf16.mxu0 %v3466
    %4465 = vmatpush2.bf16.msra.mxu0 %v3465
    %4466 = vmatprep.mubr.bf16.mxu0 %v1804
    %4467 = vmatmul.mubr.bf16.gmra.mxu0 %v1803
    %v4468 = vpop.f32.mrf.mxu0
    %v4469 = vadd.f32 %v4428, %v4468
    %v4470 = vpop.f32.mrf.mxu0
    %v4471 = vadd.f32 %v4430, %v4470
    %v4472 = vpop.f32.mrf.mxu0
    %v4473 = vpop.f32.mrf.mxu0
    %4474 = vdwg.mxu0
    %4475 = vmatprep.subr.bf16.mxu0 %v3526
    %4476 = vmatpush1.bf16.msra.mxu0 %v3525
    %4477 = vmatprep.subr.bf16.mxu0 %v3522
    %4478 = vmatpush1.bf16.msra.mxu0 %v3521
    %4479 = vmatprep.subr.bf16.mxu0 %v3518
    %4480 = vmatpush1.bf16.msra.mxu0 %v3517
    %4481 = vmatprep.subr.bf16.mxu0 %v3514
    %4482 = vmatpush1.bf16.msra.mxu0 %v3513
    %4483 = vmatprep.subr.bf16.mxu0 %v3510
    %4484 = vmatpush1.bf16.msra.mxu0 %v3509
    %4485 = vmatprep.subr.bf16.mxu0 %v3506
    %4486 = vmatpush1.bf16.msra.mxu0 %v3505
    %4487 = vmatprep.subr.bf16.mxu0 %v3502
    %4488 = vmatpush1.bf16.msra.mxu0 %v3501
    %4489 = vmatprep.subr.bf16.mxu0 %v3498
    %4490 = vmatpush1.bf16.msra.mxu0 %v3497
    %4491 = vmatprep.subr.bf16.mxu0 %v3558
    %4492 = vmatpush2.bf16.msra.mxu0 %v3557
    %4493 = vmatprep.subr.bf16.mxu0 %v3554
    %4494 = vmatpush2.bf16.msra.mxu0 %v3553
    %4495 = vmatprep.subr.bf16.mxu0 %v3550
    %4496 = vmatpush2.bf16.msra.mxu0 %v3549
    %4497 = vmatprep.subr.bf16.mxu0 %v3546
    %4498 = vmatpush2.bf16.msra.mxu0 %v3545
    %4499 = vmatprep.subr.bf16.mxu0 %v3542
    %4500 = vmatpush2.bf16.msra.mxu0 %v3541
    %4501 = vmatprep.subr.bf16.mxu0 %v3538
    %4502 = vmatpush2.bf16.msra.mxu0 %v3537
    %4503 = vmatprep.subr.bf16.mxu0 %v3534
    %4504 = vmatpush2.bf16.msra.mxu0 %v3533
    %4505 = vmatprep.subr.bf16.mxu0 %v3530
    %4506 = vmatpush2.bf16.msra.mxu0 %v3529
    %4507 = vmatprep.mubr.bf16.mxu0 %v1806
    %4508 = vmatmul.mubr.bf16.gmra.mxu0 %v1805
    %v4509 = vpop.f32.mrf.mxu0
    %v4510 = vadd.f32 %v4469, %v4509
    %v4511 = vpop.f32.mrf.mxu0
    %v4512 = vadd.f32 %v4471, %v4511
    %v4513 = vpop.f32.mrf.mxu0
    %v4514 = vpop.f32.mrf.mxu0
    %4515 = vdwg.mxu0
    %4516 = vmatprep.subr.bf16.mxu0 %v3590
    %4517 = vmatpush1.bf16.msra.mxu0 %v3589
    %4518 = vmatprep.subr.bf16.mxu0 %v3586
    %4519 = vmatpush1.bf16.msra.mxu0 %v3585
    %4520 = vmatprep.subr.bf16.mxu0 %v3582
    %4521 = vmatpush1.bf16.msra.mxu0 %v3581
    %4522 = vmatprep.subr.bf16.mxu0 %v3578
    %4523 = vmatpush1.bf16.msra.mxu0 %v3577
    %4524 = vmatprep.subr.bf16.mxu0 %v3574
    %4525 = vmatpush1.bf16.msra.mxu0 %v3573
    %4526 = vmatprep.subr.bf16.mxu0 %v3570
    %4527 = vmatpush1.bf16.msra.mxu0 %v3569
    %4528 = vmatprep.subr.bf16.mxu0 %v3566
    %4529 = vmatpush1.bf16.msra.mxu0 %v3565
    %4530 = vmatprep.subr.bf16.mxu0 %v3562
    %4531 = vmatpush1.bf16.msra.mxu0 %v3561
    %4532 = vmatprep.subr.bf16.mxu0 %v3622
    %4533 = vmatpush2.bf16.msra.mxu0 %v3621
    %4534 = vmatprep.subr.bf16.mxu0 %v3618
    %4535 = vmatpush2.bf16.msra.mxu0 %v3617
    %4536 = vmatprep.subr.bf16.mxu0 %v3614
    %4537 = vmatpush2.bf16.msra.mxu0 %v3613
    %4538 = vmatprep.subr.bf16.mxu0 %v3610
    %4539 = vmatpush2.bf16.msra.mxu0 %v3609
    %4540 = vmatprep.subr.bf16.mxu0 %v3606
    %4541 = vmatpush2.bf16.msra.mxu0 %v3605
    %4542 = vmatprep.subr.bf16.mxu0 %v3602
    %4543 = vmatpush2.bf16.msra.mxu0 %v3601
    %4544 = vmatprep.subr.bf16.mxu0 %v3598
    %4545 = vmatpush2.bf16.msra.mxu0 %v3597
    %4546 = vmatprep.subr.bf16.mxu0 %v3594
    %4547 = vmatpush2.bf16.msra.mxu0 %v3593
    %4548 = vmatprep.mubr.bf16.mxu0 %v1808
    %4549 = vmatmul.mubr.bf16.gmra.mxu0 %v1807
    %v4550 = vpop.f32.mrf.mxu0
    %v4551 = vadd.f32 %v4510, %v4550
    %v4552 = vpop.f32.mrf.mxu0
    %v4553 = vadd.f32 %v4512, %v4552
    %v4554 = vpop.f32.mrf.mxu0
    %v4555 = vpop.f32.mrf.mxu0
    %4556 = vdwg.mxu0
    %4557 = vmatprep.subr.bf16.mxu0 %v3654
    %4558 = vmatpush1.bf16.msra.mxu0 %v3653
    %4559 = vmatprep.subr.bf16.mxu0 %v3650
    %4560 = vmatpush1.bf16.msra.mxu0 %v3649
    %4561 = vmatprep.subr.bf16.mxu0 %v3646
    %4562 = vmatpush1.bf16.msra.mxu0 %v3645
    %4563 = vmatprep.subr.bf16.mxu0 %v3642
    %4564 = vmatpush1.bf16.msra.mxu0 %v3641
    %4565 = vmatprep.subr.bf16.mxu0 %v3638
    %4566 = vmatpush1.bf16.msra.mxu0 %v3637
    %4567 = vmatprep.subr.bf16.mxu0 %v3634
    %4568 = vmatpush1.bf16.msra.mxu0 %v3633
    %4569 = vmatprep.subr.bf16.mxu0 %v3630
    %4570 = vmatpush1.bf16.msra.mxu0 %v3629
    %4571 = vmatprep.subr.bf16.mxu0 %v3626
    %4572 = vmatpush1.bf16.msra.mxu0 %v3625
    %4573 = vmatprep.subr.bf16.mxu0 %v3686
    %4574 = vmatpush2.bf16.msra.mxu0 %v3685
    %4575 = vmatprep.subr.bf16.mxu0 %v3682
    %4576 = vmatpush2.bf16.msra.mxu0 %v3681
    %4577 = vmatprep.subr.bf16.mxu0 %v3678
    %4578 = vmatpush2.bf16.msra.mxu0 %v3677
    %4579 = vmatprep.subr.bf16.mxu0 %v3674
    %4580 = vmatpush2.bf16.msra.mxu0 %v3673
    %4581 = vmatprep.subr.bf16.mxu0 %v3670
    %4582 = vmatpush2.bf16.msra.mxu0 %v3669
    %4583 = vmatprep.subr.bf16.mxu0 %v3666
    %4584 = vmatpush2.bf16.msra.mxu0 %v3665
    %4585 = vmatprep.subr.bf16.mxu0 %v3662
    %4586 = vmatpush2.bf16.msra.mxu0 %v3661
    %4587 = vmatprep.subr.bf16.mxu0 %v3658
    %4588 = vmatpush2.bf16.msra.mxu0 %v3657
    %4589 = vmatprep.mubr.bf16.mxu0 %v1810
    %4590 = vmatmul.mubr.bf16.gmra.mxu0 %v1809
    %v4591 = vpop.f32.mrf.mxu0
    %v4592 = vadd.f32 %v4551, %v4591
    %v4593 = vpop.f32.mrf.mxu0
    %v4594 = vadd.f32 %v4553, %v4593
    %v4595 = vpop.f32.mrf.mxu0
    %v4596 = vpop.f32.mrf.mxu0
    %4597 = vdwg.mxu0
    %4598 = vmatprep.subr.bf16.mxu0 %v3718
    %4599 = vmatpush1.bf16.msra.mxu0 %v3717
    %4600 = vmatprep.subr.bf16.mxu0 %v3714
    %4601 = vmatpush1.bf16.msra.mxu0 %v3713
    %4602 = vmatprep.subr.bf16.mxu0 %v3710
    %4603 = vmatpush1.bf16.msra.mxu0 %v3709
    %4604 = vmatprep.subr.bf16.mxu0 %v3706
    %4605 = vmatpush1.bf16.msra.mxu0 %v3705
    %4606 = vmatprep.subr.bf16.mxu0 %v3702
    %4607 = vmatpush1.bf16.msra.mxu0 %v3701
    %4608 = vmatprep.subr.bf16.mxu0 %v3698
    %4609 = vmatpush1.bf16.msra.mxu0 %v3697
    %4610 = vmatprep.subr.bf16.mxu0 %v3694
    %4611 = vmatpush1.bf16.msra.mxu0 %v3693
    %4612 = vmatprep.subr.bf16.mxu0 %v3690
    %4613 = vmatpush1.bf16.msra.mxu0 %v3689
    %4614 = vmatprep.subr.bf16.mxu0 %v3750
    %4615 = vmatpush2.bf16.msra.mxu0 %v3749
    %4616 = vmatprep.subr.bf16.mxu0 %v3746
    %4617 = vmatpush2.bf16.msra.mxu0 %v3745
    %4618 = vmatprep.subr.bf16.mxu0 %v3742
    %4619 = vmatpush2.bf16.msra.mxu0 %v3741
    %4620 = vmatprep.subr.bf16.mxu0 %v3738
    %4621 = vmatpush2.bf16.msra.mxu0 %v3737
    %4622 = vmatprep.subr.bf16.mxu0 %v3734
    %4623 = vmatpush2.bf16.msra.mxu0 %v3733
    %4624 = vmatprep.subr.bf16.mxu0 %v3730
    %4625 = vmatpush2.bf16.msra.mxu0 %v3729
    %4626 = vmatprep.subr.bf16.mxu0 %v3726
    %4627 = vmatpush2.bf16.msra.mxu0 %v3725
    %4628 = vmatprep.subr.bf16.mxu0 %v3722
    %4629 = vmatpush2.bf16.msra.mxu0 %v3721
    %4630 = vmatprep.mubr.bf16.mxu0 %v1812
    %4631 = vmatmul.mubr.bf16.gmra.mxu0 %v1811
    %v4632 = vpop.f32.mrf.mxu0
    %v4633 = vadd.f32 %v4592, %v4632
    %v4634 = vpop.f32.mrf.mxu0
    %v4635 = vadd.f32 %v4594, %v4634
    %v4636 = vpop.f32.mrf.mxu0
    %v4637 = vpop.f32.mrf.mxu0
    %4638 = vdwg.mxu0
    %4639 = vmatprep.subr.bf16.mxu0 %v3782
    %4640 = vmatpush1.bf16.msra.mxu0 %v3781
    %4641 = vmatprep.subr.bf16.mxu0 %v3778
    %4642 = vmatpush1.bf16.msra.mxu0 %v3777
    %4643 = vmatprep.subr.bf16.mxu0 %v3774
    %4644 = vmatpush1.bf16.msra.mxu0 %v3773
    %4645 = vmatprep.subr.bf16.mxu0 %v3770
    %4646 = vmatpush1.bf16.msra.mxu0 %v3769
    %4647 = vmatprep.subr.bf16.mxu0 %v3766
    %4648 = vmatpush1.bf16.msra.mxu0 %v3765
    %4649 = vmatprep.subr.bf16.mxu0 %v3762
    %4650 = vmatpush1.bf16.msra.mxu0 %v3761
    %4651 = vmatprep.subr.bf16.mxu0 %v3758
    %4652 = vmatpush1.bf16.msra.mxu0 %v3757
    %4653 = vmatprep.subr.bf16.mxu0 %v3754
    %4654 = vmatpush1.bf16.msra.mxu0 %v3753
    %4655 = vmatprep.subr.bf16.mxu0 %v3814
    %4656 = vmatpush2.bf16.msra.mxu0 %v3813
    %4657 = vmatprep.subr.bf16.mxu0 %v3810
    %4658 = vmatpush2.bf16.msra.mxu0 %v3809
    %4659 = vmatprep.subr.bf16.mxu0 %v3806
    %4660 = vmatpush2.bf16.msra.mxu0 %v3805
    %4661 = vmatprep.subr.bf16.mxu0 %v3802
    %4662 = vmatpush2.bf16.msra.mxu0 %v3801
    %4663 = vmatprep.subr.bf16.mxu0 %v3798
    %4664 = vmatpush2.bf16.msra.mxu0 %v3797
    %4665 = vmatprep.subr.bf16.mxu0 %v3794
    %4666 = vmatpush2.bf16.msra.mxu0 %v3793
    %4667 = vmatprep.subr.bf16.mxu0 %v3790
    %4668 = vmatpush2.bf16.msra.mxu0 %v3789
    %4669 = vmatprep.subr.bf16.mxu0 %v3786
    %4670 = vmatpush2.bf16.msra.mxu0 %v3785
    %4671 = vmatprep.mubr.bf16.mxu0 %v1814
    %4672 = vmatmul.mubr.bf16.gmra.mxu0 %v1813
    %v4673 = vpop.f32.mrf.mxu0
    %v4674 = vadd.f32 %v4633, %v4673
    %v4675 = vpop.f32.mrf.mxu0
    %v4676 = vadd.f32 %v4635, %v4675
    %v4677 = vpop.f32.mrf.mxu0
    %v4678 = vpop.f32.mrf.mxu0
    %4679 = vdwg.mxu0
    %4680 = vmatprep.subr.bf16.mxu0 %v3846
    %4681 = vmatpush1.bf16.msra.mxu0 %v3845
    %4682 = vmatprep.subr.bf16.mxu0 %v3842
    %4683 = vmatpush1.bf16.msra.mxu0 %v3841
    %4684 = vmatprep.subr.bf16.mxu0 %v3838
    %4685 = vmatpush1.bf16.msra.mxu0 %v3837
    %4686 = vmatprep.subr.bf16.mxu0 %v3834
    %4687 = vmatpush1.bf16.msra.mxu0 %v3833
    %4688 = vmatprep.subr.bf16.mxu0 %v3830
    %4689 = vmatpush1.bf16.msra.mxu0 %v3829
    %4690 = vmatprep.subr.bf16.mxu0 %v3826
    %4691 = vmatpush1.bf16.msra.mxu0 %v3825
    %4692 = vmatprep.subr.bf16.mxu0 %v3822
    %4693 = vmatpush1.bf16.msra.mxu0 %v3821
    %4694 = vmatprep.subr.bf16.mxu0 %v3818
    %4695 = vmatpush1.bf16.msra.mxu0 %v3817
    %4696 = vmatprep.subr.bf16.mxu0 %v3878
    %4697 = vmatpush2.bf16.msra.mxu0 %v3877
    %4698 = vmatprep.subr.bf16.mxu0 %v3874
    %4699 = vmatpush2.bf16.msra.mxu0 %v3873
    %4700 = vmatprep.subr.bf16.mxu0 %v3870
    %4701 = vmatpush2.bf16.msra.mxu0 %v3869
    %4702 = vmatprep.subr.bf16.mxu0 %v3866
    %4703 = vmatpush2.bf16.msra.mxu0 %v3865
    %4704 = vmatprep.subr.bf16.mxu0 %v3862
    %4705 = vmatpush2.bf16.msra.mxu0 %v3861
    %4706 = vmatprep.subr.bf16.mxu0 %v3858
    %4707 = vmatpush2.bf16.msra.mxu0 %v3857
    %4708 = vmatprep.subr.bf16.mxu0 %v3854
    %4709 = vmatpush2.bf16.msra.mxu0 %v3853
    %4710 = vmatprep.subr.bf16.mxu0 %v3850
    %4711 = vmatpush2.bf16.msra.mxu0 %v3849
    %4712 = vmatprep.mubr.bf16.mxu0 %v1816
    %4713 = vmatmul.mubr.bf16.gmra.mxu0 %v1815
    %v4714 = vpop.f32.mrf.mxu0
    %v4715 = vadd.f32 %v4674, %v4714
    %v4716 = vpop.f32.mrf.mxu0
    %v4717 = vadd.f32 %v4676, %v4716
    %v4718 = vpop.f32.mrf.mxu0
    %v4719 = vpop.f32.mrf.mxu0
    %4720 = vdwg.mxu0
    %4721 = vmatprep.subr.bf16.mxu0 %v3400
    %4722 = vmatpush1.bf16.msra.mxu0 %v3399
    %4723 = vmatprep.subr.bf16.mxu0 %v3396
    %4724 = vmatpush1.bf16.msra.mxu0 %v3395
    %4725 = vmatprep.subr.bf16.mxu0 %v3392
    %4726 = vmatpush1.bf16.msra.mxu0 %v3391
    %4727 = vmatprep.subr.bf16.mxu0 %v3388
    %4728 = vmatpush1.bf16.msra.mxu0 %v3387
    %4729 = vmatprep.subr.bf16.mxu0 %v3384
    %4730 = vmatpush1.bf16.msra.mxu0 %v3383
    %4731 = vmatprep.subr.bf16.mxu0 %v3380
    %4732 = vmatpush1.bf16.msra.mxu0 %v3379
    %4733 = vmatprep.subr.bf16.mxu0 %v3376
    %4734 = vmatpush1.bf16.msra.mxu0 %v3375
    %4735 = vmatprep.subr.bf16.mxu0 %v3372
    %4736 = vmatpush1.bf16.msra.mxu0 %v3371
    %4737 = vmatprep.subr.bf16.mxu0 %v3432
    %4738 = vmatpush2.bf16.msra.mxu0 %v3431
    %4739 = vmatprep.subr.bf16.mxu0 %v3428
    %4740 = vmatpush2.bf16.msra.mxu0 %v3427
    %4741 = vmatprep.subr.bf16.mxu0 %v3424
    %4742 = vmatpush2.bf16.msra.mxu0 %v3423
    %4743 = vmatprep.subr.bf16.mxu0 %v3420
    %4744 = vmatpush2.bf16.msra.mxu0 %v3419
    %4745 = vmatprep.subr.bf16.mxu0 %v3416
    %4746 = vmatpush2.bf16.msra.mxu0 %v3415
    %4747 = vmatprep.subr.bf16.mxu0 %v3412
    %4748 = vmatpush2.bf16.msra.mxu0 %v3411
    %4749 = vmatprep.subr.bf16.mxu0 %v3408
    %4750 = vmatpush2.bf16.msra.mxu0 %v3407
    %4751 = vmatprep.subr.bf16.mxu0 %v3404
    %4752 = vmatpush2.bf16.msra.mxu0 %v3403
    %4753 = vmatprep.mubr.bf16.mxu0 %v1802
    %4754 = vmatmul.mubr.bf16.gmra.mxu0 %v1801
    %v4755 = vpop.f32.mrf.mxu0
    %v4756 = vadd.f32 0.0, %v4755
    %v4757 = vpop.f32.mrf.mxu0
    %v4758 = vadd.f32 0.0, %v4757
    %v4759 = vpop.f32.mrf.mxu0
    %v4760 = vpop.f32.mrf.mxu0
    %4761 = vdwg.mxu0
    %4762 = vmatprep.subr.bf16.mxu0 %v3464
    %4763 = vmatpush1.bf16.msra.mxu0 %v3463
    %4764 = vmatprep.subr.bf16.mxu0 %v3460
    %4765 = vmatpush1.bf16.msra.mxu0 %v3459
    %4766 = vmatprep.subr.bf16.mxu0 %v3456
    %4767 = vmatpush1.bf16.msra.mxu0 %v3455
    %4768 = vmatprep.subr.bf16.mxu0 %v3452
    %4769 = vmatpush1.bf16.msra.mxu0 %v3451
    %4770 = vmatprep.subr.bf16.mxu0 %v3448
    %4771 = vmatpush1.bf16.msra.mxu0 %v3447
    %4772 = vmatprep.subr.bf16.mxu0 %v3444
    %4773 = vmatpush1.bf16.msra.mxu0 %v3443
    %4774 = vmatprep.subr.bf16.mxu0 %v3440
    %4775 = vmatpush1.bf16.msra.mxu0 %v3439
    %4776 = vmatprep.subr.bf16.mxu0 %v3436
    %4777 = vmatpush1.bf16.msra.mxu0 %v3435
    %4778 = vmatprep.subr.bf16.mxu0 %v3496
    %4779 = vmatpush2.bf16.msra.mxu0 %v3495
    %4780 = vmatprep.subr.bf16.mxu0 %v3492
    %4781 = vmatpush2.bf16.msra.mxu0 %v3491
    %4782 = vmatprep.subr.bf16.mxu0 %v3488
    %4783 = vmatpush2.bf16.msra.mxu0 %v3487
    %4784 = vmatprep.subr.bf16.mxu0 %v3484
    %4785 = vmatpush2.bf16.msra.mxu0 %v3483
    %4786 = vmatprep.subr.bf16.mxu0 %v3480
    %4787 = vmatpush2.bf16.msra.mxu0 %v3479
    %4788 = vmatprep.subr.bf16.mxu0 %v3476
    %4789 = vmatpush2.bf16.msra.mxu0 %v3475
    %4790 = vmatprep.subr.bf16.mxu0 %v3472
    %4791 = vmatpush2.bf16.msra.mxu0 %v3471
    %4792 = vmatprep.subr.bf16.mxu0 %v3468
    %4793 = vmatpush2.bf16.msra.mxu0 %v3467
    %4794 = vmatprep.mubr.bf16.mxu0 %v1804
    %4795 = vmatmul.mubr.bf16.gmra.mxu0 %v1803
    %v4796 = vpop.f32.mrf.mxu0
    %v4797 = vadd.f32 %v4756, %v4796
    %v4798 = vpop.f32.mrf.mxu0
    %v4799 = vadd.f32 %v4758, %v4798
    %v4800 = vpop.f32.mrf.mxu0
    %v4801 = vpop.f32.mrf.mxu0
    %4802 = vdwg.mxu0
    %4803 = vmatprep.subr.bf16.mxu0 %v3528
    %4804 = vmatpush1.bf16.msra.mxu0 %v3527
    %4805 = vmatprep.subr.bf16.mxu0 %v3524
    %4806 = vmatpush1.bf16.msra.mxu0 %v3523
    %4807 = vmatprep.subr.bf16.mxu0 %v3520
    %4808 = vmatpush1.bf16.msra.mxu0 %v3519
    %4809 = vmatprep.subr.bf16.mxu0 %v3516
    %4810 = vmatpush1.bf16.msra.mxu0 %v3515
    %4811 = vmatprep.subr.bf16.mxu0 %v3512
    %4812 = vmatpush1.bf16.msra.mxu0 %v3511
    %4813 = vmatprep.subr.bf16.mxu0 %v3508
    %4814 = vmatpush1.bf16.msra.mxu0 %v3507
    %4815 = vmatprep.subr.bf16.mxu0 %v3504
    %4816 = vmatpush1.bf16.msra.mxu0 %v3503
    %4817 = vmatprep.subr.bf16.mxu0 %v3500
    %4818 = vmatpush1.bf16.msra.mxu0 %v3499
    %4819 = vmatprep.subr.bf16.mxu0 %v3560
    %4820 = vmatpush2.bf16.msra.mxu0 %v3559
    %4821 = vmatprep.subr.bf16.mxu0 %v3556
    %4822 = vmatpush2.bf16.msra.mxu0 %v3555
    %4823 = vmatprep.subr.bf16.mxu0 %v3552
    %4824 = vmatpush2.bf16.msra.mxu0 %v3551
    %4825 = vmatprep.subr.bf16.mxu0 %v3548
    %4826 = vmatpush2.bf16.msra.mxu0 %v3547
    %4827 = vmatprep.subr.bf16.mxu0 %v3544
    %4828 = vmatpush2.bf16.msra.mxu0 %v3543
    %4829 = vmatprep.subr.bf16.mxu0 %v3540
    %4830 = vmatpush2.bf16.msra.mxu0 %v3539
    %4831 = vmatprep.subr.bf16.mxu0 %v3536
    %4832 = vmatpush2.bf16.msra.mxu0 %v3535
    %4833 = vmatprep.subr.bf16.mxu0 %v3532
    %4834 = vmatpush2.bf16.msra.mxu0 %v3531
    %4835 = vmatprep.mubr.bf16.mxu0 %v1806
    %4836 = vmatmul.mubr.bf16.gmra.mxu0 %v1805
    %v4837 = vpop.f32.mrf.mxu0
    %v4838 = vadd.f32 %v4797, %v4837
    %v4839 = vpop.f32.mrf.mxu0
    %v4840 = vadd.f32 %v4799, %v4839
    %v4841 = vpop.f32.mrf.mxu0
    %v4842 = vpop.f32.mrf.mxu0
    %4843 = vdwg.mxu0
    %4844 = vmatprep.subr.bf16.mxu0 %v3592
    %4845 = vmatpush1.bf16.msra.mxu0 %v3591
    %4846 = vmatprep.subr.bf16.mxu0 %v3588
    %4847 = vmatpush1.bf16.msra.mxu0 %v3587
    %4848 = vmatprep.subr.bf16.mxu0 %v3584
    %4849 = vmatpush1.bf16.msra.mxu0 %v3583
    %4850 = vmatprep.subr.bf16.mxu0 %v3580
    %4851 = vmatpush1.bf16.msra.mxu0 %v3579
    %4852 = vmatprep.subr.bf16.mxu0 %v3576
    %4853 = vmatpush1.bf16.msra.mxu0 %v3575
    %4854 = vmatprep.subr.bf16.mxu0 %v3572
    %4855 = vmatpush1.bf16.msra.mxu0 %v3571
    %4856 = vmatprep.subr.bf16.mxu0 %v3568
    %4857 = vmatpush1.bf16.msra.mxu0 %v3567
    %4858 = vmatprep.subr.bf16.mxu0 %v3564
    %4859 = vmatpush1.bf16.msra.mxu0 %v3563
    %4860 = vmatprep.subr.bf16.mxu0 %v3624
    %4861 = vmatpush2.bf16.msra.mxu0 %v3623
    %4862 = vmatprep.subr.bf16.mxu0 %v3620
    %4863 = vmatpush2.bf16.msra.mxu0 %v3619
    %4864 = vmatprep.subr.bf16.mxu0 %v3616
    %4865 = vmatpush2.bf16.msra.mxu0 %v3615
    %4866 = vmatprep.subr.bf16.mxu0 %v3612
    %4867 = vmatpush2.bf16.msra.mxu0 %v3611
    %4868 = vmatprep.subr.bf16.mxu0 %v3608
    %4869 = vmatpush2.bf16.msra.mxu0 %v3607
    %4870 = vmatprep.subr.bf16.mxu0 %v3604
    %4871 = vmatpush2.bf16.msra.mxu0 %v3603
    %4872 = vmatprep.subr.bf16.mxu0 %v3600
    %4873 = vmatpush2.bf16.msra.mxu0 %v3599
    %4874 = vmatprep.subr.bf16.mxu0 %v3596
    %4875 = vmatpush2.bf16.msra.mxu0 %v3595
    %4876 = vmatprep.mubr.bf16.mxu0 %v1808
    %4877 = vmatmul.mubr.bf16.gmra.mxu0 %v1807
    %v4878 = vpop.f32.mrf.mxu0
    %v4879 = vadd.f32 %v4838, %v4878
    %v4880 = vpop.f32.mrf.mxu0
    %v4881 = vadd.f32 %v4840, %v4880
    %v4882 = vpop.f32.mrf.mxu0
    %v4883 = vpop.f32.mrf.mxu0
    %4884 = vdwg.mxu0
    %4885 = vmatprep.subr.bf16.mxu0 %v3656
    %4886 = vmatpush1.bf16.msra.mxu0 %v3655
    %4887 = vmatprep.subr.bf16.mxu0 %v3652
    %4888 = vmatpush1.bf16.msra.mxu0 %v3651
    %4889 = vmatprep.subr.bf16.mxu0 %v3648
    %4890 = vmatpush1.bf16.msra.mxu0 %v3647
    %4891 = vmatprep.subr.bf16.mxu0 %v3644
    %4892 = vmatpush1.bf16.msra.mxu0 %v3643
    %4893 = vmatprep.subr.bf16.mxu0 %v3640
    %4894 = vmatpush1.bf16.msra.mxu0 %v3639
    %4895 = vmatprep.subr.bf16.mxu0 %v3636
    %4896 = vmatpush1.bf16.msra.mxu0 %v3635
    %4897 = vmatprep.subr.bf16.mxu0 %v3632
    %4898 = vmatpush1.bf16.msra.mxu0 %v3631
    %4899 = vmatprep.subr.bf16.mxu0 %v3628
    %4900 = vmatpush1.bf16.msra.mxu0 %v3627
    %4901 = vmatprep.subr.bf16.mxu0 %v3688
    %4902 = vmatpush2.bf16.msra.mxu0 %v3687
    %4903 = vmatprep.subr.bf16.mxu0 %v3684
    %4904 = vmatpush2.bf16.msra.mxu0 %v3683
    %4905 = vmatprep.subr.bf16.mxu0 %v3680
    %4906 = vmatpush2.bf16.msra.mxu0 %v3679
    %4907 = vmatprep.subr.bf16.mxu0 %v3676
    %4908 = vmatpush2.bf16.msra.mxu0 %v3675
    %4909 = vmatprep.subr.bf16.mxu0 %v3672
    %4910 = vmatpush2.bf16.msra.mxu0 %v3671
    %4911 = vmatprep.subr.bf16.mxu0 %v3668
    %4912 = vmatpush2.bf16.msra.mxu0 %v3667
    %4913 = vmatprep.subr.bf16.mxu0 %v3664
    %4914 = vmatpush2.bf16.msra.mxu0 %v3663
    %4915 = vmatprep.subr.bf16.mxu0 %v3660
    %4916 = vmatpush2.bf16.msra.mxu0 %v3659
    %4917 = vmatprep.mubr.bf16.mxu0 %v1810
    %4918 = vmatmul.mubr.bf16.gmra.mxu0 %v1809
    %v4919 = vpop.f32.mrf.mxu0
    %v4920 = vadd.f32 %v4879, %v4919
    %v4921 = vpop.f32.mrf.mxu0
    %v4922 = vadd.f32 %v4881, %v4921
    %v4923 = vpop.f32.mrf.mxu0
    %v4924 = vpop.f32.mrf.mxu0
    %4925 = vdwg.mxu0
    %4926 = vmatprep.subr.bf16.mxu0 %v3720
    %4927 = vmatpush1.bf16.msra.mxu0 %v3719
    %4928 = vmatprep.subr.bf16.mxu0 %v3716
    %4929 = vmatpush1.bf16.msra.mxu0 %v3715
    %4930 = vmatprep.subr.bf16.mxu0 %v3712
    %4931 = vmatpush1.bf16.msra.mxu0 %v3711
    %4932 = vmatprep.subr.bf16.mxu0 %v3708
    %4933 = vmatpush1.bf16.msra.mxu0 %v3707
    %4934 = vmatprep.subr.bf16.mxu0 %v3704
    %4935 = vmatpush1.bf16.msra.mxu0 %v3703
    %4936 = vmatprep.subr.bf16.mxu0 %v3700
    %4937 = vmatpush1.bf16.msra.mxu0 %v3699
    %4938 = vmatprep.subr.bf16.mxu0 %v3696
    %4939 = vmatpush1.bf16.msra.mxu0 %v3695
    %4940 = vmatprep.subr.bf16.mxu0 %v3692
    %4941 = vmatpush1.bf16.msra.mxu0 %v3691
    %4942 = vmatprep.subr.bf16.mxu0 %v3752
    %4943 = vmatpush2.bf16.msra.mxu0 %v3751
    %4944 = vmatprep.subr.bf16.mxu0 %v3748
    %4945 = vmatpush2.bf16.msra.mxu0 %v3747
    %4946 = vmatprep.subr.bf16.mxu0 %v3744
    %4947 = vmatpush2.bf16.msra.mxu0 %v3743
    %4948 = vmatprep.subr.bf16.mxu0 %v3740
    %4949 = vmatpush2.bf16.msra.mxu0 %v3739
    %4950 = vmatprep.subr.bf16.mxu0 %v3736
    %4951 = vmatpush2.bf16.msra.mxu0 %v3735
    %4952 = vmatprep.subr.bf16.mxu0 %v3732
    %4953 = vmatpush2.bf16.msra.mxu0 %v3731
    %4954 = vmatprep.subr.bf16.mxu0 %v3728
    %4955 = vmatpush2.bf16.msra.mxu0 %v3727
    %4956 = vmatprep.subr.bf16.mxu0 %v3724
    %4957 = vmatpush2.bf16.msra.mxu0 %v3723
    %4958 = vmatprep.mubr.bf16.mxu0 %v1812
    %4959 = vmatmul.mubr.bf16.gmra.mxu0 %v1811
    %v4960 = vpop.f32.mrf.mxu0
    %v4961 = vadd.f32 %v4920, %v4960
    %v4962 = vpop.f32.mrf.mxu0
    %v4963 = vadd.f32 %v4922, %v4962
    %v4964 = vpop.f32.mrf.mxu0
    %v4965 = vpop.f32.mrf.mxu0
    %4966 = vdwg.mxu0
    %4967 = vmatprep.subr.bf16.mxu0 %v3784
    %4968 = vmatpush1.bf16.msra.mxu0 %v3783
    %4969 = vmatprep.subr.bf16.mxu0 %v3780
    %4970 = vmatpush1.bf16.msra.mxu0 %v3779
    %4971 = vmatprep.subr.bf16.mxu0 %v3776
    %4972 = vmatpush1.bf16.msra.mxu0 %v3775
    %4973 = vmatprep.subr.bf16.mxu0 %v3772
    %4974 = vmatpush1.bf16.msra.mxu0 %v3771
    %4975 = vmatprep.subr.bf16.mxu0 %v3768
    %4976 = vmatpush1.bf16.msra.mxu0 %v3767
    %4977 = vmatprep.subr.bf16.mxu0 %v3764
    %4978 = vmatpush1.bf16.msra.mxu0 %v3763
    %4979 = vmatprep.subr.bf16.mxu0 %v3760
    %4980 = vmatpush1.bf16.msra.mxu0 %v3759
    %4981 = vmatprep.subr.bf16.mxu0 %v3756
    %4982 = vmatpush1.bf16.msra.mxu0 %v3755
    %4983 = vmatprep.subr.bf16.mxu0 %v3816
    %4984 = vmatpush2.bf16.msra.mxu0 %v3815
    %4985 = vmatprep.subr.bf16.mxu0 %v3812
    %4986 = vmatpush2.bf16.msra.mxu0 %v3811
    %4987 = vmatprep.subr.bf16.mxu0 %v3808
    %4988 = vmatpush2.bf16.msra.mxu0 %v3807
    %4989 = vmatprep.subr.bf16.mxu0 %v3804
    %4990 = vmatpush2.bf16.msra.mxu0 %v3803
    %4991 = vmatprep.subr.bf16.mxu0 %v3800
    %4992 = vmatpush2.bf16.msra.mxu0 %v3799
    %4993 = vmatprep.subr.bf16.mxu0 %v3796
    %4994 = vmatpush2.bf16.msra.mxu0 %v3795
    %4995 = vmatprep.subr.bf16.mxu0 %v3792
    %4996 = vmatpush2.bf16.msra.mxu0 %v3791
    %4997 = vmatprep.subr.bf16.mxu0 %v3788
    %4998 = vmatpush2.bf16.msra.mxu0 %v3787
    %4999 = vmatprep.mubr.bf16.mxu0 %v1814
    %5000 = vmatmul.mubr.bf16.gmra.mxu0 %v1813
    %v5001 = vpop.f32.mrf.mxu0
    %v5002 = vadd.f32 %v4961, %v5001
    %v5003 = vpop.f32.mrf.mxu0
    %v5004 = vadd.f32 %v4963, %v5003
    %v5005 = vpop.f32.mrf.mxu0
    %v5006 = vpop.f32.mrf.mxu0
    %5007 = vdwg.mxu0
    %5008 = vmatprep.subr.bf16.mxu0 %v3848
    %5009 = vmatpush1.bf16.msra.mxu0 %v3847
    %5010 = vmatprep.subr.bf16.mxu0 %v3844
    %5011 = vmatpush1.bf16.msra.mxu0 %v3843
    %5012 = vmatprep.subr.bf16.mxu0 %v3840
    %5013 = vmatpush1.bf16.msra.mxu0 %v3839
    %5014 = vmatprep.subr.bf16.mxu0 %v3836
    %5015 = vmatpush1.bf16.msra.mxu0 %v3835
    %5016 = vmatprep.subr.bf16.mxu0 %v3832
    %5017 = vmatpush1.bf16.msra.mxu0 %v3831
    %5018 = vmatprep.subr.bf16.mxu0 %v3828
    %5019 = vmatpush1.bf16.msra.mxu0 %v3827
    %5020 = vmatprep.subr.bf16.mxu0 %v3824
    %5021 = vmatpush1.bf16.msra.mxu0 %v3823
    %5022 = vmatprep.subr.bf16.mxu0 %v3820
    %5023 = vmatpush1.bf16.msra.mxu0 %v3819
    %5024 = vmatprep.subr.bf16.mxu0 %v3880
    %5025 = vmatpush2.bf16.msra.mxu0 %v3879
    %5026 = vmatprep.subr.bf16.mxu0 %v3876
    %5027 = vmatpush2.bf16.msra.mxu0 %v3875
    %5028 = vmatprep.subr.bf16.mxu0 %v3872
    %5029 = vmatpush2.bf16.msra.mxu0 %v3871
    %5030 = vmatprep.subr.bf16.mxu0 %v3868
    %5031 = vmatpush2.bf16.msra.mxu0 %v3867
    %5032 = vmatprep.subr.bf16.mxu0 %v3864
    %5033 = vmatpush2.bf16.msra.mxu0 %v3863
    %5034 = vmatprep.subr.bf16.mxu0 %v3860
    %5035 = vmatpush2.bf16.msra.mxu0 %v3859
    %5036 = vmatprep.subr.bf16.mxu0 %v3856
    %5037 = vmatpush2.bf16.msra.mxu0 %v3855
    %5038 = vmatprep.subr.bf16.mxu0 %v3852
    %5039 = vmatpush2.bf16.msra.mxu0 %v3851
    %5040 = vmatprep.mubr.bf16.mxu0 %v1816
    %5041 = vmatmul.mubr.bf16.gmra.mxu0 %v1815
    %v5042 = vpop.f32.mrf.mxu0
    %v5043 = vadd.f32 %v5002, %v5042
    %v5044 = vpop.f32.mrf.mxu0
    %v5045 = vadd.f32 %v5004, %v5044
    %v5046 = vpop.f32.mrf.mxu0
    %v5047 = vpop.f32.mrf.mxu0
    %5048 = vdwg.mxu0
    %v5081 = vunpack.c.l.b16 %v632
    %v5082 = vunpack.c.l.b16 %v633
    %v5083 = vunpack.c.l.b16 %v634
    %v5084 = vunpack.c.l.b16 %v635
    %v5085 = vunpack.c.l.b16 %v636
    %v5086 = vunpack.c.l.b16 %v637
    %v5087 = vunpack.c.l.b16 %v638
    %v5088 = vunpack.c.l.b16 %v639
    %v5089 = vunpack.c.l.b16 %v640
    %v5090 = vunpack.c.l.b16 %v641
    %v5091 = vunpack.c.l.b16 %v642
    %v5092 = vunpack.c.l.b16 %v643
    %v5093 = vunpack.c.l.b16 %v644
    %v5094 = vunpack.c.l.b16 %v645
    %v5095 = vunpack.c.l.b16 %v646
    %v5096 = vunpack.c.l.b16 %v647
    %v5097 = vunpack.c.l.b16 %v648
    %v5098 = vunpack.c.l.b16 %v649
    %v5099 = vunpack.c.l.b16 %v650
    %v5100 = vunpack.c.l.b16 %v651
    %v5101 = vunpack.c.l.b16 %v652
    %v5102 = vunpack.c.l.b16 %v653
    %v5103 = vunpack.c.l.b16 %v654
    %v5104 = vunpack.c.l.b16 %v655
    %v5105 = vunpack.c.l.b16 %v656
    %v5106 = vunpack.c.l.b16 %v657
    %v5107 = vunpack.c.l.b16 %v658
    %v5108 = vunpack.c.l.b16 %v659
    %v5109 = vunpack.c.l.b16 %v660
    %v5110 = vunpack.c.l.b16 %v661
    %v5111 = vunpack.c.l.b16 %v662
    %v5112 = vunpack.c.l.b16 %v663
    %v5113 = vsel %vm1784, %v5097, %v5081
    %v5114 = vsel %vm1784, %v5098, %v5082
    %v5115 = vsel %vm1784, %v5099, %v5083
    %v5116 = vsel %vm1784, %v5100, %v5084
    %v5117 = vsel %vm1784, %v5101, %v5085
    %v5118 = vsel %vm1784, %v5102, %v5086
    %v5119 = vsel %vm1784, %v5103, %v5087
    %v5120 = vsel %vm1784, %v5104, %v5088
    %v5121 = vsel %vm1784, %v5105, %v5089
    %v5122 = vsel %vm1784, %v5106, %v5090
    %v5123 = vsel %vm1784, %v5107, %v5091
    %v5124 = vsel %vm1784, %v5108, %v5092
    %v5125 = vsel %vm1784, %v5109, %v5093
    %v5126 = vsel %vm1784, %v5110, %v5094
    %v5127 = vsel %vm1784, %v5111, %v5095
    %v5128 = vsel %vm1784, %v5112, %v5096
    %v5129 = vpack.c.b16 %v5113, %v5113
    %v5130 = vpack.c.b16 %v5114, %v5114
    %v5131 = vpack.c.b16 %v5115, %v5115
    %v5132 = vpack.c.b16 %v5116, %v5116
    %v5133 = vpack.c.b16 %v5117, %v5117
    %v5134 = vpack.c.b16 %v5118, %v5118
    %v5135 = vpack.c.b16 %v5119, %v5119
    %v5136 = vpack.c.b16 %v5120, %v5120
    %v5137 = vpack.c.b16 %v5121, %v5121
    %v5138 = vpack.c.b16 %v5122, %v5122
    %v5139 = vpack.c.b16 %v5123, %v5123
    %v5140 = vpack.c.b16 %v5124, %v5124
    %v5141 = vpack.c.b16 %v5125, %v5125
    %v5142 = vpack.c.b16 %v5126, %v5126
    %v5143 = vpack.c.b16 %v5127, %v5127
    %v5144 = vpack.c.b16 %v5128, %v5128
    %v5673 = vunpack.c.l.b16 %v664
    %v5674 = vunpack.c.h.b16 %v664
    %v5675 = vunpack.c.l.b16 %v665
    %v5676 = vunpack.c.h.b16 %v665
    %v5677 = vunpack.c.l.b16 %v666
    %v5678 = vunpack.c.h.b16 %v666
    %v5679 = vunpack.c.l.b16 %v667
    %v5680 = vunpack.c.h.b16 %v667
    %v5681 = vunpack.c.l.b16 %v668
    %v5682 = vunpack.c.h.b16 %v668
    %v5683 = vunpack.c.l.b16 %v669
    %v5684 = vunpack.c.h.b16 %v669
    %v5685 = vunpack.c.l.b16 %v670
    %v5686 = vunpack.c.h.b16 %v670
    %v5687 = vunpack.c.l.b16 %v671
    %v5688 = vunpack.c.h.b16 %v671
    %v5689 = vunpack.c.l.b16 %v672
    %v5690 = vunpack.c.h.b16 %v672
    %v5691 = vunpack.c.l.b16 %v673
    %v5692 = vunpack.c.h.b16 %v673
    %v5693 = vunpack.c.l.b16 %v674
    %v5694 = vunpack.c.h.b16 %v674
    %v5695 = vunpack.c.l.b16 %v675
    %v5696 = vunpack.c.h.b16 %v675
    %v5697 = vunpack.c.l.b16 %v676
    %v5698 = vunpack.c.h.b16 %v676
    %v5699 = vunpack.c.l.b16 %v677
    %v5700 = vunpack.c.h.b16 %v677
    %v5701 = vunpack.c.l.b16 %v678
    %v5702 = vunpack.c.h.b16 %v678
    %v5703 = vunpack.c.l.b16 %v679
    %v5704 = vunpack.c.h.b16 %v679
    %v5705 = vunpack.c.l.b16 %v680
    %v5706 = vunpack.c.h.b16 %v680
    %v5707 = vunpack.c.l.b16 %v681
    %v5708 = vunpack.c.h.b16 %v681
    %v5709 = vunpack.c.l.b16 %v682
    %v5710 = vunpack.c.h.b16 %v682
    %v5711 = vunpack.c.l.b16 %v683
    %v5712 = vunpack.c.h.b16 %v683
    %v5713 = vunpack.c.l.b16 %v684
    %v5714 = vunpack.c.h.b16 %v684
    %v5715 = vunpack.c.l.b16 %v685
    %v5716 = vunpack.c.h.b16 %v685
    %v5717 = vunpack.c.l.b16 %v686
    %v5718 = vunpack.c.h.b16 %v686
    %v5719 = vunpack.c.l.b16 %v687
    %v5720 = vunpack.c.h.b16 %v687
    %v5721 = vunpack.c.l.b16 %v688
    %v5722 = vunpack.c.h.b16 %v688
    %v5723 = vunpack.c.l.b16 %v689
    %v5724 = vunpack.c.h.b16 %v689
    %v5725 = vunpack.c.l.b16 %v690
    %v5726 = vunpack.c.h.b16 %v690
    %v5727 = vunpack.c.l.b16 %v691
    %v5728 = vunpack.c.h.b16 %v691
    %v5729 = vunpack.c.l.b16 %v692
    %v5730 = vunpack.c.h.b16 %v692
    %v5731 = vunpack.c.l.b16 %v693
    %v5732 = vunpack.c.h.b16 %v693
    %v5733 = vunpack.c.l.b16 %v694
    %v5734 = vunpack.c.h.b16 %v694
    %v5735 = vunpack.c.l.b16 %v695
    %v5736 = vunpack.c.h.b16 %v695
    %v5737 = vunpack.c.l.b16 %v696
    %v5738 = vunpack.c.h.b16 %v696
    %v5739 = vunpack.c.l.b16 %v697
    %v5740 = vunpack.c.h.b16 %v697
    %v5741 = vunpack.c.l.b16 %v698
    %v5742 = vunpack.c.h.b16 %v698
    %v5743 = vunpack.c.l.b16 %v699
    %v5744 = vunpack.c.h.b16 %v699
    %v5745 = vunpack.c.l.b16 %v700
    %v5746 = vunpack.c.h.b16 %v700
    %v5747 = vunpack.c.l.b16 %v701
    %v5748 = vunpack.c.h.b16 %v701
    %v5749 = vunpack.c.l.b16 %v702
    %v5750 = vunpack.c.h.b16 %v702
    %v5751 = vunpack.c.l.b16 %v703
    %v5752 = vunpack.c.h.b16 %v703
    %v5753 = vunpack.c.l.b16 %v704
    %v5754 = vunpack.c.h.b16 %v704
    %v5755 = vunpack.c.l.b16 %v705
    %v5756 = vunpack.c.h.b16 %v705
    %v5757 = vunpack.c.l.b16 %v706
    %v5758 = vunpack.c.h.b16 %v706
    %v5759 = vunpack.c.l.b16 %v707
    %v5760 = vunpack.c.h.b16 %v707
    %v5761 = vunpack.c.l.b16 %v708
    %v5762 = vunpack.c.h.b16 %v708
    %v5763 = vunpack.c.l.b16 %v709
    %v5764 = vunpack.c.h.b16 %v709
    %v5765 = vunpack.c.l.b16 %v710
    %v5766 = vunpack.c.h.b16 %v710
    %v5767 = vunpack.c.l.b16 %v711
    %v5768 = vunpack.c.h.b16 %v711
    %v5769 = vunpack.c.l.b16 %v712
    %v5770 = vunpack.c.h.b16 %v712
    %v5771 = vunpack.c.l.b16 %v713
    %v5772 = vunpack.c.h.b16 %v713
    %v5773 = vunpack.c.l.b16 %v714
    %v5774 = vunpack.c.h.b16 %v714
    %v5775 = vunpack.c.l.b16 %v715
    %v5776 = vunpack.c.h.b16 %v715
    %v5777 = vunpack.c.l.b16 %v716
    %v5778 = vunpack.c.h.b16 %v716
    %v5779 = vunpack.c.l.b16 %v717
    %v5780 = vunpack.c.h.b16 %v717
    %v5781 = vunpack.c.l.b16 %v718
    %v5782 = vunpack.c.h.b16 %v718
    %v5783 = vunpack.c.l.b16 %v719
    %v5784 = vunpack.c.h.b16 %v719
    %v5785 = vunpack.c.l.b16 %v720
    %v5786 = vunpack.c.h.b16 %v720
    %v5787 = vunpack.c.l.b16 %v721
    %v5788 = vunpack.c.h.b16 %v721
    %v5789 = vunpack.c.l.b16 %v722
    %v5790 = vunpack.c.h.b16 %v722
    %v5791 = vunpack.c.l.b16 %v723
    %v5792 = vunpack.c.h.b16 %v723
    %v5793 = vunpack.c.l.b16 %v724
    %v5794 = vunpack.c.h.b16 %v724
    %v5795 = vunpack.c.l.b16 %v725
    %v5796 = vunpack.c.h.b16 %v725
    %v5797 = vunpack.c.l.b16 %v726
    %v5798 = vunpack.c.h.b16 %v726
    %v5799 = vunpack.c.l.b16 %v727
    %v5800 = vunpack.c.h.b16 %v727
    %v5801 = vunpack.c.l.b16 %v728
    %v5802 = vunpack.c.h.b16 %v728
    %v5803 = vunpack.c.l.b16 %v729
    %v5804 = vunpack.c.h.b16 %v729
    %v5805 = vunpack.c.l.b16 %v730
    %v5806 = vunpack.c.h.b16 %v730
    %v5807 = vunpack.c.l.b16 %v731
    %v5808 = vunpack.c.h.b16 %v731
    %v5809 = vunpack.c.l.b16 %v732
    %v5810 = vunpack.c.h.b16 %v732
    %v5811 = vunpack.c.l.b16 %v733
    %v5812 = vunpack.c.h.b16 %v733
    %v5813 = vunpack.c.l.b16 %v734
    %v5814 = vunpack.c.h.b16 %v734
    %v5815 = vunpack.c.l.b16 %v735
    %v5816 = vunpack.c.h.b16 %v735
    %v5817 = vunpack.c.l.b16 %v736
    %v5818 = vunpack.c.h.b16 %v736
    %v5819 = vunpack.c.l.b16 %v737
    %v5820 = vunpack.c.h.b16 %v737
    %v5821 = vunpack.c.l.b16 %v738
    %v5822 = vunpack.c.h.b16 %v738
    %v5823 = vunpack.c.l.b16 %v739
    %v5824 = vunpack.c.h.b16 %v739
    %v5825 = vunpack.c.l.b16 %v740
    %v5826 = vunpack.c.h.b16 %v740
    %v5827 = vunpack.c.l.b16 %v741
    %v5828 = vunpack.c.h.b16 %v741
    %v5829 = vunpack.c.l.b16 %v742
    %v5830 = vunpack.c.h.b16 %v742
    %v5831 = vunpack.c.l.b16 %v743
    %v5832 = vunpack.c.h.b16 %v743
    %v5833 = vunpack.c.l.b16 %v744
    %v5834 = vunpack.c.h.b16 %v744
    %v5835 = vunpack.c.l.b16 %v745
    %v5836 = vunpack.c.h.b16 %v745
    %v5837 = vunpack.c.l.b16 %v746
    %v5838 = vunpack.c.h.b16 %v746
    %v5839 = vunpack.c.l.b16 %v747
    %v5840 = vunpack.c.h.b16 %v747
    %v5841 = vunpack.c.l.b16 %v748
    %v5842 = vunpack.c.h.b16 %v748
    %v5843 = vunpack.c.l.b16 %v749
    %v5844 = vunpack.c.h.b16 %v749
    %v5845 = vunpack.c.l.b16 %v750
    %v5846 = vunpack.c.h.b16 %v750
    %v5847 = vunpack.c.l.b16 %v751
    %v5848 = vunpack.c.h.b16 %v751
    %v5849 = vunpack.c.l.b16 %v752
    %v5850 = vunpack.c.h.b16 %v752
    %v5851 = vunpack.c.l.b16 %v753
    %v5852 = vunpack.c.h.b16 %v753
    %v5853 = vunpack.c.l.b16 %v754
    %v5854 = vunpack.c.h.b16 %v754
    %v5855 = vunpack.c.l.b16 %v755
    %v5856 = vunpack.c.h.b16 %v755
    %v5857 = vunpack.c.l.b16 %v756
    %v5858 = vunpack.c.h.b16 %v756
    %v5859 = vunpack.c.l.b16 %v757
    %v5860 = vunpack.c.h.b16 %v757
    %v5861 = vunpack.c.l.b16 %v758
    %v5862 = vunpack.c.h.b16 %v758
    %v5863 = vunpack.c.l.b16 %v759
    %v5864 = vunpack.c.h.b16 %v759
    %v5865 = vunpack.c.l.b16 %v760
    %v5866 = vunpack.c.h.b16 %v760
    %v5867 = vunpack.c.l.b16 %v761
    %v5868 = vunpack.c.h.b16 %v761
    %v5869 = vunpack.c.l.b16 %v762
    %v5870 = vunpack.c.h.b16 %v762
    %v5871 = vunpack.c.l.b16 %v763
    %v5872 = vunpack.c.h.b16 %v763
    %v5873 = vunpack.c.l.b16 %v764
    %v5874 = vunpack.c.h.b16 %v764
    %v5875 = vunpack.c.l.b16 %v765
    %v5876 = vunpack.c.h.b16 %v765
    %v5877 = vunpack.c.l.b16 %v766
    %v5878 = vunpack.c.h.b16 %v766
    %v5879 = vunpack.c.l.b16 %v767
    %v5880 = vunpack.c.h.b16 %v767
    %v5881 = vunpack.c.l.b16 %v768
    %v5882 = vunpack.c.h.b16 %v768
    %v5883 = vunpack.c.l.b16 %v769
    %v5884 = vunpack.c.h.b16 %v769
    %v5885 = vunpack.c.l.b16 %v770
    %v5886 = vunpack.c.h.b16 %v770
    %v5887 = vunpack.c.l.b16 %v771
    %v5888 = vunpack.c.h.b16 %v771
    %v5889 = vunpack.c.l.b16 %v772
    %v5890 = vunpack.c.h.b16 %v772
    %v5891 = vunpack.c.l.b16 %v773
    %v5892 = vunpack.c.h.b16 %v773
    %v5893 = vunpack.c.l.b16 %v774
    %v5894 = vunpack.c.h.b16 %v774
    %v5895 = vunpack.c.l.b16 %v775
    %v5896 = vunpack.c.h.b16 %v775
    %v5897 = vunpack.c.l.b16 %v776
    %v5898 = vunpack.c.h.b16 %v776
    %v5899 = vunpack.c.l.b16 %v777
    %v5900 = vunpack.c.h.b16 %v777
    %v5901 = vunpack.c.l.b16 %v778
    %v5902 = vunpack.c.h.b16 %v778
    %v5903 = vunpack.c.l.b16 %v779
    %v5904 = vunpack.c.h.b16 %v779
    %v5905 = vunpack.c.l.b16 %v780
    %v5906 = vunpack.c.h.b16 %v780
    %v5907 = vunpack.c.l.b16 %v781
    %v5908 = vunpack.c.h.b16 %v781
    %v5909 = vunpack.c.l.b16 %v782
    %v5910 = vunpack.c.h.b16 %v782
    %v5911 = vunpack.c.l.b16 %v783
    %v5912 = vunpack.c.h.b16 %v783
    %v5913 = vunpack.c.l.b16 %v784
    %v5914 = vunpack.c.h.b16 %v784
    %v5915 = vunpack.c.l.b16 %v785
    %v5916 = vunpack.c.h.b16 %v785
    %v5917 = vunpack.c.l.b16 %v786
    %v5918 = vunpack.c.h.b16 %v786
    %v5919 = vunpack.c.l.b16 %v787
    %v5920 = vunpack.c.h.b16 %v787
    %v5921 = vunpack.c.l.b16 %v788
    %v5922 = vunpack.c.h.b16 %v788
    %v5923 = vunpack.c.l.b16 %v789
    %v5924 = vunpack.c.h.b16 %v789
    %v5925 = vunpack.c.l.b16 %v790
    %v5926 = vunpack.c.h.b16 %v790
    %v5927 = vunpack.c.l.b16 %v791
    %v5928 = vunpack.c.h.b16 %v791
    %v5929 = vunpack.c.l.b16 %v792
    %v5930 = vunpack.c.h.b16 %v792
    %v5931 = vunpack.c.l.b16 %v793
    %v5932 = vunpack.c.h.b16 %v793
    %v5933 = vunpack.c.l.b16 %v794
    %v5934 = vunpack.c.h.b16 %v794
    %v5935 = vunpack.c.l.b16 %v795
    %v5936 = vunpack.c.h.b16 %v795
    %v5937 = vunpack.c.l.b16 %v796
    %v5938 = vunpack.c.h.b16 %v796
    %v5939 = vunpack.c.l.b16 %v797
    %v5940 = vunpack.c.h.b16 %v797
    %v5941 = vunpack.c.l.b16 %v798
    %v5942 = vunpack.c.h.b16 %v798
    %v5943 = vunpack.c.l.b16 %v799
    %v5944 = vunpack.c.h.b16 %v799
    %v5945 = vunpack.c.l.b16 %v800
    %v5946 = vunpack.c.h.b16 %v800
    %v5947 = vunpack.c.l.b16 %v801
    %v5948 = vunpack.c.h.b16 %v801
    %v5949 = vunpack.c.l.b16 %v802
    %v5950 = vunpack.c.h.b16 %v802
    %v5951 = vunpack.c.l.b16 %v803
    %v5952 = vunpack.c.h.b16 %v803
    %v5953 = vunpack.c.l.b16 %v804
    %v5954 = vunpack.c.h.b16 %v804
    %v5955 = vunpack.c.l.b16 %v805
    %v5956 = vunpack.c.h.b16 %v805
    %v5957 = vunpack.c.l.b16 %v806
    %v5958 = vunpack.c.h.b16 %v806
    %v5959 = vunpack.c.l.b16 %v807
    %v5960 = vunpack.c.h.b16 %v807
    %v5961 = vunpack.c.l.b16 %v808
    %v5962 = vunpack.c.h.b16 %v808
    %v5963 = vunpack.c.l.b16 %v809
    %v5964 = vunpack.c.h.b16 %v809
    %v5965 = vunpack.c.l.b16 %v810
    %v5966 = vunpack.c.h.b16 %v810
    %v5967 = vunpack.c.l.b16 %v811
    %v5968 = vunpack.c.h.b16 %v811
    %v5969 = vunpack.c.l.b16 %v812
    %v5970 = vunpack.c.h.b16 %v812
    %v5971 = vunpack.c.l.b16 %v813
    %v5972 = vunpack.c.h.b16 %v813
    %v5973 = vunpack.c.l.b16 %v814
    %v5974 = vunpack.c.h.b16 %v814
    %v5975 = vunpack.c.l.b16 %v815
    %v5976 = vunpack.c.h.b16 %v815
    %v5977 = vunpack.c.l.b16 %v816
    %v5978 = vunpack.c.h.b16 %v816
    %v5979 = vunpack.c.l.b16 %v817
    %v5980 = vunpack.c.h.b16 %v817
    %v5981 = vunpack.c.l.b16 %v818
    %v5982 = vunpack.c.h.b16 %v818
    %v5983 = vunpack.c.l.b16 %v819
    %v5984 = vunpack.c.h.b16 %v819
    %v5985 = vunpack.c.l.b16 %v820
    %v5986 = vunpack.c.h.b16 %v820
    %v5987 = vunpack.c.l.b16 %v821
    %v5988 = vunpack.c.h.b16 %v821
    %v5989 = vunpack.c.l.b16 %v822
    %v5990 = vunpack.c.h.b16 %v822
    %v5991 = vunpack.c.l.b16 %v823
    %v5992 = vunpack.c.h.b16 %v823
    %v5993 = vunpack.c.l.b16 %v824
    %v5994 = vunpack.c.h.b16 %v824
    %v5995 = vunpack.c.l.b16 %v825
    %v5996 = vunpack.c.h.b16 %v825
    %v5997 = vunpack.c.l.b16 %v826
    %v5998 = vunpack.c.h.b16 %v826
    %v5999 = vunpack.c.l.b16 %v827
    %v6000 = vunpack.c.h.b16 %v827
    %v6001 = vunpack.c.l.b16 %v828
    %v6002 = vunpack.c.h.b16 %v828
    %v6003 = vunpack.c.l.b16 %v829
    %v6004 = vunpack.c.h.b16 %v829
    %v6005 = vunpack.c.l.b16 %v830
    %v6006 = vunpack.c.h.b16 %v830
    %v6007 = vunpack.c.l.b16 %v831
    %v6008 = vunpack.c.h.b16 %v831
    %v6009 = vunpack.c.l.b16 %v832
    %v6010 = vunpack.c.h.b16 %v832
    %v6011 = vunpack.c.l.b16 %v833
    %v6012 = vunpack.c.h.b16 %v833
    %v6013 = vunpack.c.l.b16 %v834
    %v6014 = vunpack.c.h.b16 %v834
    %v6015 = vunpack.c.l.b16 %v835
    %v6016 = vunpack.c.h.b16 %v835
    %v6017 = vunpack.c.l.b16 %v836
    %v6018 = vunpack.c.h.b16 %v836
    %v6019 = vunpack.c.l.b16 %v837
    %v6020 = vunpack.c.h.b16 %v837
    %v6021 = vunpack.c.l.b16 %v838
    %v6022 = vunpack.c.h.b16 %v838
    %v6023 = vunpack.c.l.b16 %v839
    %v6024 = vunpack.c.h.b16 %v839
    %v6025 = vunpack.c.l.b16 %v840
    %v6026 = vunpack.c.h.b16 %v840
    %v6027 = vunpack.c.l.b16 %v841
    %v6028 = vunpack.c.h.b16 %v841
    %v6029 = vunpack.c.l.b16 %v842
    %v6030 = vunpack.c.h.b16 %v842
    %v6031 = vunpack.c.l.b16 %v843
    %v6032 = vunpack.c.h.b16 %v843
    %v6033 = vunpack.c.l.b16 %v844
    %v6034 = vunpack.c.h.b16 %v844
    %v6035 = vunpack.c.l.b16 %v845
    %v6036 = vunpack.c.h.b16 %v845
    %v6037 = vunpack.c.l.b16 %v846
    %v6038 = vunpack.c.h.b16 %v846
    %v6039 = vunpack.c.l.b16 %v847
    %v6040 = vunpack.c.h.b16 %v847
    %v6041 = vunpack.c.l.b16 %v848
    %v6042 = vunpack.c.h.b16 %v848
    %v6043 = vunpack.c.l.b16 %v849
    %v6044 = vunpack.c.h.b16 %v849
    %v6045 = vunpack.c.l.b16 %v850
    %v6046 = vunpack.c.h.b16 %v850
    %v6047 = vunpack.c.l.b16 %v851
    %v6048 = vunpack.c.h.b16 %v851
    %v6049 = vunpack.c.l.b16 %v852
    %v6050 = vunpack.c.h.b16 %v852
    %v6051 = vunpack.c.l.b16 %v853
    %v6052 = vunpack.c.h.b16 %v853
    %v6053 = vunpack.c.l.b16 %v854
    %v6054 = vunpack.c.h.b16 %v854
    %v6055 = vunpack.c.l.b16 %v855
    %v6056 = vunpack.c.h.b16 %v855
    %v6057 = vunpack.c.l.b16 %v856
    %v6058 = vunpack.c.h.b16 %v856
    %v6059 = vunpack.c.l.b16 %v857
    %v6060 = vunpack.c.h.b16 %v857
    %v6061 = vunpack.c.l.b16 %v858
    %v6062 = vunpack.c.h.b16 %v858
    %v6063 = vunpack.c.l.b16 %v859
    %v6064 = vunpack.c.h.b16 %v859
    %v6065 = vunpack.c.l.b16 %v860
    %v6066 = vunpack.c.h.b16 %v860
    %v6067 = vunpack.c.l.b16 %v861
    %v6068 = vunpack.c.h.b16 %v861
    %v6069 = vunpack.c.l.b16 %v862
    %v6070 = vunpack.c.h.b16 %v862
    %v6071 = vunpack.c.l.b16 %v863
    %v6072 = vunpack.c.h.b16 %v863
    %v6073 = vunpack.c.l.b16 %v864
    %v6074 = vunpack.c.h.b16 %v864
    %v6075 = vunpack.c.l.b16 %v865
    %v6076 = vunpack.c.h.b16 %v865
    %v6077 = vunpack.c.l.b16 %v866
    %v6078 = vunpack.c.h.b16 %v866
    %v6079 = vunpack.c.l.b16 %v867
    %v6080 = vunpack.c.h.b16 %v867
    %v6081 = vunpack.c.l.b16 %v868
    %v6082 = vunpack.c.h.b16 %v868
    %v6083 = vunpack.c.l.b16 %v869
    %v6084 = vunpack.c.h.b16 %v869
    %v6085 = vunpack.c.l.b16 %v870
    %v6086 = vunpack.c.h.b16 %v870
    %v6087 = vunpack.c.l.b16 %v871
    %v6088 = vunpack.c.h.b16 %v871
    %v6089 = vunpack.c.l.b16 %v872
    %v6090 = vunpack.c.h.b16 %v872
    %v6091 = vunpack.c.l.b16 %v873
    %v6092 = vunpack.c.h.b16 %v873
    %v6093 = vunpack.c.l.b16 %v874
    %v6094 = vunpack.c.h.b16 %v874
    %v6095 = vunpack.c.l.b16 %v875
    %v6096 = vunpack.c.h.b16 %v875
    %v6097 = vunpack.c.l.b16 %v876
    %v6098 = vunpack.c.h.b16 %v876
    %v6099 = vunpack.c.l.b16 %v877
    %v6100 = vunpack.c.h.b16 %v877
    %v6101 = vunpack.c.l.b16 %v878
    %v6102 = vunpack.c.h.b16 %v878
    %v6103 = vunpack.c.l.b16 %v879
    %v6104 = vunpack.c.h.b16 %v879
    %v6105 = vunpack.c.l.b16 %v880
    %v6106 = vunpack.c.h.b16 %v880
    %v6107 = vunpack.c.l.b16 %v881
    %v6108 = vunpack.c.h.b16 %v881
    %v6109 = vunpack.c.l.b16 %v882
    %v6110 = vunpack.c.h.b16 %v882
    %v6111 = vunpack.c.l.b16 %v883
    %v6112 = vunpack.c.h.b16 %v883
    %v6113 = vunpack.c.l.b16 %v884
    %v6114 = vunpack.c.h.b16 %v884
    %v6115 = vunpack.c.l.b16 %v885
    %v6116 = vunpack.c.h.b16 %v885
    %v6117 = vunpack.c.l.b16 %v886
    %v6118 = vunpack.c.h.b16 %v886
    %v6119 = vunpack.c.l.b16 %v887
    %v6120 = vunpack.c.h.b16 %v887
    %v6121 = vunpack.c.l.b16 %v888
    %v6122 = vunpack.c.h.b16 %v888
    %v6123 = vunpack.c.l.b16 %v889
    %v6124 = vunpack.c.h.b16 %v889
    %v6125 = vunpack.c.l.b16 %v890
    %v6126 = vunpack.c.h.b16 %v890
    %v6127 = vunpack.c.l.b16 %v891
    %v6128 = vunpack.c.h.b16 %v891
    %v6129 = vunpack.c.l.b16 %v892
    %v6130 = vunpack.c.h.b16 %v892
    %v6131 = vunpack.c.l.b16 %v893
    %v6132 = vunpack.c.h.b16 %v893
    %v6133 = vunpack.c.l.b16 %v894
    %v6134 = vunpack.c.h.b16 %v894
    %v6135 = vunpack.c.l.b16 %v895
    %v6136 = vunpack.c.h.b16 %v895
    %v6137 = vunpack.c.l.b16 %v896
    %v6138 = vunpack.c.h.b16 %v896
    %v6139 = vunpack.c.l.b16 %v897
    %v6140 = vunpack.c.h.b16 %v897
    %v6141 = vunpack.c.l.b16 %v898
    %v6142 = vunpack.c.h.b16 %v898
    %v6143 = vunpack.c.l.b16 %v899
    %v6144 = vunpack.c.h.b16 %v899
    %v6145 = vunpack.c.l.b16 %v900
    %v6146 = vunpack.c.h.b16 %v900
    %v6147 = vunpack.c.l.b16 %v901
    %v6148 = vunpack.c.h.b16 %v901
    %v6149 = vunpack.c.l.b16 %v902
    %v6150 = vunpack.c.h.b16 %v902
    %v6151 = vunpack.c.l.b16 %v903
    %v6152 = vunpack.c.h.b16 %v903
    %v6153 = vunpack.c.l.b16 %v904
    %v6154 = vunpack.c.h.b16 %v904
    %v6155 = vunpack.c.l.b16 %v905
    %v6156 = vunpack.c.h.b16 %v905
    %v6157 = vunpack.c.l.b16 %v906
    %v6158 = vunpack.c.h.b16 %v906
    %v6159 = vunpack.c.l.b16 %v907
    %v6160 = vunpack.c.h.b16 %v907
    %v6161 = vunpack.c.l.b16 %v908
    %v6162 = vunpack.c.h.b16 %v908
    %v6163 = vunpack.c.l.b16 %v909
    %v6164 = vunpack.c.h.b16 %v909
    %v6165 = vunpack.c.l.b16 %v910
    %v6166 = vunpack.c.h.b16 %v910
    %v6167 = vunpack.c.l.b16 %v911
    %v6168 = vunpack.c.h.b16 %v911
    %v6169 = vunpack.c.l.b16 %v912
    %v6170 = vunpack.c.h.b16 %v912
    %v6171 = vunpack.c.l.b16 %v913
    %v6172 = vunpack.c.h.b16 %v913
    %v6173 = vunpack.c.l.b16 %v914
    %v6174 = vunpack.c.h.b16 %v914
    %v6175 = vunpack.c.l.b16 %v915
    %v6176 = vunpack.c.h.b16 %v915
    %v6177 = vunpack.c.l.b16 %v916
    %v6178 = vunpack.c.h.b16 %v916
    %v6179 = vunpack.c.l.b16 %v917
    %v6180 = vunpack.c.h.b16 %v917
    %v6181 = vunpack.c.l.b16 %v918
    %v6182 = vunpack.c.h.b16 %v918
    %v6183 = vunpack.c.l.b16 %v919
    %v6184 = vunpack.c.h.b16 %v919
    %v6185 = vunpack.c.l.b16 %v920
    %v6186 = vunpack.c.h.b16 %v920
    %v6187 = vunpack.c.l.b16 %v921
    %v6188 = vunpack.c.h.b16 %v921
    %v6189 = vunpack.c.l.b16 %v922
    %v6190 = vunpack.c.h.b16 %v922
    %v6191 = vunpack.c.l.b16 %v923
    %v6192 = vunpack.c.h.b16 %v923
    %v6193 = vunpack.c.l.b16 %v924
    %v6194 = vunpack.c.h.b16 %v924
    %v6195 = vunpack.c.l.b16 %v925
    %v6196 = vunpack.c.h.b16 %v925
    %v6197 = vunpack.c.l.b16 %v926
    %v6198 = vunpack.c.h.b16 %v926
    %v6199 = vunpack.c.l.b16 %v927
    %v6200 = vunpack.c.h.b16 %v927
    %v6201 = vunpack.c.l.b16 %v928
    %v6202 = vunpack.c.h.b16 %v928
    %v6203 = vunpack.c.l.b16 %v929
    %v6204 = vunpack.c.h.b16 %v929
    %v6205 = vunpack.c.l.b16 %v930
    %v6206 = vunpack.c.h.b16 %v930
    %v6207 = vunpack.c.l.b16 %v931
    %v6208 = vunpack.c.h.b16 %v931
    %v6209 = vunpack.c.l.b16 %v932
    %v6210 = vunpack.c.h.b16 %v932
    %v6211 = vunpack.c.l.b16 %v933
    %v6212 = vunpack.c.h.b16 %v933
    %v6213 = vunpack.c.l.b16 %v934
    %v6214 = vunpack.c.h.b16 %v934
    %v6215 = vunpack.c.l.b16 %v935
    %v6216 = vunpack.c.h.b16 %v935
    %v6217 = vunpack.c.l.b16 %v936
    %v6218 = vunpack.c.h.b16 %v936
    %v6219 = vunpack.c.l.b16 %v937
    %v6220 = vunpack.c.h.b16 %v937
    %v6221 = vunpack.c.l.b16 %v938
    %v6222 = vunpack.c.h.b16 %v938
    %v6223 = vunpack.c.l.b16 %v939
    %v6224 = vunpack.c.h.b16 %v939
    %v6225 = vunpack.c.l.b16 %v940
    %v6226 = vunpack.c.h.b16 %v940
    %v6227 = vunpack.c.l.b16 %v941
    %v6228 = vunpack.c.h.b16 %v941
    %v6229 = vunpack.c.l.b16 %v942
    %v6230 = vunpack.c.h.b16 %v942
    %v6231 = vunpack.c.l.b16 %v943
    %v6232 = vunpack.c.h.b16 %v943
    %v6233 = vunpack.c.l.b16 %v944
    %v6234 = vunpack.c.h.b16 %v944
    %v6235 = vunpack.c.l.b16 %v945
    %v6236 = vunpack.c.h.b16 %v945
    %v6237 = vunpack.c.l.b16 %v946
    %v6238 = vunpack.c.h.b16 %v946
    %v6239 = vunpack.c.l.b16 %v947
    %v6240 = vunpack.c.h.b16 %v947
    %v6241 = vunpack.c.l.b16 %v948
    %v6242 = vunpack.c.h.b16 %v948
    %v6243 = vunpack.c.l.b16 %v949
    %v6244 = vunpack.c.h.b16 %v949
    %v6245 = vunpack.c.l.b16 %v950
    %v6246 = vunpack.c.h.b16 %v950
    %v6247 = vunpack.c.l.b16 %v951
    %v6248 = vunpack.c.h.b16 %v951
    %v6249 = vunpack.c.l.b16 %v952
    %v6250 = vunpack.c.h.b16 %v952
    %v6251 = vunpack.c.l.b16 %v953
    %v6252 = vunpack.c.h.b16 %v953
    %v6253 = vunpack.c.l.b16 %v954
    %v6254 = vunpack.c.h.b16 %v954
    %v6255 = vunpack.c.l.b16 %v955
    %v6256 = vunpack.c.h.b16 %v955
    %v6257 = vunpack.c.l.b16 %v956
    %v6258 = vunpack.c.h.b16 %v956
    %v6259 = vunpack.c.l.b16 %v957
    %v6260 = vunpack.c.h.b16 %v957
    %v6261 = vunpack.c.l.b16 %v958
    %v6262 = vunpack.c.h.b16 %v958
    %v6263 = vunpack.c.l.b16 %v959
    %v6264 = vunpack.c.h.b16 %v959
    %v6265 = vunpack.c.l.b16 %v960
    %v6266 = vunpack.c.h.b16 %v960
    %v6267 = vunpack.c.l.b16 %v961
    %v6268 = vunpack.c.h.b16 %v961
    %v6269 = vunpack.c.l.b16 %v962
    %v6270 = vunpack.c.h.b16 %v962
    %v6271 = vunpack.c.l.b16 %v963
    %v6272 = vunpack.c.h.b16 %v963
    %v6273 = vunpack.c.l.b16 %v964
    %v6274 = vunpack.c.h.b16 %v964
    %v6275 = vunpack.c.l.b16 %v965
    %v6276 = vunpack.c.h.b16 %v965
    %v6277 = vunpack.c.l.b16 %v966
    %v6278 = vunpack.c.h.b16 %v966
    %v6279 = vunpack.c.l.b16 %v967
    %v6280 = vunpack.c.h.b16 %v967
    %v6281 = vunpack.c.l.b16 %v968
    %v6282 = vunpack.c.h.b16 %v968
    %v6283 = vunpack.c.l.b16 %v969
    %v6284 = vunpack.c.h.b16 %v969
    %v6285 = vunpack.c.l.b16 %v970
    %v6286 = vunpack.c.h.b16 %v970
    %v6287 = vunpack.c.l.b16 %v971
    %v6288 = vunpack.c.h.b16 %v971
    %v6289 = vunpack.c.l.b16 %v972
    %v6290 = vunpack.c.h.b16 %v972
    %v6291 = vunpack.c.l.b16 %v973
    %v6292 = vunpack.c.h.b16 %v973
    %v6293 = vunpack.c.l.b16 %v974
    %v6294 = vunpack.c.h.b16 %v974
    %v6295 = vunpack.c.l.b16 %v975
    %v6296 = vunpack.c.h.b16 %v975
    %v6297 = vunpack.c.l.b16 %v976
    %v6298 = vunpack.c.h.b16 %v976
    %v6299 = vunpack.c.l.b16 %v977
    %v6300 = vunpack.c.h.b16 %v977
    %v6301 = vunpack.c.l.b16 %v978
    %v6302 = vunpack.c.h.b16 %v978
    %v6303 = vunpack.c.l.b16 %v979
    %v6304 = vunpack.c.h.b16 %v979
    %v6305 = vunpack.c.l.b16 %v980
    %v6306 = vunpack.c.h.b16 %v980
    %v6307 = vunpack.c.l.b16 %v981
    %v6308 = vunpack.c.h.b16 %v981
    %v6309 = vunpack.c.l.b16 %v982
    %v6310 = vunpack.c.h.b16 %v982
    %v6311 = vunpack.c.l.b16 %v983
    %v6312 = vunpack.c.h.b16 %v983
    %v6313 = vunpack.c.l.b16 %v984
    %v6314 = vunpack.c.h.b16 %v984
    %v6315 = vunpack.c.l.b16 %v985
    %v6316 = vunpack.c.h.b16 %v985
    %v6317 = vunpack.c.l.b16 %v986
    %v6318 = vunpack.c.h.b16 %v986
    %v6319 = vunpack.c.l.b16 %v987
    %v6320 = vunpack.c.h.b16 %v987
    %v6321 = vunpack.c.l.b16 %v988
    %v6322 = vunpack.c.h.b16 %v988
    %v6323 = vunpack.c.l.b16 %v989
    %v6324 = vunpack.c.h.b16 %v989
    %v6325 = vunpack.c.l.b16 %v990
    %v6326 = vunpack.c.h.b16 %v990
    %v6327 = vunpack.c.l.b16 %v991
    %v6328 = vunpack.c.h.b16 %v991
    %v6329 = vunpack.c.l.b16 %v992
    %v6330 = vunpack.c.h.b16 %v992
    %v6331 = vunpack.c.l.b16 %v993
    %v6332 = vunpack.c.h.b16 %v993
    %v6333 = vunpack.c.l.b16 %v994
    %v6334 = vunpack.c.h.b16 %v994
    %v6335 = vunpack.c.l.b16 %v995
    %v6336 = vunpack.c.h.b16 %v995
    %v6337 = vunpack.c.l.b16 %v996
    %v6338 = vunpack.c.h.b16 %v996
    %v6339 = vunpack.c.l.b16 %v997
    %v6340 = vunpack.c.h.b16 %v997
    %v6341 = vunpack.c.l.b16 %v998
    %v6342 = vunpack.c.h.b16 %v998
    %v6343 = vunpack.c.l.b16 %v999
    %v6344 = vunpack.c.h.b16 %v999
    %v6345 = vunpack.c.l.b16 %v1000
    %v6346 = vunpack.c.h.b16 %v1000
    %v6347 = vunpack.c.l.b16 %v1001
    %v6348 = vunpack.c.h.b16 %v1001
    %v6349 = vunpack.c.l.b16 %v1002
    %v6350 = vunpack.c.h.b16 %v1002
    %v6351 = vunpack.c.l.b16 %v1003
    %v6352 = vunpack.c.h.b16 %v1003
    %v6353 = vunpack.c.l.b16 %v1004
    %v6354 = vunpack.c.h.b16 %v1004
    %v6355 = vunpack.c.l.b16 %v1005
    %v6356 = vunpack.c.h.b16 %v1005
    %v6357 = vunpack.c.l.b16 %v1006
    %v6358 = vunpack.c.h.b16 %v1006
    %v6359 = vunpack.c.l.b16 %v1007
    %v6360 = vunpack.c.h.b16 %v1007
    %v6361 = vunpack.c.l.b16 %v1008
    %v6362 = vunpack.c.h.b16 %v1008
    %v6363 = vunpack.c.l.b16 %v1009
    %v6364 = vunpack.c.h.b16 %v1009
    %v6365 = vunpack.c.l.b16 %v1010
    %v6366 = vunpack.c.h.b16 %v1010
    %v6367 = vunpack.c.l.b16 %v1011
    %v6368 = vunpack.c.h.b16 %v1011
    %v6369 = vunpack.c.l.b16 %v1012
    %v6370 = vunpack.c.h.b16 %v1012
    %v6371 = vunpack.c.l.b16 %v1013
    %v6372 = vunpack.c.h.b16 %v1013
    %v6373 = vunpack.c.l.b16 %v1014
    %v6374 = vunpack.c.h.b16 %v1014
    %v6375 = vunpack.c.l.b16 %v1015
    %v6376 = vunpack.c.h.b16 %v1015
    %v6377 = vunpack.c.l.b16 %v1016
    %v6378 = vunpack.c.h.b16 %v1016
    %v6379 = vunpack.c.l.b16 %v1017
    %v6380 = vunpack.c.h.b16 %v1017
    %v6381 = vunpack.c.l.b16 %v1018
    %v6382 = vunpack.c.h.b16 %v1018
    %v6383 = vunpack.c.l.b16 %v1019
    %v6384 = vunpack.c.h.b16 %v1019
    %v6385 = vunpack.c.l.b16 %v1020
    %v6386 = vunpack.c.h.b16 %v1020
    %v6387 = vunpack.c.l.b16 %v1021
    %v6388 = vunpack.c.h.b16 %v1021
    %v6389 = vunpack.c.l.b16 %v1022
    %v6390 = vunpack.c.h.b16 %v1022
    %v6391 = vunpack.c.l.b16 %v1023
    %v6392 = vunpack.c.h.b16 %v1023
    %v6393 = vunpack.c.l.b16 %v1024
    %v6394 = vunpack.c.h.b16 %v1024
    %v6395 = vunpack.c.l.b16 %v1025
    %v6396 = vunpack.c.h.b16 %v1025
    %v6397 = vunpack.c.l.b16 %v1026
    %v6398 = vunpack.c.h.b16 %v1026
    %v6399 = vunpack.c.l.b16 %v1027
    %v6400 = vunpack.c.h.b16 %v1027
    %v6401 = vunpack.c.l.b16 %v1028
    %v6402 = vunpack.c.h.b16 %v1028
    %v6403 = vunpack.c.l.b16 %v1029
    %v6404 = vunpack.c.h.b16 %v1029
    %v6405 = vunpack.c.l.b16 %v1030
    %v6406 = vunpack.c.h.b16 %v1030
    %v6407 = vunpack.c.l.b16 %v1031
    %v6408 = vunpack.c.h.b16 %v1031
    %v6409 = vunpack.c.l.b16 %v1032
    %v6410 = vunpack.c.h.b16 %v1032
    %v6411 = vunpack.c.l.b16 %v1033
    %v6412 = vunpack.c.h.b16 %v1033
    %v6413 = vunpack.c.l.b16 %v1034
    %v6414 = vunpack.c.h.b16 %v1034
    %v6415 = vunpack.c.l.b16 %v1035
    %v6416 = vunpack.c.h.b16 %v1035
    %v6417 = vunpack.c.l.b16 %v1036
    %v6418 = vunpack.c.h.b16 %v1036
    %v6419 = vunpack.c.l.b16 %v1037
    %v6420 = vunpack.c.h.b16 %v1037
    %v6421 = vunpack.c.l.b16 %v1038
    %v6422 = vunpack.c.h.b16 %v1038
    %v6423 = vunpack.c.l.b16 %v1039
    %v6424 = vunpack.c.h.b16 %v1039
    %v6425 = vunpack.c.l.b16 %v1040
    %v6426 = vunpack.c.h.b16 %v1040
    %v6427 = vunpack.c.l.b16 %v1041
    %v6428 = vunpack.c.h.b16 %v1041
    %v6429 = vunpack.c.l.b16 %v1042
    %v6430 = vunpack.c.h.b16 %v1042
    %v6431 = vunpack.c.l.b16 %v1043
    %v6432 = vunpack.c.h.b16 %v1043
    %v6433 = vunpack.c.l.b16 %v1044
    %v6434 = vunpack.c.h.b16 %v1044
    %v6435 = vunpack.c.l.b16 %v1045
    %v6436 = vunpack.c.h.b16 %v1045
    %v6437 = vunpack.c.l.b16 %v1046
    %v6438 = vunpack.c.h.b16 %v1046
    %v6439 = vunpack.c.l.b16 %v1047
    %v6440 = vunpack.c.h.b16 %v1047
    %v6441 = vunpack.c.l.b16 %v1048
    %v6442 = vunpack.c.h.b16 %v1048
    %v6443 = vunpack.c.l.b16 %v1049
    %v6444 = vunpack.c.h.b16 %v1049
    %v6445 = vunpack.c.l.b16 %v1050
    %v6446 = vunpack.c.h.b16 %v1050
    %v6447 = vunpack.c.l.b16 %v1051
    %v6448 = vunpack.c.h.b16 %v1051
    %v6449 = vunpack.c.l.b16 %v1052
    %v6450 = vunpack.c.h.b16 %v1052
    %v6451 = vunpack.c.l.b16 %v1053
    %v6452 = vunpack.c.h.b16 %v1053
    %v6453 = vunpack.c.l.b16 %v1054
    %v6454 = vunpack.c.h.b16 %v1054
    %v6455 = vunpack.c.l.b16 %v1055
    %v6456 = vunpack.c.h.b16 %v1055
    %v6457 = vunpack.c.l.b16 %v1056
    %v6458 = vunpack.c.h.b16 %v1056
    %v6459 = vunpack.c.l.b16 %v1057
    %v6460 = vunpack.c.h.b16 %v1057
    %v6461 = vunpack.c.l.b16 %v1058
    %v6462 = vunpack.c.h.b16 %v1058
    %v6463 = vunpack.c.l.b16 %v1059
    %v6464 = vunpack.c.h.b16 %v1059
    %v6465 = vunpack.c.l.b16 %v1060
    %v6466 = vunpack.c.h.b16 %v1060
    %v6467 = vunpack.c.l.b16 %v1061
    %v6468 = vunpack.c.h.b16 %v1061
    %v6469 = vunpack.c.l.b16 %v1062
    %v6470 = vunpack.c.h.b16 %v1062
    %v6471 = vunpack.c.l.b16 %v1063
    %v6472 = vunpack.c.h.b16 %v1063
    %v6473 = vunpack.c.l.b16 %v1064
    %v6474 = vunpack.c.h.b16 %v1064
    %v6475 = vunpack.c.l.b16 %v1065
    %v6476 = vunpack.c.h.b16 %v1065
    %v6477 = vunpack.c.l.b16 %v1066
    %v6478 = vunpack.c.h.b16 %v1066
    %v6479 = vunpack.c.l.b16 %v1067
    %v6480 = vunpack.c.h.b16 %v1067
    %v6481 = vunpack.c.l.b16 %v1068
    %v6482 = vunpack.c.h.b16 %v1068
    %v6483 = vunpack.c.l.b16 %v1069
    %v6484 = vunpack.c.h.b16 %v1069
    %v6485 = vunpack.c.l.b16 %v1070
    %v6486 = vunpack.c.h.b16 %v1070
    %v6487 = vunpack.c.l.b16 %v1071
    %v6488 = vunpack.c.h.b16 %v1071
    %v6489 = vunpack.c.l.b16 %v1072
    %v6490 = vunpack.c.h.b16 %v1072
    %v6491 = vunpack.c.l.b16 %v1073
    %v6492 = vunpack.c.h.b16 %v1073
    %v6493 = vunpack.c.l.b16 %v1074
    %v6494 = vunpack.c.h.b16 %v1074
    %v6495 = vunpack.c.l.b16 %v1075
    %v6496 = vunpack.c.h.b16 %v1075
    %v6497 = vunpack.c.l.b16 %v1076
    %v6498 = vunpack.c.h.b16 %v1076
    %v6499 = vunpack.c.l.b16 %v1077
    %v6500 = vunpack.c.h.b16 %v1077
    %v6501 = vunpack.c.l.b16 %v1078
    %v6502 = vunpack.c.h.b16 %v1078
    %v6503 = vunpack.c.l.b16 %v1079
    %v6504 = vunpack.c.h.b16 %v1079
    %v6505 = vunpack.c.l.b16 %v1080
    %v6506 = vunpack.c.h.b16 %v1080
    %v6507 = vunpack.c.l.b16 %v1081
    %v6508 = vunpack.c.h.b16 %v1081
    %v6509 = vunpack.c.l.b16 %v1082
    %v6510 = vunpack.c.h.b16 %v1082
    %v6511 = vunpack.c.l.b16 %v1083
    %v6512 = vunpack.c.h.b16 %v1083
    %v6513 = vunpack.c.l.b16 %v1084
    %v6514 = vunpack.c.h.b16 %v1084
    %v6515 = vunpack.c.l.b16 %v1085
    %v6516 = vunpack.c.h.b16 %v1085
    %v6517 = vunpack.c.l.b16 %v1086
    %v6518 = vunpack.c.h.b16 %v1086
    %v6519 = vunpack.c.l.b16 %v1087
    %v6520 = vunpack.c.h.b16 %v1087
    %v6521 = vunpack.c.l.b16 %v1088
    %v6522 = vunpack.c.h.b16 %v1088
    %v6523 = vunpack.c.l.b16 %v1089
    %v6524 = vunpack.c.h.b16 %v1089
    %v6525 = vunpack.c.l.b16 %v1090
    %v6526 = vunpack.c.h.b16 %v1090
    %v6527 = vunpack.c.l.b16 %v1091
    %v6528 = vunpack.c.h.b16 %v1091
    %v6529 = vunpack.c.l.b16 %v1092
    %v6530 = vunpack.c.h.b16 %v1092
    %v6531 = vunpack.c.l.b16 %v1093
    %v6532 = vunpack.c.h.b16 %v1093
    %v6533 = vunpack.c.l.b16 %v1094
    %v6534 = vunpack.c.h.b16 %v1094
    %v6535 = vunpack.c.l.b16 %v1095
    %v6536 = vunpack.c.h.b16 %v1095
    %v6537 = vunpack.c.l.b16 %v1096
    %v6538 = vunpack.c.h.b16 %v1096
    %v6539 = vunpack.c.l.b16 %v1097
    %v6540 = vunpack.c.h.b16 %v1097
    %v6541 = vunpack.c.l.b16 %v1098
    %v6542 = vunpack.c.h.b16 %v1098
    %v6543 = vunpack.c.l.b16 %v1099
    %v6544 = vunpack.c.h.b16 %v1099
    %v6545 = vunpack.c.l.b16 %v1100
    %v6546 = vunpack.c.h.b16 %v1100
    %v6547 = vunpack.c.l.b16 %v1101
    %v6548 = vunpack.c.h.b16 %v1101
    %v6549 = vunpack.c.l.b16 %v1102
    %v6550 = vunpack.c.h.b16 %v1102
    %v6551 = vunpack.c.l.b16 %v1103
    %v6552 = vunpack.c.h.b16 %v1103
    %v6553 = vunpack.c.l.b16 %v1104
    %v6554 = vunpack.c.h.b16 %v1104
    %v6555 = vunpack.c.l.b16 %v1105
    %v6556 = vunpack.c.h.b16 %v1105
    %v6557 = vunpack.c.l.b16 %v1106
    %v6558 = vunpack.c.h.b16 %v1106
    %v6559 = vunpack.c.l.b16 %v1107
    %v6560 = vunpack.c.h.b16 %v1107
    %v6561 = vunpack.c.l.b16 %v1108
    %v6562 = vunpack.c.h.b16 %v1108
    %v6563 = vunpack.c.l.b16 %v1109
    %v6564 = vunpack.c.h.b16 %v1109
    %v6565 = vunpack.c.l.b16 %v1110
    %v6566 = vunpack.c.h.b16 %v1110
    %v6567 = vunpack.c.l.b16 %v1111
    %v6568 = vunpack.c.h.b16 %v1111
    %v6569 = vunpack.c.l.b16 %v1112
    %v6570 = vunpack.c.h.b16 %v1112
    %v6571 = vunpack.c.l.b16 %v1113
    %v6572 = vunpack.c.h.b16 %v1113
    %v6573 = vunpack.c.l.b16 %v1114
    %v6574 = vunpack.c.h.b16 %v1114
    %v6575 = vunpack.c.l.b16 %v1115
    %v6576 = vunpack.c.h.b16 %v1115
    %v6577 = vunpack.c.l.b16 %v1116
    %v6578 = vunpack.c.h.b16 %v1116
    %v6579 = vunpack.c.l.b16 %v1117
    %v6580 = vunpack.c.h.b16 %v1117
    %v6581 = vunpack.c.l.b16 %v1118
    %v6582 = vunpack.c.h.b16 %v1118
    %v6583 = vunpack.c.l.b16 %v1119
    %v6584 = vunpack.c.h.b16 %v1119
    %v6585 = vunpack.c.l.b16 %v1120
    %v6586 = vunpack.c.h.b16 %v1120
    %v6587 = vunpack.c.l.b16 %v1121
    %v6588 = vunpack.c.h.b16 %v1121
    %v6589 = vunpack.c.l.b16 %v1122
    %v6590 = vunpack.c.h.b16 %v1122
    %v6591 = vunpack.c.l.b16 %v1123
    %v6592 = vunpack.c.h.b16 %v1123
    %v6593 = vunpack.c.l.b16 %v1124
    %v6594 = vunpack.c.h.b16 %v1124
    %v6595 = vunpack.c.l.b16 %v1125
    %v6596 = vunpack.c.h.b16 %v1125
    %v6597 = vunpack.c.l.b16 %v1126
    %v6598 = vunpack.c.h.b16 %v1126
    %v6599 = vunpack.c.l.b16 %v1127
    %v6600 = vunpack.c.h.b16 %v1127
    %v6601 = vunpack.c.l.b16 %v1128
    %v6602 = vunpack.c.h.b16 %v1128
    %v6603 = vunpack.c.l.b16 %v1129
    %v6604 = vunpack.c.h.b16 %v1129
    %v6605 = vunpack.c.l.b16 %v1130
    %v6606 = vunpack.c.h.b16 %v1130
    %v6607 = vunpack.c.l.b16 %v1131
    %v6608 = vunpack.c.h.b16 %v1131
    %v6609 = vunpack.c.l.b16 %v1132
    %v6610 = vunpack.c.h.b16 %v1132
    %v6611 = vunpack.c.l.b16 %v1133
    %v6612 = vunpack.c.h.b16 %v1133
    %v6613 = vunpack.c.l.b16 %v1134
    %v6614 = vunpack.c.h.b16 %v1134
    %v6615 = vunpack.c.l.b16 %v1135
    %v6616 = vunpack.c.h.b16 %v1135
    %v6617 = vunpack.c.l.b16 %v1136
    %v6618 = vunpack.c.h.b16 %v1136
    %v6619 = vunpack.c.l.b16 %v1137
    %v6620 = vunpack.c.h.b16 %v1137
    %v6621 = vunpack.c.l.b16 %v1138
    %v6622 = vunpack.c.h.b16 %v1138
    %v6623 = vunpack.c.l.b16 %v1139
    %v6624 = vunpack.c.h.b16 %v1139
    %v6625 = vunpack.c.l.b16 %v1140
    %v6626 = vunpack.c.h.b16 %v1140
    %v6627 = vunpack.c.l.b16 %v1141
    %v6628 = vunpack.c.h.b16 %v1141
    %v6629 = vunpack.c.l.b16 %v1142
    %v6630 = vunpack.c.h.b16 %v1142
    %v6631 = vunpack.c.l.b16 %v1143
    %v6632 = vunpack.c.h.b16 %v1143
    %v6633 = vunpack.c.l.b16 %v1144
    %v6634 = vunpack.c.h.b16 %v1144
    %v6635 = vunpack.c.l.b16 %v1145
    %v6636 = vunpack.c.h.b16 %v1145
    %v6637 = vunpack.c.l.b16 %v1146
    %v6638 = vunpack.c.h.b16 %v1146
    %v6639 = vunpack.c.l.b16 %v1147
    %v6640 = vunpack.c.h.b16 %v1147
    %v6641 = vunpack.c.l.b16 %v1148
    %v6642 = vunpack.c.h.b16 %v1148
    %v6643 = vunpack.c.l.b16 %v1149
    %v6644 = vunpack.c.h.b16 %v1149
    %v6645 = vunpack.c.l.b16 %v1150
    %v6646 = vunpack.c.h.b16 %v1150
    %v6647 = vunpack.c.l.b16 %v1151
    %v6648 = vunpack.c.h.b16 %v1151
    %v6649 = vunpack.c.l.b16 %v1152
    %v6650 = vunpack.c.h.b16 %v1152
    %v6651 = vunpack.c.l.b16 %v1153
    %v6652 = vunpack.c.h.b16 %v1153
    %v6653 = vunpack.c.l.b16 %v1154
    %v6654 = vunpack.c.h.b16 %v1154
    %v6655 = vunpack.c.l.b16 %v1155
    %v6656 = vunpack.c.h.b16 %v1155
    %v6657 = vunpack.c.l.b16 %v1156
    %v6658 = vunpack.c.h.b16 %v1156
    %v6659 = vunpack.c.l.b16 %v1157
    %v6660 = vunpack.c.h.b16 %v1157
    %v6661 = vunpack.c.l.b16 %v1158
    %v6662 = vunpack.c.h.b16 %v1158
    %v6663 = vunpack.c.l.b16 %v1159
    %v6664 = vunpack.c.h.b16 %v1159
    %v6665 = vunpack.c.l.b16 %v1160
    %v6666 = vunpack.c.h.b16 %v1160
    %v6667 = vunpack.c.l.b16 %v1161
    %v6668 = vunpack.c.h.b16 %v1161
    %v6669 = vunpack.c.l.b16 %v1162
    %v6670 = vunpack.c.h.b16 %v1162
    %v6671 = vunpack.c.l.b16 %v1163
    %v6672 = vunpack.c.h.b16 %v1163
    %v6673 = vunpack.c.l.b16 %v1164
    %v6674 = vunpack.c.h.b16 %v1164
    %v6675 = vunpack.c.l.b16 %v1165
    %v6676 = vunpack.c.h.b16 %v1165
    %v6677 = vunpack.c.l.b16 %v1166
    %v6678 = vunpack.c.h.b16 %v1166
    %v6679 = vunpack.c.l.b16 %v1167
    %v6680 = vunpack.c.h.b16 %v1167
    %v6681 = vunpack.c.l.b16 %v1168
    %v6682 = vunpack.c.h.b16 %v1168
    %v6683 = vunpack.c.l.b16 %v1169
    %v6684 = vunpack.c.h.b16 %v1169
    %v6685 = vunpack.c.l.b16 %v1170
    %v6686 = vunpack.c.h.b16 %v1170
    %v6687 = vunpack.c.l.b16 %v1171
    %v6688 = vunpack.c.h.b16 %v1171
    %v6689 = vunpack.c.l.b16 %v1172
    %v6690 = vunpack.c.h.b16 %v1172
    %v6691 = vunpack.c.l.b16 %v1173
    %v6692 = vunpack.c.h.b16 %v1173
    %v6693 = vunpack.c.l.b16 %v1174
    %v6694 = vunpack.c.h.b16 %v1174
    %v6695 = vunpack.c.l.b16 %v1175
    %v6696 = vunpack.c.h.b16 %v1175
    %v6697 = vpack.c.b16 %v5677, %v5673
    %v6698 = vpack.c.b16 %v5678, %v5674
    %v6699 = vpack.c.b16 %v5679, %v5675
    %v6700 = vpack.c.b16 %v5680, %v5676
    %v6701 = vpack.c.b16 %v5685, %v5681
    %v6702 = vpack.c.b16 %v5686, %v5682
    %v6703 = vpack.c.b16 %v5687, %v5683
    %v6704 = vpack.c.b16 %v5688, %v5684
    %v6705 = vpack.c.b16 %v5693, %v5689
    %v6706 = vpack.c.b16 %v5694, %v5690
    %v6707 = vpack.c.b16 %v5695, %v5691
    %v6708 = vpack.c.b16 %v5696, %v5692
    %v6709 = vpack.c.b16 %v5701, %v5697
    %v6710 = vpack.c.b16 %v5702, %v5698
    %v6711 = vpack.c.b16 %v5703, %v5699
    %v6712 = vpack.c.b16 %v5704, %v5700
    %v6713 = vpack.c.b16 %v5709, %v5705
    %v6714 = vpack.c.b16 %v5710, %v5706
    %v6715 = vpack.c.b16 %v5711, %v5707
    %v6716 = vpack.c.b16 %v5712, %v5708
    %v6717 = vpack.c.b16 %v5717, %v5713
    %v6718 = vpack.c.b16 %v5718, %v5714
    %v6719 = vpack.c.b16 %v5719, %v5715
    %v6720 = vpack.c.b16 %v5720, %v5716
    %v6721 = vpack.c.b16 %v5725, %v5721
    %v6722 = vpack.c.b16 %v5726, %v5722
    %v6723 = vpack.c.b16 %v5727, %v5723
    %v6724 = vpack.c.b16 %v5728, %v5724
    %v6725 = vpack.c.b16 %v5733, %v5729
    %v6726 = vpack.c.b16 %v5734, %v5730
    %v6727 = vpack.c.b16 %v5735, %v5731
    %v6728 = vpack.c.b16 %v5736, %v5732
    %v6729 = vpack.c.b16 %v5741, %v5737
    %v6730 = vpack.c.b16 %v5742, %v5738
    %v6731 = vpack.c.b16 %v5743, %v5739
    %v6732 = vpack.c.b16 %v5744, %v5740
    %v6733 = vpack.c.b16 %v5749, %v5745
    %v6734 = vpack.c.b16 %v5750, %v5746
    %v6735 = vpack.c.b16 %v5751, %v5747
    %v6736 = vpack.c.b16 %v5752, %v5748
    %v6737 = vpack.c.b16 %v5757, %v5753
    %v6738 = vpack.c.b16 %v5758, %v5754
    %v6739 = vpack.c.b16 %v5759, %v5755
    %v6740 = vpack.c.b16 %v5760, %v5756
    %v6741 = vpack.c.b16 %v5765, %v5761
    %v6742 = vpack.c.b16 %v5766, %v5762
    %v6743 = vpack.c.b16 %v5767, %v5763
    %v6744 = vpack.c.b16 %v5768, %v5764
    %v6745 = vpack.c.b16 %v5773, %v5769
    %v6746 = vpack.c.b16 %v5774, %v5770
    %v6747 = vpack.c.b16 %v5775, %v5771
    %v6748 = vpack.c.b16 %v5776, %v5772
    %v6749 = vpack.c.b16 %v5781, %v5777
    %v6750 = vpack.c.b16 %v5782, %v5778
    %v6751 = vpack.c.b16 %v5783, %v5779
    %v6752 = vpack.c.b16 %v5784, %v5780
    %v6753 = vpack.c.b16 %v5789, %v5785
    %v6754 = vpack.c.b16 %v5790, %v5786
    %v6755 = vpack.c.b16 %v5791, %v5787
    %v6756 = vpack.c.b16 %v5792, %v5788
    %v6757 = vpack.c.b16 %v5797, %v5793
    %v6758 = vpack.c.b16 %v5798, %v5794
    %v6759 = vpack.c.b16 %v5799, %v5795
    %v6760 = vpack.c.b16 %v5800, %v5796
    %v6761 = vpack.c.b16 %v5805, %v5801
    %v6762 = vpack.c.b16 %v5806, %v5802
    %v6763 = vpack.c.b16 %v5807, %v5803
    %v6764 = vpack.c.b16 %v5808, %v5804
    %v6765 = vpack.c.b16 %v5813, %v5809
    %v6766 = vpack.c.b16 %v5814, %v5810
    %v6767 = vpack.c.b16 %v5815, %v5811
    %v6768 = vpack.c.b16 %v5816, %v5812
    %v6769 = vpack.c.b16 %v5821, %v5817
    %v6770 = vpack.c.b16 %v5822, %v5818
    %v6771 = vpack.c.b16 %v5823, %v5819
    %v6772 = vpack.c.b16 %v5824, %v5820
    %v6773 = vpack.c.b16 %v5829, %v5825
    %v6774 = vpack.c.b16 %v5830, %v5826
    %v6775 = vpack.c.b16 %v5831, %v5827
    %v6776 = vpack.c.b16 %v5832, %v5828
    %v6777 = vpack.c.b16 %v5837, %v5833
    %v6778 = vpack.c.b16 %v5838, %v5834
    %v6779 = vpack.c.b16 %v5839, %v5835
    %v6780 = vpack.c.b16 %v5840, %v5836
    %v6781 = vpack.c.b16 %v5845, %v5841
    %v6782 = vpack.c.b16 %v5846, %v5842
    %v6783 = vpack.c.b16 %v5847, %v5843
    %v6784 = vpack.c.b16 %v5848, %v5844
    %v6785 = vpack.c.b16 %v5853, %v5849
    %v6786 = vpack.c.b16 %v5854, %v5850
    %v6787 = vpack.c.b16 %v5855, %v5851
    %v6788 = vpack.c.b16 %v5856, %v5852
    %v6789 = vpack.c.b16 %v5861, %v5857
    %v6790 = vpack.c.b16 %v5862, %v5858
    %v6791 = vpack.c.b16 %v5863, %v5859
    %v6792 = vpack.c.b16 %v5864, %v5860
    %v6793 = vpack.c.b16 %v5869, %v5865
    %v6794 = vpack.c.b16 %v5870, %v5866
    %v6795 = vpack.c.b16 %v5871, %v5867
    %v6796 = vpack.c.b16 %v5872, %v5868
    %v6797 = vpack.c.b16 %v5877, %v5873
    %v6798 = vpack.c.b16 %v5878, %v5874
    %v6799 = vpack.c.b16 %v5879, %v5875
    %v6800 = vpack.c.b16 %v5880, %v5876
    %v6801 = vpack.c.b16 %v5885, %v5881
    %v6802 = vpack.c.b16 %v5886, %v5882
    %v6803 = vpack.c.b16 %v5887, %v5883
    %v6804 = vpack.c.b16 %v5888, %v5884
    %v6805 = vpack.c.b16 %v5893, %v5889
    %v6806 = vpack.c.b16 %v5894, %v5890
    %v6807 = vpack.c.b16 %v5895, %v5891
    %v6808 = vpack.c.b16 %v5896, %v5892
    %v6809 = vpack.c.b16 %v5901, %v5897
    %v6810 = vpack.c.b16 %v5902, %v5898
    %v6811 = vpack.c.b16 %v5903, %v5899
    %v6812 = vpack.c.b16 %v5904, %v5900
    %v6813 = vpack.c.b16 %v5909, %v5905
    %v6814 = vpack.c.b16 %v5910, %v5906
    %v6815 = vpack.c.b16 %v5911, %v5907
    %v6816 = vpack.c.b16 %v5912, %v5908
    %v6817 = vpack.c.b16 %v5917, %v5913
    %v6818 = vpack.c.b16 %v5918, %v5914
    %v6819 = vpack.c.b16 %v5919, %v5915
    %v6820 = vpack.c.b16 %v5920, %v5916
    %v6821 = vpack.c.b16 %v5925, %v5921
    %v6822 = vpack.c.b16 %v5926, %v5922
    %v6823 = vpack.c.b16 %v5927, %v5923
    %v6824 = vpack.c.b16 %v5928, %v5924
    %v6825 = vpack.c.b16 %v5933, %v5929
    %v6826 = vpack.c.b16 %v5934, %v5930
    %v6827 = vpack.c.b16 %v5935, %v5931
    %v6828 = vpack.c.b16 %v5936, %v5932
    %v6829 = vpack.c.b16 %v5941, %v5937
    %v6830 = vpack.c.b16 %v5942, %v5938
    %v6831 = vpack.c.b16 %v5943, %v5939
    %v6832 = vpack.c.b16 %v5944, %v5940
    %v6833 = vpack.c.b16 %v5949, %v5945
    %v6834 = vpack.c.b16 %v5950, %v5946
    %v6835 = vpack.c.b16 %v5951, %v5947
    %v6836 = vpack.c.b16 %v5952, %v5948
    %v6837 = vpack.c.b16 %v5957, %v5953
    %v6838 = vpack.c.b16 %v5958, %v5954
    %v6839 = vpack.c.b16 %v5959, %v5955
    %v6840 = vpack.c.b16 %v5960, %v5956
    %v6841 = vpack.c.b16 %v5965, %v5961
    %v6842 = vpack.c.b16 %v5966, %v5962
    %v6843 = vpack.c.b16 %v5967, %v5963
    %v6844 = vpack.c.b16 %v5968, %v5964
    %v6845 = vpack.c.b16 %v5973, %v5969
    %v6846 = vpack.c.b16 %v5974, %v5970
    %v6847 = vpack.c.b16 %v5975, %v5971
    %v6848 = vpack.c.b16 %v5976, %v5972
    %v6849 = vpack.c.b16 %v5981, %v5977
    %v6850 = vpack.c.b16 %v5982, %v5978
    %v6851 = vpack.c.b16 %v5983, %v5979
    %v6852 = vpack.c.b16 %v5984, %v5980
    %v6853 = vpack.c.b16 %v5989, %v5985
    %v6854 = vpack.c.b16 %v5990, %v5986
    %v6855 = vpack.c.b16 %v5991, %v5987
    %v6856 = vpack.c.b16 %v5992, %v5988
    %v6857 = vpack.c.b16 %v5997, %v5993
    %v6858 = vpack.c.b16 %v5998, %v5994
    %v6859 = vpack.c.b16 %v5999, %v5995
    %v6860 = vpack.c.b16 %v6000, %v5996
    %v6861 = vpack.c.b16 %v6005, %v6001
    %v6862 = vpack.c.b16 %v6006, %v6002
    %v6863 = vpack.c.b16 %v6007, %v6003
    %v6864 = vpack.c.b16 %v6008, %v6004
    %v6865 = vpack.c.b16 %v6013, %v6009
    %v6866 = vpack.c.b16 %v6014, %v6010
    %v6867 = vpack.c.b16 %v6015, %v6011
    %v6868 = vpack.c.b16 %v6016, %v6012
    %v6869 = vpack.c.b16 %v6021, %v6017
    %v6870 = vpack.c.b16 %v6022, %v6018
    %v6871 = vpack.c.b16 %v6023, %v6019
    %v6872 = vpack.c.b16 %v6024, %v6020
    %v6873 = vpack.c.b16 %v6029, %v6025
    %v6874 = vpack.c.b16 %v6030, %v6026
    %v6875 = vpack.c.b16 %v6031, %v6027
    %v6876 = vpack.c.b16 %v6032, %v6028
    %v6877 = vpack.c.b16 %v6037, %v6033
    %v6878 = vpack.c.b16 %v6038, %v6034
    %v6879 = vpack.c.b16 %v6039, %v6035
    %v6880 = vpack.c.b16 %v6040, %v6036
    %v6881 = vpack.c.b16 %v6045, %v6041
    %v6882 = vpack.c.b16 %v6046, %v6042
    %v6883 = vpack.c.b16 %v6047, %v6043
    %v6884 = vpack.c.b16 %v6048, %v6044
    %v6885 = vpack.c.b16 %v6053, %v6049
    %v6886 = vpack.c.b16 %v6054, %v6050
    %v6887 = vpack.c.b16 %v6055, %v6051
    %v6888 = vpack.c.b16 %v6056, %v6052
    %v6889 = vpack.c.b16 %v6061, %v6057
    %v6890 = vpack.c.b16 %v6062, %v6058
    %v6891 = vpack.c.b16 %v6063, %v6059
    %v6892 = vpack.c.b16 %v6064, %v6060
    %v6893 = vpack.c.b16 %v6069, %v6065
    %v6894 = vpack.c.b16 %v6070, %v6066
    %v6895 = vpack.c.b16 %v6071, %v6067
    %v6896 = vpack.c.b16 %v6072, %v6068
    %v6897 = vpack.c.b16 %v6077, %v6073
    %v6898 = vpack.c.b16 %v6078, %v6074
    %v6899 = vpack.c.b16 %v6079, %v6075
    %v6900 = vpack.c.b16 %v6080, %v6076
    %v6901 = vpack.c.b16 %v6085, %v6081
    %v6902 = vpack.c.b16 %v6086, %v6082
    %v6903 = vpack.c.b16 %v6087, %v6083
    %v6904 = vpack.c.b16 %v6088, %v6084
    %v6905 = vpack.c.b16 %v6093, %v6089
    %v6906 = vpack.c.b16 %v6094, %v6090
    %v6907 = vpack.c.b16 %v6095, %v6091
    %v6908 = vpack.c.b16 %v6096, %v6092
    %v6909 = vpack.c.b16 %v6101, %v6097
    %v6910 = vpack.c.b16 %v6102, %v6098
    %v6911 = vpack.c.b16 %v6103, %v6099
    %v6912 = vpack.c.b16 %v6104, %v6100
    %v6913 = vpack.c.b16 %v6109, %v6105
    %v6914 = vpack.c.b16 %v6110, %v6106
    %v6915 = vpack.c.b16 %v6111, %v6107
    %v6916 = vpack.c.b16 %v6112, %v6108
    %v6917 = vpack.c.b16 %v6117, %v6113
    %v6918 = vpack.c.b16 %v6118, %v6114
    %v6919 = vpack.c.b16 %v6119, %v6115
    %v6920 = vpack.c.b16 %v6120, %v6116
    %v6921 = vpack.c.b16 %v6125, %v6121
    %v6922 = vpack.c.b16 %v6126, %v6122
    %v6923 = vpack.c.b16 %v6127, %v6123
    %v6924 = vpack.c.b16 %v6128, %v6124
    %v6925 = vpack.c.b16 %v6133, %v6129
    %v6926 = vpack.c.b16 %v6134, %v6130
    %v6927 = vpack.c.b16 %v6135, %v6131
    %v6928 = vpack.c.b16 %v6136, %v6132
    %v6929 = vpack.c.b16 %v6141, %v6137
    %v6930 = vpack.c.b16 %v6142, %v6138
    %v6931 = vpack.c.b16 %v6143, %v6139
    %v6932 = vpack.c.b16 %v6144, %v6140
    %v6933 = vpack.c.b16 %v6149, %v6145
    %v6934 = vpack.c.b16 %v6150, %v6146
    %v6935 = vpack.c.b16 %v6151, %v6147
    %v6936 = vpack.c.b16 %v6152, %v6148
    %v6937 = vpack.c.b16 %v6157, %v6153
    %v6938 = vpack.c.b16 %v6158, %v6154
    %v6939 = vpack.c.b16 %v6159, %v6155
    %v6940 = vpack.c.b16 %v6160, %v6156
    %v6941 = vpack.c.b16 %v6165, %v6161
    %v6942 = vpack.c.b16 %v6166, %v6162
    %v6943 = vpack.c.b16 %v6167, %v6163
    %v6944 = vpack.c.b16 %v6168, %v6164
    %v6945 = vpack.c.b16 %v6173, %v6169
    %v6946 = vpack.c.b16 %v6174, %v6170
    %v6947 = vpack.c.b16 %v6175, %v6171
    %v6948 = vpack.c.b16 %v6176, %v6172
    %v6949 = vpack.c.b16 %v6181, %v6177
    %v6950 = vpack.c.b16 %v6182, %v6178
    %v6951 = vpack.c.b16 %v6183, %v6179
    %v6952 = vpack.c.b16 %v6184, %v6180
    %v6953 = vpack.c.b16 %v6189, %v6185
    %v6954 = vpack.c.b16 %v6190, %v6186
    %v6955 = vpack.c.b16 %v6191, %v6187
    %v6956 = vpack.c.b16 %v6192, %v6188
    %v6957 = vpack.c.b16 %v6197, %v6193
    %v6958 = vpack.c.b16 %v6198, %v6194
    %v6959 = vpack.c.b16 %v6199, %v6195
    %v6960 = vpack.c.b16 %v6200, %v6196
    %v6961 = vpack.c.b16 %v6205, %v6201
    %v6962 = vpack.c.b16 %v6206, %v6202
    %v6963 = vpack.c.b16 %v6207, %v6203
    %v6964 = vpack.c.b16 %v6208, %v6204
    %v6965 = vpack.c.b16 %v6213, %v6209
    %v6966 = vpack.c.b16 %v6214, %v6210
    %v6967 = vpack.c.b16 %v6215, %v6211
    %v6968 = vpack.c.b16 %v6216, %v6212
    %v6969 = vpack.c.b16 %v6221, %v6217
    %v6970 = vpack.c.b16 %v6222, %v6218
    %v6971 = vpack.c.b16 %v6223, %v6219
    %v6972 = vpack.c.b16 %v6224, %v6220
    %v6973 = vpack.c.b16 %v6229, %v6225
    %v6974 = vpack.c.b16 %v6230, %v6226
    %v6975 = vpack.c.b16 %v6231, %v6227
    %v6976 = vpack.c.b16 %v6232, %v6228
    %v6977 = vpack.c.b16 %v6237, %v6233
    %v6978 = vpack.c.b16 %v6238, %v6234
    %v6979 = vpack.c.b16 %v6239, %v6235
    %v6980 = vpack.c.b16 %v6240, %v6236
    %v6981 = vpack.c.b16 %v6245, %v6241
    %v6982 = vpack.c.b16 %v6246, %v6242
    %v6983 = vpack.c.b16 %v6247, %v6243
    %v6984 = vpack.c.b16 %v6248, %v6244
    %v6985 = vpack.c.b16 %v6253, %v6249
    %v6986 = vpack.c.b16 %v6254, %v6250
    %v6987 = vpack.c.b16 %v6255, %v6251
    %v6988 = vpack.c.b16 %v6256, %v6252
    %v6989 = vpack.c.b16 %v6261, %v6257
    %v6990 = vpack.c.b16 %v6262, %v6258
    %v6991 = vpack.c.b16 %v6263, %v6259
    %v6992 = vpack.c.b16 %v6264, %v6260
    %v6993 = vpack.c.b16 %v6269, %v6265
    %v6994 = vpack.c.b16 %v6270, %v6266
    %v6995 = vpack.c.b16 %v6271, %v6267
    %v6996 = vpack.c.b16 %v6272, %v6268
    %v6997 = vpack.c.b16 %v6277, %v6273
    %v6998 = vpack.c.b16 %v6278, %v6274
    %v6999 = vpack.c.b16 %v6279, %v6275
    %v7000 = vpack.c.b16 %v6280, %v6276
    %v7001 = vpack.c.b16 %v6285, %v6281
    %v7002 = vpack.c.b16 %v6286, %v6282
    %v7003 = vpack.c.b16 %v6287, %v6283
    %v7004 = vpack.c.b16 %v6288, %v6284
    %v7005 = vpack.c.b16 %v6293, %v6289
    %v7006 = vpack.c.b16 %v6294, %v6290
    %v7007 = vpack.c.b16 %v6295, %v6291
    %v7008 = vpack.c.b16 %v6296, %v6292
    %v7009 = vpack.c.b16 %v6301, %v6297
    %v7010 = vpack.c.b16 %v6302, %v6298
    %v7011 = vpack.c.b16 %v6303, %v6299
    %v7012 = vpack.c.b16 %v6304, %v6300
    %v7013 = vpack.c.b16 %v6309, %v6305
    %v7014 = vpack.c.b16 %v6310, %v6306
    %v7015 = vpack.c.b16 %v6311, %v6307
    %v7016 = vpack.c.b16 %v6312, %v6308
    %v7017 = vpack.c.b16 %v6317, %v6313
    %v7018 = vpack.c.b16 %v6318, %v6314
    %v7019 = vpack.c.b16 %v6319, %v6315
    %v7020 = vpack.c.b16 %v6320, %v6316
    %v7021 = vpack.c.b16 %v6325, %v6321
    %v7022 = vpack.c.b16 %v6326, %v6322
    %v7023 = vpack.c.b16 %v6327, %v6323
    %v7024 = vpack.c.b16 %v6328, %v6324
    %v7025 = vpack.c.b16 %v6333, %v6329
    %v7026 = vpack.c.b16 %v6334, %v6330
    %v7027 = vpack.c.b16 %v6335, %v6331
    %v7028 = vpack.c.b16 %v6336, %v6332
    %v7029 = vpack.c.b16 %v6341, %v6337
    %v7030 = vpack.c.b16 %v6342, %v6338
    %v7031 = vpack.c.b16 %v6343, %v6339
    %v7032 = vpack.c.b16 %v6344, %v6340
    %v7033 = vpack.c.b16 %v6349, %v6345
    %v7034 = vpack.c.b16 %v6350, %v6346
    %v7035 = vpack.c.b16 %v6351, %v6347
    %v7036 = vpack.c.b16 %v6352, %v6348
    %v7037 = vpack.c.b16 %v6357, %v6353
    %v7038 = vpack.c.b16 %v6358, %v6354
    %v7039 = vpack.c.b16 %v6359, %v6355
    %v7040 = vpack.c.b16 %v6360, %v6356
    %v7041 = vpack.c.b16 %v6365, %v6361
    %v7042 = vpack.c.b16 %v6366, %v6362
    %v7043 = vpack.c.b16 %v6367, %v6363
    %v7044 = vpack.c.b16 %v6368, %v6364
    %v7045 = vpack.c.b16 %v6373, %v6369
    %v7046 = vpack.c.b16 %v6374, %v6370
    %v7047 = vpack.c.b16 %v6375, %v6371
    %v7048 = vpack.c.b16 %v6376, %v6372
    %v7049 = vpack.c.b16 %v6381, %v6377
    %v7050 = vpack.c.b16 %v6382, %v6378
    %v7051 = vpack.c.b16 %v6383, %v6379
    %v7052 = vpack.c.b16 %v6384, %v6380
    %v7053 = vpack.c.b16 %v6389, %v6385
    %v7054 = vpack.c.b16 %v6390, %v6386
    %v7055 = vpack.c.b16 %v6391, %v6387
    %v7056 = vpack.c.b16 %v6392, %v6388
    %v7057 = vpack.c.b16 %v6397, %v6393
    %v7058 = vpack.c.b16 %v6398, %v6394
    %v7059 = vpack.c.b16 %v6399, %v6395
    %v7060 = vpack.c.b16 %v6400, %v6396
    %v7061 = vpack.c.b16 %v6405, %v6401
    %v7062 = vpack.c.b16 %v6406, %v6402
    %v7063 = vpack.c.b16 %v6407, %v6403
    %v7064 = vpack.c.b16 %v6408, %v6404
    %v7065 = vpack.c.b16 %v6413, %v6409
    %v7066 = vpack.c.b16 %v6414, %v6410
    %v7067 = vpack.c.b16 %v6415, %v6411
    %v7068 = vpack.c.b16 %v6416, %v6412
    %v7069 = vpack.c.b16 %v6421, %v6417
    %v7070 = vpack.c.b16 %v6422, %v6418
    %v7071 = vpack.c.b16 %v6423, %v6419
    %v7072 = vpack.c.b16 %v6424, %v6420
    %v7073 = vpack.c.b16 %v6429, %v6425
    %v7074 = vpack.c.b16 %v6430, %v6426
    %v7075 = vpack.c.b16 %v6431, %v6427
    %v7076 = vpack.c.b16 %v6432, %v6428
    %v7077 = vpack.c.b16 %v6437, %v6433
    %v7078 = vpack.c.b16 %v6438, %v6434
    %v7079 = vpack.c.b16 %v6439, %v6435
    %v7080 = vpack.c.b16 %v6440, %v6436
    %v7081 = vpack.c.b16 %v6445, %v6441
    %v7082 = vpack.c.b16 %v6446, %v6442
    %v7083 = vpack.c.b16 %v6447, %v6443
    %v7084 = vpack.c.b16 %v6448, %v6444
    %v7085 = vpack.c.b16 %v6453, %v6449
    %v7086 = vpack.c.b16 %v6454, %v6450
    %v7087 = vpack.c.b16 %v6455, %v6451
    %v7088 = vpack.c.b16 %v6456, %v6452
    %v7089 = vpack.c.b16 %v6461, %v6457
    %v7090 = vpack.c.b16 %v6462, %v6458
    %v7091 = vpack.c.b16 %v6463, %v6459
    %v7092 = vpack.c.b16 %v6464, %v6460
    %v7093 = vpack.c.b16 %v6469, %v6465
    %v7094 = vpack.c.b16 %v6470, %v6466
    %v7095 = vpack.c.b16 %v6471, %v6467
    %v7096 = vpack.c.b16 %v6472, %v6468
    %v7097 = vpack.c.b16 %v6477, %v6473
    %v7098 = vpack.c.b16 %v6478, %v6474
    %v7099 = vpack.c.b16 %v6479, %v6475
    %v7100 = vpack.c.b16 %v6480, %v6476
    %v7101 = vpack.c.b16 %v6485, %v6481
    %v7102 = vpack.c.b16 %v6486, %v6482
    %v7103 = vpack.c.b16 %v6487, %v6483
    %v7104 = vpack.c.b16 %v6488, %v6484
    %v7105 = vpack.c.b16 %v6493, %v6489
    %v7106 = vpack.c.b16 %v6494, %v6490
    %v7107 = vpack.c.b16 %v6495, %v6491
    %v7108 = vpack.c.b16 %v6496, %v6492
    %v7109 = vpack.c.b16 %v6501, %v6497
    %v7110 = vpack.c.b16 %v6502, %v6498
    %v7111 = vpack.c.b16 %v6503, %v6499
    %v7112 = vpack.c.b16 %v6504, %v6500
    %v7113 = vpack.c.b16 %v6509, %v6505
    %v7114 = vpack.c.b16 %v6510, %v6506
    %v7115 = vpack.c.b16 %v6511, %v6507
    %v7116 = vpack.c.b16 %v6512, %v6508
    %v7117 = vpack.c.b16 %v6517, %v6513
    %v7118 = vpack.c.b16 %v6518, %v6514
    %v7119 = vpack.c.b16 %v6519, %v6515
    %v7120 = vpack.c.b16 %v6520, %v6516
    %v7121 = vpack.c.b16 %v6525, %v6521
    %v7122 = vpack.c.b16 %v6526, %v6522
    %v7123 = vpack.c.b16 %v6527, %v6523
    %v7124 = vpack.c.b16 %v6528, %v6524
    %v7125 = vpack.c.b16 %v6533, %v6529
    %v7126 = vpack.c.b16 %v6534, %v6530
    %v7127 = vpack.c.b16 %v6535, %v6531
    %v7128 = vpack.c.b16 %v6536, %v6532
    %v7129 = vpack.c.b16 %v6541, %v6537
    %v7130 = vpack.c.b16 %v6542, %v6538
    %v7131 = vpack.c.b16 %v6543, %v6539
    %v7132 = vpack.c.b16 %v6544, %v6540
    %v7133 = vpack.c.b16 %v6549, %v6545
    %v7134 = vpack.c.b16 %v6550, %v6546
    %v7135 = vpack.c.b16 %v6551, %v6547
    %v7136 = vpack.c.b16 %v6552, %v6548
    %v7137 = vpack.c.b16 %v6557, %v6553
    %v7138 = vpack.c.b16 %v6558, %v6554
    %v7139 = vpack.c.b16 %v6559, %v6555
    %v7140 = vpack.c.b16 %v6560, %v6556
    %v7141 = vpack.c.b16 %v6565, %v6561
    %v7142 = vpack.c.b16 %v6566, %v6562
    %v7143 = vpack.c.b16 %v6567, %v6563
    %v7144 = vpack.c.b16 %v6568, %v6564
    %v7145 = vpack.c.b16 %v6573, %v6569
    %v7146 = vpack.c.b16 %v6574, %v6570
    %v7147 = vpack.c.b16 %v6575, %v6571
    %v7148 = vpack.c.b16 %v6576, %v6572
    %v7149 = vpack.c.b16 %v6581, %v6577
    %v7150 = vpack.c.b16 %v6582, %v6578
    %v7151 = vpack.c.b16 %v6583, %v6579
    %v7152 = vpack.c.b16 %v6584, %v6580
    %v7153 = vpack.c.b16 %v6589, %v6585
    %v7154 = vpack.c.b16 %v6590, %v6586
    %v7155 = vpack.c.b16 %v6591, %v6587
    %v7156 = vpack.c.b16 %v6592, %v6588
    %v7157 = vpack.c.b16 %v6597, %v6593
    %v7158 = vpack.c.b16 %v6598, %v6594
    %v7159 = vpack.c.b16 %v6599, %v6595
    %v7160 = vpack.c.b16 %v6600, %v6596
    %v7161 = vpack.c.b16 %v6605, %v6601
    %v7162 = vpack.c.b16 %v6606, %v6602
    %v7163 = vpack.c.b16 %v6607, %v6603
    %v7164 = vpack.c.b16 %v6608, %v6604
    %v7165 = vpack.c.b16 %v6613, %v6609
    %v7166 = vpack.c.b16 %v6614, %v6610
    %v7167 = vpack.c.b16 %v6615, %v6611
    %v7168 = vpack.c.b16 %v6616, %v6612
    %v7169 = vpack.c.b16 %v6621, %v6617
    %v7170 = vpack.c.b16 %v6622, %v6618
    %v7171 = vpack.c.b16 %v6623, %v6619
    %v7172 = vpack.c.b16 %v6624, %v6620
    %v7173 = vpack.c.b16 %v6629, %v6625
    %v7174 = vpack.c.b16 %v6630, %v6626
    %v7175 = vpack.c.b16 %v6631, %v6627
    %v7176 = vpack.c.b16 %v6632, %v6628
    %v7177 = vpack.c.b16 %v6637, %v6633
    %v7178 = vpack.c.b16 %v6638, %v6634
    %v7179 = vpack.c.b16 %v6639, %v6635
    %v7180 = vpack.c.b16 %v6640, %v6636
    %v7181 = vpack.c.b16 %v6645, %v6641
    %v7182 = vpack.c.b16 %v6646, %v6642
    %v7183 = vpack.c.b16 %v6647, %v6643
    %v7184 = vpack.c.b16 %v6648, %v6644
    %v7185 = vpack.c.b16 %v6653, %v6649
    %v7186 = vpack.c.b16 %v6654, %v6650
    %v7187 = vpack.c.b16 %v6655, %v6651
    %v7188 = vpack.c.b16 %v6656, %v6652
    %v7189 = vpack.c.b16 %v6661, %v6657
    %v7190 = vpack.c.b16 %v6662, %v6658
    %v7191 = vpack.c.b16 %v6663, %v6659
    %v7192 = vpack.c.b16 %v6664, %v6660
    %v7193 = vpack.c.b16 %v6669, %v6665
    %v7194 = vpack.c.b16 %v6670, %v6666
    %v7195 = vpack.c.b16 %v6671, %v6667
    %v7196 = vpack.c.b16 %v6672, %v6668
    %v7197 = vpack.c.b16 %v6677, %v6673
    %v7198 = vpack.c.b16 %v6678, %v6674
    %v7199 = vpack.c.b16 %v6679, %v6675
    %v7200 = vpack.c.b16 %v6680, %v6676
    %v7201 = vpack.c.b16 %v6685, %v6681
    %v7202 = vpack.c.b16 %v6686, %v6682
    %v7203 = vpack.c.b16 %v6687, %v6683
    %v7204 = vpack.c.b16 %v6688, %v6684
    %v7205 = vpack.c.b16 %v6693, %v6689
    %v7206 = vpack.c.b16 %v6694, %v6690
    %v7207 = vpack.c.b16 %v6695, %v6691
    %v7208 = vpack.c.b16 %v6696, %v6692
    %7721 = vmatprep.subr.bf16.mxu0 %v6726
    %7722 = vmatpush1.bf16.msra.mxu0 %v6725
    %7723 = vmatprep.subr.bf16.mxu0 %v6722
    %7724 = vmatpush1.bf16.msra.mxu0 %v6721
    %7725 = vmatprep.subr.bf16.mxu0 %v6718
    %7726 = vmatpush1.bf16.msra.mxu0 %v6717
    %7727 = vmatprep.subr.bf16.mxu0 %v6714
    %7728 = vmatpush1.bf16.msra.mxu0 %v6713
    %7729 = vmatprep.subr.bf16.mxu0 %v6710
    %7730 = vmatpush1.bf16.msra.mxu0 %v6709
    %7731 = vmatprep.subr.bf16.mxu0 %v6706
    %7732 = vmatpush1.bf16.msra.mxu0 %v6705
    %7733 = vmatprep.subr.bf16.mxu0 %v6702
    %7734 = vmatpush1.bf16.msra.mxu0 %v6701
    %7735 = vmatprep.subr.bf16.mxu0 %v6698
    %7736 = vmatpush1.bf16.msra.mxu0 %v6697
    %7737 = vmatprep.subr.bf16.mxu0 %v6758
    %7738 = vmatpush2.bf16.msra.mxu0 %v6757
    %7739 = vmatprep.subr.bf16.mxu0 %v6754
    %7740 = vmatpush2.bf16.msra.mxu0 %v6753
    %7741 = vmatprep.subr.bf16.mxu0 %v6750
    %7742 = vmatpush2.bf16.msra.mxu0 %v6749
    %7743 = vmatprep.subr.bf16.mxu0 %v6746
    %7744 = vmatpush2.bf16.msra.mxu0 %v6745
    %7745 = vmatprep.subr.bf16.mxu0 %v6742
    %7746 = vmatpush2.bf16.msra.mxu0 %v6741
    %7747 = vmatprep.subr.bf16.mxu0 %v6738
    %7748 = vmatpush2.bf16.msra.mxu0 %v6737
    %7749 = vmatprep.subr.bf16.mxu0 %v6734
    %7750 = vmatpush2.bf16.msra.mxu0 %v6733
    %7751 = vmatprep.subr.bf16.mxu0 %v6730
    %7752 = vmatpush2.bf16.msra.mxu0 %v6729
    %7753 = vmatprep.mubr.bf16.mxu0 %v5130
    %7754 = vmatmul.mubr.bf16.gmra.mxu0 %v5129
    %v7755 = vpop.f32.mrf.mxu0
    %v7756 = vadd.f32 %v4715, %v7755
    %v7757 = vpop.f32.mrf.mxu0
    %v7758 = vadd.f32 %v4717, %v7757
    %v7759 = vpop.f32.mrf.mxu0
    %v7760 = vpop.f32.mrf.mxu0
    %7761 = vdwg.mxu0
    %7762 = vmatprep.subr.bf16.mxu0 %v6790
    %7763 = vmatpush1.bf16.msra.mxu0 %v6789
    %7764 = vmatprep.subr.bf16.mxu0 %v6786
    %7765 = vmatpush1.bf16.msra.mxu0 %v6785
    %7766 = vmatprep.subr.bf16.mxu0 %v6782
    %7767 = vmatpush1.bf16.msra.mxu0 %v6781
    %7768 = vmatprep.subr.bf16.mxu0 %v6778
    %7769 = vmatpush1.bf16.msra.mxu0 %v6777
    %7770 = vmatprep.subr.bf16.mxu0 %v6774
    %7771 = vmatpush1.bf16.msra.mxu0 %v6773
    %7772 = vmatprep.subr.bf16.mxu0 %v6770
    %7773 = vmatpush1.bf16.msra.mxu0 %v6769
    %7774 = vmatprep.subr.bf16.mxu0 %v6766
    %7775 = vmatpush1.bf16.msra.mxu0 %v6765
    %7776 = vmatprep.subr.bf16.mxu0 %v6762
    %7777 = vmatpush1.bf16.msra.mxu0 %v6761
    %7778 = vmatprep.subr.bf16.mxu0 %v6822
    %7779 = vmatpush2.bf16.msra.mxu0 %v6821
    %7780 = vmatprep.subr.bf16.mxu0 %v6818
    %7781 = vmatpush2.bf16.msra.mxu0 %v6817
    %7782 = vmatprep.subr.bf16.mxu0 %v6814
    %7783 = vmatpush2.bf16.msra.mxu0 %v6813
    %7784 = vmatprep.subr.bf16.mxu0 %v6810
    %7785 = vmatpush2.bf16.msra.mxu0 %v6809
    %7786 = vmatprep.subr.bf16.mxu0 %v6806
    %7787 = vmatpush2.bf16.msra.mxu0 %v6805
    %7788 = vmatprep.subr.bf16.mxu0 %v6802
    %7789 = vmatpush2.bf16.msra.mxu0 %v6801
    %7790 = vmatprep.subr.bf16.mxu0 %v6798
    %7791 = vmatpush2.bf16.msra.mxu0 %v6797
    %7792 = vmatprep.subr.bf16.mxu0 %v6794
    %7793 = vmatpush2.bf16.msra.mxu0 %v6793
    %7794 = vmatprep.mubr.bf16.mxu0 %v5132
    %7795 = vmatmul.mubr.bf16.gmra.mxu0 %v5131
    %v7796 = vpop.f32.mrf.mxu0
    %v7797 = vadd.f32 %v7756, %v7796
    %v7798 = vpop.f32.mrf.mxu0
    %v7799 = vadd.f32 %v7758, %v7798
    %v7800 = vpop.f32.mrf.mxu0
    %v7801 = vpop.f32.mrf.mxu0
    %7802 = vdwg.mxu0
    %7803 = vmatprep.subr.bf16.mxu0 %v6854
    %7804 = vmatpush1.bf16.msra.mxu0 %v6853
    %7805 = vmatprep.subr.bf16.mxu0 %v6850
    %7806 = vmatpush1.bf16.msra.mxu0 %v6849
    %7807 = vmatprep.subr.bf16.mxu0 %v6846
    %7808 = vmatpush1.bf16.msra.mxu0 %v6845
    %7809 = vmatprep.subr.bf16.mxu0 %v6842
    %7810 = vmatpush1.bf16.msra.mxu0 %v6841
    %7811 = vmatprep.subr.bf16.mxu0 %v6838
    %7812 = vmatpush1.bf16.msra.mxu0 %v6837
    %7813 = vmatprep.subr.bf16.mxu0 %v6834
    %7814 = vmatpush1.bf16.msra.mxu0 %v6833
    %7815 = vmatprep.subr.bf16.mxu0 %v6830
    %7816 = vmatpush1.bf16.msra.mxu0 %v6829
    %7817 = vmatprep.subr.bf16.mxu0 %v6826
    %7818 = vmatpush1.bf16.msra.mxu0 %v6825
    %7819 = vmatprep.subr.bf16.mxu0 %v6886
    %7820 = vmatpush2.bf16.msra.mxu0 %v6885
    %7821 = vmatprep.subr.bf16.mxu0 %v6882
    %7822 = vmatpush2.bf16.msra.mxu0 %v6881
    %7823 = vmatprep.subr.bf16.mxu0 %v6878
    %7824 = vmatpush2.bf16.msra.mxu0 %v6877
    %7825 = vmatprep.subr.bf16.mxu0 %v6874
    %7826 = vmatpush2.bf16.msra.mxu0 %v6873
    %7827 = vmatprep.subr.bf16.mxu0 %v6870
    %7828 = vmatpush2.bf16.msra.mxu0 %v6869
    %7829 = vmatprep.subr.bf16.mxu0 %v6866
    %7830 = vmatpush2.bf16.msra.mxu0 %v6865
    %7831 = vmatprep.subr.bf16.mxu0 %v6862
    %7832 = vmatpush2.bf16.msra.mxu0 %v6861
    %7833 = vmatprep.subr.bf16.mxu0 %v6858
    %7834 = vmatpush2.bf16.msra.mxu0 %v6857
    %7835 = vmatprep.mubr.bf16.mxu0 %v5134
    %7836 = vmatmul.mubr.bf16.gmra.mxu0 %v5133
    %v7837 = vpop.f32.mrf.mxu0
    %v7838 = vadd.f32 %v7797, %v7837
    %v7839 = vpop.f32.mrf.mxu0
    %v7840 = vadd.f32 %v7799, %v7839
    %v7841 = vpop.f32.mrf.mxu0
    %v7842 = vpop.f32.mrf.mxu0
    %7843 = vdwg.mxu0
    %7844 = vmatprep.subr.bf16.mxu0 %v6918
    %7845 = vmatpush1.bf16.msra.mxu0 %v6917
    %7846 = vmatprep.subr.bf16.mxu0 %v6914
    %7847 = vmatpush1.bf16.msra.mxu0 %v6913
    %7848 = vmatprep.subr.bf16.mxu0 %v6910
    %7849 = vmatpush1.bf16.msra.mxu0 %v6909
    %7850 = vmatprep.subr.bf16.mxu0 %v6906
    %7851 = vmatpush1.bf16.msra.mxu0 %v6905
    %7852 = vmatprep.subr.bf16.mxu0 %v6902
    %7853 = vmatpush1.bf16.msra.mxu0 %v6901
    %7854 = vmatprep.subr.bf16.mxu0 %v6898
    %7855 = vmatpush1.bf16.msra.mxu0 %v6897
    %7856 = vmatprep.subr.bf16.mxu0 %v6894
    %7857 = vmatpush1.bf16.msra.mxu0 %v6893
    %7858 = vmatprep.subr.bf16.mxu0 %v6890
    %7859 = vmatpush1.bf16.msra.mxu0 %v6889
    %7860 = vmatprep.subr.bf16.mxu0 %v6950
    %7861 = vmatpush2.bf16.msra.mxu0 %v6949
    %7862 = vmatprep.subr.bf16.mxu0 %v6946
    %7863 = vmatpush2.bf16.msra.mxu0 %v6945
    %7864 = vmatprep.subr.bf16.mxu0 %v6942
    %7865 = vmatpush2.bf16.msra.mxu0 %v6941
    %7866 = vmatprep.subr.bf16.mxu0 %v6938
    %7867 = vmatpush2.bf16.msra.mxu0 %v6937
    %7868 = vmatprep.subr.bf16.mxu0 %v6934
    %7869 = vmatpush2.bf16.msra.mxu0 %v6933
    %7870 = vmatprep.subr.bf16.mxu0 %v6930
    %7871 = vmatpush2.bf16.msra.mxu0 %v6929
    %7872 = vmatprep.subr.bf16.mxu0 %v6926
    %7873 = vmatpush2.bf16.msra.mxu0 %v6925
    %7874 = vmatprep.subr.bf16.mxu0 %v6922
    %7875 = vmatpush2.bf16.msra.mxu0 %v6921
    %7876 = vmatprep.mubr.bf16.mxu0 %v5136
    %7877 = vmatmul.mubr.bf16.gmra.mxu0 %v5135
    %v7878 = vpop.f32.mrf.mxu0
    %v7879 = vadd.f32 %v7838, %v7878
    %v7880 = vpop.f32.mrf.mxu0
    %v7881 = vadd.f32 %v7840, %v7880
    %v7882 = vpop.f32.mrf.mxu0
    %v7883 = vpop.f32.mrf.mxu0
    %7884 = vdwg.mxu0
    %7885 = vmatprep.subr.bf16.mxu0 %v6982
    %7886 = vmatpush1.bf16.msra.mxu0 %v6981
    %7887 = vmatprep.subr.bf16.mxu0 %v6978
    %7888 = vmatpush1.bf16.msra.mxu0 %v6977
    %7889 = vmatprep.subr.bf16.mxu0 %v6974
    %7890 = vmatpush1.bf16.msra.mxu0 %v6973
    %7891 = vmatprep.subr.bf16.mxu0 %v6970
    %7892 = vmatpush1.bf16.msra.mxu0 %v6969
    %7893 = vmatprep.subr.bf16.mxu0 %v6966
    %7894 = vmatpush1.bf16.msra.mxu0 %v6965
    %7895 = vmatprep.subr.bf16.mxu0 %v6962
    %7896 = vmatpush1.bf16.msra.mxu0 %v6961
    %7897 = vmatprep.subr.bf16.mxu0 %v6958
    %7898 = vmatpush1.bf16.msra.mxu0 %v6957
    %7899 = vmatprep.subr.bf16.mxu0 %v6954
    %7900 = vmatpush1.bf16.msra.mxu0 %v6953
    %7901 = vmatprep.subr.bf16.mxu0 %v7014
    %7902 = vmatpush2.bf16.msra.mxu0 %v7013
    %7903 = vmatprep.subr.bf16.mxu0 %v7010
    %7904 = vmatpush2.bf16.msra.mxu0 %v7009
    %7905 = vmatprep.subr.bf16.mxu0 %v7006
    %7906 = vmatpush2.bf16.msra.mxu0 %v7005
    %7907 = vmatprep.subr.bf16.mxu0 %v7002
    %7908 = vmatpush2.bf16.msra.mxu0 %v7001
    %7909 = vmatprep.subr.bf16.mxu0 %v6998
    %7910 = vmatpush2.bf16.msra.mxu0 %v6997
    %7911 = vmatprep.subr.bf16.mxu0 %v6994
    %7912 = vmatpush2.bf16.msra.mxu0 %v6993
    %7913 = vmatprep.subr.bf16.mxu0 %v6990
    %7914 = vmatpush2.bf16.msra.mxu0 %v6989
    %7915 = vmatprep.subr.bf16.mxu0 %v6986
    %7916 = vmatpush2.bf16.msra.mxu0 %v6985
    %7917 = vmatprep.mubr.bf16.mxu0 %v5138
    %7918 = vmatmul.mubr.bf16.gmra.mxu0 %v5137
    %v7919 = vpop.f32.mrf.mxu0
    %v7920 = vadd.f32 %v7879, %v7919
    %v7921 = vpop.f32.mrf.mxu0
    %v7922 = vadd.f32 %v7881, %v7921
    %v7923 = vpop.f32.mrf.mxu0
    %v7924 = vpop.f32.mrf.mxu0
    %7925 = vdwg.mxu0
    %7926 = vmatprep.subr.bf16.mxu0 %v7046
    %7927 = vmatpush1.bf16.msra.mxu0 %v7045
    %7928 = vmatprep.subr.bf16.mxu0 %v7042
    %7929 = vmatpush1.bf16.msra.mxu0 %v7041
    %7930 = vmatprep.subr.bf16.mxu0 %v7038
    %7931 = vmatpush1.bf16.msra.mxu0 %v7037
    %7932 = vmatprep.subr.bf16.mxu0 %v7034
    %7933 = vmatpush1.bf16.msra.mxu0 %v7033
    %7934 = vmatprep.subr.bf16.mxu0 %v7030
    %7935 = vmatpush1.bf16.msra.mxu0 %v7029
    %7936 = vmatprep.subr.bf16.mxu0 %v7026
    %7937 = vmatpush1.bf16.msra.mxu0 %v7025
    %7938 = vmatprep.subr.bf16.mxu0 %v7022
    %7939 = vmatpush1.bf16.msra.mxu0 %v7021
    %7940 = vmatprep.subr.bf16.mxu0 %v7018
    %7941 = vmatpush1.bf16.msra.mxu0 %v7017
    %7942 = vmatprep.subr.bf16.mxu0 %v7078
    %7943 = vmatpush2.bf16.msra.mxu0 %v7077
    %7944 = vmatprep.subr.bf16.mxu0 %v7074
    %7945 = vmatpush2.bf16.msra.mxu0 %v7073
    %7946 = vmatprep.subr.bf16.mxu0 %v7070
    %7947 = vmatpush2.bf16.msra.mxu0 %v7069
    %7948 = vmatprep.subr.bf16.mxu0 %v7066
    %7949 = vmatpush2.bf16.msra.mxu0 %v7065
    %7950 = vmatprep.subr.bf16.mxu0 %v7062
    %7951 = vmatpush2.bf16.msra.mxu0 %v7061
    %7952 = vmatprep.subr.bf16.mxu0 %v7058
    %7953 = vmatpush2.bf16.msra.mxu0 %v7057
    %7954 = vmatprep.subr.bf16.mxu0 %v7054
    %7955 = vmatpush2.bf16.msra.mxu0 %v7053
    %7956 = vmatprep.subr.bf16.mxu0 %v7050
    %7957 = vmatpush2.bf16.msra.mxu0 %v7049
    %7958 = vmatprep.mubr.bf16.mxu0 %v5140
    %7959 = vmatmul.mubr.bf16.gmra.mxu0 %v5139
    %v7960 = vpop.f32.mrf.mxu0
    %v7961 = vadd.f32 %v7920, %v7960
    %v7962 = vpop.f32.mrf.mxu0
    %v7963 = vadd.f32 %v7922, %v7962
    %v7964 = vpop.f32.mrf.mxu0
    %v7965 = vpop.f32.mrf.mxu0
    %7966 = vdwg.mxu0
    %7967 = vmatprep.subr.bf16.mxu0 %v7110
    %7968 = vmatpush1.bf16.msra.mxu0 %v7109
    %7969 = vmatprep.subr.bf16.mxu0 %v7106
    %7970 = vmatpush1.bf16.msra.mxu0 %v7105
    %7971 = vmatprep.subr.bf16.mxu0 %v7102
    %7972 = vmatpush1.bf16.msra.mxu0 %v7101
    %7973 = vmatprep.subr.bf16.mxu0 %v7098
    %7974 = vmatpush1.bf16.msra.mxu0 %v7097
    %7975 = vmatprep.subr.bf16.mxu0 %v7094
    %7976 = vmatpush1.bf16.msra.mxu0 %v7093
    %7977 = vmatprep.subr.bf16.mxu0 %v7090
    %7978 = vmatpush1.bf16.msra.mxu0 %v7089
    %7979 = vmatprep.subr.bf16.mxu0 %v7086
    %7980 = vmatpush1.bf16.msra.mxu0 %v7085
    %7981 = vmatprep.subr.bf16.mxu0 %v7082
    %7982 = vmatpush1.bf16.msra.mxu0 %v7081
    %7983 = vmatprep.subr.bf16.mxu0 %v7142
    %7984 = vmatpush2.bf16.msra.mxu0 %v7141
    %7985 = vmatprep.subr.bf16.mxu0 %v7138
    %7986 = vmatpush2.bf16.msra.mxu0 %v7137
    %7987 = vmatprep.subr.bf16.mxu0 %v7134
    %7988 = vmatpush2.bf16.msra.mxu0 %v7133
    %7989 = vmatprep.subr.bf16.mxu0 %v7130
    %7990 = vmatpush2.bf16.msra.mxu0 %v7129
    %7991 = vmatprep.subr.bf16.mxu0 %v7126
    %7992 = vmatpush2.bf16.msra.mxu0 %v7125
    %7993 = vmatprep.subr.bf16.mxu0 %v7122
    %7994 = vmatpush2.bf16.msra.mxu0 %v7121
    %7995 = vmatprep.subr.bf16.mxu0 %v7118
    %7996 = vmatpush2.bf16.msra.mxu0 %v7117
    %7997 = vmatprep.subr.bf16.mxu0 %v7114
    %7998 = vmatpush2.bf16.msra.mxu0 %v7113
    %7999 = vmatprep.mubr.bf16.mxu0 %v5142
    %8000 = vmatmul.mubr.bf16.gmra.mxu0 %v5141
    %v8001 = vpop.f32.mrf.mxu0
    %v8002 = vadd.f32 %v7961, %v8001
    %v8003 = vpop.f32.mrf.mxu0
    %v8004 = vadd.f32 %v7963, %v8003
    %v8005 = vpop.f32.mrf.mxu0
    %v8006 = vpop.f32.mrf.mxu0
    %8007 = vdwg.mxu0
    %8008 = vmatprep.subr.bf16.mxu0 %v7174
    %8009 = vmatpush1.bf16.msra.mxu0 %v7173
    %8010 = vmatprep.subr.bf16.mxu0 %v7170
    %8011 = vmatpush1.bf16.msra.mxu0 %v7169
    %8012 = vmatprep.subr.bf16.mxu0 %v7166
    %8013 = vmatpush1.bf16.msra.mxu0 %v7165
    %8014 = vmatprep.subr.bf16.mxu0 %v7162
    %8015 = vmatpush1.bf16.msra.mxu0 %v7161
    %8016 = vmatprep.subr.bf16.mxu0 %v7158
    %8017 = vmatpush1.bf16.msra.mxu0 %v7157
    %8018 = vmatprep.subr.bf16.mxu0 %v7154
    %8019 = vmatpush1.bf16.msra.mxu0 %v7153
    %8020 = vmatprep.subr.bf16.mxu0 %v7150
    %8021 = vmatpush1.bf16.msra.mxu0 %v7149
    %8022 = vmatprep.subr.bf16.mxu0 %v7146
    %8023 = vmatpush1.bf16.msra.mxu0 %v7145
    %8024 = vmatprep.subr.bf16.mxu0 %v7206
    %8025 = vmatpush2.bf16.msra.mxu0 %v7205
    %8026 = vmatprep.subr.bf16.mxu0 %v7202
    %8027 = vmatpush2.bf16.msra.mxu0 %v7201
    %8028 = vmatprep.subr.bf16.mxu0 %v7198
    %8029 = vmatpush2.bf16.msra.mxu0 %v7197
    %8030 = vmatprep.subr.bf16.mxu0 %v7194
    %8031 = vmatpush2.bf16.msra.mxu0 %v7193
    %8032 = vmatprep.subr.bf16.mxu0 %v7190
    %8033 = vmatpush2.bf16.msra.mxu0 %v7189
    %8034 = vmatprep.subr.bf16.mxu0 %v7186
    %8035 = vmatpush2.bf16.msra.mxu0 %v7185
    %8036 = vmatprep.subr.bf16.mxu0 %v7182
    %8037 = vmatpush2.bf16.msra.mxu0 %v7181
    %8038 = vmatprep.subr.bf16.mxu0 %v7178
    %8039 = vmatpush2.bf16.msra.mxu0 %v7177
    %8040 = vmatprep.mubr.bf16.mxu0 %v5144
    %8041 = vmatmul.mubr.bf16.gmra.mxu0 %v5143
    %v8042 = vpop.f32.mrf.mxu0
    %v8043 = vadd.f32 %v8002, %v8042
    %v8044 = vpop.f32.mrf.mxu0
    %v8045 = vadd.f32 %v8004, %v8044
    %v8046 = vpop.f32.mrf.mxu0
    %v8047 = vpop.f32.mrf.mxu0
    %8048 = vdwg.mxu0
    %8049 = vmatprep.subr.bf16.mxu0 %v6728
    %8050 = vmatpush1.bf16.msra.mxu0 %v6727
    %8051 = vmatprep.subr.bf16.mxu0 %v6724
    %8052 = vmatpush1.bf16.msra.mxu0 %v6723
    %8053 = vmatprep.subr.bf16.mxu0 %v6720
    %8054 = vmatpush1.bf16.msra.mxu0 %v6719
    %8055 = vmatprep.subr.bf16.mxu0 %v6716
    %8056 = vmatpush1.bf16.msra.mxu0 %v6715
    %8057 = vmatprep.subr.bf16.mxu0 %v6712
    %8058 = vmatpush1.bf16.msra.mxu0 %v6711
    %8059 = vmatprep.subr.bf16.mxu0 %v6708
    %8060 = vmatpush1.bf16.msra.mxu0 %v6707
    %8061 = vmatprep.subr.bf16.mxu0 %v6704
    %8062 = vmatpush1.bf16.msra.mxu0 %v6703
    %8063 = vmatprep.subr.bf16.mxu0 %v6700
    %8064 = vmatpush1.bf16.msra.mxu0 %v6699
    %8065 = vmatprep.subr.bf16.mxu0 %v6760
    %8066 = vmatpush2.bf16.msra.mxu0 %v6759
    %8067 = vmatprep.subr.bf16.mxu0 %v6756
    %8068 = vmatpush2.bf16.msra.mxu0 %v6755
    %8069 = vmatprep.subr.bf16.mxu0 %v6752
    %8070 = vmatpush2.bf16.msra.mxu0 %v6751
    %8071 = vmatprep.subr.bf16.mxu0 %v6748
    %8072 = vmatpush2.bf16.msra.mxu0 %v6747
    %8073 = vmatprep.subr.bf16.mxu0 %v6744
    %8074 = vmatpush2.bf16.msra.mxu0 %v6743
    %8075 = vmatprep.subr.bf16.mxu0 %v6740
    %8076 = vmatpush2.bf16.msra.mxu0 %v6739
    %8077 = vmatprep.subr.bf16.mxu0 %v6736
    %8078 = vmatpush2.bf16.msra.mxu0 %v6735
    %8079 = vmatprep.subr.bf16.mxu0 %v6732
    %8080 = vmatpush2.bf16.msra.mxu0 %v6731
    %8081 = vmatprep.mubr.bf16.mxu0 %v5130
    %8082 = vmatmul.mubr.bf16.gmra.mxu0 %v5129
    %v8083 = vpop.f32.mrf.mxu0
    %v8084 = vadd.f32 %v5043, %v8083
    %v8085 = vpop.f32.mrf.mxu0
    %v8086 = vadd.f32 %v5045, %v8085
    %v8087 = vpop.f32.mrf.mxu0
    %v8088 = vpop.f32.mrf.mxu0
    %8089 = vdwg.mxu0
    %8090 = vmatprep.subr.bf16.mxu0 %v6792
    %8091 = vmatpush1.bf16.msra.mxu0 %v6791
    %8092 = vmatprep.subr.bf16.mxu0 %v6788
    %8093 = vmatpush1.bf16.msra.mxu0 %v6787
    %8094 = vmatprep.subr.bf16.mxu0 %v6784
    %8095 = vmatpush1.bf16.msra.mxu0 %v6783
    %8096 = vmatprep.subr.bf16.mxu0 %v6780
    %8097 = vmatpush1.bf16.msra.mxu0 %v6779
    %8098 = vmatprep.subr.bf16.mxu0 %v6776
    %8099 = vmatpush1.bf16.msra.mxu0 %v6775
    %8100 = vmatprep.subr.bf16.mxu0 %v6772
    %8101 = vmatpush1.bf16.msra.mxu0 %v6771
    %8102 = vmatprep.subr.bf16.mxu0 %v6768
    %8103 = vmatpush1.bf16.msra.mxu0 %v6767
    %8104 = vmatprep.subr.bf16.mxu0 %v6764
    %8105 = vmatpush1.bf16.msra.mxu0 %v6763
    %8106 = vmatprep.subr.bf16.mxu0 %v6824
    %8107 = vmatpush2.bf16.msra.mxu0 %v6823
    %8108 = vmatprep.subr.bf16.mxu0 %v6820
    %8109 = vmatpush2.bf16.msra.mxu0 %v6819
    %8110 = vmatprep.subr.bf16.mxu0 %v6816
    %8111 = vmatpush2.bf16.msra.mxu0 %v6815
    %8112 = vmatprep.subr.bf16.mxu0 %v6812
    %8113 = vmatpush2.bf16.msra.mxu0 %v6811
    %8114 = vmatprep.subr.bf16.mxu0 %v6808
    %8115 = vmatpush2.bf16.msra.mxu0 %v6807
    %8116 = vmatprep.subr.bf16.mxu0 %v6804
    %8117 = vmatpush2.bf16.msra.mxu0 %v6803
    %8118 = vmatprep.subr.bf16.mxu0 %v6800
    %8119 = vmatpush2.bf16.msra.mxu0 %v6799
    %8120 = vmatprep.subr.bf16.mxu0 %v6796
    %8121 = vmatpush2.bf16.msra.mxu0 %v6795
    %8122 = vmatprep.mubr.bf16.mxu0 %v5132
    %8123 = vmatmul.mubr.bf16.gmra.mxu0 %v5131
    %v8124 = vpop.f32.mrf.mxu0
    %v8125 = vadd.f32 %v8084, %v8124
    %v8126 = vpop.f32.mrf.mxu0
    %v8127 = vadd.f32 %v8086, %v8126
    %v8128 = vpop.f32.mrf.mxu0
    %v8129 = vpop.f32.mrf.mxu0
    %8130 = vdwg.mxu0
    %8131 = vmatprep.subr.bf16.mxu0 %v6856
    %8132 = vmatpush1.bf16.msra.mxu0 %v6855
    %8133 = vmatprep.subr.bf16.mxu0 %v6852
    %8134 = vmatpush1.bf16.msra.mxu0 %v6851
    %8135 = vmatprep.subr.bf16.mxu0 %v6848
    %8136 = vmatpush1.bf16.msra.mxu0 %v6847
    %8137 = vmatprep.subr.bf16.mxu0 %v6844
    %8138 = vmatpush1.bf16.msra.mxu0 %v6843
    %8139 = vmatprep.subr.bf16.mxu0 %v6840
    %8140 = vmatpush1.bf16.msra.mxu0 %v6839
    %8141 = vmatprep.subr.bf16.mxu0 %v6836
    %8142 = vmatpush1.bf16.msra.mxu0 %v6835
    %8143 = vmatprep.subr.bf16.mxu0 %v6832
    %8144 = vmatpush1.bf16.msra.mxu0 %v6831
    %8145 = vmatprep.subr.bf16.mxu0 %v6828
    %8146 = vmatpush1.bf16.msra.mxu0 %v6827
    %8147 = vmatprep.subr.bf16.mxu0 %v6888
    %8148 = vmatpush2.bf16.msra.mxu0 %v6887
    %8149 = vmatprep.subr.bf16.mxu0 %v6884
    %8150 = vmatpush2.bf16.msra.mxu0 %v6883
    %8151 = vmatprep.subr.bf16.mxu0 %v6880
    %8152 = vmatpush2.bf16.msra.mxu0 %v6879
    %8153 = vmatprep.subr.bf16.mxu0 %v6876
    %8154 = vmatpush2.bf16.msra.mxu0 %v6875
    %8155 = vmatprep.subr.bf16.mxu0 %v6872
    %8156 = vmatpush2.bf16.msra.mxu0 %v6871
    %8157 = vmatprep.subr.bf16.mxu0 %v6868
    %8158 = vmatpush2.bf16.msra.mxu0 %v6867
    %8159 = vmatprep.subr.bf16.mxu0 %v6864
    %8160 = vmatpush2.bf16.msra.mxu0 %v6863
    %8161 = vmatprep.subr.bf16.mxu0 %v6860
    %8162 = vmatpush2.bf16.msra.mxu0 %v6859
    %8163 = vmatprep.mubr.bf16.mxu0 %v5134
    %8164 = vmatmul.mubr.bf16.gmra.mxu0 %v5133
    %v8165 = vpop.f32.mrf.mxu0
    %v8166 = vadd.f32 %v8125, %v8165
    %v8167 = vpop.f32.mrf.mxu0
    %v8168 = vadd.f32 %v8127, %v8167
    %v8169 = vpop.f32.mrf.mxu0
    %v8170 = vpop.f32.mrf.mxu0
    %8171 = vdwg.mxu0
    %8172 = vmatprep.subr.bf16.mxu0 %v6920
    %8173 = vmatpush1.bf16.msra.mxu0 %v6919
    %8174 = vmatprep.subr.bf16.mxu0 %v6916
    %8175 = vmatpush1.bf16.msra.mxu0 %v6915
    %8176 = vmatprep.subr.bf16.mxu0 %v6912
    %8177 = vmatpush1.bf16.msra.mxu0 %v6911
    %8178 = vmatprep.subr.bf16.mxu0 %v6908
    %8179 = vmatpush1.bf16.msra.mxu0 %v6907
    %8180 = vmatprep.subr.bf16.mxu0 %v6904
    %8181 = vmatpush1.bf16.msra.mxu0 %v6903
    %8182 = vmatprep.subr.bf16.mxu0 %v6900
    %8183 = vmatpush1.bf16.msra.mxu0 %v6899
    %8184 = vmatprep.subr.bf16.mxu0 %v6896
    %8185 = vmatpush1.bf16.msra.mxu0 %v6895
    %8186 = vmatprep.subr.bf16.mxu0 %v6892
    %8187 = vmatpush1.bf16.msra.mxu0 %v6891
    %8188 = vmatprep.subr.bf16.mxu0 %v6952
    %8189 = vmatpush2.bf16.msra.mxu0 %v6951
    %8190 = vmatprep.subr.bf16.mxu0 %v6948
    %8191 = vmatpush2.bf16.msra.mxu0 %v6947
    %8192 = vmatprep.subr.bf16.mxu0 %v6944
    %8193 = vmatpush2.bf16.msra.mxu0 %v6943
    %8194 = vmatprep.subr.bf16.mxu0 %v6940
    %8195 = vmatpush2.bf16.msra.mxu0 %v6939
    %8196 = vmatprep.subr.bf16.mxu0 %v6936
    %8197 = vmatpush2.bf16.msra.mxu0 %v6935
    %8198 = vmatprep.subr.bf16.mxu0 %v6932
    %8199 = vmatpush2.bf16.msra.mxu0 %v6931
    %8200 = vmatprep.subr.bf16.mxu0 %v6928
    %8201 = vmatpush2.bf16.msra.mxu0 %v6927
    %8202 = vmatprep.subr.bf16.mxu0 %v6924
    %8203 = vmatpush2.bf16.msra.mxu0 %v6923
    %8204 = vmatprep.mubr.bf16.mxu0 %v5136
    %8205 = vmatmul.mubr.bf16.gmra.mxu0 %v5135
    %v8206 = vpop.f32.mrf.mxu0
    %v8207 = vadd.f32 %v8166, %v8206
    %v8208 = vpop.f32.mrf.mxu0
    %v8209 = vadd.f32 %v8168, %v8208
    %v8210 = vpop.f32.mrf.mxu0
    %v8211 = vpop.f32.mrf.mxu0
    %8212 = vdwg.mxu0
    %8213 = vmatprep.subr.bf16.mxu0 %v6984
    %8214 = vmatpush1.bf16.msra.mxu0 %v6983
    %8215 = vmatprep.subr.bf16.mxu0 %v6980
    %8216 = vmatpush1.bf16.msra.mxu0 %v6979
    %8217 = vmatprep.subr.bf16.mxu0 %v6976
    %8218 = vmatpush1.bf16.msra.mxu0 %v6975
    %8219 = vmatprep.subr.bf16.mxu0 %v6972
    %8220 = vmatpush1.bf16.msra.mxu0 %v6971
    %8221 = vmatprep.subr.bf16.mxu0 %v6968
    %8222 = vmatpush1.bf16.msra.mxu0 %v6967
    %8223 = vmatprep.subr.bf16.mxu0 %v6964
    %8224 = vmatpush1.bf16.msra.mxu0 %v6963
    %8225 = vmatprep.subr.bf16.mxu0 %v6960
    %8226 = vmatpush1.bf16.msra.mxu0 %v6959
    %8227 = vmatprep.subr.bf16.mxu0 %v6956
    %8228 = vmatpush1.bf16.msra.mxu0 %v6955
    %8229 = vmatprep.subr.bf16.mxu0 %v7016
    %8230 = vmatpush2.bf16.msra.mxu0 %v7015
    %8231 = vmatprep.subr.bf16.mxu0 %v7012
    %8232 = vmatpush2.bf16.msra.mxu0 %v7011
    %8233 = vmatprep.subr.bf16.mxu0 %v7008
    %8234 = vmatpush2.bf16.msra.mxu0 %v7007
    %8235 = vmatprep.subr.bf16.mxu0 %v7004
    %8236 = vmatpush2.bf16.msra.mxu0 %v7003
    %8237 = vmatprep.subr.bf16.mxu0 %v7000
    %8238 = vmatpush2.bf16.msra.mxu0 %v6999
    %8239 = vmatprep.subr.bf16.mxu0 %v6996
    %8240 = vmatpush2.bf16.msra.mxu0 %v6995
    %8241 = vmatprep.subr.bf16.mxu0 %v6992
    %8242 = vmatpush2.bf16.msra.mxu0 %v6991
    %8243 = vmatprep.subr.bf16.mxu0 %v6988
    %8244 = vmatpush2.bf16.msra.mxu0 %v6987
    %8245 = vmatprep.mubr.bf16.mxu0 %v5138
    %8246 = vmatmul.mubr.bf16.gmra.mxu0 %v5137
    %v8247 = vpop.f32.mrf.mxu0
    %v8248 = vadd.f32 %v8207, %v8247
    %v8249 = vpop.f32.mrf.mxu0
    %v8250 = vadd.f32 %v8209, %v8249
    %v8251 = vpop.f32.mrf.mxu0
    %v8252 = vpop.f32.mrf.mxu0
    %8253 = vdwg.mxu0
    %8254 = vmatprep.subr.bf16.mxu0 %v7048
    %8255 = vmatpush1.bf16.msra.mxu0 %v7047
    %8256 = vmatprep.subr.bf16.mxu0 %v7044
    %8257 = vmatpush1.bf16.msra.mxu0 %v7043
    %8258 = vmatprep.subr.bf16.mxu0 %v7040
    %8259 = vmatpush1.bf16.msra.mxu0 %v7039
    %8260 = vmatprep.subr.bf16.mxu0 %v7036
    %8261 = vmatpush1.bf16.msra.mxu0 %v7035
    %8262 = vmatprep.subr.bf16.mxu0 %v7032
    %8263 = vmatpush1.bf16.msra.mxu0 %v7031
    %8264 = vmatprep.subr.bf16.mxu0 %v7028
    %8265 = vmatpush1.bf16.msra.mxu0 %v7027
    %8266 = vmatprep.subr.bf16.mxu0 %v7024
    %8267 = vmatpush1.bf16.msra.mxu0 %v7023
    %8268 = vmatprep.subr.bf16.mxu0 %v7020
    %8269 = vmatpush1.bf16.msra.mxu0 %v7019
    %8270 = vmatprep.subr.bf16.mxu0 %v7080
    %8271 = vmatpush2.bf16.msra.mxu0 %v7079
    %8272 = vmatprep.subr.bf16.mxu0 %v7076
    %8273 = vmatpush2.bf16.msra.mxu0 %v7075
    %8274 = vmatprep.subr.bf16.mxu0 %v7072
    %8275 = vmatpush2.bf16.msra.mxu0 %v7071
    %8276 = vmatprep.subr.bf16.mxu0 %v7068
    %8277 = vmatpush2.bf16.msra.mxu0 %v7067
    %8278 = vmatprep.subr.bf16.mxu0 %v7064
    %8279 = vmatpush2.bf16.msra.mxu0 %v7063
    %8280 = vmatprep.subr.bf16.mxu0 %v7060
    %8281 = vmatpush2.bf16.msra.mxu0 %v7059
    %8282 = vmatprep.subr.bf16.mxu0 %v7056
    %8283 = vmatpush2.bf16.msra.mxu0 %v7055
    %8284 = vmatprep.subr.bf16.mxu0 %v7052
    %8285 = vmatpush2.bf16.msra.mxu0 %v7051
    %8286 = vmatprep.mubr.bf16.mxu0 %v5140
    %8287 = vmatmul.mubr.bf16.gmra.mxu0 %v5139
    %v8288 = vpop.f32.mrf.mxu0
    %v8289 = vadd.f32 %v8248, %v8288
    %v8290 = vpop.f32.mrf.mxu0
    %v8291 = vadd.f32 %v8250, %v8290
    %v8292 = vpop.f32.mrf.mxu0
    %v8293 = vpop.f32.mrf.mxu0
    %8294 = vdwg.mxu0
    %8295 = vmatprep.subr.bf16.mxu0 %v7112
    %8296 = vmatpush1.bf16.msra.mxu0 %v7111
    %8297 = vmatprep.subr.bf16.mxu0 %v7108
    %8298 = vmatpush1.bf16.msra.mxu0 %v7107
    %8299 = vmatprep.subr.bf16.mxu0 %v7104
    %8300 = vmatpush1.bf16.msra.mxu0 %v7103
    %8301 = vmatprep.subr.bf16.mxu0 %v7100
    %8302 = vmatpush1.bf16.msra.mxu0 %v7099
    %8303 = vmatprep.subr.bf16.mxu0 %v7096
    %8304 = vmatpush1.bf16.msra.mxu0 %v7095
    %8305 = vmatprep.subr.bf16.mxu0 %v7092
    %8306 = vmatpush1.bf16.msra.mxu0 %v7091
    %8307 = vmatprep.subr.bf16.mxu0 %v7088
    %8308 = vmatpush1.bf16.msra.mxu0 %v7087
    %8309 = vmatprep.subr.bf16.mxu0 %v7084
    %8310 = vmatpush1.bf16.msra.mxu0 %v7083
    %8311 = vmatprep.subr.bf16.mxu0 %v7144
    %8312 = vmatpush2.bf16.msra.mxu0 %v7143
    %8313 = vmatprep.subr.bf16.mxu0 %v7140
    %8314 = vmatpush2.bf16.msra.mxu0 %v7139
    %8315 = vmatprep.subr.bf16.mxu0 %v7136
    %8316 = vmatpush2.bf16.msra.mxu0 %v7135
    %8317 = vmatprep.subr.bf16.mxu0 %v7132
    %8318 = vmatpush2.bf16.msra.mxu0 %v7131
    %8319 = vmatprep.subr.bf16.mxu0 %v7128
    %8320 = vmatpush2.bf16.msra.mxu0 %v7127
    %8321 = vmatprep.subr.bf16.mxu0 %v7124
    %8322 = vmatpush2.bf16.msra.mxu0 %v7123
    %8323 = vmatprep.subr.bf16.mxu0 %v7120
    %8324 = vmatpush2.bf16.msra.mxu0 %v7119
    %8325 = vmatprep.subr.bf16.mxu0 %v7116
    %8326 = vmatpush2.bf16.msra.mxu0 %v7115
    %8327 = vmatprep.mubr.bf16.mxu0 %v5142
    %8328 = vmatmul.mubr.bf16.gmra.mxu0 %v5141
    %v8329 = vpop.f32.mrf.mxu0
    %v8330 = vadd.f32 %v8289, %v8329
    %v8331 = vpop.f32.mrf.mxu0
    %v8332 = vadd.f32 %v8291, %v8331
    %v8333 = vpop.f32.mrf.mxu0
    %v8334 = vpop.f32.mrf.mxu0
    %8335 = vdwg.mxu0
    %8336 = vmatprep.subr.bf16.mxu0 %v7176
    %8337 = vmatpush1.bf16.msra.mxu0 %v7175
    %8338 = vmatprep.subr.bf16.mxu0 %v7172
    %8339 = vmatpush1.bf16.msra.mxu0 %v7171
    %8340 = vmatprep.subr.bf16.mxu0 %v7168
    %8341 = vmatpush1.bf16.msra.mxu0 %v7167
    %8342 = vmatprep.subr.bf16.mxu0 %v7164
    %8343 = vmatpush1.bf16.msra.mxu0 %v7163
    %8344 = vmatprep.subr.bf16.mxu0 %v7160
    %8345 = vmatpush1.bf16.msra.mxu0 %v7159
    %8346 = vmatprep.subr.bf16.mxu0 %v7156
    %8347 = vmatpush1.bf16.msra.mxu0 %v7155
    %8348 = vmatprep.subr.bf16.mxu0 %v7152
    %8349 = vmatpush1.bf16.msra.mxu0 %v7151
    %8350 = vmatprep.subr.bf16.mxu0 %v7148
    %8351 = vmatpush1.bf16.msra.mxu0 %v7147
    %8352 = vmatprep.subr.bf16.mxu0 %v7208
    %8353 = vmatpush2.bf16.msra.mxu0 %v7207
    %8354 = vmatprep.subr.bf16.mxu0 %v7204
    %8355 = vmatpush2.bf16.msra.mxu0 %v7203
    %8356 = vmatprep.subr.bf16.mxu0 %v7200
    %8357 = vmatpush2.bf16.msra.mxu0 %v7199
    %8358 = vmatprep.subr.bf16.mxu0 %v7196
    %8359 = vmatpush2.bf16.msra.mxu0 %v7195
    %8360 = vmatprep.subr.bf16.mxu0 %v7192
    %8361 = vmatpush2.bf16.msra.mxu0 %v7191
    %8362 = vmatprep.subr.bf16.mxu0 %v7188
    %8363 = vmatpush2.bf16.msra.mxu0 %v7187
    %8364 = vmatprep.subr.bf16.mxu0 %v7184
    %8365 = vmatpush2.bf16.msra.mxu0 %v7183
    %8366 = vmatprep.subr.bf16.mxu0 %v7180
    %8367 = vmatpush2.bf16.msra.mxu0 %v7179
    %8368 = vmatprep.mubr.bf16.mxu0 %v5144
    %8369 = vmatmul.mubr.bf16.gmra.mxu0 %v5143
    %v8370 = vpop.f32.mrf.mxu0
    %v8371 = vadd.f32 %v8330, %v8370
    %v8372 = vpop.f32.mrf.mxu0
    %v8373 = vadd.f32 %v8332, %v8372
    %v8374 = vpop.f32.mrf.mxu0
    %v8375 = vpop.f32.mrf.mxu0
    %8376 = vdwg.mxu0
    %v8377 = vld [vmem:[#allocation8] sm:$0xf]
    %v8379 = vlaneseq
    %v8380 = vshrl.u32 %v8379, 7
    %v8381 = vsub.s32 0, %v8380
    %v8382 = vrot.slane %v8377, %v8381
    %v8383 = vlaneseq
    %v8384 = vshrl.u32 %v8383, 7
    %v8385 = vsub.s32 1, %v8384
    %v8386 = vrot.slane %v8377, %v8385
    %v8387 = vlaneseq
    %v8388 = vshrl.u32 %v8387, 7
    %v8389 = vsub.s32 2, %v8388
    %v8390 = vrot.slane %v8377, %v8389
    %v8391 = vlaneseq
    %v8392 = vshrl.u32 %v8391, 7
    %v8393 = vsub.s32 3, %v8392
    %v8394 = vrot.slane %v8377, %v8393
    %v8399 = vadd.f32 %v8043, %v8382
    %v8400 = vadd.f32 %v8045, %v8386
    %v8401 = vadd.f32 %v8371, %v8390
    %v8402 = vadd.f32 %v8373, %v8394
    %v8403 = vmax.f32 %v8399, 0.0
    %v8404 = vmax.f32 %v8400, 0.0
    %v8405 = vmax.f32 %v8401, 0.0
    %v8406 = vmax.f32 %v8402, 0.0
    %v8407 = vld [vmem:[%s4] sm:$0xff]
    %v8408 = vld [vmem:[%s4 + $0x8] sm:$0xff]
    %v8409 = vld [vmem:[%s4 + $0x10] sm:$0xff]
    %v8410 = vld [vmem:[%s4 + $0x18] sm:$0xff]
    %v8411 = vld [vmem:[%s4 + $0x20] sm:$0xff]
    %v8412 = vld [vmem:[%s4 + $0x28] sm:$0xff]
    %v8413 = vld [vmem:[%s4 + $0x30] sm:$0xff]
    %v8414 = vld [vmem:[%s4 + $0x38] sm:$0xff]
    %v8415 = vld [vmem:[%s4 + $0x40] sm:$0xff]
    %v8416 = vld [vmem:[%s4 + $0x48] sm:$0xff]
    %v8417 = vld [vmem:[%s4 + $0x50] sm:$0xff]
    %v8418 = vld [vmem:[%s4 + $0x58] sm:$0xff]
    %v8419 = vld [vmem:[%s4 + $0x60] sm:$0xff]
    %v8420 = vld [vmem:[%s4 + $0x68] sm:$0xff]
    %v8421 = vld [vmem:[%s4 + $0x70] sm:$0xff]
    %v8422 = vld [vmem:[%s4 + $0x78] sm:$0xff]
    %v8423 = vld [vmem:[%s4 + $0x80] sm:$0xff]
    %v8424 = vld [vmem:[%s4 + $0x88] sm:$0xff]
    %v8425 = vld [vmem:[%s4 + $0x90] sm:$0xff]
    %v8426 = vld [vmem:[%s4 + $0x98] sm:$0xff]
    %v8427 = vld [vmem:[%s4 + $0xa0] sm:$0xff]
    %v8428 = vld [vmem:[%s4 + $0xa8] sm:$0xff]
    %v8429 = vld [vmem:[%s4 + $0xb0] sm:$0xff]
    %v8430 = vld [vmem:[%s4 + $0xb8] sm:$0xff]
    %v8431 = vld [vmem:[%s4 + $0xc0] sm:$0xff]
    %v8432 = vld [vmem:[%s4 + $0xc8] sm:$0xff]
    %v8433 = vld [vmem:[%s4 + $0xd0] sm:$0xff]
    %v8434 = vld [vmem:[%s4 + $0xd8] sm:$0xff]
    %v8435 = vld [vmem:[%s4 + $0xe0] sm:$0xff]
    %v8436 = vld [vmem:[%s4 + $0xe8] sm:$0xff]
    %v8437 = vld [vmem:[%s4 + $0xf0] sm:$0xff]
    %v8438 = vld [vmem:[%s4 + $0xf8] sm:$0xff]
    %v8439 = vld [vmem:[%s4 + $0x100] sm:$0xff]
    %v8440 = vld [vmem:[%s4 + $0x108] sm:$0xff]
    %v8441 = vld [vmem:[%s4 + $0x110] sm:$0xff]
    %v8442 = vld [vmem:[%s4 + $0x118] sm:$0xff]
    %v8443 = vld [vmem:[%s4 + $0x120] sm:$0xff]
    %v8444 = vld [vmem:[%s4 + $0x128] sm:$0xff]
    %v8445 = vld [vmem:[%s4 + $0x130] sm:$0xff]
    %v8446 = vld [vmem:[%s4 + $0x138] sm:$0xff]
    %v8447 = vld [vmem:[%s4 + $0x140] sm:$0xff]
    %v8448 = vld [vmem:[%s4 + $0x148] sm:$0xff]
    %v8449 = vld [vmem:[%s4 + $0x150] sm:$0xff]
    %v8450 = vld [vmem:[%s4 + $0x158] sm:$0xff]
    %v8451 = vld [vmem:[%s4 + $0x160] sm:$0xff]
    %v8452 = vld [vmem:[%s4 + $0x168] sm:$0xff]
    %v8453 = vld [vmem:[%s4 + $0x170] sm:$0xff]
    %v8454 = vld [vmem:[%s4 + $0x178] sm:$0xff]
    %v8455 = vld [vmem:[%s4 + $0x180] sm:$0xff]
    %v8456 = vld [vmem:[%s4 + $0x188] sm:$0xff]
    %v8457 = vld [vmem:[%s4 + $0x190] sm:$0xff]
    %v8458 = vld [vmem:[%s4 + $0x198] sm:$0xff]
    %v8459 = vld [vmem:[%s4 + $0x1a0] sm:$0xff]
    %v8460 = vld [vmem:[%s4 + $0x1a8] sm:$0xff]
    %v8461 = vld [vmem:[%s4 + $0x1b0] sm:$0xff]
    %v8462 = vld [vmem:[%s4 + $0x1b8] sm:$0xff]
    %v8463 = vld [vmem:[%s4 + $0x1c0] sm:$0xff]
    %v8464 = vld [vmem:[%s4 + $0x1c8] sm:$0xff]
    %v8465 = vld [vmem:[%s4 + $0x1d0] sm:$0xff]
    %v8466 = vld [vmem:[%s4 + $0x1d8] sm:$0xff]
    %v8467 = vld [vmem:[%s4 + $0x1e0] sm:$0xff]
    %v8468 = vld [vmem:[%s4 + $0x1e8] sm:$0xff]
    %v8469 = vld [vmem:[%s4 + $0x1f0] sm:$0xff]
    %v8470 = vld [vmem:[%s4 + $0x1f8] sm:$0xff]
    %v8471 = vld [vmem:[#allocation10] sm:$0x1]
    %v8473 = vlaneseq
    %v8474 = vshrl.u32 %v8473, 7
    %v8475 = vsub.s32 0, %v8474
    %v8476 = vrot.slane %v8471, %v8475
    %8478 = vmatprep.subr.mxu0 0.0
    %8479 = vmatpush1.msra.mxu0 %v8422
    %8480 = vmatprep.subr.mxu0 0.0
    %8481 = vmatpush1.msra.mxu0 %v8421
    %8482 = vmatprep.subr.mxu0 0.0
    %8483 = vmatpush1.msra.mxu0 %v8420
    %8484 = vmatprep.subr.mxu0 0.0
    %8485 = vmatpush1.msra.mxu0 %v8419
    %8486 = vmatprep.subr.mxu0 0.0
    %8487 = vmatpush1.msra.mxu0 %v8418
    %8488 = vmatprep.subr.mxu0 0.0
    %8489 = vmatpush1.msra.mxu0 %v8417
    %8490 = vmatprep.subr.mxu0 0.0
    %8491 = vmatpush1.msra.mxu0 %v8416
    %8492 = vmatprep.subr.mxu0 0.0
    %8493 = vmatpush1.msra.mxu0 %v8415
    %8494 = vmatprep.subr.mxu0 0.0
    %8495 = vmatpush1.msra.mxu0 %v8414
    %8496 = vmatprep.subr.mxu0 0.0
    %8497 = vmatpush1.msra.mxu0 %v8413
    %8498 = vmatprep.subr.mxu0 0.0
    %8499 = vmatpush1.msra.mxu0 %v8412
    %8500 = vmatprep.subr.mxu0 0.0
    %8501 = vmatpush1.msra.mxu0 %v8411
    %8502 = vmatprep.subr.mxu0 0.0
    %8503 = vmatpush1.msra.mxu0 %v8410
    %8504 = vmatprep.subr.mxu0 0.0
    %8505 = vmatpush1.msra.mxu0 %v8409
    %8506 = vmatprep.subr.mxu0 0.0
    %8507 = vmatpush1.msra.mxu0 %v8408
    %8508 = vmatprep.subr.mxu0 0.0
    %8509 = vmatpush1.msra.mxu0 %v8407
    %8510 = vmatprep.subr.mxu0 0.0
    %8511 = vmatpush2.msra.mxu0 %v8438
    %8512 = vmatprep.subr.mxu0 0.0
    %8513 = vmatpush2.msra.mxu0 %v8437
    %8514 = vmatprep.subr.mxu0 0.0
    %8515 = vmatpush2.msra.mxu0 %v8436
    %8516 = vmatprep.subr.mxu0 0.0
    %8517 = vmatpush2.msra.mxu0 %v8435
    %8518 = vmatprep.subr.mxu0 0.0
    %8519 = vmatpush2.msra.mxu0 %v8434
    %8520 = vmatprep.subr.mxu0 0.0
    %8521 = vmatpush2.msra.mxu0 %v8433
    %8522 = vmatprep.subr.mxu0 0.0
    %8523 = vmatpush2.msra.mxu0 %v8432
    %8524 = vmatprep.subr.mxu0 0.0
    %8525 = vmatpush2.msra.mxu0 %v8431
    %8526 = vmatprep.subr.mxu0 0.0
    %8527 = vmatpush2.msra.mxu0 %v8430
    %8528 = vmatprep.subr.mxu0 0.0
    %8529 = vmatpush2.msra.mxu0 %v8429
    %8530 = vmatprep.subr.mxu0 0.0
    %8531 = vmatpush2.msra.mxu0 %v8428
    %8532 = vmatprep.subr.mxu0 0.0
    %8533 = vmatpush2.msra.mxu0 %v8427
    %8534 = vmatprep.subr.mxu0 0.0
    %8535 = vmatpush2.msra.mxu0 %v8426
    %8536 = vmatprep.subr.mxu0 0.0
    %8537 = vmatpush2.msra.mxu0 %v8425
    %8538 = vmatprep.subr.mxu0 0.0
    %8539 = vmatpush2.msra.mxu0 %v8424
    %8540 = vmatprep.subr.mxu0 0.0
    %8541 = vmatpush2.msra.mxu0 %v8423
    %8542 = vmatprep.mubr.f32.mxu0 %v8404
    %8543 = vmatmul.mubr.f32.gmra.mxu0 %v8403
    %v8544 = vpop.f32.mrf.mxu0
    %v8545 = vadd.f32 %v8476, %v8544
    %v8546 = vpop.f32.mrf.mxu0
    %8547 = vdwg.mxu0
    %8548 = vmatprep.subr.mxu0 0.0
    %8549 = vmatpush1.msra.mxu0 %v8454
    %8550 = vmatprep.subr.mxu0 0.0
    %8551 = vmatpush1.msra.mxu0 %v8453
    %8552 = vmatprep.subr.mxu0 0.0
    %8553 = vmatpush1.msra.mxu0 %v8452
    %8554 = vmatprep.subr.mxu0 0.0
    %8555 = vmatpush1.msra.mxu0 %v8451
    %8556 = vmatprep.subr.mxu0 0.0
    %8557 = vmatpush1.msra.mxu0 %v8450
    %8558 = vmatprep.subr.mxu0 0.0
    %8559 = vmatpush1.msra.mxu0 %v8449
    %8560 = vmatprep.subr.mxu0 0.0
    %8561 = vmatpush1.msra.mxu0 %v8448
    %8562 = vmatprep.subr.mxu0 0.0
    %8563 = vmatpush1.msra.mxu0 %v8447
    %8564 = vmatprep.subr.mxu0 0.0
    %8565 = vmatpush1.msra.mxu0 %v8446
    %8566 = vmatprep.subr.mxu0 0.0
    %8567 = vmatpush1.msra.mxu0 %v8445
    %8568 = vmatprep.subr.mxu0 0.0
    %8569 = vmatpush1.msra.mxu0 %v8444
    %8570 = vmatprep.subr.mxu0 0.0
    %8571 = vmatpush1.msra.mxu0 %v8443
    %8572 = vmatprep.subr.mxu0 0.0
    %8573 = vmatpush1.msra.mxu0 %v8442
    %8574 = vmatprep.subr.mxu0 0.0
    %8575 = vmatpush1.msra.mxu0 %v8441
    %8576 = vmatprep.subr.mxu0 0.0
    %8577 = vmatpush1.msra.mxu0 %v8440
    %8578 = vmatprep.subr.mxu0 0.0
    %8579 = vmatpush1.msra.mxu0 %v8439
    %8580 = vmatprep.subr.mxu0 0.0
    %8581 = vmatpush2.msra.mxu0 %v8470
    %8582 = vmatprep.subr.mxu0 0.0
    %8583 = vmatpush2.msra.mxu0 %v8469
    %8584 = vmatprep.subr.mxu0 0.0
    %8585 = vmatpush2.msra.mxu0 %v8468
    %8586 = vmatprep.subr.mxu0 0.0
    %8587 = vmatpush2.msra.mxu0 %v8467
    %8588 = vmatprep.subr.mxu0 0.0
    %8589 = vmatpush2.msra.mxu0 %v8466
    %8590 = vmatprep.subr.mxu0 0.0
    %8591 = vmatpush2.msra.mxu0 %v8465
    %8592 = vmatprep.subr.mxu0 0.0
    %8593 = vmatpush2.msra.mxu0 %v8464
    %8594 = vmatprep.subr.mxu0 0.0
    %8595 = vmatpush2.msra.mxu0 %v8463
    %8596 = vmatprep.subr.mxu0 0.0
    %8597 = vmatpush2.msra.mxu0 %v8462
    %8598 = vmatprep.subr.mxu0 0.0
    %8599 = vmatpush2.msra.mxu0 %v8461
    %8600 = vmatprep.subr.mxu0 0.0
    %8601 = vmatpush2.msra.mxu0 %v8460
    %8602 = vmatprep.subr.mxu0 0.0
    %8603 = vmatpush2.msra.mxu0 %v8459
    %8604 = vmatprep.subr.mxu0 0.0
    %8605 = vmatpush2.msra.mxu0 %v8458
    %8606 = vmatprep.subr.mxu0 0.0
    %8607 = vmatpush2.msra.mxu0 %v8457
    %8608 = vmatprep.subr.mxu0 0.0
    %8609 = vmatpush2.msra.mxu0 %v8456
    %8610 = vmatprep.subr.mxu0 0.0
    %8611 = vmatpush2.msra.mxu0 %v8455
    %8612 = vmatprep.mubr.f32.mxu0 %v8406
    %8613 = vmatmul.mubr.f32.gmra.mxu0 %v8405
    %v8614 = vpop.f32.mrf.mxu0
    %v8615 = vadd.f32 %v8545, %v8614
    %v8616 = vpop.f32.mrf.mxu0
    %8617 = vdwg.mxu0
    %vm8618 = vcmask 9216
    %v8619 = vsel %vm8618, %v8615, -inf
    %8620 = vmax.xlane.f32.xlu0 %v8619
    %v8621 = vpop.xlane.xlu0 %8620
    %v8622 = vsub.f32 %v8615, %v8621
    %v8623 = vmul.f32 %v8622, 1.442695
    %v8624 = vpow.pop %v8623
    %v8625 = vsel %vm8618, %v8624, 0.0
    %8626 = vadd.xlane.f32.xlu0 %v8625
    %v8627 = vpop.xlane.xlu0 %8626
    %v8628 = vlog2.pop %v8627
    %v8629 = vmul.f32 %v8628, 0.6931472
    %v8630 = vsub.f32 %v8622, %v8629
    %8631 = vst.msk [vmem:[#allocation11] sm:$0x3] %vm8618, %v8630
    // Predicated region
    $region46: #{tpu_custom_call.1} parent=1 // pred_check
      _
    $region47: #{tpu_custom_call.1} parent=1 // pred_check_branch
      %8633 = sbr.rel (0) target = $region49
    $region48: #{tpu_custom_call.1} parent=1 // pred_region
      %s8635 = ssub.s32 32, 32
      %8636 = vsyncadd [#allocation4], %s8635
      %s8638 = sshll.u32 [#allocation11], 4
      %s8639 = int_to_ptr.vmem [resolvable:$true] %s8638
      %8641 = dma.vmem_to_hbm [thread:$0]  %s8639, 32, %s6, [#allocation4]
    $region49: #{tpu_custom_call.1} parent=1 // pred_fallthru
      _
    // Predicated region
    $region50: #{tpu_custom_call.1} parent=1 // pred_check
      _
    $region51: #{tpu_custom_call.1} parent=1 // pred_check_branch
      %8643 = sbr.rel (0) target = $region53
    $region52: #{tpu_custom_call.1} parent=1 // pred_region
      %8644 = dma.done [#allocation4], 32
    $region53: #{tpu_custom_call.1} parent=1 // pred_fallthru
      _
    %8645 = vsyncpa [#allocation3], 1
    %8646 = vsyncpa [#allocation6], 1
    %8647 = vsyncpa [#allocation9], 1
    %8648 = vsyncpa [#allocation4], 1

</llo_original>
